<compile_context>
chip_gen: v6e
topology: v6e:2x2x1
jax: 0.10.0
libtpu: 0.0.40
codegen_flags: <defaults>
</compile_context>

<pallas_src>
import numpy as np
import jax
import jax.numpy as jnp
from jax.experimental import pallas as pl
from jax.experimental.pallas import tpu as pltpu

_EPS = 1e-5
_TOP = 8          # top halo rows (multiple of 8 -> aligned interior store)


# ----------------------------- fused Pallas kernel ------------------------------------


def _fused_backbone_kernel(
        x_ref,
        w1, b1, w2, b2, w3, b3, w6, b6, w7, b7, w8, b8, w9, b9,
        s8, t8, s16, t16,
        sw1, sh1, sw2, sh2, sw3, sh3,
        out_ref,
        pa, pb, pc):
    """Whole backbone forward for one image; all intermediates live in VMEM.

    Activations are (H, W*C) f32 values (lane index = w*C + c).
    pa/pb/pc are zero-halo scratch buffers used for the kh (row) taps of each conv.
    """
    # Zero the halo scratch once per grid step; only interior rows are ever written,
    # so the top/bottom halo rows stay zero for every conv of that stage.
    pa[...] = jnp.zeros_like(pa)
    pb[...] = jnp.zeros_like(pb)
    pc[...] = jnp.zeros_like(pc)

    def conv_bn_relu(p_ref, act, H, pad, w_ref, b_ref):
        # act: (H, W*Cin);  w_ref: (KH, W*Cin, W*Cout) banded, BN-scaled weights
        # b_ref: (1, W*Cout) fused conv-bias + BN bias row.
        KH = w_ref.shape[0]
        p_ref[_TOP:_TOP + H, :] = act                       # aligned interior store
        acc = jnp.zeros((H, w_ref.shape[2]), jnp.float32)
        for kh in range(KH):                                # KH shifted row reads
            r0 = _TOP + kh - pad
            acc = acc + jnp.dot(p_ref[r0:r0 + H, :], w_ref[kh],
                                preferred_element_type=jnp.float32)
        return jnp.maximum(acc + b_ref[...], 0.0)

    def maxpool2x2(x, sw_ref, sh_ref):
        # x: (H, W*C) -> (H//2, (W//2)*C) via exact 0/1 selection matmuls + max.
        zw = jnp.maximum(
            jnp.dot(x, sw_ref[0], preferred_element_type=jnp.float32),
            jnp.dot(x, sw_ref[1], preferred_element_type=jnp.float32))
        return jnp.maximum(
            jnp.dot(sh_ref[0], zw, preferred_element_type=jnp.float32),
            jnp.dot(sh_ref[1], zw, preferred_element_type=jnp.float32))

    def add_bn_relu(a, b, s_ref, t_ref):
        return jnp.maximum((a + b) * s_ref[...] + t_ref[...], 0.0)

    x0 = x_ref[...].reshape(32, 32)                      # (H, W*Cin), Cin = 1

    a1 = conv_bn_relu(pa, x0, 32, 2, w1, b1)             # (32, 32*8)
    p1 = maxpool2x2(a1, sw1, sh1)                        # out1: (16, 16*8)

    a2 = conv_bn_relu(pb, p1, 16, 1, w2, b2)             # out2
    a3 = conv_bn_relu(pb, a2, 16, 1, w3, b3)
    o3 = add_bn_relu(a3, p1, s8, t8)                     # out3
    a4 = conv_bn_relu(pb, o3, 16, 1, w2, b2)             # c2 weights reused (out4)
    a5 = conv_bn_relu(pb, a4, 16, 1, w3, b3)             # c3 weights reused
    o5 = add_bn_relu(a5, o3, s8, t8)                     # out5
    a6 = conv_bn_relu(pb, o5, 16, 1, w6, b6)             # (16, 16*16)
    p6 = maxpool2x2(a6, sw2, sh2)                        # out6: (8, 8*16)

    a7 = conv_bn_relu(pc, p6, 8, 1, w7, b7)              # out7
    a8 = conv_bn_relu(pc, a7, 8, 1, w8, b8)
    o8 = add_bn_relu(a8, p6, s16, t16)                   # out8
    a9 = conv_bn_relu(pc, o8, 8, 1, w9, b9)              # (8, 8*32)
    p9 = maxpool2x2(a9, sw3, sh3)                        # out9: (4, 4*32)

    out_ref[...] = p9.reshape(1, 4, 128)


# ----------------------------- one-time parameter re-layout ---------------------------


def prepare_params(params):
    """Fold BN (eval mode) into the convs and re-layout weights into the fused-kernel
    operand set (banded conv matrices, bias rows, pool selection matrices)."""

    def fold_scale_bias(bn, conv_b=None):
        g, be, m, v = bn
        scale = g / jnp.sqrt(v + _EPS)
        bias = (be - m * scale) if conv_b is None else ((conv_b - m) * scale + be)
        return scale.astype(jnp.float32), bias.astype(jnp.float32)

    def banded_conv(conv, bn, W, pad):
        w, b = conv                                    # (Cout, Cin, KH, KW), (Cout,)
        scale, bias = fold_scale_bias(bn, b)
        Cout, Cin, KH, KW = w.shape
        wt = jnp.transpose(w, (2, 3, 1, 0)).astype(jnp.float32) * scale  # (KH,KW,Cin,Cout)
        wp_i = np.arange(W)[:, None]                   # source column w'
        w_i = np.arange(W)[None, :]                    # output column w
        kw = wp_i - w_i + pad                          # (W, W)
        valid = jnp.asarray(((kw >= 0) & (kw < KW)).astype(np.float32))
        kw_c = np.clip(kw, 0, KW - 1)
        # band[kh, w'*Cin+ci, w*Cout+co] = wt[kh, w'-w+pad, ci, co] (0 outside the band
        # -> left/right conv zero-padding handled implicitly).
        band = wt[:, kw_c, :, :] * valid[None, :, :, None, None]   # (KH, W, W, Cin, Cout)
        band = jnp.transpose(band, (0, 1, 3, 2, 4)).reshape(KH, W * Cin, W * Cout)
        brow = jnp.tile(bias, W).reshape(1, W * Cout)
        return band, brow

    def bn_rows(bn, W):
        scale, bias = fold_scale_bias(bn)
        return (jnp.tile(scale, W).reshape(1, -1), jnp.tile(bias, W).reshape(1, -1))

    def pool_selectors(H, W, C):
        a = np.arange(W * C)[:, None]
        b = np.arange((W // 2) * C)[None, :]
        same_c = (a % C) == (b % C)
        swe = ((a // C) == 2 * (b // C)) & same_c
        swo = ((a // C) == 2 * (b // C) + 1) & same_c
        sw = jnp.asarray(np.stack([swe, swo]).astype(np.float32))   # (2, W*C, (W//2)*C)
        i = np.arange(H // 2)[:, None]
        j = np.arange(H)[None, :]
        sh = jnp.asarray(np.stack([j == 2 * i, j == 2 * i + 1]).astype(np.float32))
        return sw, sh                                                # sh: (2, H//2, H)

    bn8, bn16, bn32 = params["bn8"], params["bn16"], params["bn32"]
    w1, b1 = banded_conv(params["c1"], bn8, 32, 2)
    w2, b2 = banded_conv(params["c2"], bn8, 16, 1)
    w3, b3 = banded_conv(params["c3"], bn8, 16, 1)
    w6, b6 = banded_conv(params["c6"], bn16, 16, 1)
    w7, b7 = banded_conv(params["c7"], bn16, 8, 1)
    w8, b8 = banded_conv(params["c8"], bn16, 8, 1)
    w9, b9 = banded_conv(params["c9"], bn32, 8, 1)
    s8, t8 = bn_rows(bn8, 16)
    s16, t16 = bn_rows(bn16, 8)
    sw1, sh1 = pool_selectors(32, 32, 8)
    sw2, sh2 = pool_selectors(16, 16, 16)
    sw3, sh3 = pool_selectors(8, 8, 32)
    return dict(w1=w1, b1=b1, w2=w2, b2=b2, w3=w3, b3=b3, w6=w6, b6=b6,
                w7=w7, b7=b7, w8=w8, b8=b8, w9=w9, b9=b9,
                s8=s8, t8=t8, s16=s16, t16=t16,
                sw1=sw1, sh1=sh1, sw2=sw2, sh2=sh2, sw3=sw3, sh3=sh3)


# ----------------------------- forward wrapper -----------------------------------------


def rpnheatmap_forward(prepped, x_nchw):
    """rpnheatmap.forward(x) == backboneFeature.forward(x); NCHW in / NCHW out."""
    N = x_nchw.shape[0]
    x = x_nchw.astype(jnp.float32)

    names = ("w1", "b1", "w2", "b2", "w3", "b3", "w6", "b6", "w7", "b7",
             "w8", "b8", "w9", "b9", "s8", "t8", "s16", "t16",
             "sw1", "sh1", "sw2", "sh2", "sw3", "sh3")
    const_ops = [prepped[k] for k in names]

    def _const_spec(a):
        return pl.BlockSpec(a.shape, lambda n, _nd=a.ndim: (0,) * _nd)

    out = pl.pallas_call(
        _fused_backbone_kernel,
        out_shape=jax.ShapeDtypeStruct((N, 4, 128), jnp.float32),
        grid=(N,),
        in_specs=[pl.BlockSpec((1, 1, 32, 32), lambda n: (n, 0, 0, 0))]
        + [_const_spec(a) for a in const_ops],
        out_specs=pl.BlockSpec((1, 4, 128), lambda n: (n, 0, 0)),
        scratch_shapes=[
            pltpu.VMEM((48, 32), jnp.float32),    # stage A halo buffer (32x32, Cin=1)
            pltpu.VMEM((32, 128), jnp.float32),   # stage B halo buffer (16x16, Cin=8)
            pltpu.VMEM((24, 128), jnp.float32),   # stage C halo buffer (8x8, Cin=16)
        ],
        compiler_params=pltpu.CompilerParams(
            dimension_semantics=("parallel",)),   # one image per TensorCore on v7x
    )(x, *const_ops)

    # (N, 4, 4*32) lane-dense kernel output -> NCHW (N, 32, 4, 4)  (tiny XLA transpose)
    return jnp.transpose(out.reshape(N, 4, 4, 32), (0, 3, 1, 2))


# ----------------------------- params / reference --------------------------------------


def init_params(key):
    def conv_init(k, cout, cin, ks):
        k1, k2 = jax.random.split(k)
        bound = 1.0 / np.sqrt(cin * ks * ks)
        w = jax.random.uniform(k1, (cout, cin, ks, ks), jnp.float32, -bound, bound)
        b = jax.random.uniform(k2, (cout,), jnp.float32, -bound, bound)
        return w, b

    def bn_init(k, c):
        k1, k2, k3, k4 = jax.random.split(k, 4)
        gamma = jax.random.uniform(k1, (c,), jnp.float32, 0.5, 1.5)
        beta = 0.1 * jax.random.normal(k2, (c,), jnp.float32)
        mean = 0.1 * jax.random.normal(k3, (c,), jnp.float32)
        var = jax.random.uniform(k4, (c,), jnp.float32, 0.5, 1.5)
        return (gamma, beta, mean, var)

    keys = jax.random.split(key, 10)
    return {
        "c1": conv_init(keys[0], 8, 1, 5),
        "c2": conv_init(keys[1], 8, 8, 3),
        "c3": conv_init(keys[2], 8, 8, 3),
        "c6": conv_init(keys[3], 16, 8, 3),
        "c7": conv_init(keys[4], 16, 16, 3),
        "c8": conv_init(keys[5], 16, 16, 3),
        "c9": conv_init(keys[6], 32, 16, 3),
        "bn8": bn_init(keys[7], 8),
        "bn16": bn_init(keys[8], 16),
        "bn32": bn_init(keys[9], 32),
    }


def _conv_ref(x, w, b, pad):
    y = jax.lax.conv_general_dilated(
        x, w, window_strides=(1, 1), padding=[(pad, pad), (pad, pad)],
        dimension_numbers=("NCHW", "OIHW", "NCHW"))
    return y + b[None, :, None, None]


def _bn_ref(x, bn):
    g, be, m, v = bn
    inv = g / jnp.sqrt(v + _EPS)
    return (x - m[None, :, None, None]) * inv[None, :, None, None] + be[None, :, None, None]


def _pool_ref(x):
    return jax.lax.reduce_window(x, -jnp.inf, jax.lax.max,
                                 (1, 1, 2, 2), (1, 1, 2, 2), "VALID")


def reference_forward(params, x):
    r = jax.nn.relu
    bn8, bn16, bn32 = params["bn8"], params["bn16"], params["bn32"]
    c1, c2, c3 = params["c1"], params["c2"], params["c3"]
    c6, c7, c8, c9 = params["c6"], params["c7"], params["c8"], params["c9"]
    out1 = _pool_ref(r(_bn_ref(_conv_ref(x, *c1, 2), bn8)))
    out2 = r(_bn_ref(_conv_ref(out1, *c2, 1), bn8))
    out3 = r(_bn_ref(_conv_ref(out2, *c3, 1), bn8))
    out3 = r(_bn_ref(out3 + out1, bn8))
    out4 = r(_bn_ref(_conv_ref(out3, *c2, 1), bn8))
    out5 = r(_bn_ref(_conv_ref(out4, *c3, 1), bn8))
    out5 = r(_bn_ref(out5 + out3, bn8))
    out6 = _pool_ref(r(_bn_ref(_conv_ref(out5, *c6, 1), bn16)))
    out7 = r(_bn_ref(_conv_ref(out6, *c7, 1), bn16))
    out8 = r(_bn_ref(_conv_ref(out7, *c8, 1), bn16))
    out8 = r(_bn_ref(out8 + out6, bn16))
    out9 = _pool_ref(r(_bn_ref(_conv_ref(out8, *c9, 1), bn32)))
    return out9


# ----------------------------- main -----------------------------------------------------


if __name__ == "__main__":
    key = jax.random.PRNGKey(0)
    pkey, xkey = jax.random.split(key)
    params = init_params(pkey)
    # backbone expects 32x32 inputs (fc is sized for 32*4*4 features after 3 pools)
    x = jax.random.normal(xkey, (2, 1, 32, 32), jnp.float32)

    prepped = prepare_params(params)          # one-time weight re-layout, off the hot path
    fwd = jax.jit(rpnheatmap_forward)
    out = jax.block_until_ready(fwd(prepped, x))
    assert out.shape == (2, 32, 4, 4), out.shape
    assert out.dtype == jnp.float32

    # correctness check against a pure-JAX (XLA) reference of the PyTorch forward
    ref = jax.block_until_ready(jax.jit(reference_forward)(params, x))
    np.testing.assert_allclose(np.asarray(out), np.asarray(ref), rtol=1e-3, atol=1e-3)

    print("KERNEL_OK")
</pallas_src>

<mosaic_0001>
module attributes {stable_mosaic.version = 11 : i64} {
  func.func @_fused_backbone_kernel(%arg0: i32, %arg1: memref<1x1x32x32xf32, #tpu.memory_space<vmem>>, %arg2: memref<5x32x256xf32, #tpu.memory_space<vmem>>, %arg3: memref<1x256xf32, #tpu.memory_space<vmem>>, %arg4: memref<3x128x128xf32, #tpu.memory_space<vmem>>, %arg5: memref<1x128xf32, #tpu.memory_space<vmem>>, %arg6: memref<3x128x128xf32, #tpu.memory_space<vmem>>, %arg7: memref<1x128xf32, #tpu.memory_space<vmem>>, %arg8: memref<3x128x256xf32, #tpu.memory_space<vmem>>, %arg9: memref<1x256xf32, #tpu.memory_space<vmem>>, %arg10: memref<3x128x128xf32, #tpu.memory_space<vmem>>, %arg11: memref<1x128xf32, #tpu.memory_space<vmem>>, %arg12: memref<3x128x128xf32, #tpu.memory_space<vmem>>, %arg13: memref<1x128xf32, #tpu.memory_space<vmem>>, %arg14: memref<3x128x256xf32, #tpu.memory_space<vmem>>, %arg15: memref<1x256xf32, #tpu.memory_space<vmem>>, %arg16: memref<1x128xf32, #tpu.memory_space<vmem>>, %arg17: memref<1x128xf32, #tpu.memory_space<vmem>>, %arg18: memref<1x128xf32, #tpu.memory_space<vmem>>, %arg19: memref<1x128xf32, #tpu.memory_space<vmem>>, %arg20: memref<2x256x128xf32, #tpu.memory_space<vmem>>, %arg21: memref<2x16x32xf32, #tpu.memory_space<vmem>>, %arg22: memref<2x256x128xf32, #tpu.memory_space<vmem>>, %arg23: memref<2x8x16xf32, #tpu.memory_space<vmem>>, %arg24: memref<2x256x128xf32, #tpu.memory_space<vmem>>, %arg25: memref<2x4x8xf32, #tpu.memory_space<vmem>>, %arg26: memref<1x4x128xf32, #tpu.memory_space<vmem>>, %arg27: memref<48x32xf32, #tpu.memory_space<vmem>>, %arg28: memref<32x128xf32, #tpu.memory_space<vmem>>, %arg29: memref<24x128xf32, #tpu.memory_space<vmem>>) attributes {dimension_semantics = [#tpu.dimension_semantics<parallel>], iteration_bounds = array<i64: 2>, scalar_prefetch = 0 : i64, scratch_operands = 3 : i64, tpu.core_type = #tpu.core_type<tc>, window_params = [{transform_indices = @transform_0, window_bounds = array<i64: 1, 1, 32, 32>}, {pipeline_mode = #tpu.pipeline_mode<synchronous>, transform_indices = @transform_1, window_bounds = array<i64: 5, 32, 256>}, {pipeline_mode = #tpu.pipeline_mode<synchronous>, transform_indices = @transform_2, window_bounds = array<i64: 1, 256>}, {pipeline_mode = #tpu.pipeline_mode<synchronous>, transform_indices = @transform_3, window_bounds = array<i64: 3, 128, 128>}, {pipeline_mode = #tpu.pipeline_mode<synchronous>, transform_indices = @transform_4, window_bounds = array<i64: 1, 128>}, {pipeline_mode = #tpu.pipeline_mode<synchronous>, transform_indices = @transform_5, window_bounds = array<i64: 3, 128, 128>}, {pipeline_mode = #tpu.pipeline_mode<synchronous>, transform_indices = @transform_6, window_bounds = array<i64: 1, 128>}, {pipeline_mode = #tpu.pipeline_mode<synchronous>, transform_indices = @transform_7, window_bounds = array<i64: 3, 128, 256>}, {pipeline_mode = #tpu.pipeline_mode<synchronous>, transform_indices = @transform_8, window_bounds = array<i64: 1, 256>}, {pipeline_mode = #tpu.pipeline_mode<synchronous>, transform_indices = @transform_9, window_bounds = array<i64: 3, 128, 128>}, {pipeline_mode = #tpu.pipeline_mode<synchronous>, transform_indices = @transform_10, window_bounds = array<i64: 1, 128>}, {pipeline_mode = #tpu.pipeline_mode<synchronous>, transform_indices = @transform_11, window_bounds = array<i64: 3, 128, 128>}, {pipeline_mode = #tpu.pipeline_mode<synchronous>, transform_indices = @transform_12, window_bounds = array<i64: 1, 128>}, {pipeline_mode = #tpu.pipeline_mode<synchronous>, transform_indices = @transform_13, window_bounds = array<i64: 3, 128, 256>}, {pipeline_mode = #tpu.pipeline_mode<synchronous>, transform_indices = @transform_14, window_bounds = array<i64: 1, 256>}, {pipeline_mode = #tpu.pipeline_mode<synchronous>, transform_indices = @transform_15, window_bounds = array<i64: 1, 128>}, {pipeline_mode = #tpu.pipeline_mode<synchronous>, transform_indices = @transform_16, window_bounds = array<i64: 1, 128>}, {pipeline_mode = #tpu.pipeline_mode<synchronous>, transform_indices = @transform_17, window_bounds = array<i64: 1, 128>}, {pipeline_mode = #tpu.pipeline_mode<synchronous>, transform_indices = @transform_18, window_bounds = array<i64: 1, 128>}, {pipeline_mode = #tpu.pipeline_mode<synchronous>, transform_indices = @transform_19, window_bounds = array<i64: 2, 256, 128>}, {pipeline_mode = #tpu.pipeline_mode<synchronous>, transform_indices = @transform_20, window_bounds = array<i64: 2, 16, 32>}, {pipeline_mode = #tpu.pipeline_mode<synchronous>, transform_indices = @transform_21, window_bounds = array<i64: 2, 256, 128>}, {pipeline_mode = #tpu.pipeline_mode<synchronous>, transform_indices = @transform_22, window_bounds = array<i64: 2, 8, 16>}, {pipeline_mode = #tpu.pipeline_mode<synchronous>, transform_indices = @transform_23, window_bounds = array<i64: 2, 256, 128>}, {pipeline_mode = #tpu.pipeline_mode<synchronous>, transform_indices = @transform_24, window_bounds = array<i64: 2, 4, 8>}, {transform_indices = @transform_25, window_bounds = array<i64: 1, 4, 128>}]} {
    %cst = arith.constant 0.000000e+00 : f32
    %0 = vector.broadcast %cst : f32 to vector<48x32xf32>
    %c0 = arith.constant 0 : index
    %c0_0 = arith.constant 0 : index
    %1 = vector.load %arg27[%c0, %c0_0] : memref<48x32xf32, #tpu.memory_space<vmem>>, vector<48x32xf32>
    tpu.vector_store %arg27[%c0, %c0_0], %0 {strides = array<i32>} : memref<48x32xf32, #tpu.memory_space<vmem>>, vector<48x32xf32>,
    %cst_1 = arith.constant 0.000000e+00 : f32
    %2 = vector.broadcast %cst_1 : f32 to vector<32x128xf32>
    %c0_2 = arith.constant 0 : index
    %c0_3 = arith.constant 0 : index
    %3 = vector.load %arg28[%c0_2, %c0_3] : memref<32x128xf32, #tpu.memory_space<vmem>>, vector<32x128xf32>
    tpu.vector_store %arg28[%c0_2, %c0_3], %2 {strides = array<i32>} : memref<32x128xf32, #tpu.memory_space<vmem>>, vector<32x128xf32>,
    %cst_4 = arith.constant 0.000000e+00 : f32
    %4 = vector.broadcast %cst_4 : f32 to vector<24x128xf32>
    %c0_5 = arith.constant 0 : index
    %c0_6 = arith.constant 0 : index
    %5 = vector.load %arg29[%c0_5, %c0_6] : memref<24x128xf32, #tpu.memory_space<vmem>>, vector<24x128xf32>
    tpu.vector_store %arg29[%c0_5, %c0_6], %4 {strides = array<i32>} : memref<24x128xf32, #tpu.memory_space<vmem>>, vector<24x128xf32>,
    %c0_7 = arith.constant 0 : index
    %c0_8 = arith.constant 0 : index
    %c0_9 = arith.constant 0 : index
    %c0_10 = arith.constant 0 : index
    %6 = vector.load %arg1[%c0_7, %c0_8, %c0_9, %c0_10] : memref<1x1x32x32xf32, #tpu.memory_space<vmem>>, vector<1x1x32x32xf32>
    %7 = vector.shape_cast %6 : vector<1x1x32x32xf32> to vector<32x32xf32>
    %c8 = arith.constant 8 : index
    %c0_11 = arith.constant 0 : index
    %8 = vector.load %arg27[%c8, %c0_11] : memref<48x32xf32, #tpu.memory_space<vmem>>, vector<32x32xf32>
    tpu.vector_store %arg27[%c8, %c0_11], %7 {strides = array<i32>} : memref<48x32xf32, #tpu.memory_space<vmem>>, vector<32x32xf32>,
    %cst_12 = arith.constant 0.000000e+00 : f32
    %9 = vector.broadcast %cst_12 : f32 to vector<32x256xf32>
    %c6 = arith.constant 6 : index
    %c0_13 = arith.constant 0 : index
    %10 = vector.load %arg27[%c6, %c0_13] : memref<48x32xf32, #tpu.memory_space<vmem>>, vector<32x32xf32>
    %c0_14 = arith.constant 0 : index
    %c0_15 = arith.constant 0 : index
    %c0_16 = arith.constant 0 : index
    %11 = vector.load %arg2[%c0_14, %c0_15, %c0_16] : memref<5x32x256xf32, #tpu.memory_space<vmem>>, vector<1x32x256xf32>
    %12 = vector.shape_cast %11 : vector<1x32x256xf32> to vector<32x256xf32>
    %cst_17 = arith.constant dense<0.000000e+00> : vector<32x256xf32>
    %13 = tpu.matmul %10, %12, %cst_17 {dimension_numbers = #tpu.dot_dimension_numbers<[1], [0], [0], [1], [0, 0, 1, 1], [], []>} : vector<32x32xf32>, vector<32x256xf32>, vector<32x256xf32> -> vector<32x256xf32>
    %14 = arith.addf %9, %13 : vector<32x256xf32>
    %c7 = arith.constant 7 : index
    %c0_18 = arith.constant 0 : index
    %15 = vector.load %arg27[%c7, %c0_18] : memref<48x32xf32, #tpu.memory_space<vmem>>, vector<32x32xf32>
    %c1 = arith.constant 1 : index
    %c0_19 = arith.constant 0 : index
    %c0_20 = arith.constant 0 : index
    %16 = vector.load %arg2[%c1, %c0_19, %c0_20] : memref<5x32x256xf32, #tpu.memory_space<vmem>>, vector<1x32x256xf32>
    %17 = vector.shape_cast %16 : vector<1x32x256xf32> to vector<32x256xf32>
    %cst_21 = arith.constant dense<0.000000e+00> : vector<32x256xf32>
    %18 = tpu.matmul %15, %17, %cst_21 {dimension_numbers = #tpu.dot_dimension_numbers<[1], [0], [0], [1], [0, 0, 1, 1], [], []>} : vector<32x32xf32>, vector<32x256xf32>, vector<32x256xf32> -> vector<32x256xf32>
    %19 = arith.addf %14, %18 : vector<32x256xf32>
    %c8_22 = arith.constant 8 : index
    %c0_23 = arith.constant 0 : index
    %20 = vector.load %arg27[%c8_22, %c0_23] : memref<48x32xf32, #tpu.memory_space<vmem>>, vector<32x32xf32>
    %c2 = arith.constant 2 : index
    %c0_24 = arith.constant 0 : index
    %c0_25 = arith.constant 0 : index
    %21 = vector.load %arg2[%c2, %c0_24, %c0_25] : memref<5x32x256xf32, #tpu.memory_space<vmem>>, vector<1x32x256xf32>
    %22 = vector.shape_cast %21 : vector<1x32x256xf32> to vector<32x256xf32>
    %cst_26 = arith.constant dense<0.000000e+00> : vector<32x256xf32>
    %23 = tpu.matmul %20, %22, %cst_26 {dimension_numbers = #tpu.dot_dimension_numbers<[1], [0], [0], [1], [0, 0, 1, 1], [], []>} : vector<32x32xf32>, vector<32x256xf32>, vector<32x256xf32> -> vector<32x256xf32>
    %24 = arith.addf %19, %23 : vector<32x256xf32>
    %c9 = arith.constant 9 : index
    %c0_27 = arith.constant 0 : index
    %25 = vector.load %arg27[%c9, %c0_27] : memref<48x32xf32, #tpu.memory_space<vmem>>, vector<32x32xf32>
    %c3 = arith.constant 3 : index
    %c0_28 = arith.constant 0 : index
    %c0_29 = arith.constant 0 : index
    %26 = vector.load %arg2[%c3, %c0_28, %c0_29] : memref<5x32x256xf32, #tpu.memory_space<vmem>>, vector<1x32x256xf32>
    %27 = vector.shape_cast %26 : vector<1x32x256xf32> to vector<32x256xf32>
    %cst_30 = arith.constant dense<0.000000e+00> : vector<32x256xf32>
    %28 = tpu.matmul %25, %27, %cst_30 {dimension_numbers = #tpu.dot_dimension_numbers<[1], [0], [0], [1], [0, 0, 1, 1], [], []>} : vector<32x32xf32>, vector<32x256xf32>, vector<32x256xf32> -> vector<32x256xf32>
    %29 = arith.addf %24, %28 : vector<32x256xf32>
    %c10 = arith.constant 10 : index
    %c0_31 = arith.constant 0 : index
    %30 = vector.load %arg27[%c10, %c0_31] : memref<48x32xf32, #tpu.memory_space<vmem>>, vector<32x32xf32>
    %c4 = arith.constant 4 : index
    %c0_32 = arith.constant 0 : index
    %c0_33 = arith.constant 0 : index
    %31 = vector.load %arg2[%c4, %c0_32, %c0_33] : memref<5x32x256xf32, #tpu.memory_space<vmem>>, vector<1x32x256xf32>
    %32 = vector.shape_cast %31 : vector<1x32x256xf32> to vector<32x256xf32>
    %cst_34 = arith.constant dense<0.000000e+00> : vector<32x256xf32>
    %33 = tpu.matmul %30, %32, %cst_34 {dimension_numbers = #tpu.dot_dimension_numbers<[1], [0], [0], [1], [0, 0, 1, 1], [], []>} : vector<32x32xf32>, vector<32x256xf32>, vector<32x256xf32> -> vector<32x256xf32>
    %34 = arith.addf %29, %33 : vector<32x256xf32>
    %c0_35 = arith.constant 0 : index
    %c0_36 = arith.constant 0 : index
    %35 = vector.load %arg3[%c0_35, %c0_36] : memref<1x256xf32, #tpu.memory_space<vmem>>, vector<1x256xf32>
    %36 = vector.broadcast %35 : vector<1x256xf32> to vector<32x256xf32>
    %37 = arith.addf %34, %36 : vector<32x256xf32>
    %cst_37 = arith.constant 0.000000e+00 : f32
    %38 = vector.broadcast %cst_37 : f32 to vector<32x256xf32>
    %39 = arith.maximumf %37, %38 : vector<32x256xf32>
    %c0_38 = arith.constant 0 : index
    %c0_39 = arith.constant 0 : index
    %c0_40 = arith.constant 0 : index
    %40 = vector.load %arg20[%c0_38, %c0_39, %c0_40] : memref<2x256x128xf32, #tpu.memory_space<vmem>>, vector<1x256x128xf32>
    %41 = vector.shape_cast %40 : vector<1x256x128xf32> to vector<256x128xf32>
    %cst_41 = arith.constant dense<0.000000e+00> : vector<32x128xf32>
    %42 = tpu.matmul %39, %41, %cst_41 {dimension_numbers = #tpu.dot_dimension_numbers<[1], [0], [0], [1], [0, 0, 1, 1], [], []>} : vector<32x256xf32>, vector<256x128xf32>, vector<32x128xf32> -> vector<32x128xf32>
    %c1_42 = arith.constant 1 : index
    %c0_43 = arith.constant 0 : index
    %c0_44 = arith.constant 0 : index
    %43 = vector.load %arg20[%c1_42, %c0_43, %c0_44] : memref<2x256x128xf32, #tpu.memory_space<vmem>>, vector<1x256x128xf32>
    %44 = vector.shape_cast %43 : vector<1x256x128xf32> to vector<256x128xf32>
    %cst_45 = arith.constant dense<0.000000e+00> : vector<32x128xf32>
    %45 = tpu.matmul %39, %44, %cst_45 {dimension_numbers = #tpu.dot_dimension_numbers<[1], [0], [0], [1], [0, 0, 1, 1], [], []>} : vector<32x256xf32>, vector<256x128xf32>, vector<32x128xf32> -> vector<32x128xf32>
    %46 = arith.maximumf %42, %45 : vector<32x128xf32>
    %c0_46 = arith.constant 0 : index
    %c0_47 = arith.constant 0 : index
    %c0_48 = arith.constant 0 : index
    %47 = vector.load %arg21[%c0_46, %c0_47, %c0_48] : memref<2x16x32xf32, #tpu.memory_space<vmem>>, vector<1x16x32xf32>
    %48 = vector.shape_cast %47 : vector<1x16x32xf32> to vector<16x32xf32>
    %cst_49 = arith.constant dense<0.000000e+00> : vector<16x128xf32>
    %49 = tpu.matmul %48, %46, %cst_49 {dimension_numbers = #tpu.dot_dimension_numbers<[1], [0], [0], [1], [0, 0, 1, 1], [], []>} : vector<16x32xf32>, vector<32x128xf32>, vector<16x128xf32> -> vector<16x128xf32>
    %c1_50 = arith.constant 1 : index
    %c0_51 = arith.constant 0 : index
    %c0_52 = arith.constant 0 : index
    %50 = vector.load %arg21[%c1_50, %c0_51, %c0_52] : memref<2x16x32xf32, #tpu.memory_space<vmem>>, vector<1x16x32xf32>
    %51 = vector.shape_cast %50 : vector<1x16x32xf32> to vector<16x32xf32>
    %cst_53 = arith.constant dense<0.000000e+00> : vector<16x128xf32>
    %52 = tpu.matmul %51, %46, %cst_53 {dimension_numbers = #tpu.dot_dimension_numbers<[1], [0], [0], [1], [0, 0, 1, 1], [], []>} : vector<16x32xf32>, vector<32x128xf32>, vector<16x128xf32> -> vector<16x128xf32>
    %53 = arith.maximumf %49, %52 : vector<16x128xf32>
    %c8_54 = arith.constant 8 : index
    %c0_55 = arith.constant 0 : index
    %54 = vector.load %arg28[%c8_54, %c0_55] : memref<32x128xf32, #tpu.memory_space<vmem>>, vector<16x128xf32>
    tpu.vector_store %arg28[%c8_54, %c0_55], %53 {strides = array<i32>} : memref<32x128xf32, #tpu.memory_space<vmem>>, vector<16x128xf32>,
    %cst_56 = arith.constant 0.000000e+00 : f32
    %55 = vector.broadcast %cst_56 : f32 to vector<16x128xf32>
    %c7_57 = arith.constant 7 : index
    %c0_58 = arith.constant 0 : index
    %56 = vector.load %arg28[%c7_57, %c0_58] : memref<32x128xf32, #tpu.memory_space<vmem>>, vector<16x128xf32>
    %c0_59 = arith.constant 0 : index
    %c0_60 = arith.constant 0 : index
    %c0_61 = arith.constant 0 : index
    %57 = vector.load %arg4[%c0_59, %c0_60, %c0_61] : memref<3x128x128xf32, #tpu.memory_space<vmem>>, vector<1x128x128xf32>
    %58 = vector.shape_cast %57 : vector<1x128x128xf32> to vector<128x128xf32>
    %cst_62 = arith.constant dense<0.000000e+00> : vector<16x128xf32>
    %59 = tpu.matmul %56, %58, %cst_62 {dimension_numbers = #tpu.dot_dimension_numbers<[1], [0], [0], [1], [0, 0, 1, 1], [], []>} : vector<16x128xf32>, vector<128x128xf32>, vector<16x128xf32> -> vector<16x128xf32>
    %60 = arith.addf %55, %59 : vector<16x128xf32>
    %c8_63 = arith.constant 8 : index
    %c0_64 = arith.constant 0 : index
    %61 = vector.load %arg28[%c8_63, %c0_64] : memref<32x128xf32, #tpu.memory_space<vmem>>, vector<16x128xf32>
    %c1_65 = arith.constant 1 : index
    %c0_66 = arith.constant 0 : index
    %c0_67 = arith.constant 0 : index
    %62 = vector.load %arg4[%c1_65, %c0_66, %c0_67] : memref<3x128x128xf32, #tpu.memory_space<vmem>>, vector<1x128x128xf32>
    %63 = vector.shape_cast %62 : vector<1x128x128xf32> to vector<128x128xf32>
    %cst_68 = arith.constant dense<0.000000e+00> : vector<16x128xf32>
    %64 = tpu.matmul %61, %63, %cst_68 {dimension_numbers = #tpu.dot_dimension_numbers<[1], [0], [0], [1], [0, 0, 1, 1], [], []>} : vector<16x128xf32>, vector<128x128xf32>, vector<16x128xf32> -> vector<16x128xf32>
    %65 = arith.addf %60, %64 : vector<16x128xf32>
    %c9_69 = arith.constant 9 : index
    %c0_70 = arith.constant 0 : index
    %66 = vector.load %arg28[%c9_69, %c0_70] : memref<32x128xf32, #tpu.memory_space<vmem>>, vector<16x128xf32>
    %c2_71 = arith.constant 2 : index
    %c0_72 = arith.constant 0 : index
    %c0_73 = arith.constant 0 : index
    %67 = vector.load %arg4[%c2_71, %c0_72, %c0_73] : memref<3x128x128xf32, #tpu.memory_space<vmem>>, vector<1x128x128xf32>
    %68 = vector.shape_cast %67 : vector<1x128x128xf32> to vector<128x128xf32>
    %cst_74 = arith.constant dense<0.000000e+00> : vector<16x128xf32>
    %69 = tpu.matmul %66, %68, %cst_74 {dimension_numbers = #tpu.dot_dimension_numbers<[1], [0], [0], [1], [0, 0, 1, 1], [], []>} : vector<16x128xf32>, vector<128x128xf32>, vector<16x128xf32> -> vector<16x128xf32>
    %70 = arith.addf %65, %69 : vector<16x128xf32>
    %c0_75 = arith.constant 0 : index
    %c0_76 = arith.constant 0 : index
    %71 = vector.load %arg5[%c0_75, %c0_76] : memref<1x128xf32, #tpu.memory_space<vmem>>, vector<1x128xf32>
    %72 = vector.broadcast %71 : vector<1x128xf32> to vector<16x128xf32>
    %73 = arith.addf %70, %72 : vector<16x128xf32>
    %cst_77 = arith.constant 0.000000e+00 : f32
    %74 = vector.broadcast %cst_77 : f32 to vector<16x128xf32>
    %75 = arith.maximumf %73, %74 : vector<16x128xf32>
    %c8_78 = arith.constant 8 : index
    %c0_79 = arith.constant 0 : index
    %76 = vector.load %arg28[%c8_78, %c0_79] : memref<32x128xf32, #tpu.memory_space<vmem>>, vector<16x128xf32>
    tpu.vector_store %arg28[%c8_78, %c0_79], %75 {strides = array<i32>} : memref<32x128xf32, #tpu.memory_space<vmem>>, vector<16x128xf32>,
    %cst_80 = arith.constant 0.000000e+00 : f32
    %77 = vector.broadcast %cst_80 : f32 to vector<16x128xf32>
    %c7_81 = arith.constant 7 : index
    %c0_82 = arith.constant 0 : index
    %78 = vector.load %arg28[%c7_81, %c0_82] : memref<32x128xf32, #tpu.memory_space<vmem>>, vector<16x128xf32>
    %c0_83 = arith.constant 0 : index
    %c0_84 = arith.constant 0 : index
    %c0_85 = arith.constant 0 : index
    %79 = vector.load %arg6[%c0_83, %c0_84, %c0_85] : memref<3x128x128xf32, #tpu.memory_space<vmem>>, vector<1x128x128xf32>
    %80 = vector.shape_cast %79 : vector<1x128x128xf32> to vector<128x128xf32>
    %cst_86 = arith.constant dense<0.000000e+00> : vector<16x128xf32>
    %81 = tpu.matmul %78, %80, %cst_86 {dimension_numbers = #tpu.dot_dimension_numbers<[1], [0], [0], [1], [0, 0, 1, 1], [], []>} : vector<16x128xf32>, vector<128x128xf32>, vector<16x128xf32> -> vector<16x128xf32>
    %82 = arith.addf %77, %81 : vector<16x128xf32>
    %c8_87 = arith.constant 8 : index
    %c0_88 = arith.constant 0 : index
    %83 = vector.load %arg28[%c8_87, %c0_88] : memref<32x128xf32, #tpu.memory_space<vmem>>, vector<16x128xf32>
    %c1_89 = arith.constant 1 : index
    %c0_90 = arith.constant 0 : index
    %c0_91 = arith.constant 0 : index
    %84 = vector.load %arg6[%c1_89, %c0_90, %c0_91] : memref<3x128x128xf32, #tpu.memory_space<vmem>>, vector<1x128x128xf32>
    %85 = vector.shape_cast %84 : vector<1x128x128xf32> to vector<128x128xf32>
    %cst_92 = arith.constant dense<0.000000e+00> : vector<16x128xf32>
    %86 = tpu.matmul %83, %85, %cst_92 {dimension_numbers = #tpu.dot_dimension_numbers<[1], [0], [0], [1], [0, 0, 1, 1], [], []>} : vector<16x128xf32>, vector<128x128xf32>, vector<16x128xf32> -> vector<16x128xf32>
    %87 = arith.addf %82, %86 : vector<16x128xf32>
    %c9_93 = arith.constant 9 : index
    %c0_94 = arith.constant 0 : index
    %88 = vector.load %arg28[%c9_93, %c0_94] : memref<32x128xf32, #tpu.memory_space<vmem>>, vector<16x128xf32>
    %c2_95 = arith.constant 2 : index
    %c0_96 = arith.constant 0 : index
    %c0_97 = arith.constant 0 : index
    %89 = vector.load %arg6[%c2_95, %c0_96, %c0_97] : memref<3x128x128xf32, #tpu.memory_space<vmem>>, vector<1x128x128xf32>
    %90 = vector.shape_cast %89 : vector<1x128x128xf32> to vector<128x128xf32>
    %cst_98 = arith.constant dense<0.000000e+00> : vector<16x128xf32>
    %91 = tpu.matmul %88, %90, %cst_98 {dimension_numbers = #tpu.dot_dimension_numbers<[1], [0], [0], [1], [0, 0, 1, 1], [], []>} : vector<16x128xf32>, vector<128x128xf32>, vector<16x128xf32> -> vector<16x128xf32>
    %92 = arith.addf %87, %91 : vector<16x128xf32>
    %c0_99 = arith.constant 0 : index
    %c0_100 = arith.constant 0 : index
    %93 = vector.load %arg7[%c0_99, %c0_100] : memref<1x128xf32, #tpu.memory_space<vmem>>, vector<1x128xf32>
    %94 = vector.broadcast %93 : vector<1x128xf32> to vector<16x128xf32>
    %95 = arith.addf %92, %94 : vector<16x128xf32>
    %cst_101 = arith.constant 0.000000e+00 : f32
    %96 = vector.broadcast %cst_101 : f32 to vector<16x128xf32>
    %97 = arith.maximumf %95, %96 : vector<16x128xf32>
    %98 = arith.addf %97, %53 : vector<16x128xf32>
    %c0_102 = arith.constant 0 : index
    %c0_103 = arith.constant 0 : index
    %99 = vector.load %arg16[%c0_102, %c0_103] : memref<1x128xf32, #tpu.memory_space<vmem>>, vector<1x128xf32>
    %100 = vector.broadcast %99 : vector<1x128xf32> to vector<16x128xf32>
    %101 = arith.mulf %98, %100 : vector<16x128xf32>
    %c0_104 = arith.constant 0 : index
    %c0_105 = arith.constant 0 : index
    %102 = vector.load %arg17[%c0_104, %c0_105] : memref<1x128xf32, #tpu.memory_space<vmem>>, vector<1x128xf32>
    %103 = vector.broadcast %102 : vector<1x128xf32> to vector<16x128xf32>
    %104 = arith.addf %101, %103 : vector<16x128xf32>
    %cst_106 = arith.constant 0.000000e+00 : f32
    %105 = vector.broadcast %cst_106 : f32 to vector<16x128xf32>
    %106 = arith.maximumf %104, %105 : vector<16x128xf32>
    %c8_107 = arith.constant 8 : index
    %c0_108 = arith.constant 0 : index
    %107 = vector.load %arg28[%c8_107, %c0_108] : memref<32x128xf32, #tpu.memory_space<vmem>>, vector<16x128xf32>
    tpu.vector_store %arg28[%c8_107, %c0_108], %106 {strides = array<i32>} : memref<32x128xf32, #tpu.memory_space<vmem>>, vector<16x128xf32>,
    %cst_109 = arith.constant 0.000000e+00 : f32
    %108 = vector.broadcast %cst_109 : f32 to vector<16x128xf32>
    %c7_110 = arith.constant 7 : index
    %c0_111 = arith.constant 0 : index
    %109 = vector.load %arg28[%c7_110, %c0_111] : memref<32x128xf32, #tpu.memory_space<vmem>>, vector<16x128xf32>
    %c0_112 = arith.constant 0 : index
    %c0_113 = arith.constant 0 : index
    %c0_114 = arith.constant 0 : index
    %110 = vector.load %arg4[%c0_112, %c0_113, %c0_114] : memref<3x128x128xf32, #tpu.memory_space<vmem>>, vector<1x128x128xf32>
    %111 = vector.shape_cast %110 : vector<1x128x128xf32> to vector<128x128xf32>
    %cst_115 = arith.constant dense<0.000000e+00> : vector<16x128xf32>
    %112 = tpu.matmul %109, %111, %cst_115 {dimension_numbers = #tpu.dot_dimension_numbers<[1], [0], [0], [1], [0, 0, 1, 1], [], []>} : vector<16x128xf32>, vector<128x128xf32>, vector<16x128xf32> -> vector<16x128xf32>
    %113 = arith.addf %108, %112 : vector<16x128xf32>
    %c8_116 = arith.constant 8 : index
    %c0_117 = arith.constant 0 : index
    %114 = vector.load %arg28[%c8_116, %c0_117] : memref<32x128xf32, #tpu.memory_space<vmem>>, vector<16x128xf32>
    %c1_118 = arith.constant 1 : index
    %c0_119 = arith.constant 0 : index
    %c0_120 = arith.constant 0 : index
    %115 = vector.load %arg4[%c1_118, %c0_119, %c0_120] : memref<3x128x128xf32, #tpu.memory_space<vmem>>, vector<1x128x128xf32>
    %116 = vector.shape_cast %115 : vector<1x128x128xf32> to vector<128x128xf32>
    %cst_121 = arith.constant dense<0.000000e+00> : vector<16x128xf32>
    %117 = tpu.matmul %114, %116, %cst_121 {dimension_numbers = #tpu.dot_dimension_numbers<[1], [0], [0], [1], [0, 0, 1, 1], [], []>} : vector<16x128xf32>, vector<128x128xf32>, vector<16x128xf32> -> vector<16x128xf32>
    %118 = arith.addf %113, %117 : vector<16x128xf32>
    %c9_122 = arith.constant 9 : index
    %c0_123 = arith.constant 0 : index
    %119 = vector.load %arg28[%c9_122, %c0_123] : memref<32x128xf32, #tpu.memory_space<vmem>>, vector<16x128xf32>
    %c2_124 = arith.constant 2 : index
    %c0_125 = arith.constant 0 : index
    %c0_126 = arith.constant 0 : index
    %120 = vector.load %arg4[%c2_124, %c0_125, %c0_126] : memref<3x128x128xf32, #tpu.memory_space<vmem>>, vector<1x128x128xf32>
    %121 = vector.shape_cast %120 : vector<1x128x128xf32> to vector<128x128xf32>
    %cst_127 = arith.constant dense<0.000000e+00> : vector<16x128xf32>
    %122 = tpu.matmul %119, %121, %cst_127 {dimension_numbers = #tpu.dot_dimension_numbers<[1], [0], [0], [1], [0, 0, 1, 1], [], []>} : vector<16x128xf32>, vector<128x128xf32>, vector<16x128xf32> -> vector<16x128xf32>
    %123 = arith.addf %118, %122 : vector<16x128xf32>
    %c0_128 = arith.constant 0 : index
    %c0_129 = arith.constant 0 : index
    %124 = vector.load %arg5[%c0_128, %c0_129] : memref<1x128xf32, #tpu.memory_space<vmem>>, vector<1x128xf32>
    %125 = vector.broadcast %124 : vector<1x128xf32> to vector<16x128xf32>
    %126 = arith.addf %123, %125 : vector<16x128xf32>
    %cst_130 = arith.constant 0.000000e+00 : f32
    %127 = vector.broadcast %cst_130 : f32 to vector<16x128xf32>
    %128 = arith.maximumf %126, %127 : vector<16x128xf32>
    %c8_131 = arith.constant 8 : index
    %c0_132 = arith.constant 0 : index
    %129 = vector.load %arg28[%c8_131, %c0_132] : memref<32x128xf32, #tpu.memory_space<vmem>>, vector<16x128xf32>
    tpu.vector_store %arg28[%c8_131, %c0_132], %128 {strides = array<i32>} : memref<32x128xf32, #tpu.memory_space<vmem>>, vector<16x128xf32>,
    %cst_133 = arith.constant 0.000000e+00 : f32
    %130 = vector.broadcast %cst_133 : f32 to vector<16x128xf32>
    %c7_134 = arith.constant 7 : index
    %c0_135 = arith.constant 0 : index
    %131 = vector.load %arg28[%c7_134, %c0_135] : memref<32x128xf32, #tpu.memory_space<vmem>>, vector<16x128xf32>
    %c0_136 = arith.constant 0 : index
    %c0_137 = arith.constant 0 : index
    %c0_138 = arith.constant 0 : index
    %132 = vector.load %arg6[%c0_136, %c0_137, %c0_138] : memref<3x128x128xf32, #tpu.memory_space<vmem>>, vector<1x128x128xf32>
    %133 = vector.shape_cast %132 : vector<1x128x128xf32> to vector<128x128xf32>
    %cst_139 = arith.constant dense<0.000000e+00> : vector<16x128xf32>
    %134 = tpu.matmul %131, %133, %cst_139 {dimension_numbers = #tpu.dot_dimension_numbers<[1], [0], [0], [1], [0, 0, 1, 1], [], []>} : vector<16x128xf32>, vector<128x128xf32>, vector<16x128xf32> -> vector<16x128xf32>
    %135 = arith.addf %130, %134 : vector<16x128xf32>
    %c8_140 = arith.constant 8 : index
    %c0_141 = arith.constant 0 : index
    %136 = vector.load %arg28[%c8_140, %c0_141] : memref<32x128xf32, #tpu.memory_space<vmem>>, vector<16x128xf32>
    %c1_142 = arith.constant 1 : index
    %c0_143 = arith.constant 0 : index
    %c0_144 = arith.constant 0 : index
    %137 = vector.load %arg6[%c1_142, %c0_143, %c0_144] : memref<3x128x128xf32, #tpu.memory_space<vmem>>, vector<1x128x128xf32>
    %138 = vector.shape_cast %137 : vector<1x128x128xf32> to vector<128x128xf32>
    %cst_145 = arith.constant dense<0.000000e+00> : vector<16x128xf32>
    %139 = tpu.matmul %136, %138, %cst_145 {dimension_numbers = #tpu.dot_dimension_numbers<[1], [0], [0], [1], [0, 0, 1, 1], [], []>} : vector<16x128xf32>, vector<128x128xf32>, vector<16x128xf32> -> vector<16x128xf32>
    %140 = arith.addf %135, %139 : vector<16x128xf32>
    %c9_146 = arith.constant 9 : index
    %c0_147 = arith.constant 0 : index
    %141 = vector.load %arg28[%c9_146, %c0_147] : memref<32x128xf32, #tpu.memory_space<vmem>>, vector<16x128xf32>
    %c2_148 = arith.constant 2 : index
    %c0_149 = arith.constant 0 : index
    %c0_150 = arith.constant 0 : index
    %142 = vector.load %arg6[%c2_148, %c0_149, %c0_150] : memref<3x128x128xf32, #tpu.memory_space<vmem>>, vector<1x128x128xf32>
    %143 = vector.shape_cast %142 : vector<1x128x128xf32> to vector<128x128xf32>
    %cst_151 = arith.constant dense<0.000000e+00> : vector<16x128xf32>
    %144 = tpu.matmul %141, %143, %cst_151 {dimension_numbers = #tpu.dot_dimension_numbers<[1], [0], [0], [1], [0, 0, 1, 1], [], []>} : vector<16x128xf32>, vector<128x128xf32>, vector<16x128xf32> -> vector<16x128xf32>
    %145 = arith.addf %140, %144 : vector<16x128xf32>
    %c0_152 = arith.constant 0 : index
    %c0_153 = arith.constant 0 : index
    %146 = vector.load %arg7[%c0_152, %c0_153] : memref<1x128xf32, #tpu.memory_space<vmem>>, vector<1x128xf32>
    %147 = vector.broadcast %146 : vector<1x128xf32> to vector<16x128xf32>
    %148 = arith.addf %145, %147 : vector<16x128xf32>
    %cst_154 = arith.constant 0.000000e+00 : f32
    %149 = vector.broadcast %cst_154 : f32 to vector<16x128xf32>
    %150 = arith.maximumf %148, %149 : vector<16x128xf32>
    %151 = arith.addf %150, %106 : vector<16x128xf32>
    %c0_155 = arith.constant 0 : index
    %c0_156 = arith.constant 0 : index
    %152 = vector.load %arg16[%c0_155, %c0_156] : memref<1x128xf32, #tpu.memory_space<vmem>>, vector<1x128xf32>
    %153 = vector.broadcast %152 : vector<1x128xf32> to vector<16x128xf32>
    %154 = arith.mulf %151, %153 : vector<16x128xf32>
    %c0_157 = arith.constant 0 : index
    %c0_158 = arith.constant 0 : index
    %155 = vector.load %arg17[%c0_157, %c0_158] : memref<1x128xf32, #tpu.memory_space<vmem>>, vector<1x128xf32>
    %156 = vector.broadcast %155 : vector<1x128xf32> to vector<16x128xf32>
    %157 = arith.addf %154, %156 : vector<16x128xf32>
    %cst_159 = arith.constant 0.000000e+00 : f32
    %158 = vector.broadcast %cst_159 : f32 to vector<16x128xf32>
    %159 = arith.maximumf %157, %158 : vector<16x128xf32>
    %c8_160 = arith.constant 8 : index
    %c0_161 = arith.constant 0 : index
    %160 = vector.load %arg28[%c8_160, %c0_161] : memref<32x128xf32, #tpu.memory_space<vmem>>, vector<16x128xf32>
    tpu.vector_store %arg28[%c8_160, %c0_161], %159 {strides = array<i32>} : memref<32x128xf32, #tpu.memory_space<vmem>>, vector<16x128xf32>,
    %cst_162 = arith.constant 0.000000e+00 : f32
    %161 = vector.broadcast %cst_162 : f32 to vector<16x256xf32>
    %c7_163 = arith.constant 7 : index
    %c0_164 = arith.constant 0 : index
    %162 = vector.load %arg28[%c7_163, %c0_164] : memref<32x128xf32, #tpu.memory_space<vmem>>, vector<16x128xf32>
    %c0_165 = arith.constant 0 : index
    %c0_166 = arith.constant 0 : index
    %c0_167 = arith.constant 0 : index
    %163 = vector.load %arg8[%c0_165, %c0_166, %c0_167] : memref<3x128x256xf32, #tpu.memory_space<vmem>>, vector<1x128x256xf32>
    %164 = vector.shape_cast %163 : vector<1x128x256xf32> to vector<128x256xf32>
    %cst_168 = arith.constant dense<0.000000e+00> : vector<16x256xf32>
    %165 = tpu.matmul %162, %164, %cst_168 {dimension_numbers = #tpu.dot_dimension_numbers<[1], [0], [0], [1], [0, 0, 1, 1], [], []>} : vector<16x128xf32>, vector<128x256xf32>, vector<16x256xf32> -> vector<16x256xf32>
    %166 = arith.addf %161, %165 : vector<16x256xf32>
    %c8_169 = arith.constant 8 : index
    %c0_170 = arith.constant 0 : index
    %167 = vector.load %arg28[%c8_169, %c0_170] : memref<32x128xf32, #tpu.memory_space<vmem>>, vector<16x128xf32>
    %c1_171 = arith.constant 1 : index
    %c0_172 = arith.constant 0 : index
    %c0_173 = arith.constant 0 : index
    %168 = vector.load %arg8[%c1_171, %c0_172, %c0_173] : memref<3x128x256xf32, #tpu.memory_space<vmem>>, vector<1x128x256xf32>
    %169 = vector.shape_cast %168 : vector<1x128x256xf32> to vector<128x256xf32>
    %cst_174 = arith.constant dense<0.000000e+00> : vector<16x256xf32>
    %170 = tpu.matmul %167, %169, %cst_174 {dimension_numbers = #tpu.dot_dimension_numbers<[1], [0], [0], [1], [0, 0, 1, 1], [], []>} : vector<16x128xf32>, vector<128x256xf32>, vector<16x256xf32> -> vector<16x256xf32>
    %171 = arith.addf %166, %170 : vector<16x256xf32>
    %c9_175 = arith.constant 9 : index
    %c0_176 = arith.constant 0 : index
    %172 = vector.load %arg28[%c9_175, %c0_176] : memref<32x128xf32, #tpu.memory_space<vmem>>, vector<16x128xf32>
    %c2_177 = arith.constant 2 : index
    %c0_178 = arith.constant 0 : index
    %c0_179 = arith.constant 0 : index
    %173 = vector.load %arg8[%c2_177, %c0_178, %c0_179] : memref<3x128x256xf32, #tpu.memory_space<vmem>>, vector<1x128x256xf32>
    %174 = vector.shape_cast %173 : vector<1x128x256xf32> to vector<128x256xf32>
    %cst_180 = arith.constant dense<0.000000e+00> : vector<16x256xf32>
    %175 = tpu.matmul %172, %174, %cst_180 {dimension_numbers = #tpu.dot_dimension_numbers<[1], [0], [0], [1], [0, 0, 1, 1], [], []>} : vector<16x128xf32>, vector<128x256xf32>, vector<16x256xf32> -> vector<16x256xf32>
    %176 = arith.addf %171, %175 : vector<16x256xf32>
    %c0_181 = arith.constant 0 : index
    %c0_182 = arith.constant 0 : index
    %177 = vector.load %arg9[%c0_181, %c0_182] : memref<1x256xf32, #tpu.memory_space<vmem>>, vector<1x256xf32>
    %178 = vector.broadcast %177 : vector<1x256xf32> to vector<16x256xf32>
    %179 = arith.addf %176, %178 : vector<16x256xf32>
    %cst_183 = arith.constant 0.000000e+00 : f32
    %180 = vector.broadcast %cst_183 : f32 to vector<16x256xf32>
    %181 = arith.maximumf %179, %180 : vector<16x256xf32>
    %c0_184 = arith.constant 0 : index
    %c0_185 = arith.constant 0 : index
    %c0_186 = arith.constant 0 : index
    %182 = vector.load %arg22[%c0_184, %c0_185, %c0_186] : memref<2x256x128xf32, #tpu.memory_space<vmem>>, vector<1x256x128xf32>
    %183 = vector.shape_cast %182 : vector<1x256x128xf32> to vector<256x128xf32>
    %cst_187 = arith.constant dense<0.000000e+00> : vector<16x128xf32>
    %184 = tpu.matmul %181, %183, %cst_187 {dimension_numbers = #tpu.dot_dimension_numbers<[1], [0], [0], [1], [0, 0, 1, 1], [], []>} : vector<16x256xf32>, vector<256x128xf32>, vector<16x128xf32> -> vector<16x128xf32>
    %c1_188 = arith.constant 1 : index
    %c0_189 = arith.constant 0 : index
    %c0_190 = arith.constant 0 : index
    %185 = vector.load %arg22[%c1_188, %c0_189, %c0_190] : memref<2x256x128xf32, #tpu.memory_space<vmem>>, vector<1x256x128xf32>
    %186 = vector.shape_cast %185 : vector<1x256x128xf32> to vector<256x128xf32>
    %cst_191 = arith.constant dense<0.000000e+00> : vector<16x128xf32>
    %187 = tpu.matmul %181, %186, %cst_191 {dimension_numbers = #tpu.dot_dimension_numbers<[1], [0], [0], [1], [0, 0, 1, 1], [], []>} : vector<16x256xf32>, vector<256x128xf32>, vector<16x128xf32> -> vector<16x128xf32>
    %188 = arith.maximumf %184, %187 : vector<16x128xf32>
    %c0_192 = arith.constant 0 : index
    %c0_193 = arith.constant 0 : index
    %c0_194 = arith.constant 0 : index
    %189 = vector.load %arg23[%c0_192, %c0_193, %c0_194] : memref<2x8x16xf32, #tpu.memory_space<vmem>>, vector<1x8x16xf32>
    %190 = vector.shape_cast %189 : vector<1x8x16xf32> to vector<8x16xf32>
    %cst_195 = arith.constant dense<0.000000e+00> : vector<8x128xf32>
    %191 = tpu.matmul %190, %188, %cst_195 {dimension_numbers = #tpu.dot_dimension_numbers<[1], [0], [0], [1], [0, 0, 1, 1], [], []>} : vector<8x16xf32>, vector<16x128xf32>, vector<8x128xf32> -> vector<8x128xf32>
    %c1_196 = arith.constant 1 : index
    %c0_197 = arith.constant 0 : index
    %c0_198 = arith.constant 0 : index
    %192 = vector.load %arg23[%c1_196, %c0_197, %c0_198] : memref<2x8x16xf32, #tpu.memory_space<vmem>>, vector<1x8x16xf32>
    %193 = vector.shape_cast %192 : vector<1x8x16xf32> to vector<8x16xf32>
    %cst_199 = arith.constant dense<0.000000e+00> : vector<8x128xf32>
    %194 = tpu.matmul %193, %188, %cst_199 {dimension_numbers = #tpu.dot_dimension_numbers<[1], [0], [0], [1], [0, 0, 1, 1], [], []>} : vector<8x16xf32>, vector<16x128xf32>, vector<8x128xf32> -> vector<8x128xf32>
    %195 = arith.maximumf %191, %194 : vector<8x128xf32>
    %c8_200 = arith.constant 8 : index
    %c0_201 = arith.constant 0 : index
    %196 = vector.load %arg29[%c8_200, %c0_201] : memref<24x128xf32, #tpu.memory_space<vmem>>, vector<8x128xf32>
    tpu.vector_store %arg29[%c8_200, %c0_201], %195 {strides = array<i32>} : memref<24x128xf32, #tpu.memory_space<vmem>>, vector<8x128xf32>,
    %cst_202 = arith.constant 0.000000e+00 : f32
    %197 = vector.broadcast %cst_202 : f32 to vector<8x128xf32>
    %c7_203 = arith.constant 7 : index
    %c0_204 = arith.constant 0 : index
    %198 = vector.load %arg29[%c7_203, %c0_204] : memref<24x128xf32, #tpu.memory_space<vmem>>, vector<8x128xf32>
    %c0_205 = arith.constant 0 : index
    %c0_206 = arith.constant 0 : index
    %c0_207 = arith.constant 0 : index
    %199 = vector.load %arg10[%c0_205, %c0_206, %c0_207] : memref<3x128x128xf32, #tpu.memory_space<vmem>>, vector<1x128x128xf32>
    %200 = vector.shape_cast %199 : vector<1x128x128xf32> to vector<128x128xf32>
    %cst_208 = arith.constant dense<0.000000e+00> : vector<8x128xf32>
    %201 = tpu.matmul %198, %200, %cst_208 {dimension_numbers = #tpu.dot_dimension_numbers<[1], [0], [0], [1], [0, 0, 1, 1], [], []>} : vector<8x128xf32>, vector<128x128xf32>, vector<8x128xf32> -> vector<8x128xf32>
    %202 = arith.addf %197, %201 : vector<8x128xf32>
    %c8_209 = arith.constant 8 : index
    %c0_210 = arith.constant 0 : index
    %203 = vector.load %arg29[%c8_209, %c0_210] : memref<24x128xf32, #tpu.memory_space<vmem>>, vector<8x128xf32>
    %c1_211 = arith.constant 1 : index
    %c0_212 = arith.constant 0 : index
    %c0_213 = arith.constant 0 : index
    %204 = vector.load %arg10[%c1_211, %c0_212, %c0_213] : memref<3x128x128xf32, #tpu.memory_space<vmem>>, vector<1x128x128xf32>
    %205 = vector.shape_cast %204 : vector<1x128x128xf32> to vector<128x128xf32>
    %cst_214 = arith.constant dense<0.000000e+00> : vector<8x128xf32>
    %206 = tpu.matmul %203, %205, %cst_214 {dimension_numbers = #tpu.dot_dimension_numbers<[1], [0], [0], [1], [0, 0, 1, 1], [], []>} : vector<8x128xf32>, vector<128x128xf32>, vector<8x128xf32> -> vector<8x128xf32>
    %207 = arith.addf %202, %206 : vector<8x128xf32>
    %c9_215 = arith.constant 9 : index
    %c0_216 = arith.constant 0 : index
    %208 = vector.load %arg29[%c9_215, %c0_216] : memref<24x128xf32, #tpu.memory_space<vmem>>, vector<8x128xf32>
    %c2_217 = arith.constant 2 : index
    %c0_218 = arith.constant 0 : index
    %c0_219 = arith.constant 0 : index
    %209 = vector.load %arg10[%c2_217, %c0_218, %c0_219] : memref<3x128x128xf32, #tpu.memory_space<vmem>>, vector<1x128x128xf32>
    %210 = vector.shape_cast %209 : vector<1x128x128xf32> to vector<128x128xf32>
    %cst_220 = arith.constant dense<0.000000e+00> : vector<8x128xf32>
    %211 = tpu.matmul %208, %210, %cst_220 {dimension_numbers = #tpu.dot_dimension_numbers<[1], [0], [0], [1], [0, 0, 1, 1], [], []>} : vector<8x128xf32>, vector<128x128xf32>, vector<8x128xf32> -> vector<8x128xf32>
    %212 = arith.addf %207, %211 : vector<8x128xf32>
    %c0_221 = arith.constant 0 : index
    %c0_222 = arith.constant 0 : index
    %213 = vector.load %arg11[%c0_221, %c0_222] : memref<1x128xf32, #tpu.memory_space<vmem>>, vector<1x128xf32>
    %214 = vector.broadcast %213 : vector<1x128xf32> to vector<8x128xf32>
    %215 = arith.addf %212, %214 : vector<8x128xf32>
    %cst_223 = arith.constant 0.000000e+00 : f32
    %216 = vector.broadcast %cst_223 : f32 to vector<8x128xf32>
    %217 = arith.maximumf %215, %216 : vector<8x128xf32>
    %c8_224 = arith.constant 8 : index
    %c0_225 = arith.constant 0 : index
    %218 = vector.load %arg29[%c8_224, %c0_225] : memref<24x128xf32, #tpu.memory_space<vmem>>, vector<8x128xf32>
    tpu.vector_store %arg29[%c8_224, %c0_225], %217 {strides = array<i32>} : memref<24x128xf32, #tpu.memory_space<vmem>>, vector<8x128xf32>,
    %cst_226 = arith.constant 0.000000e+00 : f32
    %219 = vector.broadcast %cst_226 : f32 to vector<8x128xf32>
    %c7_227 = arith.constant 7 : index
    %c0_228 = arith.constant 0 : index
    %220 = vector.load %arg29[%c7_227, %c0_228] : memref<24x128xf32, #tpu.memory_space<vmem>>, vector<8x128xf32>
    %c0_229 = arith.constant 0 : index
    %c0_230 = arith.constant 0 : index
    %c0_231 = arith.constant 0 : index
    %221 = vector.load %arg12[%c0_229, %c0_230, %c0_231] : memref<3x128x128xf32, #tpu.memory_space<vmem>>, vector<1x128x128xf32>
    %222 = vector.shape_cast %221 : vector<1x128x128xf32> to vector<128x128xf32>
    %cst_232 = arith.constant dense<0.000000e+00> : vector<8x128xf32>
    %223 = tpu.matmul %220, %222, %cst_232 {dimension_numbers = #tpu.dot_dimension_numbers<[1], [0], [0], [1], [0, 0, 1, 1], [], []>} : vector<8x128xf32>, vector<128x128xf32>, vector<8x128xf32> -> vector<8x128xf32>
    %224 = arith.addf %219, %223 : vector<8x128xf32>
    %c8_233 = arith.constant 8 : index
    %c0_234 = arith.constant 0 : index
    %225 = vector.load %arg29[%c8_233, %c0_234] : memref<24x128xf32, #tpu.memory_space<vmem>>, vector<8x128xf32>
    %c1_235 = arith.constant 1 : index
    %c0_236 = arith.constant 0 : index
    %c0_237 = arith.constant 0 : index
    %226 = vector.load %arg12[%c1_235, %c0_236, %c0_237] : memref<3x128x128xf32, #tpu.memory_space<vmem>>, vector<1x128x128xf32>
    %227 = vector.shape_cast %226 : vector<1x128x128xf32> to vector<128x128xf32>
    %cst_238 = arith.constant dense<0.000000e+00> : vector<8x128xf32>
    %228 = tpu.matmul %225, %227, %cst_238 {dimension_numbers = #tpu.dot_dimension_numbers<[1], [0], [0], [1], [0, 0, 1, 1], [], []>} : vector<8x128xf32>, vector<128x128xf32>, vector<8x128xf32> -> vector<8x128xf32>
    %229 = arith.addf %224, %228 : vector<8x128xf32>
    %c9_239 = arith.constant 9 : index
    %c0_240 = arith.constant 0 : index
    %230 = vector.load %arg29[%c9_239, %c0_240] : memref<24x128xf32, #tpu.memory_space<vmem>>, vector<8x128xf32>
    %c2_241 = arith.constant 2 : index
    %c0_242 = arith.constant 0 : index
    %c0_243 = arith.constant 0 : index
    %231 = vector.load %arg12[%c2_241, %c0_242, %c0_243] : memref<3x128x128xf32, #tpu.memory_space<vmem>>, vector<1x128x128xf32>
    %232 = vector.shape_cast %231 : vector<1x128x128xf32> to vector<128x128xf32>
    %cst_244 = arith.constant dense<0.000000e+00> : vector<8x128xf32>
    %233 = tpu.matmul %230, %232, %cst_244 {dimension_numbers = #tpu.dot_dimension_numbers<[1], [0], [0], [1], [0, 0, 1, 1], [], []>} : vector<8x128xf32>, vector<128x128xf32>, vector<8x128xf32> -> vector<8x128xf32>
    %234 = arith.addf %229, %233 : vector<8x128xf32>
    %c0_245 = arith.constant 0 : index
    %c0_246 = arith.constant 0 : index
    %235 = vector.load %arg13[%c0_245, %c0_246] : memref<1x128xf32, #tpu.memory_space<vmem>>, vector<1x128xf32>
    %236 = vector.broadcast %235 : vector<1x128xf32> to vector<8x128xf32>
    %237 = arith.addf %234, %236 : vector<8x128xf32>
    %cst_247 = arith.constant 0.000000e+00 : f32
    %238 = vector.broadcast %cst_247 : f32 to vector<8x128xf32>
    %239 = arith.maximumf %237, %238 : vector<8x128xf32>
    %240 = arith.addf %239, %195 : vector<8x128xf32>
    %c0_248 = arith.constant 0 : index
    %c0_249 = arith.constant 0 : index
    %241 = vector.load %arg18[%c0_248, %c0_249] : memref<1x128xf32, #tpu.memory_space<vmem>>, vector<1x128xf32>
    %242 = vector.broadcast %241 : vector<1x128xf32> to vector<8x128xf32>
    %243 = arith.mulf %240, %242 : vector<8x128xf32>
    %c0_250 = arith.constant 0 : index
    %c0_251 = arith.constant 0 : index
    %244 = vector.load %arg19[%c0_250, %c0_251] : memref<1x128xf32, #tpu.memory_space<vmem>>, vector<1x128xf32>
    %245 = vector.broadcast %244 : vector<1x128xf32> to vector<8x128xf32>
    %246 = arith.addf %243, %245 : vector<8x128xf32>
    %cst_252 = arith.constant 0.000000e+00 : f32
    %247 = vector.broadcast %cst_252 : f32 to vector<8x128xf32>
    %248 = arith.maximumf %246, %247 : vector<8x128xf32>
    %c8_253 = arith.constant 8 : index
    %c0_254 = arith.constant 0 : index
    %249 = vector.load %arg29[%c8_253, %c0_254] : memref<24x128xf32, #tpu.memory_space<vmem>>, vector<8x128xf32>
    tpu.vector_store %arg29[%c8_253, %c0_254], %248 {strides = array<i32>} : memref<24x128xf32, #tpu.memory_space<vmem>>, vector<8x128xf32>,
    %cst_255 = arith.constant 0.000000e+00 : f32
    %250 = vector.broadcast %cst_255 : f32 to vector<8x256xf32>
    %c7_256 = arith.constant 7 : index
    %c0_257 = arith.constant 0 : index
    %251 = vector.load %arg29[%c7_256, %c0_257] : memref<24x128xf32, #tpu.memory_space<vmem>>, vector<8x128xf32>
    %c0_258 = arith.constant 0 : index
    %c0_259 = arith.constant 0 : index
    %c0_260 = arith.constant 0 : index
    %252 = vector.load %arg14[%c0_258, %c0_259, %c0_260] : memref<3x128x256xf32, #tpu.memory_space<vmem>>, vector<1x128x256xf32>
    %253 = vector.shape_cast %252 : vector<1x128x256xf32> to vector<128x256xf32>
    %cst_261 = arith.constant dense<0.000000e+00> : vector<8x256xf32>
    %254 = tpu.matmul %251, %253, %cst_261 {dimension_numbers = #tpu.dot_dimension_numbers<[1], [0], [0], [1], [0, 0, 1, 1], [], []>} : vector<8x128xf32>, vector<128x256xf32>, vector<8x256xf32> -> vector<8x256xf32>
    %255 = arith.addf %250, %254 : vector<8x256xf32>
    %c8_262 = arith.constant 8 : index
    %c0_263 = arith.constant 0 : index
    %256 = vector.load %arg29[%c8_262, %c0_263] : memref<24x128xf32, #tpu.memory_space<vmem>>, vector<8x128xf32>
    %c1_264 = arith.constant 1 : index
    %c0_265 = arith.constant 0 : index
    %c0_266 = arith.constant 0 : index
    %257 = vector.load %arg14[%c1_264, %c0_265, %c0_266] : memref<3x128x256xf32, #tpu.memory_space<vmem>>, vector<1x128x256xf32>
    %258 = vector.shape_cast %257 : vector<1x128x256xf32> to vector<128x256xf32>
    %cst_267 = arith.constant dense<0.000000e+00> : vector<8x256xf32>
    %259 = tpu.matmul %256, %258, %cst_267 {dimension_numbers = #tpu.dot_dimension_numbers<[1], [0], [0], [1], [0, 0, 1, 1], [], []>} : vector<8x128xf32>, vector<128x256xf32>, vector<8x256xf32> -> vector<8x256xf32>
    %260 = arith.addf %255, %259 : vector<8x256xf32>
    %c9_268 = arith.constant 9 : index
    %c0_269 = arith.constant 0 : index
    %261 = vector.load %arg29[%c9_268, %c0_269] : memref<24x128xf32, #tpu.memory_space<vmem>>, vector<8x128xf32>
    %c2_270 = arith.constant 2 : index
    %c0_271 = arith.constant 0 : index
    %c0_272 = arith.constant 0 : index
    %262 = vector.load %arg14[%c2_270, %c0_271, %c0_272] : memref<3x128x256xf32, #tpu.memory_space<vmem>>, vector<1x128x256xf32>
    %263 = vector.shape_cast %262 : vector<1x128x256xf32> to vector<128x256xf32>
    %cst_273 = arith.constant dense<0.000000e+00> : vector<8x256xf32>
    %264 = tpu.matmul %261, %263, %cst_273 {dimension_numbers = #tpu.dot_dimension_numbers<[1], [0], [0], [1], [0, 0, 1, 1], [], []>} : vector<8x128xf32>, vector<128x256xf32>, vector<8x256xf32> -> vector<8x256xf32>
    %265 = arith.addf %260, %264 : vector<8x256xf32>
    %c0_274 = arith.constant 0 : index
    %c0_275 = arith.constant 0 : index
    %266 = vector.load %arg15[%c0_274, %c0_275] : memref<1x256xf32, #tpu.memory_space<vmem>>, vector<1x256xf32>
    %267 = vector.broadcast %266 : vector<1x256xf32> to vector<8x256xf32>
    %268 = arith.addf %265, %267 : vector<8x256xf32>
    %cst_276 = arith.constant 0.000000e+00 : f32
    %269 = vector.broadcast %cst_276 : f32 to vector<8x256xf32>
    %270 = arith.maximumf %268, %269 : vector<8x256xf32>
    %c0_277 = arith.constant 0 : index
    %c0_278 = arith.constant 0 : index
    %c0_279 = arith.constant 0 : index
    %271 = vector.load %arg24[%c0_277, %c0_278, %c0_279] : memref<2x256x128xf32, #tpu.memory_space<vmem>>, vector<1x256x128xf32>
    %272 = vector.shape_cast %271 : vector<1x256x128xf32> to vector<256x128xf32>
    %cst_280 = arith.constant dense<0.000000e+00> : vector<8x128xf32>
    %273 = tpu.matmul %270, %272, %cst_280 {dimension_numbers = #tpu.dot_dimension_numbers<[1], [0], [0], [1], [0, 0, 1, 1], [], []>} : vector<8x256xf32>, vector<256x128xf32>, vector<8x128xf32> -> vector<8x128xf32>
    %c1_281 = arith.constant 1 : index
    %c0_282 = arith.constant 0 : index
    %c0_283 = arith.constant 0 : index
    %274 = vector.load %arg24[%c1_281, %c0_282, %c0_283] : memref<2x256x128xf32, #tpu.memory_space<vmem>>, vector<1x256x128xf32>
    %275 = vector.shape_cast %274 : vector<1x256x128xf32> to vector<256x128xf32>
    %cst_284 = arith.constant dense<0.000000e+00> : vector<8x128xf32>
    %276 = tpu.matmul %270, %275, %cst_284 {dimension_numbers = #tpu.dot_dimension_numbers<[1], [0], [0], [1], [0, 0, 1, 1], [], []>} : vector<8x256xf32>, vector<256x128xf32>, vector<8x128xf32> -> vector<8x128xf32>
    %277 = arith.maximumf %273, %276 : vector<8x128xf32>
    %c0_285 = arith.constant 0 : index
    %c0_286 = arith.constant 0 : index
    %c0_287 = arith.constant 0 : index
    %278 = vector.load %arg25[%c0_285, %c0_286, %c0_287] : memref<2x4x8xf32, #tpu.memory_space<vmem>>, vector<1x4x8xf32>
    %279 = vector.shape_cast %278 : vector<1x4x8xf32> to vector<4x8xf32>
    %cst_288 = arith.constant dense<0.000000e+00> : vector<4x128xf32>
    %280 = tpu.matmul %279, %277, %cst_288 {dimension_numbers = #tpu.dot_dimension_numbers<[1], [0], [0], [1], [0, 0, 1, 1], [], []>} : vector<4x8xf32>, vector<8x128xf32>, vector<4x128xf32> -> vector<4x128xf32>
    %c1_289 = arith.constant 1 : index
    %c0_290 = arith.constant 0 : index
    %c0_291 = arith.constant 0 : index
    %281 = vector.load %arg25[%c1_289, %c0_290, %c0_291] : memref<2x4x8xf32, #tpu.memory_space<vmem>>, vector<1x4x8xf32>
    %282 = vector.shape_cast %281 : vector<1x4x8xf32> to vector<4x8xf32>
    %cst_292 = arith.constant dense<0.000000e+00> : vector<4x128xf32>
    %283 = tpu.matmul %282, %277, %cst_292 {dimension_numbers = #tpu.dot_dimension_numbers<[1], [0], [0], [1], [0, 0, 1, 1], [], []>} : vector<4x8xf32>, vector<8x128xf32>, vector<4x128xf32> -> vector<4x128xf32>
    %284 = arith.maximumf %280, %283 : vector<4x128xf32>
    %285 = vector.shape_cast %284 : vector<4x128xf32> to vector<1x4x128xf32>
    %c0_293 = arith.constant 0 : index
    %c0_294 = arith.constant 0 : index
    %c0_295 = arith.constant 0 : index
    %286 = vector.load %arg26[%c0_293, %c0_294, %c0_295] : memref<1x4x128xf32, #tpu.memory_space<vmem>>, vector<1x4x128xf32>
    tpu.vector_store %arg26[%c0_293, %c0_294, %c0_295], %285 {strides = array<i32>} : memref<1x4x128xf32, #tpu.memory_space<vmem>>, vector<1x4x128xf32>,
    return
  }
  func.func @transform_0(%arg0: i32) -> (i32, i32, i32, i32) {
    %c0_i32 = arith.constant 0 : i32
    %c0_i32_0 = arith.constant 0 : i32
    %c0_i32_1 = arith.constant 0 : i32
    %c0_i32_2 = arith.constant 0 : i32
    return %arg0, %c0_i32, %c0_i32_0, %c0_i32_1 : i32, i32, i32, i32
  }
  func.func @transform_1(%arg0: i32) -> (i32, i32, i32) {
    %c0_i32 = arith.constant 0 : i32
    %c0_i32_0 = arith.constant 0 : i32
    %c0_i32_1 = arith.constant 0 : i32
    %c0_i32_2 = arith.constant 0 : i32
    return %c0_i32, %c0_i32_0, %c0_i32_1 : i32, i32, i32
  }
  func.func @transform_2(%arg0: i32) -> (i32, i32) {
    %c0_i32 = arith.constant 0 : i32
    %c0_i32_0 = arith.constant 0 : i32
    %c0_i32_1 = arith.constant 0 : i32
    return %c0_i32, %c0_i32_0 : i32, i32
  }
  func.func @transform_3(%arg0: i32) -> (i32, i32, i32) {
    %c0_i32 = arith.constant 0 : i32
    %c0_i32_0 = arith.constant 0 : i32
    %c0_i32_1 = arith.constant 0 : i32
    %c0_i32_2 = arith.constant 0 : i32
    return %c0_i32, %c0_i32_0, %c0_i32_1 : i32, i32, i32
  }
  func.func @transform_4(%arg0: i32) -> (i32, i32) {
    %c0_i32 = arith.constant 0 : i32
    %c0_i32_0 = arith.constant 0 : i32
    %c0_i32_1 = arith.constant 0 : i32
    return %c0_i32, %c0_i32_0 : i32, i32
  }
  func.func @transform_5(%arg0: i32) -> (i32, i32, i32) {
    %c0_i32 = arith.constant 0 : i32
    %c0_i32_0 = arith.constant 0 : i32
    %c0_i32_1 = arith.constant 0 : i32
    %c0_i32_2 = arith.constant 0 : i32
    return %c0_i32, %c0_i32_0, %c0_i32_1 : i32, i32, i32
  }
  func.func @transform_6(%arg0: i32) -> (i32, i32) {
    %c0_i32 = arith.constant 0 : i32
    %c0_i32_0 = arith.constant 0 : i32
    %c0_i32_1 = arith.constant 0 : i32
    return %c0_i32, %c0_i32_0 : i32, i32
  }
  func.func @transform_7(%arg0: i32) -> (i32, i32, i32) {
    %c0_i32 = arith.constant 0 : i32
    %c0_i32_0 = arith.constant 0 : i32
    %c0_i32_1 = arith.constant 0 : i32
    %c0_i32_2 = arith.constant 0 : i32
    return %c0_i32, %c0_i32_0, %c0_i32_1 : i32, i32, i32
  }
  func.func @transform_8(%arg0: i32) -> (i32, i32) {
    %c0_i32 = arith.constant 0 : i32
    %c0_i32_0 = arith.constant 0 : i32
    %c0_i32_1 = arith.constant 0 : i32
    return %c0_i32, %c0_i32_0 : i32, i32
  }
  func.func @transform_9(%arg0: i32) -> (i32, i32, i32) {
    %c0_i32 = arith.constant 0 : i32
    %c0_i32_0 = arith.constant 0 : i32
    %c0_i32_1 = arith.constant 0 : i32
    %c0_i32_2 = arith.constant 0 : i32
    return %c0_i32, %c0_i32_0, %c0_i32_1 : i32, i32, i32
  }
  func.func @transform_10(%arg0: i32) -> (i32, i32) {
    %c0_i32 = arith.constant 0 : i32
    %c0_i32_0 = arith.constant 0 : i32
    %c0_i32_1 = arith.constant 0 : i32
    return %c0_i32, %c0_i32_0 : i32, i32
  }
  func.func @transform_11(%arg0: i32) -> (i32, i32, i32) {
    %c0_i32 = arith.constant 0 : i32
    %c0_i32_0 = arith.constant 0 : i32
    %c0_i32_1 = arith.constant 0 : i32
    %c0_i32_2 = arith.constant 0 : i32
    return %c0_i32, %c0_i32_0, %c0_i32_1 : i32, i32, i32
  }
  func.func @transform_12(%arg0: i32) -> (i32, i32) {
    %c0_i32 = arith.constant 0 : i32
    %c0_i32_0 = arith.constant 0 : i32
    %c0_i32_1 = arith.constant 0 : i32
    return %c0_i32, %c0_i32_0 : i32, i32
  }
  func.func @transform_13(%arg0: i32) -> (i32, i32, i32) {
    %c0_i32 = arith.constant 0 : i32
    %c0_i32_0 = arith.constant 0 : i32
    %c0_i32_1 = arith.constant 0 : i32
    %c0_i32_2 = arith.constant 0 : i32
    return %c0_i32, %c0_i32_0, %c0_i32_1 : i32, i32, i32
  }
  func.func @transform_14(%arg0: i32) -> (i32, i32) {
    %c0_i32 = arith.constant 0 : i32
    %c0_i32_0 = arith.constant 0 : i32
    %c0_i32_1 = arith.constant 0 : i32
    return %c0_i32, %c0_i32_0 : i32, i32
  }
  func.func @transform_15(%arg0: i32) -> (i32, i32) {
    %c0_i32 = arith.constant 0 : i32
    %c0_i32_0 = arith.constant 0 : i32
    %c0_i32_1 = arith.constant 0 : i32
    return %c0_i32, %c0_i32_0 : i32, i32
  }
  func.func @transform_16(%arg0: i32) -> (i32, i32) {
    %c0_i32 = arith.constant 0 : i32
    %c0_i32_0 = arith.constant 0 : i32
    %c0_i32_1 = arith.constant 0 : i32
    return %c0_i32, %c0_i32_0 : i32, i32
  }
  func.func @transform_17(%arg0: i32) -> (i32, i32) {
    %c0_i32 = arith.constant 0 : i32
    %c0_i32_0 = arith.constant 0 : i32
    %c0_i32_1 = arith.constant 0 : i32
    return %c0_i32, %c0_i32_0 : i32, i32
  }
  func.func @transform_18(%arg0: i32) -> (i32, i32) {
    %c0_i32 = arith.constant 0 : i32
    %c0_i32_0 = arith.constant 0 : i32
    %c0_i32_1 = arith.constant 0 : i32
    return %c0_i32, %c0_i32_0 : i32, i32
  }
  func.func @transform_19(%arg0: i32) -> (i32, i32, i32) {
    %c0_i32 = arith.constant 0 : i32
    %c0_i32_0 = arith.constant 0 : i32
    %c0_i32_1 = arith.constant 0 : i32
    %c0_i32_2 = arith.constant 0 : i32
    return %c0_i32, %c0_i32_0, %c0_i32_1 : i32, i32, i32
  }
  func.func @transform_20(%arg0: i32) -> (i32, i32, i32) {
    %c0_i32 = arith.constant 0 : i32
    %c0_i32_0 = arith.constant 0 : i32
    %c0_i32_1 = arith.constant 0 : i32
    %c0_i32_2 = arith.constant 0 : i32
    return %c0_i32, %c0_i32_0, %c0_i32_1 : i32, i32, i32
  }
  func.func @transform_21(%arg0: i32) -> (i32, i32, i32) {
    %c0_i32 = arith.constant 0 : i32
    %c0_i32_0 = arith.constant 0 : i32
    %c0_i32_1 = arith.constant 0 : i32
    %c0_i32_2 = arith.constant 0 : i32
    return %c0_i32, %c0_i32_0, %c0_i32_1 : i32, i32, i32
  }
  func.func @transform_22(%arg0: i32) -> (i32, i32, i32) {
    %c0_i32 = arith.constant 0 : i32
    %c0_i32_0 = arith.constant 0 : i32
    %c0_i32_1 = arith.constant 0 : i32
    %c0_i32_2 = arith.constant 0 : i32
    return %c0_i32, %c0_i32_0, %c0_i32_1 : i32, i32, i32
  }
  func.func @transform_23(%arg0: i32) -> (i32, i32, i32) {
    %c0_i32 = arith.constant 0 : i32
    %c0_i32_0 = arith.constant 0 : i32
    %c0_i32_1 = arith.constant 0 : i32
    %c0_i32_2 = arith.constant 0 : i32
    return %c0_i32, %c0_i32_0, %c0_i32_1 : i32, i32, i32
  }
  func.func @transform_24(%arg0: i32) -> (i32, i32, i32) {
    %c0_i32 = arith.constant 0 : i32
    %c0_i32_0 = arith.constant 0 : i32
    %c0_i32_1 = arith.constant 0 : i32
    %c0_i32_2 = arith.constant 0 : i32
    return %c0_i32, %c0_i32_0, %c0_i32_1 : i32, i32, i32
  }
  func.func @transform_25(%arg0: i32) -> (i32, i32, i32) {
    %c0_i32 = arith.constant 0 : i32
    %c0_i32_0 = arith.constant 0 : i32
    %c0_i32_1 = arith.constant 0 : i32
    return %arg0, %c0_i32, %c0_i32_0 : i32, i32, i32
  }
}

</mosaic_0001>

<llo_original>
// kernel: rpnheatmap_forward.1
$region0: #{rpnheatmap_forward.1}
  #allocation0 [shape = 'u32[]', space=smem, size = 0x4, offset = 0x4, fixed_abs, tag = 'smem constant byte address 0x4 - core index']
  #allocation1 [shape = 'u32[144,128]{1,0:T(1,128)}', space=vmem, size = 0x12000, scoped, tag = 'internal scratch']
  #allocation2 [shape = 'f32[48,32]{1,0:T(8,128)}', space=vmem, size = 0x6000, scoped, tag = 'scratch operand']
  #allocation3 [shape = 'f32[32,128]{1,0:T(8,128)}', space=vmem, size = 0x4000, scoped, tag = 'scratch operand']
  #allocation4 [shape = 'f32[24,128]{1,0:T(8,128)}', space=vmem, size = 0x3000, scoped, tag = 'scratch operand']
  %s0 = inlined_call_operand.hbm [shape: f32[2,1,32,32], index: 0, kind: input, shape index: {}]
  %s1 = inlined_call_operand.hbm [shape: f32[5,32,256], index: 1, kind: input, shape index: {}]
  %s2 = inlined_call_operand.hbm [shape: f32[1,256], index: 2, kind: input, shape index: {}]
  %s3 = inlined_call_operand.hbm [shape: f32[3,128,128], index: 3, kind: input, shape index: {}]
  %s4 = inlined_call_operand.hbm [shape: f32[1,128], index: 4, kind: input, shape index: {}]
  %s5 = inlined_call_operand.hbm [shape: f32[3,128,128], index: 5, kind: input, shape index: {}]
  %s6 = inlined_call_operand.hbm [shape: f32[1,128], index: 6, kind: input, shape index: {}]
  %s7 = inlined_call_operand.hbm [shape: f32[3,128,256], index: 7, kind: input, shape index: {}]
  %s8 = inlined_call_operand.vmem [shape: f32[1,256], index: 8, kind: input, shape index: {}]
  %s9 = inlined_call_operand.hbm [shape: f32[3,128,128], index: 9, kind: input, shape index: {}]
  %s10 = inlined_call_operand.hbm [shape: f32[1,128], index: 10, kind: input, shape index: {}]
  %s11 = inlined_call_operand.hbm [shape: f32[3,128,128], index: 11, kind: input, shape index: {}]
  %s12 = inlined_call_operand.hbm [shape: f32[1,128], index: 12, kind: input, shape index: {}]
  %s13 = inlined_call_operand.hbm [shape: f32[3,128,256], index: 13, kind: input, shape index: {}]
  %s14 = inlined_call_operand.hbm [shape: f32[1,256], index: 14, kind: input, shape index: {}]
  %s15 = inlined_call_operand.hbm [shape: f32[1,128], index: 15, kind: input, shape index: {}]
  %s16 = inlined_call_operand.vmem [shape: f32[1,128], index: 16, kind: input, shape index: {}]
  %s17 = inlined_call_operand.hbm [shape: f32[1,128], index: 17, kind: input, shape index: {}]
  %s18 = inlined_call_operand.vmem [shape: f32[1,128], index: 18, kind: input, shape index: {}]
  %s19 = inlined_call_operand.hbm [shape: f32[2,256,128], index: 19, kind: input, shape index: {}]
  %s20 = inlined_call_operand.hbm [shape: f32[2,16,32], index: 20, kind: input, shape index: {}]
  %s21 = inlined_call_operand.hbm [shape: f32[2,256,128], index: 21, kind: input, shape index: {}]
  %s22 = inlined_call_operand.vmem [shape: f32[2,8,16], index: 22, kind: input, shape index: {}]
  %s23 = inlined_call_operand.hbm [shape: f32[2,256,128], index: 23, kind: input, shape index: {}]
  %s24 = inlined_call_operand.hbm [shape: f32[2,4,8], index: 24, kind: input, shape index: {}]
  %s25 = inlined_call_operand.vmem [shape: f32[2,4,128], index: 25, kind: output, shape index: {}]
  %s26 = sld [smem:[#allocation0]]
  $region217: #{rpnheatmap_forward.1} parent=0
    _
  %s28 = ssub.s32 1, %s26
  %s29 = scalar_select 0, %s28, %s26
  $region1: #{rpnheatmap_forward.1} parent=0
    #allocation5 [shape = 'u8[32768]{0}', space=vmem, size = 0x8000, scoped, tag = 'input window, operand 0']
    #allocation6 [shape = 's32[2]{0}', space=sflag, size = 0x8, scoped, tag = 'scoped memory for rpnheatmap_forward.1']
    #allocation7 [shape = 'u8[163840]{0}', space=vmem, size = 0x28000, scoped, tag = 'input window, operand 1, single buffered']
    #allocation8 [shape = 's32[1]{0}', space=sflag, size = 0x4, scoped, tag = 'scoped memory for rpnheatmap_forward.1']
    #allocation9 [shape = 'u8[1024]{0}', space=vmem, size = 0x400, scoped, tag = 'input window, operand 2, single buffered']
    #allocation10 [shape = 'u8[196608]{0}', space=vmem, size = 0x30000, scoped, tag = 'input window, operand 3, single buffered']
    #allocation11 [shape = 's32[1]{0}', space=sflag, size = 0x4, scoped, tag = 'scoped memory for rpnheatmap_forward.1']
    #allocation12 [shape = 'u8[512]{0}', space=vmem, size = 0x400, scoped, tag = 'input window, operand 4, single buffered']
    #allocation13 [shape = 'u8[196608]{0}', space=vmem, size = 0x30000, scoped, tag = 'input window, operand 5, single buffered']
    #allocation14 [shape = 's32[1]{0}', space=sflag, size = 0x4, scoped, tag = 'scoped memory for rpnheatmap_forward.1']
    #allocation15 [shape = 'u8[512]{0}', space=vmem, size = 0x400, scoped, tag = 'input window, operand 6, single buffered']
    #allocation16 [shape = 'u8[393216]{0}', space=vmem, size = 0x60000, scoped, tag = 'input window, operand 7, single buffered']
    #allocation17 [shape = 's32[1]{0}', space=sflag, size = 0x4, scoped, tag = 'scoped memory for rpnheatmap_forward.1']
    #allocation18 [shape = 'u8[196608]{0}', space=vmem, size = 0x30000, scoped, tag = 'input window, operand 9, single buffered']
    #allocation19 [shape = 'u8[512]{0}', space=vmem, size = 0x400, scoped, tag = 'input window, operand 10, single buffered']
    #allocation20 [shape = 's32[1]{0}', space=sflag, size = 0x4, scoped, tag = 'scoped memory for rpnheatmap_forward.1']
    #allocation21 [shape = 'u8[196608]{0}', space=vmem, size = 0x30000, scoped, tag = 'input window, operand 11, single buffered']
    #allocation22 [shape = 'u8[512]{0}', space=vmem, size = 0x400, scoped, tag = 'input window, operand 12, single buffered']
    #allocation23 [shape = 's32[1]{0}', space=sflag, size = 0x4, scoped, tag = 'scoped memory for rpnheatmap_forward.1']
    #allocation24 [shape = 'u8[393216]{0}', space=vmem, size = 0x60000, scoped, tag = 'input window, operand 13, single buffered']
    #allocation25 [shape = 'u8[1024]{0}', space=vmem, size = 0x400, scoped, tag = 'input window, operand 14, single buffered']
    #allocation26 [shape = 's32[1]{0}', space=sflag, size = 0x4, scoped, tag = 'scoped memory for rpnheatmap_forward.1']
    #allocation27 [shape = 'u8[512]{0}', space=vmem, size = 0x400, scoped, tag = 'input window, operand 15, single buffered']
    #allocation28 [shape = 'u8[512]{0}', space=vmem, size = 0x400, scoped, tag = 'input window, operand 17, single buffered']
    #allocation29 [shape = 's32[1]{0}', space=sflag, size = 0x4, scoped, tag = 'scoped memory for rpnheatmap_forward.1']
    #allocation30 [shape = 'u8[262144]{0}', space=vmem, size = 0x40000, scoped, tag = 'input window, operand 19, single buffered']
    #allocation31 [shape = 'u8[16384]{0}', space=vmem, size = 0x4000, scoped, tag = 'input window, operand 20, single buffered']
    #allocation32 [shape = 's32[1]{0}', space=sflag, size = 0x4, scoped, tag = 'scoped memory for rpnheatmap_forward.1']
    #allocation33 [shape = 'u8[262144]{0}', space=vmem, size = 0x40000, scoped, tag = 'input window, operand 21, single buffered']
    #allocation34 [shape = 'u8[262144]{0}', space=vmem, size = 0x40000, scoped, tag = 'input window, operand 23, single buffered']
    #allocation35 [shape = 's32[1]{0}', space=sflag, size = 0x4, scoped, tag = 'scoped memory for rpnheatmap_forward.1']
    #allocation36 [shape = 'u8[4096]{0}', space=vmem, size = 0x1000, scoped, tag = 'input window, operand 24, single buffered']
    %30 = vsyncpa [#allocation6], 0
    %s31 = scalar_lea.sflag [#allocation6], 1
    %32 = vsyncpa %s31, 0
    %33 = vsyncpa [#allocation8], 0
    %34 = vsyncpa [#allocation11], 0
    %35 = vsyncpa [#allocation14], 0
    %36 = vsyncpa [#allocation17], 0
    %37 = vsyncpa [#allocation20], 0
    %38 = vsyncpa [#allocation23], 0
    %39 = vsyncpa [#allocation26], 0
    %40 = vsyncpa [#allocation29], 0
    %41 = vsyncpa [#allocation32], 0
    %42 = vsyncpa [#allocation35], 0
    loop: start=0, step=1, limit=4
    $region2: #{rpnheatmap_forward.1} parent=1 // loop_pre_header
      _
    $region3: #{rpnheatmap_forward.1} parent=1 // loop_header
      %s44 = sphi 0, %s48
      %p45 = scmp.ge.s32.totalorder %s44, 4
      %s54 = sphi 0, %s56
      %s57 = sphi 0, %s54
      %s58 = sphi 0, %s57
      %s74 = sphi 0, %s58
      %s78 = sphi 0, %s78
      %s80 = sphi 0, %s78
      %s81 = sphi 0, %s80
      %s95 = sphi 0, %s81
      %s99 = sphi 0, %s99
      %s101 = sphi 0, %s99
      %s102 = sphi 0, %s101
      %s116 = sphi 0, %s102
      %s120 = sphi 0, %s120
      %s122 = sphi 0, %s120
      %s123 = sphi 0, %s122
      %s137 = sphi 0, %s123
      %s141 = sphi 0, %s141
      %s143 = sphi 0, %s141
      %s144 = sphi 0, %s143
      %s158 = sphi 0, %s144
      %s162 = sphi 0, %s162
      %s164 = sphi 0, %s162
      %s165 = sphi 0, %s164
      %s179 = sphi 0, %s165
      %s183 = sphi 0, %s183
      %s185 = sphi 0, %s183
      %s186 = sphi 0, %s185
      %s200 = sphi 0, %s186
      %s204 = sphi 0, %s204
      %s206 = sphi 0, %s204
      %s207 = sphi 0, %s206
      %s221 = sphi 0, %s207
      %s225 = sphi 0, %s225
      %s227 = sphi 0, %s225
      %s228 = sphi 0, %s227
      %s242 = sphi 0, %s228
      %s246 = sphi 0, %s246
      %s248 = sphi 0, %s246
      %s249 = sphi 0, %s248
      %s263 = sphi 0, %s249
      %s267 = sphi 0, %s267
      %s269 = sphi 0, %s267
      %s270 = sphi 0, %s269
      %s284 = sphi 0, %s270
      %s288 = sphi 0, %s288
      %s290 = sphi 0, %s288
      %s291 = sphi 0, %s290
      %s305 = sphi 0, %s291
      %s309 = sphi 0, %s309
      %s311 = sphi 0, %s309
      %s312 = sphi 0, %s311
      %s326 = sphi 0, %s312
      %s330 = sphi 0, %s330
      %s332 = sphi 0, %s330
      %s333 = sphi 0, %s332
      %s347 = sphi 0, %s333
      %s351 = sphi 0, %s351
      %s353 = sphi 0, %s351
      %s354 = sphi 0, %s353
      %s368 = sphi 0, %s354
      %s372 = sphi 0, %s372
      %s374 = sphi 0, %s372
      %s375 = sphi 0, %s374
      %s389 = sphi 0, %s375
      %s393 = sphi 0, %s393
      %s395 = sphi 0, %s393
      %s396 = sphi 0, %s395
      %s410 = sphi 0, %s396
      %s414 = sphi 0, %s414
      %s416 = sphi 0, %s414
      %s417 = sphi 0, %s416
      %s431 = sphi 0, %s417
      %s435 = sphi 0, %s435
      %s437 = sphi 0, %s435
      %s438 = sphi 0, %s437
      %s452 = sphi 0, %s438
      %s456 = sphi 0, %s456
      %s458 = sphi 0, %s456
      %s459 = sphi 0, %s458
      %s473 = sphi 0, %s459
      %s477 = sphi 0, %s477
      %s479 = sphi 0, %s477
      %s480 = sphi 0, %s479
      %s494 = sphi 0, %s480
      %s498 = sphi 0, %s498
      %s500 = sphi 0, %s498
      %s501 = sphi 0, %s500
      %s515 = sphi 0, %s501
      %s519 = sphi 0, %s519
      %s521 = sphi 0, %s519
      %s522 = sphi 0, %s521
      %s536 = sphi 0, %s522
      %s540 = sphi 0, %s540
      %s542 = sphi 0, %s540
      %s543 = sphi 0, %s542
      %s557 = sphi 0, %s543
      %s561 = sphi 0, %s561
      %s563 = sphi 0, %s561
      %s564 = sphi 0, %s563
      %s578 = sphi 0, %s564
      %s584 = sphi 0, %s586
      %s587 = sphi 0, %s584
      %s588 = sphi 0, %s587
      %s604 = sphi 0, %s588
    $region4: #{rpnheatmap_forward.1} parent=1 // loop_header_branch
      %47 = sbr.rel (%p45) target = $region8
    $region5: #{rpnheatmap_forward.1} parent=1 // loop_body
      %s49 = ssub.s32 %s44, 1
      %s50 = ssub.s32 %s44, 2
      %s51 = sadd.s32 %s44, 1
      %s52 = ssub.s32 %s44, %s51
      %p53 = scmp.eq.s32.totalorder %s52, 0
      %s55 = sadd.s32 %s54, 1
      %s56 = scalar_select %p53, %s54, %s55
      %p59 = pneg %p53
      %p60 = scmp.eq.s32.totalorder %s44, 1
      %p61 = por %p59, %p60
      %p62 = scmp.ne.s32.totalorder %s54, %s57
      %p63 = scmp.eq.s32.totalorder %s44, 0
      %p64 = por %p62, %p63
      %p65 = scmp.ne.s32.totalorder %s54, %s57
      %p66 = scmp.eq.s32.totalorder %s49, 1
      %p67 = por %p65, %p66
      %p68 = scmp.ne.s32.totalorder %s57, %s58
      %p69 = scmp.eq.s32.totalorder %s49, 0
      %p70 = por %p68, %p69
      %p71 = scmp.ne.s32.totalorder %s57, %s58
      %p72 = scmp.eq.s32.totalorder %s50, 1
      %p73 = por %p71, %p72
      %p75 = scmp.ne.s32.totalorder %s58, %s74
      %p76 = scmp.eq.s32.totalorder %s50, 0
      %p77 = por %p75, %p76
      %s79 = sadd.s32 %s78, 1
      %p82 = scmp.eq.s32.totalorder %s44, 1
      %p83 = scmp.ne.s32.totalorder %s78, %s80
      %p84 = scmp.eq.s32.totalorder %s44, 0
      %p85 = por %p83, %p84
      %p86 = scmp.ne.s32.totalorder %s78, %s80
      %p87 = scmp.eq.s32.totalorder %s49, 1
      %p88 = por %p86, %p87
      %p89 = scmp.ne.s32.totalorder %s80, %s81
      %p90 = scmp.eq.s32.totalorder %s49, 0
      %p91 = por %p89, %p90
      %p92 = scmp.ne.s32.totalorder %s80, %s81
      %p93 = scmp.eq.s32.totalorder %s50, 1
      %p94 = por %p92, %p93
      %p96 = scmp.ne.s32.totalorder %s81, %s95
      %p97 = scmp.eq.s32.totalorder %s50, 0
      %p98 = por %p96, %p97
      %s100 = sadd.s32 %s99, 1
      %p103 = scmp.eq.s32.totalorder %s44, 1
      %p104 = scmp.ne.s32.totalorder %s99, %s101
      %p105 = scmp.eq.s32.totalorder %s44, 0
      %p106 = por %p104, %p105
      %p107 = scmp.ne.s32.totalorder %s99, %s101
      %p108 = scmp.eq.s32.totalorder %s49, 1
      %p109 = por %p107, %p108
      %p110 = scmp.ne.s32.totalorder %s101, %s102
      %p111 = scmp.eq.s32.totalorder %s49, 0
      %p112 = por %p110, %p111
      %p113 = scmp.ne.s32.totalorder %s101, %s102
      %p114 = scmp.eq.s32.totalorder %s50, 1
      %p115 = por %p113, %p114
      %p117 = scmp.ne.s32.totalorder %s102, %s116
      %p118 = scmp.eq.s32.totalorder %s50, 0
      %p119 = por %p117, %p118
      %s121 = sadd.s32 %s120, 1
      %p124 = scmp.eq.s32.totalorder %s44, 1
      %p125 = scmp.ne.s32.totalorder %s120, %s122
      %p126 = scmp.eq.s32.totalorder %s44, 0
      %p127 = por %p125, %p126
      %p128 = scmp.ne.s32.totalorder %s120, %s122
      %p129 = scmp.eq.s32.totalorder %s49, 1
      %p130 = por %p128, %p129
      %p131 = scmp.ne.s32.totalorder %s122, %s123
      %p132 = scmp.eq.s32.totalorder %s49, 0
      %p133 = por %p131, %p132
      %p134 = scmp.ne.s32.totalorder %s122, %s123
      %p135 = scmp.eq.s32.totalorder %s50, 1
      %p136 = por %p134, %p135
      %p138 = scmp.ne.s32.totalorder %s123, %s137
      %p139 = scmp.eq.s32.totalorder %s50, 0
      %p140 = por %p138, %p139
      %s142 = sadd.s32 %s141, 1
      %p145 = scmp.eq.s32.totalorder %s44, 1
      %p146 = scmp.ne.s32.totalorder %s141, %s143
      %p147 = scmp.eq.s32.totalorder %s44, 0
      %p148 = por %p146, %p147
      %p149 = scmp.ne.s32.totalorder %s141, %s143
      %p150 = scmp.eq.s32.totalorder %s49, 1
      %p151 = por %p149, %p150
      %p152 = scmp.ne.s32.totalorder %s143, %s144
      %p153 = scmp.eq.s32.totalorder %s49, 0
      %p154 = por %p152, %p153
      %p155 = scmp.ne.s32.totalorder %s143, %s144
      %p156 = scmp.eq.s32.totalorder %s50, 1
      %p157 = por %p155, %p156
      %p159 = scmp.ne.s32.totalorder %s144, %s158
      %p160 = scmp.eq.s32.totalorder %s50, 0
      %p161 = por %p159, %p160
      %s163 = sadd.s32 %s162, 1
      %p166 = scmp.eq.s32.totalorder %s44, 1
      %p167 = scmp.ne.s32.totalorder %s162, %s164
      %p168 = scmp.eq.s32.totalorder %s44, 0
      %p169 = por %p167, %p168
      %p170 = scmp.ne.s32.totalorder %s162, %s164
      %p171 = scmp.eq.s32.totalorder %s49, 1
      %p172 = por %p170, %p171
      %p173 = scmp.ne.s32.totalorder %s164, %s165
      %p174 = scmp.eq.s32.totalorder %s49, 0
      %p175 = por %p173, %p174
      %p176 = scmp.ne.s32.totalorder %s164, %s165
      %p177 = scmp.eq.s32.totalorder %s50, 1
      %p178 = por %p176, %p177
      %p180 = scmp.ne.s32.totalorder %s165, %s179
      %p181 = scmp.eq.s32.totalorder %s50, 0
      %p182 = por %p180, %p181
      %s184 = sadd.s32 %s183, 1
      %p187 = scmp.eq.s32.totalorder %s44, 1
      %p188 = scmp.ne.s32.totalorder %s183, %s185
      %p189 = scmp.eq.s32.totalorder %s44, 0
      %p190 = por %p188, %p189
      %p191 = scmp.ne.s32.totalorder %s183, %s185
      %p192 = scmp.eq.s32.totalorder %s49, 1
      %p193 = por %p191, %p192
      %p194 = scmp.ne.s32.totalorder %s185, %s186
      %p195 = scmp.eq.s32.totalorder %s49, 0
      %p196 = por %p194, %p195
      %p197 = scmp.ne.s32.totalorder %s185, %s186
      %p198 = scmp.eq.s32.totalorder %s50, 1
      %p199 = por %p197, %p198
      %p201 = scmp.ne.s32.totalorder %s186, %s200
      %p202 = scmp.eq.s32.totalorder %s50, 0
      %p203 = por %p201, %p202
      %s205 = sadd.s32 %s204, 1
      %p208 = scmp.eq.s32.totalorder %s44, 1
      %p209 = scmp.ne.s32.totalorder %s204, %s206
      %p210 = scmp.eq.s32.totalorder %s44, 0
      %p211 = por %p209, %p210
      %p212 = scmp.ne.s32.totalorder %s204, %s206
      %p213 = scmp.eq.s32.totalorder %s49, 1
      %p214 = por %p212, %p213
      %p215 = scmp.ne.s32.totalorder %s206, %s207
      %p216 = scmp.eq.s32.totalorder %s49, 0
      %p217 = por %p215, %p216
      %p218 = scmp.ne.s32.totalorder %s206, %s207
      %p219 = scmp.eq.s32.totalorder %s50, 1
      %p220 = por %p218, %p219
      %p222 = scmp.ne.s32.totalorder %s207, %s221
      %p223 = scmp.eq.s32.totalorder %s50, 0
      %p224 = por %p222, %p223
      %s226 = sadd.s32 %s225, 1
      %p229 = scmp.eq.s32.totalorder %s44, 1
      %p230 = scmp.ne.s32.totalorder %s225, %s227
      %p231 = scmp.eq.s32.totalorder %s44, 0
      %p232 = por %p230, %p231
      %p233 = scmp.ne.s32.totalorder %s225, %s227
      %p234 = scmp.eq.s32.totalorder %s49, 1
      %p235 = por %p233, %p234
      %p236 = scmp.ne.s32.totalorder %s227, %s228
      %p237 = scmp.eq.s32.totalorder %s49, 0
      %p238 = por %p236, %p237
      %p239 = scmp.ne.s32.totalorder %s227, %s228
      %p240 = scmp.eq.s32.totalorder %s50, 1
      %p241 = por %p239, %p240
      %p243 = scmp.ne.s32.totalorder %s228, %s242
      %p244 = scmp.eq.s32.totalorder %s50, 0
      %p245 = por %p243, %p244
      %s247 = sadd.s32 %s246, 1
      %p250 = scmp.eq.s32.totalorder %s44, 1
      %p251 = scmp.ne.s32.totalorder %s246, %s248
      %p252 = scmp.eq.s32.totalorder %s44, 0
      %p253 = por %p251, %p252
      %p254 = scmp.ne.s32.totalorder %s246, %s248
      %p255 = scmp.eq.s32.totalorder %s49, 1
      %p256 = por %p254, %p255
      %p257 = scmp.ne.s32.totalorder %s248, %s249
      %p258 = scmp.eq.s32.totalorder %s49, 0
      %p259 = por %p257, %p258
      %p260 = scmp.ne.s32.totalorder %s248, %s249
      %p261 = scmp.eq.s32.totalorder %s50, 1
      %p262 = por %p260, %p261
      %p264 = scmp.ne.s32.totalorder %s249, %s263
      %p265 = scmp.eq.s32.totalorder %s50, 0
      %p266 = por %p264, %p265
      %s268 = sadd.s32 %s267, 1
      %p271 = scmp.eq.s32.totalorder %s44, 1
      %p272 = scmp.ne.s32.totalorder %s267, %s269
      %p273 = scmp.eq.s32.totalorder %s44, 0
      %p274 = por %p272, %p273
      %p275 = scmp.ne.s32.totalorder %s267, %s269
      %p276 = scmp.eq.s32.totalorder %s49, 1
      %p277 = por %p275, %p276
      %p278 = scmp.ne.s32.totalorder %s269, %s270
      %p279 = scmp.eq.s32.totalorder %s49, 0
      %p280 = por %p278, %p279
      %p281 = scmp.ne.s32.totalorder %s269, %s270
      %p282 = scmp.eq.s32.totalorder %s50, 1
      %p283 = por %p281, %p282
      %p285 = scmp.ne.s32.totalorder %s270, %s284
      %p286 = scmp.eq.s32.totalorder %s50, 0
      %p287 = por %p285, %p286
      %s289 = sadd.s32 %s288, 1
      %p292 = scmp.eq.s32.totalorder %s44, 1
      %p293 = scmp.ne.s32.totalorder %s288, %s290
      %p294 = scmp.eq.s32.totalorder %s44, 0
      %p295 = por %p293, %p294
      %p296 = scmp.ne.s32.totalorder %s288, %s290
      %p297 = scmp.eq.s32.totalorder %s49, 1
      %p298 = por %p296, %p297
      %p299 = scmp.ne.s32.totalorder %s290, %s291
      %p300 = scmp.eq.s32.totalorder %s49, 0
      %p301 = por %p299, %p300
      %p302 = scmp.ne.s32.totalorder %s290, %s291
      %p303 = scmp.eq.s32.totalorder %s50, 1
      %p304 = por %p302, %p303
      %p306 = scmp.ne.s32.totalorder %s291, %s305
      %p307 = scmp.eq.s32.totalorder %s50, 0
      %p308 = por %p306, %p307
      %s310 = sadd.s32 %s309, 1
      %p313 = scmp.eq.s32.totalorder %s44, 1
      %p314 = scmp.ne.s32.totalorder %s309, %s311
      %p315 = scmp.eq.s32.totalorder %s44, 0
      %p316 = por %p314, %p315
      %p317 = scmp.ne.s32.totalorder %s309, %s311
      %p318 = scmp.eq.s32.totalorder %s49, 1
      %p319 = por %p317, %p318
      %p320 = scmp.ne.s32.totalorder %s311, %s312
      %p321 = scmp.eq.s32.totalorder %s49, 0
      %p322 = por %p320, %p321
      %p323 = scmp.ne.s32.totalorder %s311, %s312
      %p324 = scmp.eq.s32.totalorder %s50, 1
      %p325 = por %p323, %p324
      %p327 = scmp.ne.s32.totalorder %s312, %s326
      %p328 = scmp.eq.s32.totalorder %s50, 0
      %p329 = por %p327, %p328
      %s331 = sadd.s32 %s330, 1
      %p334 = scmp.eq.s32.totalorder %s44, 1
      %p335 = scmp.ne.s32.totalorder %s330, %s332
      %p336 = scmp.eq.s32.totalorder %s44, 0
      %p337 = por %p335, %p336
      %p338 = scmp.ne.s32.totalorder %s330, %s332
      %p339 = scmp.eq.s32.totalorder %s49, 1
      %p340 = por %p338, %p339
      %p341 = scmp.ne.s32.totalorder %s332, %s333
      %p342 = scmp.eq.s32.totalorder %s49, 0
      %p343 = por %p341, %p342
      %p344 = scmp.ne.s32.totalorder %s332, %s333
      %p345 = scmp.eq.s32.totalorder %s50, 1
      %p346 = por %p344, %p345
      %p348 = scmp.ne.s32.totalorder %s333, %s347
      %p349 = scmp.eq.s32.totalorder %s50, 0
      %p350 = por %p348, %p349
      %s352 = sadd.s32 %s351, 1
      %p355 = scmp.eq.s32.totalorder %s44, 1
      %p356 = scmp.ne.s32.totalorder %s351, %s353
      %p357 = scmp.eq.s32.totalorder %s44, 0
      %p358 = por %p356, %p357
      %p359 = scmp.ne.s32.totalorder %s351, %s353
      %p360 = scmp.eq.s32.totalorder %s49, 1
      %p361 = por %p359, %p360
      %p362 = scmp.ne.s32.totalorder %s353, %s354
      %p363 = scmp.eq.s32.totalorder %s49, 0
      %p364 = por %p362, %p363
      %p365 = scmp.ne.s32.totalorder %s353, %s354
      %p366 = scmp.eq.s32.totalorder %s50, 1
      %p367 = por %p365, %p366
      %p369 = scmp.ne.s32.totalorder %s354, %s368
      %p370 = scmp.eq.s32.totalorder %s50, 0
      %p371 = por %p369, %p370
      %s373 = sadd.s32 %s372, 1
      %p376 = scmp.eq.s32.totalorder %s44, 1
      %p377 = scmp.ne.s32.totalorder %s372, %s374
      %p378 = scmp.eq.s32.totalorder %s44, 0
      %p379 = por %p377, %p378
      %p380 = scmp.ne.s32.totalorder %s372, %s374
      %p381 = scmp.eq.s32.totalorder %s49, 1
      %p382 = por %p380, %p381
      %p383 = scmp.ne.s32.totalorder %s374, %s375
      %p384 = scmp.eq.s32.totalorder %s49, 0
      %p385 = por %p383, %p384
      %p386 = scmp.ne.s32.totalorder %s374, %s375
      %p387 = scmp.eq.s32.totalorder %s50, 1
      %p388 = por %p386, %p387
      %p390 = scmp.ne.s32.totalorder %s375, %s389
      %p391 = scmp.eq.s32.totalorder %s50, 0
      %p392 = por %p390, %p391
      %s394 = sadd.s32 %s393, 1
      %p397 = scmp.eq.s32.totalorder %s44, 1
      %p398 = scmp.ne.s32.totalorder %s393, %s395
      %p399 = scmp.eq.s32.totalorder %s44, 0
      %p400 = por %p398, %p399
      %p401 = scmp.ne.s32.totalorder %s393, %s395
      %p402 = scmp.eq.s32.totalorder %s49, 1
      %p403 = por %p401, %p402
      %p404 = scmp.ne.s32.totalorder %s395, %s396
      %p405 = scmp.eq.s32.totalorder %s49, 0
      %p406 = por %p404, %p405
      %p407 = scmp.ne.s32.totalorder %s395, %s396
      %p408 = scmp.eq.s32.totalorder %s50, 1
      %p409 = por %p407, %p408
      %p411 = scmp.ne.s32.totalorder %s396, %s410
      %p412 = scmp.eq.s32.totalorder %s50, 0
      %p413 = por %p411, %p412
      %s415 = sadd.s32 %s414, 1
      %p418 = scmp.eq.s32.totalorder %s44, 1
      %p419 = scmp.ne.s32.totalorder %s414, %s416
      %p420 = scmp.eq.s32.totalorder %s44, 0
      %p421 = por %p419, %p420
      %p422 = scmp.ne.s32.totalorder %s414, %s416
      %p423 = scmp.eq.s32.totalorder %s49, 1
      %p424 = por %p422, %p423
      %p425 = scmp.ne.s32.totalorder %s416, %s417
      %p426 = scmp.eq.s32.totalorder %s49, 0
      %p427 = por %p425, %p426
      %p428 = scmp.ne.s32.totalorder %s416, %s417
      %p429 = scmp.eq.s32.totalorder %s50, 1
      %p430 = por %p428, %p429
      %p432 = scmp.ne.s32.totalorder %s417, %s431
      %p433 = scmp.eq.s32.totalorder %s50, 0
      %p434 = por %p432, %p433
      %s436 = sadd.s32 %s435, 1
      %p439 = scmp.eq.s32.totalorder %s44, 1
      %p440 = scmp.ne.s32.totalorder %s435, %s437
      %p441 = scmp.eq.s32.totalorder %s44, 0
      %p442 = por %p440, %p441
      %p443 = scmp.ne.s32.totalorder %s435, %s437
      %p444 = scmp.eq.s32.totalorder %s49, 1
      %p445 = por %p443, %p444
      %p446 = scmp.ne.s32.totalorder %s437, %s438
      %p447 = scmp.eq.s32.totalorder %s49, 0
      %p448 = por %p446, %p447
      %p449 = scmp.ne.s32.totalorder %s437, %s438
      %p450 = scmp.eq.s32.totalorder %s50, 1
      %p451 = por %p449, %p450
      %p453 = scmp.ne.s32.totalorder %s438, %s452
      %p454 = scmp.eq.s32.totalorder %s50, 0
      %p455 = por %p453, %p454
      %s457 = sadd.s32 %s456, 1
      %p460 = scmp.eq.s32.totalorder %s44, 1
      %p461 = scmp.ne.s32.totalorder %s456, %s458
      %p462 = scmp.eq.s32.totalorder %s44, 0
      %p463 = por %p461, %p462
      %p464 = scmp.ne.s32.totalorder %s456, %s458
      %p465 = scmp.eq.s32.totalorder %s49, 1
      %p466 = por %p464, %p465
      %p467 = scmp.ne.s32.totalorder %s458, %s459
      %p468 = scmp.eq.s32.totalorder %s49, 0
      %p469 = por %p467, %p468
      %p470 = scmp.ne.s32.totalorder %s458, %s459
      %p471 = scmp.eq.s32.totalorder %s50, 1
      %p472 = por %p470, %p471
      %p474 = scmp.ne.s32.totalorder %s459, %s473
      %p475 = scmp.eq.s32.totalorder %s50, 0
      %p476 = por %p474, %p475
      %s478 = sadd.s32 %s477, 1
      %p481 = scmp.eq.s32.totalorder %s44, 1
      %p482 = scmp.ne.s32.totalorder %s477, %s479
      %p483 = scmp.eq.s32.totalorder %s44, 0
      %p484 = por %p482, %p483
      %p485 = scmp.ne.s32.totalorder %s477, %s479
      %p486 = scmp.eq.s32.totalorder %s49, 1
      %p487 = por %p485, %p486
      %p488 = scmp.ne.s32.totalorder %s479, %s480
      %p489 = scmp.eq.s32.totalorder %s49, 0
      %p490 = por %p488, %p489
      %p491 = scmp.ne.s32.totalorder %s479, %s480
      %p492 = scmp.eq.s32.totalorder %s50, 1
      %p493 = por %p491, %p492
      %p495 = scmp.ne.s32.totalorder %s480, %s494
      %p496 = scmp.eq.s32.totalorder %s50, 0
      %p497 = por %p495, %p496
      %s499 = sadd.s32 %s498, 1
      %p502 = scmp.eq.s32.totalorder %s44, 1
      %p503 = scmp.ne.s32.totalorder %s498, %s500
      %p504 = scmp.eq.s32.totalorder %s44, 0
      %p505 = por %p503, %p504
      %p506 = scmp.ne.s32.totalorder %s498, %s500
      %p507 = scmp.eq.s32.totalorder %s49, 1
      %p508 = por %p506, %p507
      %p509 = scmp.ne.s32.totalorder %s500, %s501
      %p510 = scmp.eq.s32.totalorder %s49, 0
      %p511 = por %p509, %p510
      %p512 = scmp.ne.s32.totalorder %s500, %s501
      %p513 = scmp.eq.s32.totalorder %s50, 1
      %p514 = por %p512, %p513
      %p516 = scmp.ne.s32.totalorder %s501, %s515
      %p517 = scmp.eq.s32.totalorder %s50, 0
      %p518 = por %p516, %p517
      %s520 = sadd.s32 %s519, 1
      %p523 = scmp.eq.s32.totalorder %s44, 1
      %p524 = scmp.ne.s32.totalorder %s519, %s521
      %p525 = scmp.eq.s32.totalorder %s44, 0
      %p526 = por %p524, %p525
      %p527 = scmp.ne.s32.totalorder %s519, %s521
      %p528 = scmp.eq.s32.totalorder %s49, 1
      %p529 = por %p527, %p528
      %p530 = scmp.ne.s32.totalorder %s521, %s522
      %p531 = scmp.eq.s32.totalorder %s49, 0
      %p532 = por %p530, %p531
      %p533 = scmp.ne.s32.totalorder %s521, %s522
      %p534 = scmp.eq.s32.totalorder %s50, 1
      %p535 = por %p533, %p534
      %p537 = scmp.ne.s32.totalorder %s522, %s536
      %p538 = scmp.eq.s32.totalorder %s50, 0
      %p539 = por %p537, %p538
      %s541 = sadd.s32 %s540, 1
      %p544 = scmp.eq.s32.totalorder %s44, 1
      %p545 = scmp.ne.s32.totalorder %s540, %s542
      %p546 = scmp.eq.s32.totalorder %s44, 0
      %p547 = por %p545, %p546
      %p548 = scmp.ne.s32.totalorder %s540, %s542
      %p549 = scmp.eq.s32.totalorder %s49, 1
      %p550 = por %p548, %p549
      %p551 = scmp.ne.s32.totalorder %s542, %s543
      %p552 = scmp.eq.s32.totalorder %s49, 0
      %p553 = por %p551, %p552
      %p554 = scmp.ne.s32.totalorder %s542, %s543
      %p555 = scmp.eq.s32.totalorder %s50, 1
      %p556 = por %p554, %p555
      %p558 = scmp.ne.s32.totalorder %s543, %s557
      %p559 = scmp.eq.s32.totalorder %s50, 0
      %p560 = por %p558, %p559
      %s562 = sadd.s32 %s561, 1
      %p565 = scmp.eq.s32.totalorder %s44, 1
      %p566 = scmp.ne.s32.totalorder %s561, %s563
      %p567 = scmp.eq.s32.totalorder %s44, 0
      %p568 = por %p566, %p567
      %p569 = scmp.ne.s32.totalorder %s561, %s563
      %p570 = scmp.eq.s32.totalorder %s49, 1
      %p571 = por %p569, %p570
      %p572 = scmp.ne.s32.totalorder %s563, %s564
      %p573 = scmp.eq.s32.totalorder %s49, 0
      %p574 = por %p572, %p573
      %p575 = scmp.ne.s32.totalorder %s563, %s564
      %p576 = scmp.eq.s32.totalorder %s50, 1
      %p577 = por %p575, %p576
      %p579 = scmp.ne.s32.totalorder %s564, %s578
      %p580 = scmp.eq.s32.totalorder %s50, 0
      %p581 = por %p579, %p580
      %s582 = ssub.s32 %s44, %s51
      %p583 = scmp.eq.s32.totalorder %s582, 0
      %s585 = sadd.s32 %s584, 1
      %s586 = scalar_select %p583, %s584, %s585
      %p589 = pneg %p583
      %p590 = scmp.eq.s32.totalorder %s44, 1
      %p591 = por %p589, %p590
      %p592 = scmp.ne.s32.totalorder %s584, %s587
      %p593 = scmp.eq.s32.totalorder %s44, 0
      %p594 = por %p592, %p593
      %p595 = scmp.ne.s32.totalorder %s584, %s587
      %p596 = scmp.eq.s32.totalorder %s49, 1
      %p597 = por %p595, %p596
      %p598 = scmp.ne.s32.totalorder %s587, %s588
      %p599 = scmp.eq.s32.totalorder %s49, 0
      %p600 = por %p598, %p599
      %p601 = scmp.ne.s32.totalorder %s587, %s588
      %p602 = scmp.eq.s32.totalorder %s50, 1
      %p603 = por %p601, %p602
      %p605 = scmp.ne.s32.totalorder %s588, %s604
      %p606 = scmp.eq.s32.totalorder %s50, 0
      %p607 = por %p605, %p606
      %p608 = scmp.le.s32.totalorder 1, %s44
      %p609 = scmp.lt.s32.totalorder %s44, 3
      %p610 = pnand %p608, %p609
      %p611 = pneg %p610
      // Predicated region
      $region9: #{rpnheatmap_forward.1} parent=5 // pred_check
        _
      $region10: #{rpnheatmap_forward.1} parent=5 // pred_check_branch
        %613 = sbr.rel (%p610) target = $region12
      $region11: #{rpnheatmap_forward.1} parent=5 // pred_region
        %s614 = ssub.s32 %s44, 1
        // Predicated region
        $region13: #{rpnheatmap_forward.1} parent=11 // pred_check
          %p615 = pneg %p91
        $region14: #{rpnheatmap_forward.1} parent=11 // pred_check_branch
          %617 = sbr.rel (%p615) target = $region16
        $region15: #{rpnheatmap_forward.1} parent=11 // pred_region
          %s619 = ssub.s32 5120, 5120
          %620 = vsyncadd [#allocation8], %s619
          %s621 = sshll.u32 [#allocation7], 4
          %s622 = int_to_ptr.vmem [resolvable:$true] %s621
          %627 = dma.hbm_to_vmem [thread:$0]  %s1, 5120, %s622, [#allocation8], 256, 256, 16
        $region16: #{rpnheatmap_forward.1} parent=11 // pred_fallthru
          _
        // Predicated region
        $region17: #{rpnheatmap_forward.1} parent=11 // pred_check
          %p628 = pneg %p112
        $region18: #{rpnheatmap_forward.1} parent=11 // pred_check_branch
          %630 = sbr.rel (%p628) target = $region20
        $region19: #{rpnheatmap_forward.1} parent=11 // pred_region
          %s632 = ssub.s32 32, 32
          %633 = vsyncadd [#allocation8], %s632
          %s635 = sshll.u32 [#allocation9], 4
          %s636 = int_to_ptr.vmem [resolvable:$true] %s635
          %638 = dma.hbm_to_vmem [thread:$0]  %s2, 32, %s636, [#allocation8]
        $region20: #{rpnheatmap_forward.1} parent=11 // pred_fallthru
          _
        // Predicated region
        $region21: #{rpnheatmap_forward.1} parent=11 // pred_check
          %p639 = pneg %p133
        $region22: #{rpnheatmap_forward.1} parent=11 // pred_check_branch
          %641 = sbr.rel (%p639) target = $region24
        $region23: #{rpnheatmap_forward.1} parent=11 // pred_region
          %s643 = ssub.s32 6144, 6144
          %644 = vsyncadd [#allocation11], %s643
          %s645 = sshll.u32 [#allocation10], 4
          %s646 = int_to_ptr.vmem [resolvable:$true] %s645
          %651 = dma.hbm_to_vmem [thread:$0]  %s3, 6144, %s646, [#allocation11], 128, 128, 8
        $region24: #{rpnheatmap_forward.1} parent=11 // pred_fallthru
          _
        // Predicated region
        $region25: #{rpnheatmap_forward.1} parent=11 // pred_check
          %p652 = pneg %p154
        $region26: #{rpnheatmap_forward.1} parent=11 // pred_check_branch
          %654 = sbr.rel (%p652) target = $region28
        $region27: #{rpnheatmap_forward.1} parent=11 // pred_region
          %s656 = ssub.s32 16, 16
          %657 = vsyncadd [#allocation11], %s656
          %s659 = sshll.u32 [#allocation12], 4
          %s660 = int_to_ptr.vmem [resolvable:$true] %s659
          %662 = dma.hbm_to_vmem [thread:$0]  %s4, 16, %s660, [#allocation11]
        $region28: #{rpnheatmap_forward.1} parent=11 // pred_fallthru
          _
        // Predicated region
        $region29: #{rpnheatmap_forward.1} parent=11 // pred_check
          %p663 = pneg %p175
        $region30: #{rpnheatmap_forward.1} parent=11 // pred_check_branch
          %665 = sbr.rel (%p663) target = $region32
        $region31: #{rpnheatmap_forward.1} parent=11 // pred_region
          %s667 = ssub.s32 6144, 6144
          %668 = vsyncadd [#allocation14], %s667
          %s669 = sshll.u32 [#allocation13], 4
          %s670 = int_to_ptr.vmem [resolvable:$true] %s669
          %675 = dma.hbm_to_vmem [thread:$0]  %s5, 6144, %s670, [#allocation14], 128, 128, 8
        $region32: #{rpnheatmap_forward.1} parent=11 // pred_fallthru
          _
        // Predicated region
        $region33: #{rpnheatmap_forward.1} parent=11 // pred_check
          %p676 = pneg %p196
        $region34: #{rpnheatmap_forward.1} parent=11 // pred_check_branch
          %678 = sbr.rel (%p676) target = $region36
        $region35: #{rpnheatmap_forward.1} parent=11 // pred_region
          %s680 = ssub.s32 16, 16
          %681 = vsyncadd [#allocation14], %s680
          %s683 = sshll.u32 [#allocation15], 4
          %s684 = int_to_ptr.vmem [resolvable:$true] %s683
          %686 = dma.hbm_to_vmem [thread:$0]  %s6, 16, %s684, [#allocation14]
        $region36: #{rpnheatmap_forward.1} parent=11 // pred_fallthru
          _
        // Predicated region
        $region37: #{rpnheatmap_forward.1} parent=11 // pred_check
          %p687 = pneg %p217
        $region38: #{rpnheatmap_forward.1} parent=11 // pred_check_branch
          %689 = sbr.rel (%p687) target = $region40
        $region39: #{rpnheatmap_forward.1} parent=11 // pred_region
          %s691 = ssub.s32 12288, 12288
          %692 = vsyncadd [#allocation17], %s691
          %s693 = sshll.u32 [#allocation16], 4
          %s694 = int_to_ptr.vmem [resolvable:$true] %s693
          %699 = dma.hbm_to_vmem [thread:$0]  %s7, 12288, %s694, [#allocation17], 256, 256, 16
        $region40: #{rpnheatmap_forward.1} parent=11 // pred_fallthru
          _
        // Predicated region
        $region41: #{rpnheatmap_forward.1} parent=11 // pred_check
          %p700 = pneg %p238
        $region42: #{rpnheatmap_forward.1} parent=11 // pred_check_branch
          %702 = sbr.rel (%p700) target = $region44
        $region43: #{rpnheatmap_forward.1} parent=11 // pred_region
          _
        $region44: #{rpnheatmap_forward.1} parent=11 // pred_fallthru
          _
        // Predicated region
        $region45: #{rpnheatmap_forward.1} parent=11 // pred_check
          %p703 = pneg %p259
        $region46: #{rpnheatmap_forward.1} parent=11 // pred_check_branch
          %705 = sbr.rel (%p703) target = $region48
        $region47: #{rpnheatmap_forward.1} parent=11 // pred_region
          %s707 = ssub.s32 6144, 6144
          %708 = vsyncadd [#allocation17], %s707
          %s709 = sshll.u32 [#allocation18], 4
          %s710 = int_to_ptr.vmem [resolvable:$true] %s709
          %715 = dma.hbm_to_vmem [thread:$0]  %s9, 6144, %s710, [#allocation17], 128, 128, 8
        $region48: #{rpnheatmap_forward.1} parent=11 // pred_fallthru
          _
        // Predicated region
        $region49: #{rpnheatmap_forward.1} parent=11 // pred_check
          %p716 = pneg %p280
        $region50: #{rpnheatmap_forward.1} parent=11 // pred_check_branch
          %718 = sbr.rel (%p716) target = $region52
        $region51: #{rpnheatmap_forward.1} parent=11 // pred_region
          %s720 = ssub.s32 16, 16
          %721 = vsyncadd [#allocation20], %s720
          %s723 = sshll.u32 [#allocation19], 4
          %s724 = int_to_ptr.vmem [resolvable:$true] %s723
          %726 = dma.hbm_to_vmem [thread:$0]  %s10, 16, %s724, [#allocation20]
        $region52: #{rpnheatmap_forward.1} parent=11 // pred_fallthru
          _
        // Predicated region
        $region53: #{rpnheatmap_forward.1} parent=11 // pred_check
          %p727 = pneg %p301
        $region54: #{rpnheatmap_forward.1} parent=11 // pred_check_branch
          %729 = sbr.rel (%p727) target = $region56
        $region55: #{rpnheatmap_forward.1} parent=11 // pred_region
          %s731 = ssub.s32 6144, 6144
          %732 = vsyncadd [#allocation20], %s731
          %s733 = sshll.u32 [#allocation21], 4
          %s734 = int_to_ptr.vmem [resolvable:$true] %s733
          %739 = dma.hbm_to_vmem [thread:$0]  %s11, 6144, %s734, [#allocation20], 128, 128, 8
        $region56: #{rpnheatmap_forward.1} parent=11 // pred_fallthru
          _
        // Predicated region
        $region57: #{rpnheatmap_forward.1} parent=11 // pred_check
          %p740 = pneg %p322
        $region58: #{rpnheatmap_forward.1} parent=11 // pred_check_branch
          %742 = sbr.rel (%p740) target = $region60
        $region59: #{rpnheatmap_forward.1} parent=11 // pred_region
          %s744 = ssub.s32 16, 16
          %745 = vsyncadd [#allocation23], %s744
          %s747 = sshll.u32 [#allocation22], 4
          %s748 = int_to_ptr.vmem [resolvable:$true] %s747
          %750 = dma.hbm_to_vmem [thread:$0]  %s12, 16, %s748, [#allocation23]
        $region60: #{rpnheatmap_forward.1} parent=11 // pred_fallthru
          _
        // Predicated region
        $region61: #{rpnheatmap_forward.1} parent=11 // pred_check
          %p751 = pneg %p343
        $region62: #{rpnheatmap_forward.1} parent=11 // pred_check_branch
          %753 = sbr.rel (%p751) target = $region64
        $region63: #{rpnheatmap_forward.1} parent=11 // pred_region
          %s755 = ssub.s32 12288, 12288
          %756 = vsyncadd [#allocation23], %s755
          %s757 = sshll.u32 [#allocation24], 4
          %s758 = int_to_ptr.vmem [resolvable:$true] %s757
          %763 = dma.hbm_to_vmem [thread:$0]  %s13, 12288, %s758, [#allocation23], 256, 256, 16
        $region64: #{rpnheatmap_forward.1} parent=11 // pred_fallthru
          _
        // Predicated region
        $region65: #{rpnheatmap_forward.1} parent=11 // pred_check
          %p764 = pneg %p364
        $region66: #{rpnheatmap_forward.1} parent=11 // pred_check_branch
          %766 = sbr.rel (%p764) target = $region68
        $region67: #{rpnheatmap_forward.1} parent=11 // pred_region
          %s768 = ssub.s32 32, 32
          %769 = vsyncadd [#allocation26], %s768
          %s771 = sshll.u32 [#allocation25], 4
          %s772 = int_to_ptr.vmem [resolvable:$true] %s771
          %774 = dma.hbm_to_vmem [thread:$0]  %s14, 32, %s772, [#allocation26]
        $region68: #{rpnheatmap_forward.1} parent=11 // pred_fallthru
          _
        // Predicated region
        $region69: #{rpnheatmap_forward.1} parent=11 // pred_check
          %p775 = pneg %p385
        $region70: #{rpnheatmap_forward.1} parent=11 // pred_check_branch
          %777 = sbr.rel (%p775) target = $region72
        $region71: #{rpnheatmap_forward.1} parent=11 // pred_region
          %s779 = ssub.s32 16, 16
          %780 = vsyncadd [#allocation26], %s779
          %s782 = sshll.u32 [#allocation27], 4
          %s783 = int_to_ptr.vmem [resolvable:$true] %s782
          %785 = dma.hbm_to_vmem [thread:$0]  %s15, 16, %s783, [#allocation26]
        $region72: #{rpnheatmap_forward.1} parent=11 // pred_fallthru
          _
        // Predicated region
        $region73: #{rpnheatmap_forward.1} parent=11 // pred_check
          %p786 = pneg %p406
        $region74: #{rpnheatmap_forward.1} parent=11 // pred_check_branch
          %788 = sbr.rel (%p786) target = $region76
        $region75: #{rpnheatmap_forward.1} parent=11 // pred_region
          _
        $region76: #{rpnheatmap_forward.1} parent=11 // pred_fallthru
          _
        // Predicated region
        $region77: #{rpnheatmap_forward.1} parent=11 // pred_check
          %p789 = pneg %p427
        $region78: #{rpnheatmap_forward.1} parent=11 // pred_check_branch
          %791 = sbr.rel (%p789) target = $region80
        $region79: #{rpnheatmap_forward.1} parent=11 // pred_region
          %s793 = ssub.s32 16, 16
          %794 = vsyncadd [#allocation29], %s793
          %s796 = sshll.u32 [#allocation28], 4
          %s797 = int_to_ptr.vmem [resolvable:$true] %s796
          %799 = dma.hbm_to_vmem [thread:$0]  %s17, 16, %s797, [#allocation29]
        $region80: #{rpnheatmap_forward.1} parent=11 // pred_fallthru
          _
        // Predicated region
        $region81: #{rpnheatmap_forward.1} parent=11 // pred_check
          %p800 = pneg %p448
        $region82: #{rpnheatmap_forward.1} parent=11 // pred_check_branch
          %802 = sbr.rel (%p800) target = $region84
        $region83: #{rpnheatmap_forward.1} parent=11 // pred_region
          _
        $region84: #{rpnheatmap_forward.1} parent=11 // pred_fallthru
          _
        // Predicated region
        $region85: #{rpnheatmap_forward.1} parent=11 // pred_check
          %p803 = pneg %p469
        $region86: #{rpnheatmap_forward.1} parent=11 // pred_check_branch
          %805 = sbr.rel (%p803) target = $region88
        $region87: #{rpnheatmap_forward.1} parent=11 // pred_region
          %s807 = ssub.s32 8192, 8192
          %808 = vsyncadd [#allocation29], %s807
          %s809 = sshll.u32 [#allocation30], 4
          %s810 = int_to_ptr.vmem [resolvable:$true] %s809
          %815 = dma.hbm_to_vmem [thread:$0]  %s19, 8192, %s810, [#allocation29], 128, 128, 8
        $region88: #{rpnheatmap_forward.1} parent=11 // pred_fallthru
          _
        // Predicated region
        $region89: #{rpnheatmap_forward.1} parent=11 // pred_check
          %p816 = pneg %p490
        $region90: #{rpnheatmap_forward.1} parent=11 // pred_check_branch
          %818 = sbr.rel (%p816) target = $region92
        $region91: #{rpnheatmap_forward.1} parent=11 // pred_region
          %s820 = ssub.s32 512, 512
          %821 = vsyncadd [#allocation32], %s820
          %s822 = sshll.u32 [#allocation31], 4
          %s823 = int_to_ptr.vmem [resolvable:$true] %s822
          %828 = dma.hbm_to_vmem [thread:$0]  %s20, 512, %s823, [#allocation32], 128, 128, 8
        $region92: #{rpnheatmap_forward.1} parent=11 // pred_fallthru
          _
        // Predicated region
        $region93: #{rpnheatmap_forward.1} parent=11 // pred_check
          %p829 = pneg %p511
        $region94: #{rpnheatmap_forward.1} parent=11 // pred_check_branch
          %831 = sbr.rel (%p829) target = $region96
        $region95: #{rpnheatmap_forward.1} parent=11 // pred_region
          %s833 = ssub.s32 8192, 8192
          %834 = vsyncadd [#allocation32], %s833
          %s835 = sshll.u32 [#allocation33], 4
          %s836 = int_to_ptr.vmem [resolvable:$true] %s835
          %841 = dma.hbm_to_vmem [thread:$0]  %s21, 8192, %s836, [#allocation32], 128, 128, 8
        $region96: #{rpnheatmap_forward.1} parent=11 // pred_fallthru
          _
        // Predicated region
        $region97: #{rpnheatmap_forward.1} parent=11 // pred_check
          %p842 = pneg %p532
        $region98: #{rpnheatmap_forward.1} parent=11 // pred_check_branch
          %844 = sbr.rel (%p842) target = $region100
        $region99: #{rpnheatmap_forward.1} parent=11 // pred_region
          _
        $region100: #{rpnheatmap_forward.1} parent=11 // pred_fallthru
          _
        // Predicated region
        $region101: #{rpnheatmap_forward.1} parent=11 // pred_check
          %p845 = pneg %p553
        $region102: #{rpnheatmap_forward.1} parent=11 // pred_check_branch
          %847 = sbr.rel (%p845) target = $region104
        $region103: #{rpnheatmap_forward.1} parent=11 // pred_region
          %s849 = ssub.s32 8192, 8192
          %850 = vsyncadd [#allocation35], %s849
          %s851 = sshll.u32 [#allocation34], 4
          %s852 = int_to_ptr.vmem [resolvable:$true] %s851
          %857 = dma.hbm_to_vmem [thread:$0]  %s23, 8192, %s852, [#allocation35], 128, 128, 8
        $region104: #{rpnheatmap_forward.1} parent=11 // pred_fallthru
          _
        // Predicated region
        $region105: #{rpnheatmap_forward.1} parent=11 // pred_check
          %p858 = pneg %p574
        $region106: #{rpnheatmap_forward.1} parent=11 // pred_check_branch
          %860 = sbr.rel (%p858) target = $region108
        $region107: #{rpnheatmap_forward.1} parent=11 // pred_region
          %s862 = ssub.s32 128, 128
          %863 = vsyncadd [#allocation35], %s862
          %s864 = sshll.u32 [#allocation36], 4
          %s865 = int_to_ptr.vmem [resolvable:$true] %s864
          %870 = dma.hbm_to_vmem [thread:$0]  %s24, 128, %s865, [#allocation35], 64, 64, 4
        $region108: #{rpnheatmap_forward.1} parent=11 // pred_fallthru
          _
      $region12: #{rpnheatmap_forward.1} parent=5 // pred_fallthru
        _
      %p871 = scmp.lt.s32.totalorder %s44, 2
      // Predicated region
      $region109: #{rpnheatmap_forward.1} parent=5 // pred_check
        %p872 = pneg %p871
      $region110: #{rpnheatmap_forward.1} parent=5 // pred_check_branch
        %874 = sbr.rel (%p872) target = $region112
      $region111: #{rpnheatmap_forward.1} parent=5 // pred_region
        // Predicated region
        $region113: #{rpnheatmap_forward.1} parent=111 // pred_check
          %p875 = pneg %p64
        $region114: #{rpnheatmap_forward.1} parent=111 // pred_check_branch
          %877 = sbr.rel (%p875) target = $region116
        $region115: #{rpnheatmap_forward.1} parent=111 // pred_region
          %s878 = sand.u32 %s54, 1
          %s879 = scalar_lea.sflag [#allocation6], %s878
          %s880 = sand.u32 %s54, 1
          %s881 = smul.addr %s880, 32
          %s882 = scalar_lea.vmem [#allocation5], %s881
          %s884 = ssub.s32 512, 512
          %885 = vsyncadd %s879, %s884
          %s886 = smul.addr %s44, 4
          %s887 = smul.addr %s886, 128
          %s888 = scalar_lea.hbm %s0, %s887
          %s889 = sshll.u32 %s882, 4
          %s890 = int_to_ptr.vmem [resolvable:$true] %s889
          %895 = dma.hbm_to_vmem [thread:$0]  %s888, 512, %s890, %s879, 128, 128, 8
        $region116: #{rpnheatmap_forward.1} parent=111 // pred_fallthru
          _
      $region112: #{rpnheatmap_forward.1} parent=5 // pred_fallthru
        _
      %p896 = scmp.le.s32.totalorder 1, %s44
      %p897 = scmp.lt.s32.totalorder %s44, 3
      %p898 = pnand %p896, %p897
      %p899 = pneg %p898
      // Predicated region
      $region117: #{rpnheatmap_forward.1} parent=5 // pred_check
        _
      $region118: #{rpnheatmap_forward.1} parent=5 // pred_check_branch
        %901 = sbr.rel (%p898) target = $region120
      $region119: #{rpnheatmap_forward.1} parent=5 // pred_region
        %s902 = ssub.s32 %s44, 1
        %s903 = sand.u32 %s57, 1
        %s904 = scalar_lea.sflag [#allocation6], %s903
        %s905 = sand.u32 %s57, 1
        %s906 = smul.addr %s905, 32
        %s907 = scalar_lea.vmem [#allocation5], %s906
        // Predicated region
        $region121: #{rpnheatmap_forward.1} parent=119 // pred_check
          %p908 = pneg %p70
        $region122: #{rpnheatmap_forward.1} parent=119 // pred_check_branch
          %910 = sbr.rel (%p908) target = $region124
        $region123: #{rpnheatmap_forward.1} parent=119 // pred_region
          %911 = dma.done %s904, 512
        $region124: #{rpnheatmap_forward.1} parent=119 // pred_fallthru
          _
        // Predicated region
        $region125: #{rpnheatmap_forward.1} parent=119 // pred_check
          %p912 = pneg %p91
        $region126: #{rpnheatmap_forward.1} parent=119 // pred_check_branch
          %914 = sbr.rel (%p912) target = $region128
        $region127: #{rpnheatmap_forward.1} parent=119 // pred_region
          %915 = dma.done [#allocation8], 5120
        $region128: #{rpnheatmap_forward.1} parent=119 // pred_fallthru
          _
        // Predicated region
        $region129: #{rpnheatmap_forward.1} parent=119 // pred_check
          %p916 = pneg %p112
        $region130: #{rpnheatmap_forward.1} parent=119 // pred_check_branch
          %918 = sbr.rel (%p916) target = $region132
        $region131: #{rpnheatmap_forward.1} parent=119 // pred_region
          %919 = dma.done [#allocation8], 32
        $region132: #{rpnheatmap_forward.1} parent=119 // pred_fallthru
          _
        // Predicated region
        $region133: #{rpnheatmap_forward.1} parent=119 // pred_check
          %p920 = pneg %p133
        $region134: #{rpnheatmap_forward.1} parent=119 // pred_check_branch
          %922 = sbr.rel (%p920) target = $region136
        $region135: #{rpnheatmap_forward.1} parent=119 // pred_region
          %923 = dma.done [#allocation11], 6144
        $region136: #{rpnheatmap_forward.1} parent=119 // pred_fallthru
          _
        // Predicated region
        $region137: #{rpnheatmap_forward.1} parent=119 // pred_check
          %p924 = pneg %p154
        $region138: #{rpnheatmap_forward.1} parent=119 // pred_check_branch
          %926 = sbr.rel (%p924) target = $region140
        $region139: #{rpnheatmap_forward.1} parent=119 // pred_region
          %927 = dma.done [#allocation11], 16
        $region140: #{rpnheatmap_forward.1} parent=119 // pred_fallthru
          _
        // Predicated region
        $region141: #{rpnheatmap_forward.1} parent=119 // pred_check
          %p928 = pneg %p175
        $region142: #{rpnheatmap_forward.1} parent=119 // pred_check_branch
          %930 = sbr.rel (%p928) target = $region144
        $region143: #{rpnheatmap_forward.1} parent=119 // pred_region
          %931 = dma.done [#allocation14], 6144
        $region144: #{rpnheatmap_forward.1} parent=119 // pred_fallthru
          _
        // Predicated region
        $region145: #{rpnheatmap_forward.1} parent=119 // pred_check
          %p932 = pneg %p196
        $region146: #{rpnheatmap_forward.1} parent=119 // pred_check_branch
          %934 = sbr.rel (%p932) target = $region148
        $region147: #{rpnheatmap_forward.1} parent=119 // pred_region
          %935 = dma.done [#allocation14], 16
        $region148: #{rpnheatmap_forward.1} parent=119 // pred_fallthru
          _
        // Predicated region
        $region149: #{rpnheatmap_forward.1} parent=119 // pred_check
          %p936 = pneg %p217
        $region150: #{rpnheatmap_forward.1} parent=119 // pred_check_branch
          %938 = sbr.rel (%p936) target = $region152
        $region151: #{rpnheatmap_forward.1} parent=119 // pred_region
          %939 = dma.done [#allocation17], 12288
        $region152: #{rpnheatmap_forward.1} parent=119 // pred_fallthru
          _
        // Predicated region
        $region153: #{rpnheatmap_forward.1} parent=119 // pred_check
          %p940 = pneg %p259
        $region154: #{rpnheatmap_forward.1} parent=119 // pred_check_branch
          %942 = sbr.rel (%p940) target = $region156
        $region155: #{rpnheatmap_forward.1} parent=119 // pred_region
          %943 = dma.done [#allocation17], 6144
        $region156: #{rpnheatmap_forward.1} parent=119 // pred_fallthru
          _
        // Predicated region
        $region157: #{rpnheatmap_forward.1} parent=119 // pred_check
          %p944 = pneg %p280
        $region158: #{rpnheatmap_forward.1} parent=119 // pred_check_branch
          %946 = sbr.rel (%p944) target = $region160
        $region159: #{rpnheatmap_forward.1} parent=119 // pred_region
          %947 = dma.done [#allocation20], 16
        $region160: #{rpnheatmap_forward.1} parent=119 // pred_fallthru
          _
        // Predicated region
        $region161: #{rpnheatmap_forward.1} parent=119 // pred_check
          %p948 = pneg %p301
        $region162: #{rpnheatmap_forward.1} parent=119 // pred_check_branch
          %950 = sbr.rel (%p948) target = $region164
        $region163: #{rpnheatmap_forward.1} parent=119 // pred_region
          %951 = dma.done [#allocation20], 6144
        $region164: #{rpnheatmap_forward.1} parent=119 // pred_fallthru
          _
        // Predicated region
        $region165: #{rpnheatmap_forward.1} parent=119 // pred_check
          %p952 = pneg %p322
        $region166: #{rpnheatmap_forward.1} parent=119 // pred_check_branch
          %954 = sbr.rel (%p952) target = $region168
        $region167: #{rpnheatmap_forward.1} parent=119 // pred_region
          %955 = dma.done [#allocation23], 16
        $region168: #{rpnheatmap_forward.1} parent=119 // pred_fallthru
          _
        // Predicated region
        $region169: #{rpnheatmap_forward.1} parent=119 // pred_check
          %p956 = pneg %p343
        $region170: #{rpnheatmap_forward.1} parent=119 // pred_check_branch
          %958 = sbr.rel (%p956) target = $region172
        $region171: #{rpnheatmap_forward.1} parent=119 // pred_region
          %959 = dma.done [#allocation23], 12288
        $region172: #{rpnheatmap_forward.1} parent=119 // pred_fallthru
          _
        // Predicated region
        $region173: #{rpnheatmap_forward.1} parent=119 // pred_check
          %p960 = pneg %p364
        $region174: #{rpnheatmap_forward.1} parent=119 // pred_check_branch
          %962 = sbr.rel (%p960) target = $region176
        $region175: #{rpnheatmap_forward.1} parent=119 // pred_region
          %963 = dma.done [#allocation26], 32
        $region176: #{rpnheatmap_forward.1} parent=119 // pred_fallthru
          _
        // Predicated region
        $region177: #{rpnheatmap_forward.1} parent=119 // pred_check
          %p964 = pneg %p385
        $region178: #{rpnheatmap_forward.1} parent=119 // pred_check_branch
          %966 = sbr.rel (%p964) target = $region180
        $region179: #{rpnheatmap_forward.1} parent=119 // pred_region
          %967 = dma.done [#allocation26], 16
        $region180: #{rpnheatmap_forward.1} parent=119 // pred_fallthru
          _
        // Predicated region
        $region181: #{rpnheatmap_forward.1} parent=119 // pred_check
          %p968 = pneg %p427
        $region182: #{rpnheatmap_forward.1} parent=119 // pred_check_branch
          %970 = sbr.rel (%p968) target = $region184
        $region183: #{rpnheatmap_forward.1} parent=119 // pred_region
          %971 = dma.done [#allocation29], 16
        $region184: #{rpnheatmap_forward.1} parent=119 // pred_fallthru
          _
        // Predicated region
        $region185: #{rpnheatmap_forward.1} parent=119 // pred_check
          %p972 = pneg %p469
        $region186: #{rpnheatmap_forward.1} parent=119 // pred_check_branch
          %974 = sbr.rel (%p972) target = $region188
        $region187: #{rpnheatmap_forward.1} parent=119 // pred_region
          %975 = dma.done [#allocation29], 8192
        $region188: #{rpnheatmap_forward.1} parent=119 // pred_fallthru
          _
        // Predicated region
        $region189: #{rpnheatmap_forward.1} parent=119 // pred_check
          %p976 = pneg %p490
        $region190: #{rpnheatmap_forward.1} parent=119 // pred_check_branch
          %978 = sbr.rel (%p976) target = $region192
        $region191: #{rpnheatmap_forward.1} parent=119 // pred_region
          %979 = dma.done [#allocation32], 512
        $region192: #{rpnheatmap_forward.1} parent=119 // pred_fallthru
          _
        // Predicated region
        $region193: #{rpnheatmap_forward.1} parent=119 // pred_check
          %p980 = pneg %p511
        $region194: #{rpnheatmap_forward.1} parent=119 // pred_check_branch
          %982 = sbr.rel (%p980) target = $region196
        $region195: #{rpnheatmap_forward.1} parent=119 // pred_region
          %983 = dma.done [#allocation32], 8192
        $region196: #{rpnheatmap_forward.1} parent=119 // pred_fallthru
          _
        // Predicated region
        $region197: #{rpnheatmap_forward.1} parent=119 // pred_check
          %p984 = pneg %p553
        $region198: #{rpnheatmap_forward.1} parent=119 // pred_check_branch
          %986 = sbr.rel (%p984) target = $region200
        $region199: #{rpnheatmap_forward.1} parent=119 // pred_region
          %987 = dma.done [#allocation35], 8192
        $region200: #{rpnheatmap_forward.1} parent=119 // pred_fallthru
          _
        // Predicated region
        $region201: #{rpnheatmap_forward.1} parent=119 // pred_check
          %p988 = pneg %p574
        $region202: #{rpnheatmap_forward.1} parent=119 // pred_check_branch
          %990 = sbr.rel (%p988) target = $region204
        $region203: #{rpnheatmap_forward.1} parent=119 // pred_region
          %991 = dma.done [#allocation35], 128
        $region204: #{rpnheatmap_forward.1} parent=119 // pred_fallthru
          _
        %s992 = sand.u32 %s57, 1
        %s993 = scalar_lea.sflag [#allocation6], %s992
        %s994 = sand.u32 %s57, 1
        %s995 = smul.addr %s994, 32
        %s996 = scalar_lea.vmem [#allocation5], %s995
        %p997 = pneg %p70
        %p998 = pneg %p67
        %p999 = pneg %p91
        %p1000 = pneg %p88
        %p1001 = pneg %p112
        %p1002 = pneg %p109
        %p1003 = pneg %p133
        %p1004 = pneg %p130
        %p1005 = pneg %p154
        %p1006 = pneg %p151
        %p1007 = pneg %p175
        %p1008 = pneg %p172
        %p1009 = pneg %p196
        %p1010 = pneg %p193
        %p1011 = pneg %p217
        %p1012 = pneg %p214
        %p1013 = pneg %p238
        %p1014 = pneg %p235
        %p1015 = pneg %p259
        %p1016 = pneg %p256
        %p1017 = pneg %p280
        %p1018 = pneg %p277
        %p1019 = pneg %p301
        %p1020 = pneg %p298
        %p1021 = pneg %p322
        %p1022 = pneg %p319
        %p1023 = pneg %p343
        %p1024 = pneg %p340
        %p1025 = pneg %p364
        %p1026 = pneg %p361
        %p1027 = pneg %p385
        %p1028 = pneg %p382
        %p1029 = pneg %p406
        %p1030 = pneg %p403
        %p1031 = pneg %p427
        %p1032 = pneg %p424
        %p1033 = pneg %p448
        %p1034 = pneg %p445
        %p1035 = pneg %p469
        %p1036 = pneg %p466
        %p1037 = pneg %p490
        %p1038 = pneg %p487
        %p1039 = pneg %p511
        %p1040 = pneg %p508
        %p1041 = pneg %p532
        %p1042 = pneg %p529
        %p1043 = pneg %p553
        %p1044 = pneg %p550
        %p1045 = pneg %p574
        %p1046 = pneg %p571
        %p1047 = pneg %p600
        %p1048 = pneg %p597
        %p1049 = scmp.lt.s32.totalorder %s49, 1
        %s1050 = scalar_select %p1049, %s49, 1
        %s1051 = smul.addr %s1050, 4
        %s1052 = scalar_lea.vmem %s25, %s1051
        %p1053 = scmp.lt.s32.totalorder %s49, 1
        %s1054 = scalar_select %p1053, %s49, 1
        %s1055 = smul.addr %s1054, 4
        %s1056 = scalar_lea.vmem %s25, %s1055
        %vm1057 = vcmask 261120
        %1058 = vst.msk [vmem:[#allocation2] sm:$0xff] %vm1057, 0.0
        %1059 = vst.msk [vmem:[#allocation2 + $0x8] sm:$0xff] %vm1057, 0.0
        %1060 = vst.msk [vmem:[#allocation2 + $0x10] sm:$0xff] %vm1057, 0.0
        %1061 = vst.msk [vmem:[#allocation2 + $0x18] sm:$0xff] %vm1057, 0.0
        %1062 = vst.msk [vmem:[#allocation2 + $0x20] sm:$0xff] %vm1057, 0.0
        %1063 = vst.msk [vmem:[#allocation2 + $0x28] sm:$0xff] %vm1057, 0.0
        %1064 = vst [vmem:[#allocation3] sm:$0xff] 0.0
        %1065 = vst [vmem:[#allocation3 + $0x8] sm:$0xff] 0.0
        %1066 = vst [vmem:[#allocation3 + $0x10] sm:$0xff] 0.0
        %1067 = vst [vmem:[#allocation3 + $0x18] sm:$0xff] 0.0
        %1068 = vst [vmem:[#allocation4] sm:$0xff] 0.0
        %1069 = vst [vmem:[#allocation4 + $0x8] sm:$0xff] 0.0
        %1070 = vst [vmem:[#allocation4 + $0x10] sm:$0xff] 0.0
        %v1071 = vld [vmem:[%s907] sm:$0xff]
        %v1072 = vld [vmem:[%s907 + $0x8] sm:$0xff]
        %v1073 = vld [vmem:[%s907 + $0x10] sm:$0xff]
        %v1074 = vld [vmem:[%s907 + $0x18] sm:$0xff]
        %1075 = vst.msk [vmem:[#allocation2 + $0x8] sm:$0xff] %vm1057, %v1071
        %1076 = vst.msk [vmem:[#allocation2 + $0x10] sm:$0xff] %vm1057, %v1072
        %1077 = vst.msk [vmem:[#allocation2 + $0x18] sm:$0xff] %vm1057, %v1073
        %1078 = vst.msk [vmem:[#allocation2 + $0x20] sm:$0xff] %vm1057, %v1074
        %v1079 = vld [vmem:[#allocation2 + $0x6] sm:$0xff]
        %v1080 = vld [vmem:[#allocation2 + $0xe] sm:$0xff]
        %v1081 = vld [vmem:[#allocation2 + $0x16] sm:$0xff]
        %v1082 = vld [vmem:[#allocation2 + $0x1e] sm:$0xff]
        %v1083 = vld [vmem:[#allocation7] sm:$0xff]
        %v1084 = vld [vmem:[#allocation7 + $0x8] sm:$0xff]
        %v1085 = vld [vmem:[#allocation7 + $0x10] sm:$0xff]
        %v1086 = vld [vmem:[#allocation7 + $0x18] sm:$0xff]
        %v1087 = vld [vmem:[#allocation7 + $0x20] sm:$0xff]
        %v1088 = vld [vmem:[#allocation7 + $0x28] sm:$0xff]
        %v1089 = vld [vmem:[#allocation7 + $0x30] sm:$0xff]
        %v1090 = vld [vmem:[#allocation7 + $0x38] sm:$0xff]
        %v1091 = vld [vmem:[#allocation2 + $0x7] sm:$0xff]
        %v1092 = vld [vmem:[#allocation2 + $0xf] sm:$0xff]
        %v1093 = vld [vmem:[#allocation2 + $0x17] sm:$0xff]
        %v1094 = vld [vmem:[#allocation2 + $0x1f] sm:$0xff]
        %s1095 = scalar_lea.vmem [#allocation7], 64
        %v1096 = vld [vmem:[%s1095] sm:$0xff]
        %v1097 = vld [vmem:[%s1095 + $0x8] sm:$0xff]
        %v1098 = vld [vmem:[%s1095 + $0x10] sm:$0xff]
        %v1099 = vld [vmem:[%s1095 + $0x18] sm:$0xff]
        %v1100 = vld [vmem:[%s1095 + $0x20] sm:$0xff]
        %v1101 = vld [vmem:[%s1095 + $0x28] sm:$0xff]
        %v1102 = vld [vmem:[%s1095 + $0x30] sm:$0xff]
        %v1103 = vld [vmem:[%s1095 + $0x38] sm:$0xff]
        %v1105 = vsel %vm1057, %v1091, 0
        %v1108 = vsel %vm1057, %v1092, 0
        %v1111 = vsel %vm1057, %v1093, 0
        %v1114 = vsel %vm1057, %v1094, 0
        %1116 = vmatprep.subr.mxu0 0.0
        %1117 = vmatpush1.msra.mxu0 0.0
        %1118 = vmatprep.subr.mxu0 0.0
        %1119 = vmatpush1.msra.mxu0 0.0
        %1120 = vmatprep.subr.mxu0 0.0
        %1121 = vmatpush1.msra.mxu0 0.0
        %1122 = vmatprep.subr.mxu0 0.0
        %1123 = vmatpush1.msra.mxu0 0.0
        %1124 = vmatprep.subr.mxu0 0.0
        %1125 = vmatpush1.msra.mxu0 0.0
        %1126 = vmatprep.subr.mxu0 0.0
        %1127 = vmatpush1.msra.mxu0 0.0
        %1128 = vmatprep.subr.mxu0 0.0
        %1129 = vmatpush1.msra.mxu0 0.0
        %1130 = vmatprep.subr.mxu0 0.0
        %1131 = vmatpush1.msra.mxu0 0.0
        %1132 = vmatprep.subr.mxu0 0.0
        %1133 = vmatpush1.msra.mxu0 0.0
        %1134 = vmatprep.subr.mxu0 0.0
        %1135 = vmatpush1.msra.mxu0 0.0
        %1136 = vmatprep.subr.mxu0 0.0
        %1137 = vmatpush1.msra.mxu0 0.0
        %1138 = vmatprep.subr.mxu0 0.0
        %1139 = vmatpush1.msra.mxu0 0.0
        %1140 = vmatprep.subr.mxu0 %v1103
        %1141 = vmatpush1.msra.mxu0 %v1102
        %1142 = vmatprep.subr.mxu0 %v1101
        %1143 = vmatpush1.msra.mxu0 %v1100
        %1144 = vmatprep.subr.mxu0 %v1099
        %1145 = vmatpush1.msra.mxu0 %v1098
        %1146 = vmatprep.subr.mxu0 %v1097
        %1147 = vmatpush1.msra.mxu0 %v1096
        %1148 = vmatprep.subr.mxu0 0.0
        %1149 = vmatpush2.msra.mxu0 0.0
        %1150 = vmatprep.subr.mxu0 0.0
        %1151 = vmatpush2.msra.mxu0 0.0
        %1152 = vmatprep.subr.mxu0 0.0
        %1153 = vmatpush2.msra.mxu0 0.0
        %1154 = vmatprep.subr.mxu0 0.0
        %1155 = vmatpush2.msra.mxu0 0.0
        %1156 = vmatprep.subr.mxu0 0.0
        %1157 = vmatpush2.msra.mxu0 0.0
        %1158 = vmatprep.subr.mxu0 0.0
        %1159 = vmatpush2.msra.mxu0 0.0
        %1160 = vmatprep.subr.mxu0 0.0
        %1161 = vmatpush2.msra.mxu0 0.0
        %1162 = vmatprep.subr.mxu0 0.0
        %1163 = vmatpush2.msra.mxu0 0.0
        %1164 = vmatprep.subr.mxu0 0.0
        %1165 = vmatpush2.msra.mxu0 0.0
        %1166 = vmatprep.subr.mxu0 0.0
        %1167 = vmatpush2.msra.mxu0 0.0
        %1168 = vmatprep.subr.mxu0 0.0
        %1169 = vmatpush2.msra.mxu0 0.0
        %1170 = vmatprep.subr.mxu0 0.0
        %1171 = vmatpush2.msra.mxu0 0.0
        %1172 = vmatprep.subr.mxu0 0.0
        %1173 = vmatpush2.msra.mxu0 0.0
        %1174 = vmatprep.subr.mxu0 0.0
        %1175 = vmatpush2.msra.mxu0 0.0
        %1176 = vmatprep.subr.mxu0 0.0
        %1177 = vmatpush2.msra.mxu0 0.0
        %1178 = vmatprep.subr.mxu0 0.0
        %1179 = vmatpush2.msra.mxu0 0.0
        %1180 = vmatprep.mubr.f32.mxu0 0.0
        %1181 = vmatmul.mubr.f32.gmra.mxu0 %v1105
        %v1182 = vpop.f32.mrf.mxu0
        %v1183 = vadd.f32 0.0, %v1182
        %v1184 = vpop.f32.mrf.mxu0
        %v1185 = vadd.f32 0.0, %v1184
        %1186 = vmatprep.mubr.f32.mxu0 0.0
        %1187 = vmatmul.mubr.f32.gmra.mxu0 %v1108
        %v1188 = vpop.f32.mrf.mxu0
        %v1189 = vadd.f32 0.0, %v1188
        %v1190 = vpop.f32.mrf.mxu0
        %v1191 = vadd.f32 0.0, %v1190
        %1192 = vmatprep.mubr.f32.mxu0 0.0
        %1193 = vmatmul.mubr.f32.gmra.mxu0 %v1111
        %v1194 = vpop.f32.mrf.mxu0
        %v1195 = vadd.f32 0.0, %v1194
        %v1196 = vpop.f32.mrf.mxu0
        %v1197 = vadd.f32 0.0, %v1196
        %1198 = vmatprep.mubr.f32.mxu0 0.0
        %1199 = vmatmul.mubr.f32.gmra.mxu0 %v1114
        %v1200 = vpop.f32.mrf.mxu0
        %v1201 = vadd.f32 0.0, %v1200
        %v1202 = vpop.f32.mrf.mxu0
        %v1203 = vadd.f32 0.0, %v1202
        %1204 = vdwg.mxu0
        %v1206 = vsel %vm1057, %v1079, 0
        %v1209 = vsel %vm1057, %v1080, 0
        %v1212 = vsel %vm1057, %v1081, 0
        %v1215 = vsel %vm1057, %v1082, 0
        %1217 = vmatprep.subr.mxu0 0.0
        %1218 = vmatpush1.msra.mxu0 0.0
        %1219 = vmatprep.subr.mxu0 0.0
        %1220 = vmatpush1.msra.mxu0 0.0
        %1221 = vmatprep.subr.mxu0 0.0
        %1222 = vmatpush1.msra.mxu0 0.0
        %1223 = vmatprep.subr.mxu0 0.0
        %1224 = vmatpush1.msra.mxu0 0.0
        %1225 = vmatprep.subr.mxu0 0.0
        %1226 = vmatpush1.msra.mxu0 0.0
        %1227 = vmatprep.subr.mxu0 0.0
        %1228 = vmatpush1.msra.mxu0 0.0
        %1229 = vmatprep.subr.mxu0 0.0
        %1230 = vmatpush1.msra.mxu0 0.0
        %1231 = vmatprep.subr.mxu0 0.0
        %1232 = vmatpush1.msra.mxu0 0.0
        %1233 = vmatprep.subr.mxu0 0.0
        %1234 = vmatpush1.msra.mxu0 0.0
        %1235 = vmatprep.subr.mxu0 0.0
        %1236 = vmatpush1.msra.mxu0 0.0
        %1237 = vmatprep.subr.mxu0 0.0
        %1238 = vmatpush1.msra.mxu0 0.0
        %1239 = vmatprep.subr.mxu0 0.0
        %1240 = vmatpush1.msra.mxu0 0.0
        %1241 = vmatprep.subr.mxu0 %v1090
        %1242 = vmatpush1.msra.mxu0 %v1089
        %1243 = vmatprep.subr.mxu0 %v1088
        %1244 = vmatpush1.msra.mxu0 %v1087
        %1245 = vmatprep.subr.mxu0 %v1086
        %1246 = vmatpush1.msra.mxu0 %v1085
        %1247 = vmatprep.subr.mxu0 %v1084
        %1248 = vmatpush1.msra.mxu0 %v1083
        %1249 = vmatprep.subr.mxu0 0.0
        %1250 = vmatpush2.msra.mxu0 0.0
        %1251 = vmatprep.subr.mxu0 0.0
        %1252 = vmatpush2.msra.mxu0 0.0
        %1253 = vmatprep.subr.mxu0 0.0
        %1254 = vmatpush2.msra.mxu0 0.0
        %1255 = vmatprep.subr.mxu0 0.0
        %1256 = vmatpush2.msra.mxu0 0.0
        %1257 = vmatprep.subr.mxu0 0.0
        %1258 = vmatpush2.msra.mxu0 0.0
        %1259 = vmatprep.subr.mxu0 0.0
        %1260 = vmatpush2.msra.mxu0 0.0
        %1261 = vmatprep.subr.mxu0 0.0
        %1262 = vmatpush2.msra.mxu0 0.0
        %1263 = vmatprep.subr.mxu0 0.0
        %1264 = vmatpush2.msra.mxu0 0.0
        %1265 = vmatprep.subr.mxu0 0.0
        %1266 = vmatpush2.msra.mxu0 0.0
        %1267 = vmatprep.subr.mxu0 0.0
        %1268 = vmatpush2.msra.mxu0 0.0
        %1269 = vmatprep.subr.mxu0 0.0
        %1270 = vmatpush2.msra.mxu0 0.0
        %1271 = vmatprep.subr.mxu0 0.0
        %1272 = vmatpush2.msra.mxu0 0.0
        %1273 = vmatprep.subr.mxu0 0.0
        %1274 = vmatpush2.msra.mxu0 0.0
        %1275 = vmatprep.subr.mxu0 0.0
        %1276 = vmatpush2.msra.mxu0 0.0
        %1277 = vmatprep.subr.mxu0 0.0
        %1278 = vmatpush2.msra.mxu0 0.0
        %1279 = vmatprep.subr.mxu0 0.0
        %1280 = vmatpush2.msra.mxu0 0.0
        %1281 = vmatprep.mubr.f32.mxu0 0.0
        %1282 = vmatmul.mubr.f32.gmra.mxu0 %v1206
        %v1283 = vpop.f32.mrf.mxu0
        %v1284 = vadd.f32 %v1183, %v1283
        %v1285 = vpop.f32.mrf.mxu0
        %v1286 = vadd.f32 %v1185, %v1285
        %1287 = vmatprep.mubr.f32.mxu0 0.0
        %1288 = vmatmul.mubr.f32.gmra.mxu0 %v1209
        %v1289 = vpop.f32.mrf.mxu0
        %v1290 = vadd.f32 %v1189, %v1289
        %v1291 = vpop.f32.mrf.mxu0
        %v1292 = vadd.f32 %v1191, %v1291
        %1293 = vmatprep.mubr.f32.mxu0 0.0
        %1294 = vmatmul.mubr.f32.gmra.mxu0 %v1212
        %v1295 = vpop.f32.mrf.mxu0
        %v1296 = vadd.f32 %v1195, %v1295
        %v1297 = vpop.f32.mrf.mxu0
        %v1298 = vadd.f32 %v1197, %v1297
        %1299 = vmatprep.mubr.f32.mxu0 0.0
        %1300 = vmatmul.mubr.f32.gmra.mxu0 %v1215
        %v1301 = vpop.f32.mrf.mxu0
        %v1302 = vadd.f32 %v1201, %v1301
        %v1303 = vpop.f32.mrf.mxu0
        %v1304 = vadd.f32 %v1203, %v1303
        %1305 = vdwg.mxu0
        %v1306 = vld [vmem:[#allocation2 + $0x8] sm:$0xff]
        %v1307 = vld [vmem:[#allocation2 + $0x10] sm:$0xff]
        %v1308 = vld [vmem:[#allocation2 + $0x18] sm:$0xff]
        %v1309 = vld [vmem:[#allocation2 + $0x20] sm:$0xff]
        %s1310 = scalar_lea.vmem [#allocation7], 128
        %v1311 = vld [vmem:[%s1310] sm:$0xff]
        %v1312 = vld [vmem:[%s1310 + $0x8] sm:$0xff]
        %v1313 = vld [vmem:[%s1310 + $0x10] sm:$0xff]
        %v1314 = vld [vmem:[%s1310 + $0x18] sm:$0xff]
        %v1315 = vld [vmem:[%s1310 + $0x20] sm:$0xff]
        %v1316 = vld [vmem:[%s1310 + $0x28] sm:$0xff]
        %v1317 = vld [vmem:[%s1310 + $0x30] sm:$0xff]
        %v1318 = vld [vmem:[%s1310 + $0x38] sm:$0xff]
        %v1320 = vsel %vm1057, %v1306, 0
        %v1323 = vsel %vm1057, %v1307, 0
        %v1326 = vsel %vm1057, %v1308, 0
        %v1329 = vsel %vm1057, %v1309, 0
        %1331 = vmatprep.subr.mxu0 0.0
        %1332 = vmatpush1.msra.mxu0 0.0
        %1333 = vmatprep.subr.mxu0 0.0
        %1334 = vmatpush1.msra.mxu0 0.0
        %1335 = vmatprep.subr.mxu0 0.0
        %1336 = vmatpush1.msra.mxu0 0.0
        %1337 = vmatprep.subr.mxu0 0.0
        %1338 = vmatpush1.msra.mxu0 0.0
        %1339 = vmatprep.subr.mxu0 0.0
        %1340 = vmatpush1.msra.mxu0 0.0
        %1341 = vmatprep.subr.mxu0 0.0
        %1342 = vmatpush1.msra.mxu0 0.0
        %1343 = vmatprep.subr.mxu0 0.0
        %1344 = vmatpush1.msra.mxu0 0.0
        %1345 = vmatprep.subr.mxu0 0.0
        %1346 = vmatpush1.msra.mxu0 0.0
        %1347 = vmatprep.subr.mxu0 0.0
        %1348 = vmatpush1.msra.mxu0 0.0
        %1349 = vmatprep.subr.mxu0 0.0
        %1350 = vmatpush1.msra.mxu0 0.0
        %1351 = vmatprep.subr.mxu0 0.0
        %1352 = vmatpush1.msra.mxu0 0.0
        %1353 = vmatprep.subr.mxu0 0.0
        %1354 = vmatpush1.msra.mxu0 0.0
        %1355 = vmatprep.subr.mxu0 %v1318
        %1356 = vmatpush1.msra.mxu0 %v1317
        %1357 = vmatprep.subr.mxu0 %v1316
        %1358 = vmatpush1.msra.mxu0 %v1315
        %1359 = vmatprep.subr.mxu0 %v1314
        %1360 = vmatpush1.msra.mxu0 %v1313
        %1361 = vmatprep.subr.mxu0 %v1312
        %1362 = vmatpush1.msra.mxu0 %v1311
        %1363 = vmatprep.subr.mxu0 0.0
        %1364 = vmatpush2.msra.mxu0 0.0
        %1365 = vmatprep.subr.mxu0 0.0
        %1366 = vmatpush2.msra.mxu0 0.0
        %1367 = vmatprep.subr.mxu0 0.0
        %1368 = vmatpush2.msra.mxu0 0.0
        %1369 = vmatprep.subr.mxu0 0.0
        %1370 = vmatpush2.msra.mxu0 0.0
        %1371 = vmatprep.subr.mxu0 0.0
        %1372 = vmatpush2.msra.mxu0 0.0
        %1373 = vmatprep.subr.mxu0 0.0
        %1374 = vmatpush2.msra.mxu0 0.0
        %1375 = vmatprep.subr.mxu0 0.0
        %1376 = vmatpush2.msra.mxu0 0.0
        %1377 = vmatprep.subr.mxu0 0.0
        %1378 = vmatpush2.msra.mxu0 0.0
        %1379 = vmatprep.subr.mxu0 0.0
        %1380 = vmatpush2.msra.mxu0 0.0
        %1381 = vmatprep.subr.mxu0 0.0
        %1382 = vmatpush2.msra.mxu0 0.0
        %1383 = vmatprep.subr.mxu0 0.0
        %1384 = vmatpush2.msra.mxu0 0.0
        %1385 = vmatprep.subr.mxu0 0.0
        %1386 = vmatpush2.msra.mxu0 0.0
        %1387 = vmatprep.subr.mxu0 0.0
        %1388 = vmatpush2.msra.mxu0 0.0
        %1389 = vmatprep.subr.mxu0 0.0
        %1390 = vmatpush2.msra.mxu0 0.0
        %1391 = vmatprep.subr.mxu0 0.0
        %1392 = vmatpush2.msra.mxu0 0.0
        %1393 = vmatprep.subr.mxu0 0.0
        %1394 = vmatpush2.msra.mxu0 0.0
        %1395 = vmatprep.mubr.f32.mxu0 0.0
        %1396 = vmatmul.mubr.f32.gmra.mxu0 %v1320
        %v1397 = vpop.f32.mrf.mxu0
        %v1398 = vadd.f32 0.0, %v1397
        %v1399 = vpop.f32.mrf.mxu0
        %v1400 = vadd.f32 0.0, %v1399
        %1401 = vmatprep.mubr.f32.mxu0 0.0
        %1402 = vmatmul.mubr.f32.gmra.mxu0 %v1323
        %v1403 = vpop.f32.mrf.mxu0
        %v1404 = vadd.f32 0.0, %v1403
        %v1405 = vpop.f32.mrf.mxu0
        %v1406 = vadd.f32 0.0, %v1405
        %1407 = vmatprep.mubr.f32.mxu0 0.0
        %1408 = vmatmul.mubr.f32.gmra.mxu0 %v1326
        %v1409 = vpop.f32.mrf.mxu0
        %v1410 = vadd.f32 0.0, %v1409
        %v1411 = vpop.f32.mrf.mxu0
        %v1412 = vadd.f32 0.0, %v1411
        %1413 = vmatprep.mubr.f32.mxu0 0.0
        %1414 = vmatmul.mubr.f32.gmra.mxu0 %v1329
        %v1415 = vpop.f32.mrf.mxu0
        %v1416 = vadd.f32 0.0, %v1415
        %v1417 = vpop.f32.mrf.mxu0
        %v1418 = vadd.f32 0.0, %v1417
        %1419 = vdwg.mxu0
        %v1420 = vadd.f32 %v1284, %v1398
        %v1421 = vadd.f32 %v1286, %v1400
        %v1422 = vadd.f32 %v1290, %v1404
        %v1423 = vadd.f32 %v1292, %v1406
        %v1424 = vadd.f32 %v1296, %v1410
        %v1425 = vadd.f32 %v1298, %v1412
        %v1426 = vadd.f32 %v1302, %v1416
        %v1427 = vadd.f32 %v1304, %v1418
        %v1428 = vld [vmem:[#allocation2 + $0x9] sm:$0xff]
        %v1429 = vld [vmem:[#allocation2 + $0x11] sm:$0xff]
        %v1430 = vld [vmem:[#allocation2 + $0x19] sm:$0xff]
        %v1431 = vld [vmem:[#allocation2 + $0x21] sm:$0xff]
        %s1432 = scalar_lea.vmem [#allocation7], 192
        %v1433 = vld [vmem:[%s1432] sm:$0xff]
        %v1434 = vld [vmem:[%s1432 + $0x8] sm:$0xff]
        %v1435 = vld [vmem:[%s1432 + $0x10] sm:$0xff]
        %v1436 = vld [vmem:[%s1432 + $0x18] sm:$0xff]
        %v1437 = vld [vmem:[%s1432 + $0x20] sm:$0xff]
        %v1438 = vld [vmem:[%s1432 + $0x28] sm:$0xff]
        %v1439 = vld [vmem:[%s1432 + $0x30] sm:$0xff]
        %v1440 = vld [vmem:[%s1432 + $0x38] sm:$0xff]
        %v1442 = vsel %vm1057, %v1428, 0
        %v1445 = vsel %vm1057, %v1429, 0
        %v1448 = vsel %vm1057, %v1430, 0
        %v1451 = vsel %vm1057, %v1431, 0
        %1453 = vmatprep.subr.mxu0 0.0
        %1454 = vmatpush1.msra.mxu0 0.0
        %1455 = vmatprep.subr.mxu0 0.0
        %1456 = vmatpush1.msra.mxu0 0.0
        %1457 = vmatprep.subr.mxu0 0.0
        %1458 = vmatpush1.msra.mxu0 0.0
        %1459 = vmatprep.subr.mxu0 0.0
        %1460 = vmatpush1.msra.mxu0 0.0
        %1461 = vmatprep.subr.mxu0 0.0
        %1462 = vmatpush1.msra.mxu0 0.0
        %1463 = vmatprep.subr.mxu0 0.0
        %1464 = vmatpush1.msra.mxu0 0.0
        %1465 = vmatprep.subr.mxu0 0.0
        %1466 = vmatpush1.msra.mxu0 0.0
        %1467 = vmatprep.subr.mxu0 0.0
        %1468 = vmatpush1.msra.mxu0 0.0
        %1469 = vmatprep.subr.mxu0 0.0
        %1470 = vmatpush1.msra.mxu0 0.0
        %1471 = vmatprep.subr.mxu0 0.0
        %1472 = vmatpush1.msra.mxu0 0.0
        %1473 = vmatprep.subr.mxu0 0.0
        %1474 = vmatpush1.msra.mxu0 0.0
        %1475 = vmatprep.subr.mxu0 0.0
        %1476 = vmatpush1.msra.mxu0 0.0
        %1477 = vmatprep.subr.mxu0 %v1440
        %1478 = vmatpush1.msra.mxu0 %v1439
        %1479 = vmatprep.subr.mxu0 %v1438
        %1480 = vmatpush1.msra.mxu0 %v1437
        %1481 = vmatprep.subr.mxu0 %v1436
        %1482 = vmatpush1.msra.mxu0 %v1435
        %1483 = vmatprep.subr.mxu0 %v1434
        %1484 = vmatpush1.msra.mxu0 %v1433
        %1485 = vmatprep.subr.mxu0 0.0
        %1486 = vmatpush2.msra.mxu0 0.0
        %1487 = vmatprep.subr.mxu0 0.0
        %1488 = vmatpush2.msra.mxu0 0.0
        %1489 = vmatprep.subr.mxu0 0.0
        %1490 = vmatpush2.msra.mxu0 0.0
        %1491 = vmatprep.subr.mxu0 0.0
        %1492 = vmatpush2.msra.mxu0 0.0
        %1493 = vmatprep.subr.mxu0 0.0
        %1494 = vmatpush2.msra.mxu0 0.0
        %1495 = vmatprep.subr.mxu0 0.0
        %1496 = vmatpush2.msra.mxu0 0.0
        %1497 = vmatprep.subr.mxu0 0.0
        %1498 = vmatpush2.msra.mxu0 0.0
        %1499 = vmatprep.subr.mxu0 0.0
        %1500 = vmatpush2.msra.mxu0 0.0
        %1501 = vmatprep.subr.mxu0 0.0
        %1502 = vmatpush2.msra.mxu0 0.0
        %1503 = vmatprep.subr.mxu0 0.0
        %1504 = vmatpush2.msra.mxu0 0.0
        %1505 = vmatprep.subr.mxu0 0.0
        %1506 = vmatpush2.msra.mxu0 0.0
        %1507 = vmatprep.subr.mxu0 0.0
        %1508 = vmatpush2.msra.mxu0 0.0
        %1509 = vmatprep.subr.mxu0 0.0
        %1510 = vmatpush2.msra.mxu0 0.0
        %1511 = vmatprep.subr.mxu0 0.0
        %1512 = vmatpush2.msra.mxu0 0.0
        %1513 = vmatprep.subr.mxu0 0.0
        %1514 = vmatpush2.msra.mxu0 0.0
        %1515 = vmatprep.subr.mxu0 0.0
        %1516 = vmatpush2.msra.mxu0 0.0
        %1517 = vmatprep.mubr.f32.mxu0 0.0
        %1518 = vmatmul.mubr.f32.gmra.mxu0 %v1442
        %v1519 = vpop.f32.mrf.mxu0
        %v1520 = vadd.f32 0.0, %v1519
        %v1521 = vpop.f32.mrf.mxu0
        %v1522 = vadd.f32 0.0, %v1521
        %1523 = vmatprep.mubr.f32.mxu0 0.0
        %1524 = vmatmul.mubr.f32.gmra.mxu0 %v1445
        %v1525 = vpop.f32.mrf.mxu0
        %v1526 = vadd.f32 0.0, %v1525
        %v1527 = vpop.f32.mrf.mxu0
        %v1528 = vadd.f32 0.0, %v1527
        %1529 = vmatprep.mubr.f32.mxu0 0.0
        %1530 = vmatmul.mubr.f32.gmra.mxu0 %v1448
        %v1531 = vpop.f32.mrf.mxu0
        %v1532 = vadd.f32 0.0, %v1531
        %v1533 = vpop.f32.mrf.mxu0
        %v1534 = vadd.f32 0.0, %v1533
        %1535 = vmatprep.mubr.f32.mxu0 0.0
        %1536 = vmatmul.mubr.f32.gmra.mxu0 %v1451
        %v1537 = vpop.f32.mrf.mxu0
        %v1538 = vadd.f32 0.0, %v1537
        %v1539 = vpop.f32.mrf.mxu0
        %v1540 = vadd.f32 0.0, %v1539
        %1541 = vdwg.mxu0
        %v1542 = vadd.f32 %v1420, %v1520
        %v1543 = vadd.f32 %v1421, %v1522
        %v1544 = vadd.f32 %v1422, %v1526
        %v1545 = vadd.f32 %v1423, %v1528
        %v1546 = vadd.f32 %v1424, %v1532
        %v1547 = vadd.f32 %v1425, %v1534
        %v1548 = vadd.f32 %v1426, %v1538
        %v1549 = vadd.f32 %v1427, %v1540
        %v1550 = vld [vmem:[#allocation2 + $0xa] sm:$0xff]
        %v1551 = vld [vmem:[#allocation2 + $0x12] sm:$0xff]
        %v1552 = vld [vmem:[#allocation2 + $0x1a] sm:$0xff]
        %v1553 = vld [vmem:[#allocation2 + $0x22] sm:$0xff]
        %s1554 = scalar_lea.vmem [#allocation7], 256
        %v1555 = vld [vmem:[%s1554] sm:$0xff]
        %v1556 = vld [vmem:[%s1554 + $0x8] sm:$0xff]
        %v1557 = vld [vmem:[%s1554 + $0x10] sm:$0xff]
        %v1558 = vld [vmem:[%s1554 + $0x18] sm:$0xff]
        %v1559 = vld [vmem:[%s1554 + $0x20] sm:$0xff]
        %v1560 = vld [vmem:[%s1554 + $0x28] sm:$0xff]
        %v1561 = vld [vmem:[%s1554 + $0x30] sm:$0xff]
        %v1562 = vld [vmem:[%s1554 + $0x38] sm:$0xff]
        %v1564 = vsel %vm1057, %v1550, 0
        %v1567 = vsel %vm1057, %v1551, 0
        %v1570 = vsel %vm1057, %v1552, 0
        %v1573 = vsel %vm1057, %v1553, 0
        %1575 = vmatprep.subr.mxu0 0.0
        %1576 = vmatpush1.msra.mxu0 0.0
        %1577 = vmatprep.subr.mxu0 0.0
        %1578 = vmatpush1.msra.mxu0 0.0
        %1579 = vmatprep.subr.mxu0 0.0
        %1580 = vmatpush1.msra.mxu0 0.0
        %1581 = vmatprep.subr.mxu0 0.0
        %1582 = vmatpush1.msra.mxu0 0.0
        %1583 = vmatprep.subr.mxu0 0.0
        %1584 = vmatpush1.msra.mxu0 0.0
        %1585 = vmatprep.subr.mxu0 0.0
        %1586 = vmatpush1.msra.mxu0 0.0
        %1587 = vmatprep.subr.mxu0 0.0
        %1588 = vmatpush1.msra.mxu0 0.0
        %1589 = vmatprep.subr.mxu0 0.0
        %1590 = vmatpush1.msra.mxu0 0.0
        %1591 = vmatprep.subr.mxu0 0.0
        %1592 = vmatpush1.msra.mxu0 0.0
        %1593 = vmatprep.subr.mxu0 0.0
        %1594 = vmatpush1.msra.mxu0 0.0
        %1595 = vmatprep.subr.mxu0 0.0
        %1596 = vmatpush1.msra.mxu0 0.0
        %1597 = vmatprep.subr.mxu0 0.0
        %1598 = vmatpush1.msra.mxu0 0.0
        %1599 = vmatprep.subr.mxu0 %v1562
        %1600 = vmatpush1.msra.mxu0 %v1561
        %1601 = vmatprep.subr.mxu0 %v1560
        %1602 = vmatpush1.msra.mxu0 %v1559
        %1603 = vmatprep.subr.mxu0 %v1558
        %1604 = vmatpush1.msra.mxu0 %v1557
        %1605 = vmatprep.subr.mxu0 %v1556
        %1606 = vmatpush1.msra.mxu0 %v1555
        %1607 = vmatprep.subr.mxu0 0.0
        %1608 = vmatpush2.msra.mxu0 0.0
        %1609 = vmatprep.subr.mxu0 0.0
        %1610 = vmatpush2.msra.mxu0 0.0
        %1611 = vmatprep.subr.mxu0 0.0
        %1612 = vmatpush2.msra.mxu0 0.0
        %1613 = vmatprep.subr.mxu0 0.0
        %1614 = vmatpush2.msra.mxu0 0.0
        %1615 = vmatprep.subr.mxu0 0.0
        %1616 = vmatpush2.msra.mxu0 0.0
        %1617 = vmatprep.subr.mxu0 0.0
        %1618 = vmatpush2.msra.mxu0 0.0
        %1619 = vmatprep.subr.mxu0 0.0
        %1620 = vmatpush2.msra.mxu0 0.0
        %1621 = vmatprep.subr.mxu0 0.0
        %1622 = vmatpush2.msra.mxu0 0.0
        %1623 = vmatprep.subr.mxu0 0.0
        %1624 = vmatpush2.msra.mxu0 0.0
        %1625 = vmatprep.subr.mxu0 0.0
        %1626 = vmatpush2.msra.mxu0 0.0
        %1627 = vmatprep.subr.mxu0 0.0
        %1628 = vmatpush2.msra.mxu0 0.0
        %1629 = vmatprep.subr.mxu0 0.0
        %1630 = vmatpush2.msra.mxu0 0.0
        %1631 = vmatprep.subr.mxu0 0.0
        %1632 = vmatpush2.msra.mxu0 0.0
        %1633 = vmatprep.subr.mxu0 0.0
        %1634 = vmatpush2.msra.mxu0 0.0
        %1635 = vmatprep.subr.mxu0 0.0
        %1636 = vmatpush2.msra.mxu0 0.0
        %1637 = vmatprep.subr.mxu0 0.0
        %1638 = vmatpush2.msra.mxu0 0.0
        %1639 = vmatprep.mubr.f32.mxu0 0.0
        %1640 = vmatmul.mubr.f32.gmra.mxu0 %v1564
        %v1641 = vpop.f32.mrf.mxu0
        %v1642 = vadd.f32 0.0, %v1641
        %v1643 = vpop.f32.mrf.mxu0
        %v1644 = vadd.f32 0.0, %v1643
        %1645 = vmatprep.mubr.f32.mxu0 0.0
        %1646 = vmatmul.mubr.f32.gmra.mxu0 %v1567
        %v1647 = vpop.f32.mrf.mxu0
        %v1648 = vadd.f32 0.0, %v1647
        %v1649 = vpop.f32.mrf.mxu0
        %v1650 = vadd.f32 0.0, %v1649
        %1651 = vmatprep.mubr.f32.mxu0 0.0
        %1652 = vmatmul.mubr.f32.gmra.mxu0 %v1570
        %v1653 = vpop.f32.mrf.mxu0
        %v1654 = vadd.f32 0.0, %v1653
        %v1655 = vpop.f32.mrf.mxu0
        %v1656 = vadd.f32 0.0, %v1655
        %1657 = vmatprep.mubr.f32.mxu0 0.0
        %1658 = vmatmul.mubr.f32.gmra.mxu0 %v1573
        %v1659 = vpop.f32.mrf.mxu0
        %v1660 = vadd.f32 0.0, %v1659
        %v1661 = vpop.f32.mrf.mxu0
        %v1662 = vadd.f32 0.0, %v1661
        %1663 = vdwg.mxu0
        %v1664 = vadd.f32 %v1542, %v1642
        %v1665 = vadd.f32 %v1543, %v1644
        %v1666 = vadd.f32 %v1544, %v1648
        %v1667 = vadd.f32 %v1545, %v1650
        %v1668 = vadd.f32 %v1546, %v1654
        %v1669 = vadd.f32 %v1547, %v1656
        %v1670 = vadd.f32 %v1548, %v1660
        %v1671 = vadd.f32 %v1549, %v1662
        %v1672 = vld [vmem:[#allocation9] sm:$0x3]
        %v1674 = vlaneseq
        %v1675 = vshrl.u32 %v1674, 7
        %v1676 = vsub.s32 0, %v1675
        %v1677 = vrot.slane %v1672, %v1676
        %v1678 = vlaneseq
        %v1679 = vshrl.u32 %v1678, 7
        %v1680 = vsub.s32 1, %v1679
        %v1681 = vrot.slane %v1672, %v1680
        %v1684 = vadd.f32 %v1664, %v1677
        %v1685 = vadd.f32 %v1665, %v1681
        %v1686 = vadd.f32 %v1666, %v1677
        %v1687 = vadd.f32 %v1667, %v1681
        %v1688 = vadd.f32 %v1668, %v1677
        %v1689 = vadd.f32 %v1669, %v1681
        %v1690 = vadd.f32 %v1670, %v1677
        %v1691 = vadd.f32 %v1671, %v1681
        %v1692 = vmax.f32 %v1684, 0.0
        %v1693 = vmax.f32 %v1685, 0.0
        %v1694 = vmax.f32 %v1686, 0.0
        %v1695 = vmax.f32 %v1687, 0.0
        %v1696 = vmax.f32 %v1688, 0.0
        %v1697 = vmax.f32 %v1689, 0.0
        %v1698 = vmax.f32 %v1690, 0.0
        %v1699 = vmax.f32 %v1691, 0.0
        %v1700 = vld [vmem:[#allocation30] sm:$0xff]
        %v1701 = vld [vmem:[#allocation30 + $0x8] sm:$0xff]
        %v1702 = vld [vmem:[#allocation30 + $0x10] sm:$0xff]
        %v1703 = vld [vmem:[#allocation30 + $0x18] sm:$0xff]
        %v1704 = vld [vmem:[#allocation30 + $0x20] sm:$0xff]
        %v1705 = vld [vmem:[#allocation30 + $0x28] sm:$0xff]
        %v1706 = vld [vmem:[#allocation30 + $0x30] sm:$0xff]
        %v1707 = vld [vmem:[#allocation30 + $0x38] sm:$0xff]
        %v1708 = vld [vmem:[#allocation30 + $0x40] sm:$0xff]
        %v1709 = vld [vmem:[#allocation30 + $0x48] sm:$0xff]
        %v1710 = vld [vmem:[#allocation30 + $0x50] sm:$0xff]
        %v1711 = vld [vmem:[#allocation30 + $0x58] sm:$0xff]
        %v1712 = vld [vmem:[#allocation30 + $0x60] sm:$0xff]
        %v1713 = vld [vmem:[#allocation30 + $0x68] sm:$0xff]
        %v1714 = vld [vmem:[#allocation30 + $0x70] sm:$0xff]
        %v1715 = vld [vmem:[#allocation30 + $0x78] sm:$0xff]
        %v1716 = vld [vmem:[#allocation30 + $0x80] sm:$0xff]
        %v1717 = vld [vmem:[#allocation30 + $0x88] sm:$0xff]
        %v1718 = vld [vmem:[#allocation30 + $0x90] sm:$0xff]
        %v1719 = vld [vmem:[#allocation30 + $0x98] sm:$0xff]
        %v1720 = vld [vmem:[#allocation30 + $0xa0] sm:$0xff]
        %v1721 = vld [vmem:[#allocation30 + $0xa8] sm:$0xff]
        %v1722 = vld [vmem:[#allocation30 + $0xb0] sm:$0xff]
        %v1723 = vld [vmem:[#allocation30 + $0xb8] sm:$0xff]
        %v1724 = vld [vmem:[#allocation30 + $0xc0] sm:$0xff]
        %v1725 = vld [vmem:[#allocation30 + $0xc8] sm:$0xff]
        %v1726 = vld [vmem:[#allocation30 + $0xd0] sm:$0xff]
        %v1727 = vld [vmem:[#allocation30 + $0xd8] sm:$0xff]
        %v1728 = vld [vmem:[#allocation30 + $0xe0] sm:$0xff]
        %v1729 = vld [vmem:[#allocation30 + $0xe8] sm:$0xff]
        %v1730 = vld [vmem:[#allocation30 + $0xf0] sm:$0xff]
        %v1731 = vld [vmem:[#allocation30 + $0xf8] sm:$0xff]
        %1732 = vmatprep.subr.mxu0 0.0
        %1733 = vmatpush1.msra.mxu0 %v1715
        %1734 = vmatprep.subr.mxu0 0.0
        %1735 = vmatpush1.msra.mxu0 %v1714
        %1736 = vmatprep.subr.mxu0 0.0
        %1737 = vmatpush1.msra.mxu0 %v1713
        %1738 = vmatprep.subr.mxu0 0.0
        %1739 = vmatpush1.msra.mxu0 %v1712
        %1740 = vmatprep.subr.mxu0 0.0
        %1741 = vmatpush1.msra.mxu0 %v1711
        %1742 = vmatprep.subr.mxu0 0.0
        %1743 = vmatpush1.msra.mxu0 %v1710
        %1744 = vmatprep.subr.mxu0 0.0
        %1745 = vmatpush1.msra.mxu0 %v1709
        %1746 = vmatprep.subr.mxu0 0.0
        %1747 = vmatpush1.msra.mxu0 %v1708
        %1748 = vmatprep.subr.mxu0 0.0
        %1749 = vmatpush1.msra.mxu0 %v1707
        %1750 = vmatprep.subr.mxu0 0.0
        %1751 = vmatpush1.msra.mxu0 %v1706
        %1752 = vmatprep.subr.mxu0 0.0
        %1753 = vmatpush1.msra.mxu0 %v1705
        %1754 = vmatprep.subr.mxu0 0.0
        %1755 = vmatpush1.msra.mxu0 %v1704
        %1756 = vmatprep.subr.mxu0 0.0
        %1757 = vmatpush1.msra.mxu0 %v1703
        %1758 = vmatprep.subr.mxu0 0.0
        %1759 = vmatpush1.msra.mxu0 %v1702
        %1760 = vmatprep.subr.mxu0 0.0
        %1761 = vmatpush1.msra.mxu0 %v1701
        %1762 = vmatprep.subr.mxu0 0.0
        %1763 = vmatpush1.msra.mxu0 %v1700
        %1764 = vmatprep.subr.mxu0 0.0
        %1765 = vmatpush2.msra.mxu0 %v1731
        %1766 = vmatprep.subr.mxu0 0.0
        %1767 = vmatpush2.msra.mxu0 %v1730
        %1768 = vmatprep.subr.mxu0 0.0
        %1769 = vmatpush2.msra.mxu0 %v1729
        %1770 = vmatprep.subr.mxu0 0.0
        %1771 = vmatpush2.msra.mxu0 %v1728
        %1772 = vmatprep.subr.mxu0 0.0
        %1773 = vmatpush2.msra.mxu0 %v1727
        %1774 = vmatprep.subr.mxu0 0.0
        %1775 = vmatpush2.msra.mxu0 %v1726
        %1776 = vmatprep.subr.mxu0 0.0
        %1777 = vmatpush2.msra.mxu0 %v1725
        %1778 = vmatprep.subr.mxu0 0.0
        %1779 = vmatpush2.msra.mxu0 %v1724
        %1780 = vmatprep.subr.mxu0 0.0
        %1781 = vmatpush2.msra.mxu0 %v1723
        %1782 = vmatprep.subr.mxu0 0.0
        %1783 = vmatpush2.msra.mxu0 %v1722
        %1784 = vmatprep.subr.mxu0 0.0
        %1785 = vmatpush2.msra.mxu0 %v1721
        %1786 = vmatprep.subr.mxu0 0.0
        %1787 = vmatpush2.msra.mxu0 %v1720
        %1788 = vmatprep.subr.mxu0 0.0
        %1789 = vmatpush2.msra.mxu0 %v1719
        %1790 = vmatprep.subr.mxu0 0.0
        %1791 = vmatpush2.msra.mxu0 %v1718
        %1792 = vmatprep.subr.mxu0 0.0
        %1793 = vmatpush2.msra.mxu0 %v1717
        %1794 = vmatprep.subr.mxu0 0.0
        %1795 = vmatpush2.msra.mxu0 %v1716
        %1796 = vmatprep.mubr.f32.mxu0 %v1693
        %1797 = vmatmul.mubr.f32.gmra.mxu0 %v1692
        %v1798 = vpop.f32.mrf.mxu0
        %v1799 = vadd.f32 0.0, %v1798
        %v1800 = vpop.f32.mrf.mxu0
        %1801 = vmatprep.mubr.f32.mxu0 %v1695
        %1802 = vmatmul.mubr.f32.gmra.mxu0 %v1694
        %v1803 = vpop.f32.mrf.mxu0
        %v1804 = vadd.f32 0.0, %v1803
        %v1805 = vpop.f32.mrf.mxu0
        %1806 = vmatprep.mubr.f32.mxu0 %v1697
        %1807 = vmatmul.mubr.f32.gmra.mxu0 %v1696
        %v1808 = vpop.f32.mrf.mxu0
        %v1809 = vadd.f32 0.0, %v1808
        %v1810 = vpop.f32.mrf.mxu0
        %1811 = vmatprep.mubr.f32.mxu0 %v1699
        %1812 = vmatmul.mubr.f32.gmra.mxu0 %v1698
        %v1813 = vpop.f32.mrf.mxu0
        %v1814 = vadd.f32 0.0, %v1813
        %v1815 = vpop.f32.mrf.mxu0
        %1816 = vdwg.mxu0
        %s1817 = scalar_lea.vmem [#allocation30], 256
        %v1818 = vld [vmem:[%s1817] sm:$0xff]
        %v1819 = vld [vmem:[%s1817 + $0x8] sm:$0xff]
        %v1820 = vld [vmem:[%s1817 + $0x10] sm:$0xff]
        %v1821 = vld [vmem:[%s1817 + $0x18] sm:$0xff]
        %v1822 = vld [vmem:[%s1817 + $0x20] sm:$0xff]
        %v1823 = vld [vmem:[%s1817 + $0x28] sm:$0xff]
        %v1824 = vld [vmem:[%s1817 + $0x30] sm:$0xff]
        %v1825 = vld [vmem:[%s1817 + $0x38] sm:$0xff]
        %v1826 = vld [vmem:[%s1817 + $0x40] sm:$0xff]
        %v1827 = vld [vmem:[%s1817 + $0x48] sm:$0xff]
        %v1828 = vld [vmem:[%s1817 + $0x50] sm:$0xff]
        %v1829 = vld [vmem:[%s1817 + $0x58] sm:$0xff]
        %v1830 = vld [vmem:[%s1817 + $0x60] sm:$0xff]
        %v1831 = vld [vmem:[%s1817 + $0x68] sm:$0xff]
        %v1832 = vld [vmem:[%s1817 + $0x70] sm:$0xff]
        %v1833 = vld [vmem:[%s1817 + $0x78] sm:$0xff]
        %v1834 = vld [vmem:[%s1817 + $0x80] sm:$0xff]
        %v1835 = vld [vmem:[%s1817 + $0x88] sm:$0xff]
        %v1836 = vld [vmem:[%s1817 + $0x90] sm:$0xff]
        %v1837 = vld [vmem:[%s1817 + $0x98] sm:$0xff]
        %v1838 = vld [vmem:[%s1817 + $0xa0] sm:$0xff]
        %v1839 = vld [vmem:[%s1817 + $0xa8] sm:$0xff]
        %v1840 = vld [vmem:[%s1817 + $0xb0] sm:$0xff]
        %v1841 = vld [vmem:[%s1817 + $0xb8] sm:$0xff]
        %v1842 = vld [vmem:[%s1817 + $0xc0] sm:$0xff]
        %v1843 = vld [vmem:[%s1817 + $0xc8] sm:$0xff]
        %v1844 = vld [vmem:[%s1817 + $0xd0] sm:$0xff]
        %v1845 = vld [vmem:[%s1817 + $0xd8] sm:$0xff]
        %v1846 = vld [vmem:[%s1817 + $0xe0] sm:$0xff]
        %v1847 = vld [vmem:[%s1817 + $0xe8] sm:$0xff]
        %v1848 = vld [vmem:[%s1817 + $0xf0] sm:$0xff]
        %v1849 = vld [vmem:[%s1817 + $0xf8] sm:$0xff]
        %1850 = vmatprep.subr.mxu0 0.0
        %1851 = vmatpush1.msra.mxu0 %v1833
        %1852 = vmatprep.subr.mxu0 0.0
        %1853 = vmatpush1.msra.mxu0 %v1832
        %1854 = vmatprep.subr.mxu0 0.0
        %1855 = vmatpush1.msra.mxu0 %v1831
        %1856 = vmatprep.subr.mxu0 0.0
        %1857 = vmatpush1.msra.mxu0 %v1830
        %1858 = vmatprep.subr.mxu0 0.0
        %1859 = vmatpush1.msra.mxu0 %v1829
        %1860 = vmatprep.subr.mxu0 0.0
        %1861 = vmatpush1.msra.mxu0 %v1828
        %1862 = vmatprep.subr.mxu0 0.0
        %1863 = vmatpush1.msra.mxu0 %v1827
        %1864 = vmatprep.subr.mxu0 0.0
        %1865 = vmatpush1.msra.mxu0 %v1826
        %1866 = vmatprep.subr.mxu0 0.0
        %1867 = vmatpush1.msra.mxu0 %v1825
        %1868 = vmatprep.subr.mxu0 0.0
        %1869 = vmatpush1.msra.mxu0 %v1824
        %1870 = vmatprep.subr.mxu0 0.0
        %1871 = vmatpush1.msra.mxu0 %v1823
        %1872 = vmatprep.subr.mxu0 0.0
        %1873 = vmatpush1.msra.mxu0 %v1822
        %1874 = vmatprep.subr.mxu0 0.0
        %1875 = vmatpush1.msra.mxu0 %v1821
        %1876 = vmatprep.subr.mxu0 0.0
        %1877 = vmatpush1.msra.mxu0 %v1820
        %1878 = vmatprep.subr.mxu0 0.0
        %1879 = vmatpush1.msra.mxu0 %v1819
        %1880 = vmatprep.subr.mxu0 0.0
        %1881 = vmatpush1.msra.mxu0 %v1818
        %1882 = vmatprep.subr.mxu0 0.0
        %1883 = vmatpush2.msra.mxu0 %v1849
        %1884 = vmatprep.subr.mxu0 0.0
        %1885 = vmatpush2.msra.mxu0 %v1848
        %1886 = vmatprep.subr.mxu0 0.0
        %1887 = vmatpush2.msra.mxu0 %v1847
        %1888 = vmatprep.subr.mxu0 0.0
        %1889 = vmatpush2.msra.mxu0 %v1846
        %1890 = vmatprep.subr.mxu0 0.0
        %1891 = vmatpush2.msra.mxu0 %v1845
        %1892 = vmatprep.subr.mxu0 0.0
        %1893 = vmatpush2.msra.mxu0 %v1844
        %1894 = vmatprep.subr.mxu0 0.0
        %1895 = vmatpush2.msra.mxu0 %v1843
        %1896 = vmatprep.subr.mxu0 0.0
        %1897 = vmatpush2.msra.mxu0 %v1842
        %1898 = vmatprep.subr.mxu0 0.0
        %1899 = vmatpush2.msra.mxu0 %v1841
        %1900 = vmatprep.subr.mxu0 0.0
        %1901 = vmatpush2.msra.mxu0 %v1840
        %1902 = vmatprep.subr.mxu0 0.0
        %1903 = vmatpush2.msra.mxu0 %v1839
        %1904 = vmatprep.subr.mxu0 0.0
        %1905 = vmatpush2.msra.mxu0 %v1838
        %1906 = vmatprep.subr.mxu0 0.0
        %1907 = vmatpush2.msra.mxu0 %v1837
        %1908 = vmatprep.subr.mxu0 0.0
        %1909 = vmatpush2.msra.mxu0 %v1836
        %1910 = vmatprep.subr.mxu0 0.0
        %1911 = vmatpush2.msra.mxu0 %v1835
        %1912 = vmatprep.subr.mxu0 0.0
        %1913 = vmatpush2.msra.mxu0 %v1834
        %1914 = vmatprep.mubr.f32.mxu0 %v1693
        %1915 = vmatmul.mubr.f32.gmra.mxu0 %v1692
        %v1916 = vpop.f32.mrf.mxu0
        %v1917 = vadd.f32 0.0, %v1916
        %v1918 = vpop.f32.mrf.mxu0
        %1919 = vmatprep.mubr.f32.mxu0 %v1695
        %1920 = vmatmul.mubr.f32.gmra.mxu0 %v1694
        %v1921 = vpop.f32.mrf.mxu0
        %v1922 = vadd.f32 0.0, %v1921
        %v1923 = vpop.f32.mrf.mxu0
        %1924 = vmatprep.mubr.f32.mxu0 %v1697
        %1925 = vmatmul.mubr.f32.gmra.mxu0 %v1696
        %v1926 = vpop.f32.mrf.mxu0
        %v1927 = vadd.f32 0.0, %v1926
        %v1928 = vpop.f32.mrf.mxu0
        %1929 = vmatprep.mubr.f32.mxu0 %v1699
        %1930 = vmatmul.mubr.f32.gmra.mxu0 %v1698
        %v1931 = vpop.f32.mrf.mxu0
        %v1932 = vadd.f32 0.0, %v1931
        %v1933 = vpop.f32.mrf.mxu0
        %1934 = vdwg.mxu0
        %v1935 = vmax.f32 %v1799, %v1917
        %v1936 = vmax.f32 %v1804, %v1922
        %v1937 = vmax.f32 %v1809, %v1927
        %v1938 = vmax.f32 %v1814, %v1932
        %v1939 = vld [vmem:[#allocation31] sm:$0xff]
        %v1940 = vld [vmem:[#allocation31 + $0x8] sm:$0xff]
        %v1942 = vsel %vm1057, %v1939, 0
        %v1945 = vsel %vm1057, %v1940, 0
        %1947 = vmatprep.subr.mxu0 0.0
        %1948 = vmatpush1.msra.mxu0 0.0
        %1949 = vmatprep.subr.mxu0 0.0
        %1950 = vmatpush1.msra.mxu0 0.0
        %1951 = vmatprep.subr.mxu0 0.0
        %1952 = vmatpush1.msra.mxu0 0.0
        %1953 = vmatprep.subr.mxu0 0.0
        %1954 = vmatpush1.msra.mxu0 0.0
        %1955 = vmatprep.subr.mxu0 0.0
        %1956 = vmatpush1.msra.mxu0 0.0
        %1957 = vmatprep.subr.mxu0 0.0
        %1958 = vmatpush1.msra.mxu0 0.0
        %1959 = vmatprep.subr.mxu0 0.0
        %1960 = vmatpush1.msra.mxu0 0.0
        %1961 = vmatprep.subr.mxu0 0.0
        %1962 = vmatpush1.msra.mxu0 0.0
        %1963 = vmatprep.subr.mxu0 0.0
        %1964 = vmatpush1.msra.mxu0 0.0
        %1965 = vmatprep.subr.mxu0 0.0
        %1966 = vmatpush1.msra.mxu0 0.0
        %1967 = vmatprep.subr.mxu0 0.0
        %1968 = vmatpush1.msra.mxu0 0.0
        %1969 = vmatprep.subr.mxu0 0.0
        %1970 = vmatpush1.msra.mxu0 0.0
        %1971 = vmatprep.subr.mxu0 0.0
        %1972 = vmatpush1.msra.mxu0 %v1938
        %1973 = vmatprep.subr.mxu0 0.0
        %1974 = vmatpush1.msra.mxu0 %v1937
        %1975 = vmatprep.subr.mxu0 0.0
        %1976 = vmatpush1.msra.mxu0 %v1936
        %1977 = vmatprep.subr.mxu0 0.0
        %1978 = vmatpush1.msra.mxu0 %v1935
        %1979 = vmatprep.subr.mxu0 0.0
        %1980 = vmatpush2.msra.mxu0 0.0
        %1981 = vmatprep.subr.mxu0 0.0
        %1982 = vmatpush2.msra.mxu0 0.0
        %1983 = vmatprep.subr.mxu0 0.0
        %1984 = vmatpush2.msra.mxu0 0.0
        %1985 = vmatprep.subr.mxu0 0.0
        %1986 = vmatpush2.msra.mxu0 0.0
        %1987 = vmatprep.subr.mxu0 0.0
        %1988 = vmatpush2.msra.mxu0 0.0
        %1989 = vmatprep.subr.mxu0 0.0
        %1990 = vmatpush2.msra.mxu0 0.0
        %1991 = vmatprep.subr.mxu0 0.0
        %1992 = vmatpush2.msra.mxu0 0.0
        %1993 = vmatprep.subr.mxu0 0.0
        %1994 = vmatpush2.msra.mxu0 0.0
        %1995 = vmatprep.subr.mxu0 0.0
        %1996 = vmatpush2.msra.mxu0 0.0
        %1997 = vmatprep.subr.mxu0 0.0
        %1998 = vmatpush2.msra.mxu0 0.0
        %1999 = vmatprep.subr.mxu0 0.0
        %2000 = vmatpush2.msra.mxu0 0.0
        %2001 = vmatprep.subr.mxu0 0.0
        %2002 = vmatpush2.msra.mxu0 0.0
        %2003 = vmatprep.subr.mxu0 0.0
        %2004 = vmatpush2.msra.mxu0 0.0
        %2005 = vmatprep.subr.mxu0 0.0
        %2006 = vmatpush2.msra.mxu0 0.0
        %2007 = vmatprep.subr.mxu0 0.0
        %2008 = vmatpush2.msra.mxu0 0.0
        %2009 = vmatprep.subr.mxu0 0.0
        %2010 = vmatpush2.msra.mxu0 0.0
        %2011 = vmatprep.mubr.f32.mxu0 0.0
        %2012 = vmatmul.mubr.f32.gmra.mxu0 %v1942
        %v2013 = vpop.f32.mrf.mxu0
        %v2014 = vadd.f32 0.0, %v2013
        %v2015 = vpop.f32.mrf.mxu0
        %2016 = vmatprep.mubr.f32.mxu0 0.0
        %2017 = vmatmul.mubr.f32.gmra.mxu0 %v1945
        %v2018 = vpop.f32.mrf.mxu0
        %v2019 = vadd.f32 0.0, %v2018
        %v2020 = vpop.f32.mrf.mxu0
        %2021 = vdwg.mxu0
        %s2022 = scalar_lea.vmem [#allocation31], 16
        %v2023 = vld [vmem:[%s2022] sm:$0xff]
        %v2024 = vld [vmem:[%s2022 + $0x8] sm:$0xff]
        %v2026 = vsel %vm1057, %v2023, 0
        %v2029 = vsel %vm1057, %v2024, 0
        %2031 = vmatprep.subr.mxu0 0.0
        %2032 = vmatpush1.msra.mxu0 0.0
        %2033 = vmatprep.subr.mxu0 0.0
        %2034 = vmatpush1.msra.mxu0 0.0
        %2035 = vmatprep.subr.mxu0 0.0
        %2036 = vmatpush1.msra.mxu0 0.0
        %2037 = vmatprep.subr.mxu0 0.0
        %2038 = vmatpush1.msra.mxu0 0.0
        %2039 = vmatprep.subr.mxu0 0.0
        %2040 = vmatpush1.msra.mxu0 0.0
        %2041 = vmatprep.subr.mxu0 0.0
        %2042 = vmatpush1.msra.mxu0 0.0
        %2043 = vmatprep.subr.mxu0 0.0
        %2044 = vmatpush1.msra.mxu0 0.0
        %2045 = vmatprep.subr.mxu0 0.0
        %2046 = vmatpush1.msra.mxu0 0.0
        %2047 = vmatprep.subr.mxu0 0.0
        %2048 = vmatpush1.msra.mxu0 0.0
        %2049 = vmatprep.subr.mxu0 0.0
        %2050 = vmatpush1.msra.mxu0 0.0
        %2051 = vmatprep.subr.mxu0 0.0
        %2052 = vmatpush1.msra.mxu0 0.0
        %2053 = vmatprep.subr.mxu0 0.0
        %2054 = vmatpush1.msra.mxu0 0.0
        %2055 = vmatprep.subr.mxu0 0.0
        %2056 = vmatpush1.msra.mxu0 %v1938
        %2057 = vmatprep.subr.mxu0 0.0
        %2058 = vmatpush1.msra.mxu0 %v1937
        %2059 = vmatprep.subr.mxu0 0.0
        %2060 = vmatpush1.msra.mxu0 %v1936
        %2061 = vmatprep.subr.mxu0 0.0
        %2062 = vmatpush1.msra.mxu0 %v1935
        %2063 = vmatprep.subr.mxu0 0.0
        %2064 = vmatpush2.msra.mxu0 0.0
        %2065 = vmatprep.subr.mxu0 0.0
        %2066 = vmatpush2.msra.mxu0 0.0
        %2067 = vmatprep.subr.mxu0 0.0
        %2068 = vmatpush2.msra.mxu0 0.0
        %2069 = vmatprep.subr.mxu0 0.0
        %2070 = vmatpush2.msra.mxu0 0.0
        %2071 = vmatprep.subr.mxu0 0.0
        %2072 = vmatpush2.msra.mxu0 0.0
        %2073 = vmatprep.subr.mxu0 0.0
        %2074 = vmatpush2.msra.mxu0 0.0
        %2075 = vmatprep.subr.mxu0 0.0
        %2076 = vmatpush2.msra.mxu0 0.0
        %2077 = vmatprep.subr.mxu0 0.0
        %2078 = vmatpush2.msra.mxu0 0.0
        %2079 = vmatprep.subr.mxu0 0.0
        %2080 = vmatpush2.msra.mxu0 0.0
        %2081 = vmatprep.subr.mxu0 0.0
        %2082 = vmatpush2.msra.mxu0 0.0
        %2083 = vmatprep.subr.mxu0 0.0
        %2084 = vmatpush2.msra.mxu0 0.0
        %2085 = vmatprep.subr.mxu0 0.0
        %2086 = vmatpush2.msra.mxu0 0.0
        %2087 = vmatprep.subr.mxu0 0.0
        %2088 = vmatpush2.msra.mxu0 0.0
        %2089 = vmatprep.subr.mxu0 0.0
        %2090 = vmatpush2.msra.mxu0 0.0
        %2091 = vmatprep.subr.mxu0 0.0
        %2092 = vmatpush2.msra.mxu0 0.0
        %2093 = vmatprep.subr.mxu0 0.0
        %2094 = vmatpush2.msra.mxu0 0.0
        %2095 = vmatprep.mubr.f32.mxu0 0.0
        %2096 = vmatmul.mubr.f32.gmra.mxu0 %v2026
        %v2097 = vpop.f32.mrf.mxu0
        %v2098 = vadd.f32 0.0, %v2097
        %v2099 = vpop.f32.mrf.mxu0
        %2100 = vmatprep.mubr.f32.mxu0 0.0
        %2101 = vmatmul.mubr.f32.gmra.mxu0 %v2029
        %v2102 = vpop.f32.mrf.mxu0
        %v2103 = vadd.f32 0.0, %v2102
        %v2104 = vpop.f32.mrf.mxu0
        %2105 = vdwg.mxu0
        %v2106 = vmax.f32 %v2014, %v2098
        %v2107 = vmax.f32 %v2019, %v2103
        %2108 = vst [vmem:[#allocation3 + $0x8] sm:$0xff] %v2106
        %2109 = vst [vmem:[#allocation3 + $0x10] sm:$0xff] %v2107
        %v2110 = vld [vmem:[#allocation3 + $0x7] sm:$0xff]
        %v2111 = vld [vmem:[#allocation3 + $0xf] sm:$0xff]
        %v2112 = vld [vmem:[#allocation10] sm:$0xff]
        %v2113 = vld [vmem:[#allocation10 + $0x8] sm:$0xff]
        %v2114 = vld [vmem:[#allocation10 + $0x10] sm:$0xff]
        %v2115 = vld [vmem:[#allocation10 + $0x18] sm:$0xff]
        %v2116 = vld [vmem:[#allocation10 + $0x20] sm:$0xff]
        %v2117 = vld [vmem:[#allocation10 + $0x28] sm:$0xff]
        %v2118 = vld [vmem:[#allocation10 + $0x30] sm:$0xff]
        %v2119 = vld [vmem:[#allocation10 + $0x38] sm:$0xff]
        %v2120 = vld [vmem:[#allocation10 + $0x40] sm:$0xff]
        %v2121 = vld [vmem:[#allocation10 + $0x48] sm:$0xff]
        %v2122 = vld [vmem:[#allocation10 + $0x50] sm:$0xff]
        %v2123 = vld [vmem:[#allocation10 + $0x58] sm:$0xff]
        %v2124 = vld [vmem:[#allocation10 + $0x60] sm:$0xff]
        %v2125 = vld [vmem:[#allocation10 + $0x68] sm:$0xff]
        %v2126 = vld [vmem:[#allocation10 + $0x70] sm:$0xff]
        %v2127 = vld [vmem:[#allocation10 + $0x78] sm:$0xff]
        %v2128 = vld [vmem:[#allocation3 + $0x8] sm:$0xff]
        %v2129 = vld [vmem:[#allocation3 + $0x10] sm:$0xff]
        %s2130 = scalar_lea.vmem [#allocation10], 128
        %v2131 = vld [vmem:[%s2130] sm:$0xff]
        %v2132 = vld [vmem:[%s2130 + $0x8] sm:$0xff]
        %v2133 = vld [vmem:[%s2130 + $0x10] sm:$0xff]
        %v2134 = vld [vmem:[%s2130 + $0x18] sm:$0xff]
        %v2135 = vld [vmem:[%s2130 + $0x20] sm:$0xff]
        %v2136 = vld [vmem:[%s2130 + $0x28] sm:$0xff]
        %v2137 = vld [vmem:[%s2130 + $0x30] sm:$0xff]
        %v2138 = vld [vmem:[%s2130 + $0x38] sm:$0xff]
        %v2139 = vld [vmem:[%s2130 + $0x40] sm:$0xff]
        %v2140 = vld [vmem:[%s2130 + $0x48] sm:$0xff]
        %v2141 = vld [vmem:[%s2130 + $0x50] sm:$0xff]
        %v2142 = vld [vmem:[%s2130 + $0x58] sm:$0xff]
        %v2143 = vld [vmem:[%s2130 + $0x60] sm:$0xff]
        %v2144 = vld [vmem:[%s2130 + $0x68] sm:$0xff]
        %v2145 = vld [vmem:[%s2130 + $0x70] sm:$0xff]
        %v2146 = vld [vmem:[%s2130 + $0x78] sm:$0xff]
        %2147 = vmatprep.subr.mxu0 0.0
        %2148 = vmatpush1.msra.mxu0 %v2146
        %2149 = vmatprep.subr.mxu0 0.0
        %2150 = vmatpush1.msra.mxu0 %v2145
        %2151 = vmatprep.subr.mxu0 0.0
        %2152 = vmatpush1.msra.mxu0 %v2144
        %2153 = vmatprep.subr.mxu0 0.0
        %2154 = vmatpush1.msra.mxu0 %v2143
        %2155 = vmatprep.subr.mxu0 0.0
        %2156 = vmatpush1.msra.mxu0 %v2142
        %2157 = vmatprep.subr.mxu0 0.0
        %2158 = vmatpush1.msra.mxu0 %v2141
        %2159 = vmatprep.subr.mxu0 0.0
        %2160 = vmatpush1.msra.mxu0 %v2140
        %2161 = vmatprep.subr.mxu0 0.0
        %2162 = vmatpush1.msra.mxu0 %v2139
        %2163 = vmatprep.subr.mxu0 0.0
        %2164 = vmatpush1.msra.mxu0 %v2138
        %2165 = vmatprep.subr.mxu0 0.0
        %2166 = vmatpush1.msra.mxu0 %v2137
        %2167 = vmatprep.subr.mxu0 0.0
        %2168 = vmatpush1.msra.mxu0 %v2136
        %2169 = vmatprep.subr.mxu0 0.0
        %2170 = vmatpush1.msra.mxu0 %v2135
        %2171 = vmatprep.subr.mxu0 0.0
        %2172 = vmatpush1.msra.mxu0 %v2134
        %2173 = vmatprep.subr.mxu0 0.0
        %2174 = vmatpush1.msra.mxu0 %v2133
        %2175 = vmatprep.subr.mxu0 0.0
        %2176 = vmatpush1.msra.mxu0 %v2132
        %2177 = vmatprep.subr.mxu0 0.0
        %2178 = vmatpush1.msra.mxu0 %v2131
        %2179 = vmatprep.subr.mxu0 0.0
        %2180 = vmatpush2.msra.mxu0 0.0
        %2181 = vmatprep.subr.mxu0 0.0
        %2182 = vmatpush2.msra.mxu0 0.0
        %2183 = vmatprep.subr.mxu0 0.0
        %2184 = vmatpush2.msra.mxu0 0.0
        %2185 = vmatprep.subr.mxu0 0.0
        %2186 = vmatpush2.msra.mxu0 0.0
        %2187 = vmatprep.subr.mxu0 0.0
        %2188 = vmatpush2.msra.mxu0 0.0
        %2189 = vmatprep.subr.mxu0 0.0
        %2190 = vmatpush2.msra.mxu0 0.0
        %2191 = vmatprep.subr.mxu0 0.0
        %2192 = vmatpush2.msra.mxu0 0.0
        %2193 = vmatprep.subr.mxu0 0.0
        %2194 = vmatpush2.msra.mxu0 0.0
        %2195 = vmatprep.subr.mxu0 0.0
        %2196 = vmatpush2.msra.mxu0 0.0
        %2197 = vmatprep.subr.mxu0 0.0
        %2198 = vmatpush2.msra.mxu0 0.0
        %2199 = vmatprep.subr.mxu0 0.0
        %2200 = vmatpush2.msra.mxu0 0.0
        %2201 = vmatprep.subr.mxu0 0.0
        %2202 = vmatpush2.msra.mxu0 0.0
        %2203 = vmatprep.subr.mxu0 0.0
        %2204 = vmatpush2.msra.mxu0 0.0
        %2205 = vmatprep.subr.mxu0 0.0
        %2206 = vmatpush2.msra.mxu0 0.0
        %2207 = vmatprep.subr.mxu0 0.0
        %2208 = vmatpush2.msra.mxu0 0.0
        %2209 = vmatprep.subr.mxu0 0.0
        %2210 = vmatpush2.msra.mxu0 0.0
        %2211 = vmatprep.mubr.f32.mxu0 0.0
        %2212 = vmatmul.mubr.f32.gmra.mxu0 %v2128
        %v2213 = vpop.f32.mrf.mxu0
        %v2214 = vadd.f32 0.0, %v2213
        %v2215 = vpop.f32.mrf.mxu0
        %2216 = vmatprep.mubr.f32.mxu0 0.0
        %2217 = vmatmul.mubr.f32.gmra.mxu0 %v2129
        %v2218 = vpop.f32.mrf.mxu0
        %v2219 = vadd.f32 0.0, %v2218
        %v2220 = vpop.f32.mrf.mxu0
        %2221 = vdwg.mxu0
        %2222 = vmatprep.subr.mxu0 0.0
        %2223 = vmatpush1.msra.mxu0 %v2127
        %2224 = vmatprep.subr.mxu0 0.0
        %2225 = vmatpush1.msra.mxu0 %v2126
        %2226 = vmatprep.subr.mxu0 0.0
        %2227 = vmatpush1.msra.mxu0 %v2125
        %2228 = vmatprep.subr.mxu0 0.0
        %2229 = vmatpush1.msra.mxu0 %v2124
        %2230 = vmatprep.subr.mxu0 0.0
        %2231 = vmatpush1.msra.mxu0 %v2123
        %2232 = vmatprep.subr.mxu0 0.0
        %2233 = vmatpush1.msra.mxu0 %v2122
        %2234 = vmatprep.subr.mxu0 0.0
        %2235 = vmatpush1.msra.mxu0 %v2121
        %2236 = vmatprep.subr.mxu0 0.0
        %2237 = vmatpush1.msra.mxu0 %v2120
        %2238 = vmatprep.subr.mxu0 0.0
        %2239 = vmatpush1.msra.mxu0 %v2119
        %2240 = vmatprep.subr.mxu0 0.0
        %2241 = vmatpush1.msra.mxu0 %v2118
        %2242 = vmatprep.subr.mxu0 0.0
        %2243 = vmatpush1.msra.mxu0 %v2117
        %2244 = vmatprep.subr.mxu0 0.0
        %2245 = vmatpush1.msra.mxu0 %v2116
        %2246 = vmatprep.subr.mxu0 0.0
        %2247 = vmatpush1.msra.mxu0 %v2115
        %2248 = vmatprep.subr.mxu0 0.0
        %2249 = vmatpush1.msra.mxu0 %v2114
        %2250 = vmatprep.subr.mxu0 0.0
        %2251 = vmatpush1.msra.mxu0 %v2113
        %2252 = vmatprep.subr.mxu0 0.0
        %2253 = vmatpush1.msra.mxu0 %v2112
        %2254 = vmatprep.subr.mxu0 0.0
        %2255 = vmatpush2.msra.mxu0 0.0
        %2256 = vmatprep.subr.mxu0 0.0
        %2257 = vmatpush2.msra.mxu0 0.0
        %2258 = vmatprep.subr.mxu0 0.0
        %2259 = vmatpush2.msra.mxu0 0.0
        %2260 = vmatprep.subr.mxu0 0.0
        %2261 = vmatpush2.msra.mxu0 0.0
        %2262 = vmatprep.subr.mxu0 0.0
        %2263 = vmatpush2.msra.mxu0 0.0
        %2264 = vmatprep.subr.mxu0 0.0
        %2265 = vmatpush2.msra.mxu0 0.0
        %2266 = vmatprep.subr.mxu0 0.0
        %2267 = vmatpush2.msra.mxu0 0.0
        %2268 = vmatprep.subr.mxu0 0.0
        %2269 = vmatpush2.msra.mxu0 0.0
        %2270 = vmatprep.subr.mxu0 0.0
        %2271 = vmatpush2.msra.mxu0 0.0
        %2272 = vmatprep.subr.mxu0 0.0
        %2273 = vmatpush2.msra.mxu0 0.0
        %2274 = vmatprep.subr.mxu0 0.0
        %2275 = vmatpush2.msra.mxu0 0.0
        %2276 = vmatprep.subr.mxu0 0.0
        %2277 = vmatpush2.msra.mxu0 0.0
        %2278 = vmatprep.subr.mxu0 0.0
        %2279 = vmatpush2.msra.mxu0 0.0
        %2280 = vmatprep.subr.mxu0 0.0
        %2281 = vmatpush2.msra.mxu0 0.0
        %2282 = vmatprep.subr.mxu0 0.0
        %2283 = vmatpush2.msra.mxu0 0.0
        %2284 = vmatprep.subr.mxu0 0.0
        %2285 = vmatpush2.msra.mxu0 0.0
        %2286 = vmatprep.mubr.f32.mxu0 0.0
        %2287 = vmatmul.mubr.f32.gmra.mxu0 %v2110
        %v2288 = vpop.f32.mrf.mxu0
        %v2289 = vadd.f32 %v2214, %v2288
        %v2290 = vpop.f32.mrf.mxu0
        %2291 = vmatprep.mubr.f32.mxu0 0.0
        %2292 = vmatmul.mubr.f32.gmra.mxu0 %v2111
        %v2293 = vpop.f32.mrf.mxu0
        %v2294 = vadd.f32 %v2219, %v2293
        %v2295 = vpop.f32.mrf.mxu0
        %2296 = vdwg.mxu0
        %v2297 = vld [vmem:[#allocation3 + $0x9] sm:$0xff]
        %v2298 = vld [vmem:[#allocation3 + $0x11] sm:$0xff]
        %s2299 = scalar_lea.vmem [#allocation10], 256
        %v2300 = vld [vmem:[%s2299] sm:$0xff]
        %v2301 = vld [vmem:[%s2299 + $0x8] sm:$0xff]
        %v2302 = vld [vmem:[%s2299 + $0x10] sm:$0xff]
        %v2303 = vld [vmem:[%s2299 + $0x18] sm:$0xff]
        %v2304 = vld [vmem:[%s2299 + $0x20] sm:$0xff]
        %v2305 = vld [vmem:[%s2299 + $0x28] sm:$0xff]
        %v2306 = vld [vmem:[%s2299 + $0x30] sm:$0xff]
        %v2307 = vld [vmem:[%s2299 + $0x38] sm:$0xff]
        %v2308 = vld [vmem:[%s2299 + $0x40] sm:$0xff]
        %v2309 = vld [vmem:[%s2299 + $0x48] sm:$0xff]
        %v2310 = vld [vmem:[%s2299 + $0x50] sm:$0xff]
        %v2311 = vld [vmem:[%s2299 + $0x58] sm:$0xff]
        %v2312 = vld [vmem:[%s2299 + $0x60] sm:$0xff]
        %v2313 = vld [vmem:[%s2299 + $0x68] sm:$0xff]
        %v2314 = vld [vmem:[%s2299 + $0x70] sm:$0xff]
        %v2315 = vld [vmem:[%s2299 + $0x78] sm:$0xff]
        %2316 = vmatprep.subr.mxu0 0.0
        %2317 = vmatpush1.msra.mxu0 %v2315
        %2318 = vmatprep.subr.mxu0 0.0
        %2319 = vmatpush1.msra.mxu0 %v2314
        %2320 = vmatprep.subr.mxu0 0.0
        %2321 = vmatpush1.msra.mxu0 %v2313
        %2322 = vmatprep.subr.mxu0 0.0
        %2323 = vmatpush1.msra.mxu0 %v2312
        %2324 = vmatprep.subr.mxu0 0.0
        %2325 = vmatpush1.msra.mxu0 %v2311
        %2326 = vmatprep.subr.mxu0 0.0
        %2327 = vmatpush1.msra.mxu0 %v2310
        %2328 = vmatprep.subr.mxu0 0.0
        %2329 = vmatpush1.msra.mxu0 %v2309
        %2330 = vmatprep.subr.mxu0 0.0
        %2331 = vmatpush1.msra.mxu0 %v2308
        %2332 = vmatprep.subr.mxu0 0.0
        %2333 = vmatpush1.msra.mxu0 %v2307
        %2334 = vmatprep.subr.mxu0 0.0
        %2335 = vmatpush1.msra.mxu0 %v2306
        %2336 = vmatprep.subr.mxu0 0.0
        %2337 = vmatpush1.msra.mxu0 %v2305
        %2338 = vmatprep.subr.mxu0 0.0
        %2339 = vmatpush1.msra.mxu0 %v2304
        %2340 = vmatprep.subr.mxu0 0.0
        %2341 = vmatpush1.msra.mxu0 %v2303
        %2342 = vmatprep.subr.mxu0 0.0
        %2343 = vmatpush1.msra.mxu0 %v2302
        %2344 = vmatprep.subr.mxu0 0.0
        %2345 = vmatpush1.msra.mxu0 %v2301
        %2346 = vmatprep.subr.mxu0 0.0
        %2347 = vmatpush1.msra.mxu0 %v2300
        %2348 = vmatprep.subr.mxu0 0.0
        %2349 = vmatpush2.msra.mxu0 0.0
        %2350 = vmatprep.subr.mxu0 0.0
        %2351 = vmatpush2.msra.mxu0 0.0
        %2352 = vmatprep.subr.mxu0 0.0
        %2353 = vmatpush2.msra.mxu0 0.0
        %2354 = vmatprep.subr.mxu0 0.0
        %2355 = vmatpush2.msra.mxu0 0.0
        %2356 = vmatprep.subr.mxu0 0.0
        %2357 = vmatpush2.msra.mxu0 0.0
        %2358 = vmatprep.subr.mxu0 0.0
        %2359 = vmatpush2.msra.mxu0 0.0
        %2360 = vmatprep.subr.mxu0 0.0
        %2361 = vmatpush2.msra.mxu0 0.0
        %2362 = vmatprep.subr.mxu0 0.0
        %2363 = vmatpush2.msra.mxu0 0.0
        %2364 = vmatprep.subr.mxu0 0.0
        %2365 = vmatpush2.msra.mxu0 0.0
        %2366 = vmatprep.subr.mxu0 0.0
        %2367 = vmatpush2.msra.mxu0 0.0
        %2368 = vmatprep.subr.mxu0 0.0
        %2369 = vmatpush2.msra.mxu0 0.0
        %2370 = vmatprep.subr.mxu0 0.0
        %2371 = vmatpush2.msra.mxu0 0.0
        %2372 = vmatprep.subr.mxu0 0.0
        %2373 = vmatpush2.msra.mxu0 0.0
        %2374 = vmatprep.subr.mxu0 0.0
        %2375 = vmatpush2.msra.mxu0 0.0
        %2376 = vmatprep.subr.mxu0 0.0
        %2377 = vmatpush2.msra.mxu0 0.0
        %2378 = vmatprep.subr.mxu0 0.0
        %2379 = vmatpush2.msra.mxu0 0.0
        %2380 = vmatprep.mubr.f32.mxu0 0.0
        %2381 = vmatmul.mubr.f32.gmra.mxu0 %v2297
        %v2382 = vpop.f32.mrf.mxu0
        %v2383 = vadd.f32 0.0, %v2382
        %v2384 = vpop.f32.mrf.mxu0
        %2385 = vmatprep.mubr.f32.mxu0 0.0
        %2386 = vmatmul.mubr.f32.gmra.mxu0 %v2298
        %v2387 = vpop.f32.mrf.mxu0
        %v2388 = vadd.f32 0.0, %v2387
        %v2389 = vpop.f32.mrf.mxu0
        %2390 = vdwg.mxu0
        %v2391 = vadd.f32 %v2289, %v2383
        %v2392 = vadd.f32 %v2294, %v2388
        %v2393 = vld [vmem:[#allocation12] sm:$0x1]
        %v2395 = vlaneseq
        %v2396 = vshrl.u32 %v2395, 7
        %v2397 = vsub.s32 0, %v2396
        %v2398 = vrot.slane %v2393, %v2397
        %v2400 = vadd.f32 %v2391, %v2398
        %v2401 = vadd.f32 %v2392, %v2398
        %v2402 = vmax.f32 %v2400, 0.0
        %v2403 = vmax.f32 %v2401, 0.0
        %2404 = vst [vmem:[#allocation3 + $0x8] sm:$0xff] %v2402
        %2405 = vst [vmem:[#allocation3 + $0x10] sm:$0xff] %v2403
        %v2406 = vld [vmem:[#allocation3 + $0x7] sm:$0xff]
        %v2407 = vld [vmem:[#allocation3 + $0xf] sm:$0xff]
        %v2408 = vld [vmem:[#allocation13] sm:$0xff]
        %v2409 = vld [vmem:[#allocation13 + $0x8] sm:$0xff]
        %v2410 = vld [vmem:[#allocation13 + $0x10] sm:$0xff]
        %v2411 = vld [vmem:[#allocation13 + $0x18] sm:$0xff]
        %v2412 = vld [vmem:[#allocation13 + $0x20] sm:$0xff]
        %v2413 = vld [vmem:[#allocation13 + $0x28] sm:$0xff]
        %v2414 = vld [vmem:[#allocation13 + $0x30] sm:$0xff]
        %v2415 = vld [vmem:[#allocation13 + $0x38] sm:$0xff]
        %v2416 = vld [vmem:[#allocation13 + $0x40] sm:$0xff]
        %v2417 = vld [vmem:[#allocation13 + $0x48] sm:$0xff]
        %v2418 = vld [vmem:[#allocation13 + $0x50] sm:$0xff]
        %v2419 = vld [vmem:[#allocation13 + $0x58] sm:$0xff]
        %v2420 = vld [vmem:[#allocation13 + $0x60] sm:$0xff]
        %v2421 = vld [vmem:[#allocation13 + $0x68] sm:$0xff]
        %v2422 = vld [vmem:[#allocation13 + $0x70] sm:$0xff]
        %v2423 = vld [vmem:[#allocation13 + $0x78] sm:$0xff]
        %v2424 = vld [vmem:[#allocation3 + $0x8] sm:$0xff]
        %v2425 = vld [vmem:[#allocation3 + $0x10] sm:$0xff]
        %s2426 = scalar_lea.vmem [#allocation13], 128
        %v2427 = vld [vmem:[%s2426] sm:$0xff]
        %v2428 = vld [vmem:[%s2426 + $0x8] sm:$0xff]
        %v2429 = vld [vmem:[%s2426 + $0x10] sm:$0xff]
        %v2430 = vld [vmem:[%s2426 + $0x18] sm:$0xff]
        %v2431 = vld [vmem:[%s2426 + $0x20] sm:$0xff]
        %v2432 = vld [vmem:[%s2426 + $0x28] sm:$0xff]
        %v2433 = vld [vmem:[%s2426 + $0x30] sm:$0xff]
        %v2434 = vld [vmem:[%s2426 + $0x38] sm:$0xff]
        %v2435 = vld [vmem:[%s2426 + $0x40] sm:$0xff]
        %v2436 = vld [vmem:[%s2426 + $0x48] sm:$0xff]
        %v2437 = vld [vmem:[%s2426 + $0x50] sm:$0xff]
        %v2438 = vld [vmem:[%s2426 + $0x58] sm:$0xff]
        %v2439 = vld [vmem:[%s2426 + $0x60] sm:$0xff]
        %v2440 = vld [vmem:[%s2426 + $0x68] sm:$0xff]
        %v2441 = vld [vmem:[%s2426 + $0x70] sm:$0xff]
        %v2442 = vld [vmem:[%s2426 + $0x78] sm:$0xff]
        %2443 = vmatprep.subr.mxu0 0.0
        %2444 = vmatpush1.msra.mxu0 %v2442
        %2445 = vmatprep.subr.mxu0 0.0
        %2446 = vmatpush1.msra.mxu0 %v2441
        %2447 = vmatprep.subr.mxu0 0.0
        %2448 = vmatpush1.msra.mxu0 %v2440
        %2449 = vmatprep.subr.mxu0 0.0
        %2450 = vmatpush1.msra.mxu0 %v2439
        %2451 = vmatprep.subr.mxu0 0.0
        %2452 = vmatpush1.msra.mxu0 %v2438
        %2453 = vmatprep.subr.mxu0 0.0
        %2454 = vmatpush1.msra.mxu0 %v2437
        %2455 = vmatprep.subr.mxu0 0.0
        %2456 = vmatpush1.msra.mxu0 %v2436
        %2457 = vmatprep.subr.mxu0 0.0
        %2458 = vmatpush1.msra.mxu0 %v2435
        %2459 = vmatprep.subr.mxu0 0.0
        %2460 = vmatpush1.msra.mxu0 %v2434
        %2461 = vmatprep.subr.mxu0 0.0
        %2462 = vmatpush1.msra.mxu0 %v2433
        %2463 = vmatprep.subr.mxu0 0.0
        %2464 = vmatpush1.msra.mxu0 %v2432
        %2465 = vmatprep.subr.mxu0 0.0
        %2466 = vmatpush1.msra.mxu0 %v2431
        %2467 = vmatprep.subr.mxu0 0.0
        %2468 = vmatpush1.msra.mxu0 %v2430
        %2469 = vmatprep.subr.mxu0 0.0
        %2470 = vmatpush1.msra.mxu0 %v2429
        %2471 = vmatprep.subr.mxu0 0.0
        %2472 = vmatpush1.msra.mxu0 %v2428
        %2473 = vmatprep.subr.mxu0 0.0
        %2474 = vmatpush1.msra.mxu0 %v2427
        %2475 = vmatprep.subr.mxu0 0.0
        %2476 = vmatpush2.msra.mxu0 0.0
        %2477 = vmatprep.subr.mxu0 0.0
        %2478 = vmatpush2.msra.mxu0 0.0
        %2479 = vmatprep.subr.mxu0 0.0
        %2480 = vmatpush2.msra.mxu0 0.0
        %2481 = vmatprep.subr.mxu0 0.0
        %2482 = vmatpush2.msra.mxu0 0.0
        %2483 = vmatprep.subr.mxu0 0.0
        %2484 = vmatpush2.msra.mxu0 0.0
        %2485 = vmatprep.subr.mxu0 0.0
        %2486 = vmatpush2.msra.mxu0 0.0
        %2487 = vmatprep.subr.mxu0 0.0
        %2488 = vmatpush2.msra.mxu0 0.0
        %2489 = vmatprep.subr.mxu0 0.0
        %2490 = vmatpush2.msra.mxu0 0.0
        %2491 = vmatprep.subr.mxu0 0.0
        %2492 = vmatpush2.msra.mxu0 0.0
        %2493 = vmatprep.subr.mxu0 0.0
        %2494 = vmatpush2.msra.mxu0 0.0
        %2495 = vmatprep.subr.mxu0 0.0
        %2496 = vmatpush2.msra.mxu0 0.0
        %2497 = vmatprep.subr.mxu0 0.0
        %2498 = vmatpush2.msra.mxu0 0.0
        %2499 = vmatprep.subr.mxu0 0.0
        %2500 = vmatpush2.msra.mxu0 0.0
        %2501 = vmatprep.subr.mxu0 0.0
        %2502 = vmatpush2.msra.mxu0 0.0
        %2503 = vmatprep.subr.mxu0 0.0
        %2504 = vmatpush2.msra.mxu0 0.0
        %2505 = vmatprep.subr.mxu0 0.0
        %2506 = vmatpush2.msra.mxu0 0.0
        %2507 = vmatprep.mubr.f32.mxu0 0.0
        %2508 = vmatmul.mubr.f32.gmra.mxu0 %v2424
        %v2509 = vpop.f32.mrf.mxu0
        %v2510 = vadd.f32 0.0, %v2509
        %v2511 = vpop.f32.mrf.mxu0
        %2512 = vmatprep.mubr.f32.mxu0 0.0
        %2513 = vmatmul.mubr.f32.gmra.mxu0 %v2425
        %v2514 = vpop.f32.mrf.mxu0
        %v2515 = vadd.f32 0.0, %v2514
        %v2516 = vpop.f32.mrf.mxu0
        %2517 = vdwg.mxu0
        %2518 = vmatprep.subr.mxu0 0.0
        %2519 = vmatpush1.msra.mxu0 %v2423
        %2520 = vmatprep.subr.mxu0 0.0
        %2521 = vmatpush1.msra.mxu0 %v2422
        %2522 = vmatprep.subr.mxu0 0.0
        %2523 = vmatpush1.msra.mxu0 %v2421
        %2524 = vmatprep.subr.mxu0 0.0
        %2525 = vmatpush1.msra.mxu0 %v2420
        %2526 = vmatprep.subr.mxu0 0.0
        %2527 = vmatpush1.msra.mxu0 %v2419
        %2528 = vmatprep.subr.mxu0 0.0
        %2529 = vmatpush1.msra.mxu0 %v2418
        %2530 = vmatprep.subr.mxu0 0.0
        %2531 = vmatpush1.msra.mxu0 %v2417
        %2532 = vmatprep.subr.mxu0 0.0
        %2533 = vmatpush1.msra.mxu0 %v2416
        %2534 = vmatprep.subr.mxu0 0.0
        %2535 = vmatpush1.msra.mxu0 %v2415
        %2536 = vmatprep.subr.mxu0 0.0
        %2537 = vmatpush1.msra.mxu0 %v2414
        %2538 = vmatprep.subr.mxu0 0.0
        %2539 = vmatpush1.msra.mxu0 %v2413
        %2540 = vmatprep.subr.mxu0 0.0
        %2541 = vmatpush1.msra.mxu0 %v2412
        %2542 = vmatprep.subr.mxu0 0.0
        %2543 = vmatpush1.msra.mxu0 %v2411
        %2544 = vmatprep.subr.mxu0 0.0
        %2545 = vmatpush1.msra.mxu0 %v2410
        %2546 = vmatprep.subr.mxu0 0.0
        %2547 = vmatpush1.msra.mxu0 %v2409
        %2548 = vmatprep.subr.mxu0 0.0
        %2549 = vmatpush1.msra.mxu0 %v2408
        %2550 = vmatprep.subr.mxu0 0.0
        %2551 = vmatpush2.msra.mxu0 0.0
        %2552 = vmatprep.subr.mxu0 0.0
        %2553 = vmatpush2.msra.mxu0 0.0
        %2554 = vmatprep.subr.mxu0 0.0
        %2555 = vmatpush2.msra.mxu0 0.0
        %2556 = vmatprep.subr.mxu0 0.0
        %2557 = vmatpush2.msra.mxu0 0.0
        %2558 = vmatprep.subr.mxu0 0.0
        %2559 = vmatpush2.msra.mxu0 0.0
        %2560 = vmatprep.subr.mxu0 0.0
        %2561 = vmatpush2.msra.mxu0 0.0
        %2562 = vmatprep.subr.mxu0 0.0
        %2563 = vmatpush2.msra.mxu0 0.0
        %2564 = vmatprep.subr.mxu0 0.0
        %2565 = vmatpush2.msra.mxu0 0.0
        %2566 = vmatprep.subr.mxu0 0.0
        %2567 = vmatpush2.msra.mxu0 0.0
        %2568 = vmatprep.subr.mxu0 0.0
        %2569 = vmatpush2.msra.mxu0 0.0
        %2570 = vmatprep.subr.mxu0 0.0
        %2571 = vmatpush2.msra.mxu0 0.0
        %2572 = vmatprep.subr.mxu0 0.0
        %2573 = vmatpush2.msra.mxu0 0.0
        %2574 = vmatprep.subr.mxu0 0.0
        %2575 = vmatpush2.msra.mxu0 0.0
        %2576 = vmatprep.subr.mxu0 0.0
        %2577 = vmatpush2.msra.mxu0 0.0
        %2578 = vmatprep.subr.mxu0 0.0
        %2579 = vmatpush2.msra.mxu0 0.0
        %2580 = vmatprep.subr.mxu0 0.0
        %2581 = vmatpush2.msra.mxu0 0.0
        %2582 = vmatprep.mubr.f32.mxu0 0.0
        %2583 = vmatmul.mubr.f32.gmra.mxu0 %v2406
        %v2584 = vpop.f32.mrf.mxu0
        %v2585 = vadd.f32 %v2510, %v2584
        %v2586 = vpop.f32.mrf.mxu0
        %2587 = vmatprep.mubr.f32.mxu0 0.0
        %2588 = vmatmul.mubr.f32.gmra.mxu0 %v2407
        %v2589 = vpop.f32.mrf.mxu0
        %v2590 = vadd.f32 %v2515, %v2589
        %v2591 = vpop.f32.mrf.mxu0
        %2592 = vdwg.mxu0
        %v2593 = vld [vmem:[#allocation3 + $0x9] sm:$0xff]
        %v2594 = vld [vmem:[#allocation3 + $0x11] sm:$0xff]
        %s2595 = scalar_lea.vmem [#allocation13], 256
        %v2596 = vld [vmem:[%s2595] sm:$0xff]
        %v2597 = vld [vmem:[%s2595 + $0x8] sm:$0xff]
        %v2598 = vld [vmem:[%s2595 + $0x10] sm:$0xff]
        %v2599 = vld [vmem:[%s2595 + $0x18] sm:$0xff]
        %v2600 = vld [vmem:[%s2595 + $0x20] sm:$0xff]
        %v2601 = vld [vmem:[%s2595 + $0x28] sm:$0xff]
        %v2602 = vld [vmem:[%s2595 + $0x30] sm:$0xff]
        %v2603 = vld [vmem:[%s2595 + $0x38] sm:$0xff]
        %v2604 = vld [vmem:[%s2595 + $0x40] sm:$0xff]
        %v2605 = vld [vmem:[%s2595 + $0x48] sm:$0xff]
        %v2606 = vld [vmem:[%s2595 + $0x50] sm:$0xff]
        %v2607 = vld [vmem:[%s2595 + $0x58] sm:$0xff]
        %v2608 = vld [vmem:[%s2595 + $0x60] sm:$0xff]
        %v2609 = vld [vmem:[%s2595 + $0x68] sm:$0xff]
        %v2610 = vld [vmem:[%s2595 + $0x70] sm:$0xff]
        %v2611 = vld [vmem:[%s2595 + $0x78] sm:$0xff]
        %2612 = vmatprep.subr.mxu0 0.0
        %2613 = vmatpush1.msra.mxu0 %v2611
        %2614 = vmatprep.subr.mxu0 0.0
        %2615 = vmatpush1.msra.mxu0 %v2610
        %2616 = vmatprep.subr.mxu0 0.0
        %2617 = vmatpush1.msra.mxu0 %v2609
        %2618 = vmatprep.subr.mxu0 0.0
        %2619 = vmatpush1.msra.mxu0 %v2608
        %2620 = vmatprep.subr.mxu0 0.0
        %2621 = vmatpush1.msra.mxu0 %v2607
        %2622 = vmatprep.subr.mxu0 0.0
        %2623 = vmatpush1.msra.mxu0 %v2606
        %2624 = vmatprep.subr.mxu0 0.0
        %2625 = vmatpush1.msra.mxu0 %v2605
        %2626 = vmatprep.subr.mxu0 0.0
        %2627 = vmatpush1.msra.mxu0 %v2604
        %2628 = vmatprep.subr.mxu0 0.0
        %2629 = vmatpush1.msra.mxu0 %v2603
        %2630 = vmatprep.subr.mxu0 0.0
        %2631 = vmatpush1.msra.mxu0 %v2602
        %2632 = vmatprep.subr.mxu0 0.0
        %2633 = vmatpush1.msra.mxu0 %v2601
        %2634 = vmatprep.subr.mxu0 0.0
        %2635 = vmatpush1.msra.mxu0 %v2600
        %2636 = vmatprep.subr.mxu0 0.0
        %2637 = vmatpush1.msra.mxu0 %v2599
        %2638 = vmatprep.subr.mxu0 0.0
        %2639 = vmatpush1.msra.mxu0 %v2598
        %2640 = vmatprep.subr.mxu0 0.0
        %2641 = vmatpush1.msra.mxu0 %v2597
        %2642 = vmatprep.subr.mxu0 0.0
        %2643 = vmatpush1.msra.mxu0 %v2596
        %2644 = vmatprep.subr.mxu0 0.0
        %2645 = vmatpush2.msra.mxu0 0.0
        %2646 = vmatprep.subr.mxu0 0.0
        %2647 = vmatpush2.msra.mxu0 0.0
        %2648 = vmatprep.subr.mxu0 0.0
        %2649 = vmatpush2.msra.mxu0 0.0
        %2650 = vmatprep.subr.mxu0 0.0
        %2651 = vmatpush2.msra.mxu0 0.0
        %2652 = vmatprep.subr.mxu0 0.0
        %2653 = vmatpush2.msra.mxu0 0.0
        %2654 = vmatprep.subr.mxu0 0.0
        %2655 = vmatpush2.msra.mxu0 0.0
        %2656 = vmatprep.subr.mxu0 0.0
        %2657 = vmatpush2.msra.mxu0 0.0
        %2658 = vmatprep.subr.mxu0 0.0
        %2659 = vmatpush2.msra.mxu0 0.0
        %2660 = vmatprep.subr.mxu0 0.0
        %2661 = vmatpush2.msra.mxu0 0.0
        %2662 = vmatprep.subr.mxu0 0.0
        %2663 = vmatpush2.msra.mxu0 0.0
        %2664 = vmatprep.subr.mxu0 0.0
        %2665 = vmatpush2.msra.mxu0 0.0
        %2666 = vmatprep.subr.mxu0 0.0
        %2667 = vmatpush2.msra.mxu0 0.0
        %2668 = vmatprep.subr.mxu0 0.0
        %2669 = vmatpush2.msra.mxu0 0.0
        %2670 = vmatprep.subr.mxu0 0.0
        %2671 = vmatpush2.msra.mxu0 0.0
        %2672 = vmatprep.subr.mxu0 0.0
        %2673 = vmatpush2.msra.mxu0 0.0
        %2674 = vmatprep.subr.mxu0 0.0
        %2675 = vmatpush2.msra.mxu0 0.0
        %2676 = vmatprep.mubr.f32.mxu0 0.0
        %2677 = vmatmul.mubr.f32.gmra.mxu0 %v2593
        %v2678 = vpop.f32.mrf.mxu0
        %v2679 = vadd.f32 0.0, %v2678
        %v2680 = vpop.f32.mrf.mxu0
        %2681 = vmatprep.mubr.f32.mxu0 0.0
        %2682 = vmatmul.mubr.f32.gmra.mxu0 %v2594
        %v2683 = vpop.f32.mrf.mxu0
        %v2684 = vadd.f32 0.0, %v2683
        %v2685 = vpop.f32.mrf.mxu0
        %2686 = vdwg.mxu0
        %v2687 = vadd.f32 %v2585, %v2679
        %v2688 = vadd.f32 %v2590, %v2684
        %v2689 = vld [vmem:[#allocation15] sm:$0x1]
        %v2691 = vlaneseq
        %v2692 = vshrl.u32 %v2691, 7
        %v2693 = vsub.s32 0, %v2692
        %v2694 = vrot.slane %v2689, %v2693
        %v2696 = vadd.f32 %v2687, %v2694
        %v2697 = vadd.f32 %v2688, %v2694
        %v2698 = vmax.f32 %v2696, 0.0
        %v2699 = vmax.f32 %v2697, 0.0
        %v2700 = vadd.f32 %v2698, %v2106
        %v2701 = vadd.f32 %v2699, %v2107
        %v2702 = vld [vmem:[#allocation27] sm:$0x1]
        %v2704 = vlaneseq
        %v2705 = vshrl.u32 %v2704, 7
        %v2706 = vsub.s32 0, %v2705
        %v2707 = vrot.slane %v2702, %v2706
        %v2709 = vmul.f32 %v2700, %v2707
        %v2710 = vmul.f32 %v2701, %v2707
        %v2711 = vld [vmem:[%s16] sm:$0x1]
        %v2713 = vlaneseq
        %v2714 = vshrl.u32 %v2713, 7
        %v2715 = vsub.s32 0, %v2714
        %v2716 = vrot.slane %v2711, %v2715
        %v2718 = vadd.f32 %v2709, %v2716
        %v2719 = vadd.f32 %v2710, %v2716
        %v2720 = vmax.f32 %v2718, 0.0
        %v2721 = vmax.f32 %v2719, 0.0
        %2722 = vst [vmem:[#allocation3 + $0x8] sm:$0xff] %v2720
        %2723 = vst [vmem:[#allocation3 + $0x10] sm:$0xff] %v2721
        %v2724 = vld [vmem:[#allocation3 + $0x7] sm:$0xff]
        %v2725 = vld [vmem:[#allocation3 + $0xf] sm:$0xff]
        %v2726 = vld [vmem:[#allocation10] sm:$0xff]
        %v2727 = vld [vmem:[#allocation10 + $0x8] sm:$0xff]
        %v2728 = vld [vmem:[#allocation10 + $0x10] sm:$0xff]
        %v2729 = vld [vmem:[#allocation10 + $0x18] sm:$0xff]
        %v2730 = vld [vmem:[#allocation10 + $0x20] sm:$0xff]
        %v2731 = vld [vmem:[#allocation10 + $0x28] sm:$0xff]
        %v2732 = vld [vmem:[#allocation10 + $0x30] sm:$0xff]
        %v2733 = vld [vmem:[#allocation10 + $0x38] sm:$0xff]
        %v2734 = vld [vmem:[#allocation10 + $0x40] sm:$0xff]
        %v2735 = vld [vmem:[#allocation10 + $0x48] sm:$0xff]
        %v2736 = vld [vmem:[#allocation10 + $0x50] sm:$0xff]
        %v2737 = vld [vmem:[#allocation10 + $0x58] sm:$0xff]
        %v2738 = vld [vmem:[#allocation10 + $0x60] sm:$0xff]
        %v2739 = vld [vmem:[#allocation10 + $0x68] sm:$0xff]
        %v2740 = vld [vmem:[#allocation10 + $0x70] sm:$0xff]
        %v2741 = vld [vmem:[#allocation10 + $0x78] sm:$0xff]
        %v2742 = vld [vmem:[#allocation3 + $0x8] sm:$0xff]
        %v2743 = vld [vmem:[#allocation3 + $0x10] sm:$0xff]
        %v2744 = vld [vmem:[%s2130] sm:$0xff]
        %v2745 = vld [vmem:[%s2130 + $0x8] sm:$0xff]
        %v2746 = vld [vmem:[%s2130 + $0x10] sm:$0xff]
        %v2747 = vld [vmem:[%s2130 + $0x18] sm:$0xff]
        %v2748 = vld [vmem:[%s2130 + $0x20] sm:$0xff]
        %v2749 = vld [vmem:[%s2130 + $0x28] sm:$0xff]
        %v2750 = vld [vmem:[%s2130 + $0x30] sm:$0xff]
        %v2751 = vld [vmem:[%s2130 + $0x38] sm:$0xff]
        %v2752 = vld [vmem:[%s2130 + $0x40] sm:$0xff]
        %v2753 = vld [vmem:[%s2130 + $0x48] sm:$0xff]
        %v2754 = vld [vmem:[%s2130 + $0x50] sm:$0xff]
        %v2755 = vld [vmem:[%s2130 + $0x58] sm:$0xff]
        %v2756 = vld [vmem:[%s2130 + $0x60] sm:$0xff]
        %v2757 = vld [vmem:[%s2130 + $0x68] sm:$0xff]
        %v2758 = vld [vmem:[%s2130 + $0x70] sm:$0xff]
        %v2759 = vld [vmem:[%s2130 + $0x78] sm:$0xff]
        %2760 = vmatprep.subr.mxu0 0.0
        %2761 = vmatpush1.msra.mxu0 %v2759
        %2762 = vmatprep.subr.mxu0 0.0
        %2763 = vmatpush1.msra.mxu0 %v2758
        %2764 = vmatprep.subr.mxu0 0.0
        %2765 = vmatpush1.msra.mxu0 %v2757
        %2766 = vmatprep.subr.mxu0 0.0
        %2767 = vmatpush1.msra.mxu0 %v2756
        %2768 = vmatprep.subr.mxu0 0.0
        %2769 = vmatpush1.msra.mxu0 %v2755
        %2770 = vmatprep.subr.mxu0 0.0
        %2771 = vmatpush1.msra.mxu0 %v2754
        %2772 = vmatprep.subr.mxu0 0.0
        %2773 = vmatpush1.msra.mxu0 %v2753
        %2774 = vmatprep.subr.mxu0 0.0
        %2775 = vmatpush1.msra.mxu0 %v2752
        %2776 = vmatprep.subr.mxu0 0.0
        %2777 = vmatpush1.msra.mxu0 %v2751
        %2778 = vmatprep.subr.mxu0 0.0
        %2779 = vmatpush1.msra.mxu0 %v2750
        %2780 = vmatprep.subr.mxu0 0.0
        %2781 = vmatpush1.msra.mxu0 %v2749
        %2782 = vmatprep.subr.mxu0 0.0
        %2783 = vmatpush1.msra.mxu0 %v2748
        %2784 = vmatprep.subr.mxu0 0.0
        %2785 = vmatpush1.msra.mxu0 %v2747
        %2786 = vmatprep.subr.mxu0 0.0
        %2787 = vmatpush1.msra.mxu0 %v2746
        %2788 = vmatprep.subr.mxu0 0.0
        %2789 = vmatpush1.msra.mxu0 %v2745
        %2790 = vmatprep.subr.mxu0 0.0
        %2791 = vmatpush1.msra.mxu0 %v2744
        %2792 = vmatprep.subr.mxu0 0.0
        %2793 = vmatpush2.msra.mxu0 0.0
        %2794 = vmatprep.subr.mxu0 0.0
        %2795 = vmatpush2.msra.mxu0 0.0
        %2796 = vmatprep.subr.mxu0 0.0
        %2797 = vmatpush2.msra.mxu0 0.0
        %2798 = vmatprep.subr.mxu0 0.0
        %2799 = vmatpush2.msra.mxu0 0.0
        %2800 = vmatprep.subr.mxu0 0.0
        %2801 = vmatpush2.msra.mxu0 0.0
        %2802 = vmatprep.subr.mxu0 0.0
        %2803 = vmatpush2.msra.mxu0 0.0
        %2804 = vmatprep.subr.mxu0 0.0
        %2805 = vmatpush2.msra.mxu0 0.0
        %2806 = vmatprep.subr.mxu0 0.0
        %2807 = vmatpush2.msra.mxu0 0.0
        %2808 = vmatprep.subr.mxu0 0.0
        %2809 = vmatpush2.msra.mxu0 0.0
        %2810 = vmatprep.subr.mxu0 0.0
        %2811 = vmatpush2.msra.mxu0 0.0
        %2812 = vmatprep.subr.mxu0 0.0
        %2813 = vmatpush2.msra.mxu0 0.0
        %2814 = vmatprep.subr.mxu0 0.0
        %2815 = vmatpush2.msra.mxu0 0.0
        %2816 = vmatprep.subr.mxu0 0.0
        %2817 = vmatpush2.msra.mxu0 0.0
        %2818 = vmatprep.subr.mxu0 0.0
        %2819 = vmatpush2.msra.mxu0 0.0
        %2820 = vmatprep.subr.mxu0 0.0
        %2821 = vmatpush2.msra.mxu0 0.0
        %2822 = vmatprep.subr.mxu0 0.0
        %2823 = vmatpush2.msra.mxu0 0.0
        %2824 = vmatprep.mubr.f32.mxu0 0.0
        %2825 = vmatmul.mubr.f32.gmra.mxu0 %v2742
        %v2826 = vpop.f32.mrf.mxu0
        %v2827 = vadd.f32 0.0, %v2826
        %v2828 = vpop.f32.mrf.mxu0
        %2829 = vmatprep.mubr.f32.mxu0 0.0
        %2830 = vmatmul.mubr.f32.gmra.mxu0 %v2743
        %v2831 = vpop.f32.mrf.mxu0
        %v2832 = vadd.f32 0.0, %v2831
        %v2833 = vpop.f32.mrf.mxu0
        %2834 = vdwg.mxu0
        %2835 = vmatprep.subr.mxu0 0.0
        %2836 = vmatpush1.msra.mxu0 %v2741
        %2837 = vmatprep.subr.mxu0 0.0
        %2838 = vmatpush1.msra.mxu0 %v2740
        %2839 = vmatprep.subr.mxu0 0.0
        %2840 = vmatpush1.msra.mxu0 %v2739
        %2841 = vmatprep.subr.mxu0 0.0
        %2842 = vmatpush1.msra.mxu0 %v2738
        %2843 = vmatprep.subr.mxu0 0.0
        %2844 = vmatpush1.msra.mxu0 %v2737
        %2845 = vmatprep.subr.mxu0 0.0
        %2846 = vmatpush1.msra.mxu0 %v2736
        %2847 = vmatprep.subr.mxu0 0.0
        %2848 = vmatpush1.msra.mxu0 %v2735
        %2849 = vmatprep.subr.mxu0 0.0
        %2850 = vmatpush1.msra.mxu0 %v2734
        %2851 = vmatprep.subr.mxu0 0.0
        %2852 = vmatpush1.msra.mxu0 %v2733
        %2853 = vmatprep.subr.mxu0 0.0
        %2854 = vmatpush1.msra.mxu0 %v2732
        %2855 = vmatprep.subr.mxu0 0.0
        %2856 = vmatpush1.msra.mxu0 %v2731
        %2857 = vmatprep.subr.mxu0 0.0
        %2858 = vmatpush1.msra.mxu0 %v2730
        %2859 = vmatprep.subr.mxu0 0.0
        %2860 = vmatpush1.msra.mxu0 %v2729
        %2861 = vmatprep.subr.mxu0 0.0
        %2862 = vmatpush1.msra.mxu0 %v2728
        %2863 = vmatprep.subr.mxu0 0.0
        %2864 = vmatpush1.msra.mxu0 %v2727
        %2865 = vmatprep.subr.mxu0 0.0
        %2866 = vmatpush1.msra.mxu0 %v2726
        %2867 = vmatprep.subr.mxu0 0.0
        %2868 = vmatpush2.msra.mxu0 0.0
        %2869 = vmatprep.subr.mxu0 0.0
        %2870 = vmatpush2.msra.mxu0 0.0
        %2871 = vmatprep.subr.mxu0 0.0
        %2872 = vmatpush2.msra.mxu0 0.0
        %2873 = vmatprep.subr.mxu0 0.0
        %2874 = vmatpush2.msra.mxu0 0.0
        %2875 = vmatprep.subr.mxu0 0.0
        %2876 = vmatpush2.msra.mxu0 0.0
        %2877 = vmatprep.subr.mxu0 0.0
        %2878 = vmatpush2.msra.mxu0 0.0
        %2879 = vmatprep.subr.mxu0 0.0
        %2880 = vmatpush2.msra.mxu0 0.0
        %2881 = vmatprep.subr.mxu0 0.0
        %2882 = vmatpush2.msra.mxu0 0.0
        %2883 = vmatprep.subr.mxu0 0.0
        %2884 = vmatpush2.msra.mxu0 0.0
        %2885 = vmatprep.subr.mxu0 0.0
        %2886 = vmatpush2.msra.mxu0 0.0
        %2887 = vmatprep.subr.mxu0 0.0
        %2888 = vmatpush2.msra.mxu0 0.0
        %2889 = vmatprep.subr.mxu0 0.0
        %2890 = vmatpush2.msra.mxu0 0.0
        %2891 = vmatprep.subr.mxu0 0.0
        %2892 = vmatpush2.msra.mxu0 0.0
        %2893 = vmatprep.subr.mxu0 0.0
        %2894 = vmatpush2.msra.mxu0 0.0
        %2895 = vmatprep.subr.mxu0 0.0
        %2896 = vmatpush2.msra.mxu0 0.0
        %2897 = vmatprep.subr.mxu0 0.0
        %2898 = vmatpush2.msra.mxu0 0.0
        %2899 = vmatprep.mubr.f32.mxu0 0.0
        %2900 = vmatmul.mubr.f32.gmra.mxu0 %v2724
        %v2901 = vpop.f32.mrf.mxu0
        %v2902 = vadd.f32 %v2827, %v2901
        %v2903 = vpop.f32.mrf.mxu0
        %2904 = vmatprep.mubr.f32.mxu0 0.0
        %2905 = vmatmul.mubr.f32.gmra.mxu0 %v2725
        %v2906 = vpop.f32.mrf.mxu0
        %v2907 = vadd.f32 %v2832, %v2906
        %v2908 = vpop.f32.mrf.mxu0
        %2909 = vdwg.mxu0
        %v2910 = vld [vmem:[#allocation3 + $0x9] sm:$0xff]
        %v2911 = vld [vmem:[#allocation3 + $0x11] sm:$0xff]
        %v2912 = vld [vmem:[%s2299] sm:$0xff]
        %v2913 = vld [vmem:[%s2299 + $0x8] sm:$0xff]
        %v2914 = vld [vmem:[%s2299 + $0x10] sm:$0xff]
        %v2915 = vld [vmem:[%s2299 + $0x18] sm:$0xff]
        %v2916 = vld [vmem:[%s2299 + $0x20] sm:$0xff]
        %v2917 = vld [vmem:[%s2299 + $0x28] sm:$0xff]
        %v2918 = vld [vmem:[%s2299 + $0x30] sm:$0xff]
        %v2919 = vld [vmem:[%s2299 + $0x38] sm:$0xff]
        %v2920 = vld [vmem:[%s2299 + $0x40] sm:$0xff]
        %v2921 = vld [vmem:[%s2299 + $0x48] sm:$0xff]
        %v2922 = vld [vmem:[%s2299 + $0x50] sm:$0xff]
        %v2923 = vld [vmem:[%s2299 + $0x58] sm:$0xff]
        %v2924 = vld [vmem:[%s2299 + $0x60] sm:$0xff]
        %v2925 = vld [vmem:[%s2299 + $0x68] sm:$0xff]
        %v2926 = vld [vmem:[%s2299 + $0x70] sm:$0xff]
        %v2927 = vld [vmem:[%s2299 + $0x78] sm:$0xff]
        %2928 = vmatprep.subr.mxu0 0.0
        %2929 = vmatpush1.msra.mxu0 %v2927
        %2930 = vmatprep.subr.mxu0 0.0
        %2931 = vmatpush1.msra.mxu0 %v2926
        %2932 = vmatprep.subr.mxu0 0.0
        %2933 = vmatpush1.msra.mxu0 %v2925
        %2934 = vmatprep.subr.mxu0 0.0
        %2935 = vmatpush1.msra.mxu0 %v2924
        %2936 = vmatprep.subr.mxu0 0.0
        %2937 = vmatpush1.msra.mxu0 %v2923
        %2938 = vmatprep.subr.mxu0 0.0
        %2939 = vmatpush1.msra.mxu0 %v2922
        %2940 = vmatprep.subr.mxu0 0.0
        %2941 = vmatpush1.msra.mxu0 %v2921
        %2942 = vmatprep.subr.mxu0 0.0
        %2943 = vmatpush1.msra.mxu0 %v2920
        %2944 = vmatprep.subr.mxu0 0.0
        %2945 = vmatpush1.msra.mxu0 %v2919
        %2946 = vmatprep.subr.mxu0 0.0
        %2947 = vmatpush1.msra.mxu0 %v2918
        %2948 = vmatprep.subr.mxu0 0.0
        %2949 = vmatpush1.msra.mxu0 %v2917
        %2950 = vmatprep.subr.mxu0 0.0
        %2951 = vmatpush1.msra.mxu0 %v2916
        %2952 = vmatprep.subr.mxu0 0.0
        %2953 = vmatpush1.msra.mxu0 %v2915
        %2954 = vmatprep.subr.mxu0 0.0
        %2955 = vmatpush1.msra.mxu0 %v2914
        %2956 = vmatprep.subr.mxu0 0.0
        %2957 = vmatpush1.msra.mxu0 %v2913
        %2958 = vmatprep.subr.mxu0 0.0
        %2959 = vmatpush1.msra.mxu0 %v2912
        %2960 = vmatprep.subr.mxu0 0.0
        %2961 = vmatpush2.msra.mxu0 0.0
        %2962 = vmatprep.subr.mxu0 0.0
        %2963 = vmatpush2.msra.mxu0 0.0
        %2964 = vmatprep.subr.mxu0 0.0
        %2965 = vmatpush2.msra.mxu0 0.0
        %2966 = vmatprep.subr.mxu0 0.0
        %2967 = vmatpush2.msra.mxu0 0.0
        %2968 = vmatprep.subr.mxu0 0.0
        %2969 = vmatpush2.msra.mxu0 0.0
        %2970 = vmatprep.subr.mxu0 0.0
        %2971 = vmatpush2.msra.mxu0 0.0
        %2972 = vmatprep.subr.mxu0 0.0
        %2973 = vmatpush2.msra.mxu0 0.0
        %2974 = vmatprep.subr.mxu0 0.0
        %2975 = vmatpush2.msra.mxu0 0.0
        %2976 = vmatprep.subr.mxu0 0.0
        %2977 = vmatpush2.msra.mxu0 0.0
        %2978 = vmatprep.subr.mxu0 0.0
        %2979 = vmatpush2.msra.mxu0 0.0
        %2980 = vmatprep.subr.mxu0 0.0
        %2981 = vmatpush2.msra.mxu0 0.0
        %2982 = vmatprep.subr.mxu0 0.0
        %2983 = vmatpush2.msra.mxu0 0.0
        %2984 = vmatprep.subr.mxu0 0.0
        %2985 = vmatpush2.msra.mxu0 0.0
        %2986 = vmatprep.subr.mxu0 0.0
        %2987 = vmatpush2.msra.mxu0 0.0
        %2988 = vmatprep.subr.mxu0 0.0
        %2989 = vmatpush2.msra.mxu0 0.0
        %2990 = vmatprep.subr.mxu0 0.0
        %2991 = vmatpush2.msra.mxu0 0.0
        %2992 = vmatprep.mubr.f32.mxu0 0.0
        %2993 = vmatmul.mubr.f32.gmra.mxu0 %v2910
        %v2994 = vpop.f32.mrf.mxu0
        %v2995 = vadd.f32 0.0, %v2994
        %v2996 = vpop.f32.mrf.mxu0
        %2997 = vmatprep.mubr.f32.mxu0 0.0
        %2998 = vmatmul.mubr.f32.gmra.mxu0 %v2911
        %v2999 = vpop.f32.mrf.mxu0
        %v3000 = vadd.f32 0.0, %v2999
        %v3001 = vpop.f32.mrf.mxu0
        %3002 = vdwg.mxu0
        %v3003 = vadd.f32 %v2902, %v2995
        %v3004 = vadd.f32 %v2907, %v3000
        %v3005 = vld [vmem:[#allocation12] sm:$0x1]
        %v3007 = vlaneseq
        %v3008 = vshrl.u32 %v3007, 7
        %v3009 = vsub.s32 0, %v3008
        %v3010 = vrot.slane %v3005, %v3009
        %v3012 = vadd.f32 %v3003, %v3010
        %v3013 = vadd.f32 %v3004, %v3010
        %v3014 = vmax.f32 %v3012, 0.0
        %v3015 = vmax.f32 %v3013, 0.0
        %3016 = vst [vmem:[#allocation3 + $0x8] sm:$0xff] %v3014
        %3017 = vst [vmem:[#allocation3 + $0x10] sm:$0xff] %v3015
        %v3018 = vld [vmem:[#allocation3 + $0x7] sm:$0xff]
        %v3019 = vld [vmem:[#allocation3 + $0xf] sm:$0xff]
        %v3020 = vld [vmem:[#allocation13] sm:$0xff]
        %v3021 = vld [vmem:[#allocation13 + $0x8] sm:$0xff]
        %v3022 = vld [vmem:[#allocation13 + $0x10] sm:$0xff]
        %v3023 = vld [vmem:[#allocation13 + $0x18] sm:$0xff]
        %v3024 = vld [vmem:[#allocation13 + $0x20] sm:$0xff]
        %v3025 = vld [vmem:[#allocation13 + $0x28] sm:$0xff]
        %v3026 = vld [vmem:[#allocation13 + $0x30] sm:$0xff]
        %v3027 = vld [vmem:[#allocation13 + $0x38] sm:$0xff]
        %v3028 = vld [vmem:[#allocation13 + $0x40] sm:$0xff]
        %v3029 = vld [vmem:[#allocation13 + $0x48] sm:$0xff]
        %v3030 = vld [vmem:[#allocation13 + $0x50] sm:$0xff]
        %v3031 = vld [vmem:[#allocation13 + $0x58] sm:$0xff]
        %v3032 = vld [vmem:[#allocation13 + $0x60] sm:$0xff]
        %v3033 = vld [vmem:[#allocation13 + $0x68] sm:$0xff]
        %v3034 = vld [vmem:[#allocation13 + $0x70] sm:$0xff]
        %v3035 = vld [vmem:[#allocation13 + $0x78] sm:$0xff]
        %v3036 = vld [vmem:[#allocation3 + $0x8] sm:$0xff]
        %v3037 = vld [vmem:[#allocation3 + $0x10] sm:$0xff]
        %v3038 = vld [vmem:[%s2426] sm:$0xff]
        %v3039 = vld [vmem:[%s2426 + $0x8] sm:$0xff]
        %v3040 = vld [vmem:[%s2426 + $0x10] sm:$0xff]
        %v3041 = vld [vmem:[%s2426 + $0x18] sm:$0xff]
        %v3042 = vld [vmem:[%s2426 + $0x20] sm:$0xff]
        %v3043 = vld [vmem:[%s2426 + $0x28] sm:$0xff]
        %v3044 = vld [vmem:[%s2426 + $0x30] sm:$0xff]
        %v3045 = vld [vmem:[%s2426 + $0x38] sm:$0xff]
        %v3046 = vld [vmem:[%s2426 + $0x40] sm:$0xff]
        %v3047 = vld [vmem:[%s2426 + $0x48] sm:$0xff]
        %v3048 = vld [vmem:[%s2426 + $0x50] sm:$0xff]
        %v3049 = vld [vmem:[%s2426 + $0x58] sm:$0xff]
        %v3050 = vld [vmem:[%s2426 + $0x60] sm:$0xff]
        %v3051 = vld [vmem:[%s2426 + $0x68] sm:$0xff]
        %v3052 = vld [vmem:[%s2426 + $0x70] sm:$0xff]
        %v3053 = vld [vmem:[%s2426 + $0x78] sm:$0xff]
        %3054 = vmatprep.subr.mxu0 0.0
        %3055 = vmatpush1.msra.mxu0 %v3053
        %3056 = vmatprep.subr.mxu0 0.0
        %3057 = vmatpush1.msra.mxu0 %v3052
        %3058 = vmatprep.subr.mxu0 0.0
        %3059 = vmatpush1.msra.mxu0 %v3051
        %3060 = vmatprep.subr.mxu0 0.0
        %3061 = vmatpush1.msra.mxu0 %v3050
        %3062 = vmatprep.subr.mxu0 0.0
        %3063 = vmatpush1.msra.mxu0 %v3049
        %3064 = vmatprep.subr.mxu0 0.0
        %3065 = vmatpush1.msra.mxu0 %v3048
        %3066 = vmatprep.subr.mxu0 0.0
        %3067 = vmatpush1.msra.mxu0 %v3047
        %3068 = vmatprep.subr.mxu0 0.0
        %3069 = vmatpush1.msra.mxu0 %v3046
        %3070 = vmatprep.subr.mxu0 0.0
        %3071 = vmatpush1.msra.mxu0 %v3045
        %3072 = vmatprep.subr.mxu0 0.0
        %3073 = vmatpush1.msra.mxu0 %v3044
        %3074 = vmatprep.subr.mxu0 0.0
        %3075 = vmatpush1.msra.mxu0 %v3043
        %3076 = vmatprep.subr.mxu0 0.0
        %3077 = vmatpush1.msra.mxu0 %v3042
        %3078 = vmatprep.subr.mxu0 0.0
        %3079 = vmatpush1.msra.mxu0 %v3041
        %3080 = vmatprep.subr.mxu0 0.0
        %3081 = vmatpush1.msra.mxu0 %v3040
        %3082 = vmatprep.subr.mxu0 0.0
        %3083 = vmatpush1.msra.mxu0 %v3039
        %3084 = vmatprep.subr.mxu0 0.0
        %3085 = vmatpush1.msra.mxu0 %v3038
        %3086 = vmatprep.subr.mxu0 0.0
        %3087 = vmatpush2.msra.mxu0 0.0
        %3088 = vmatprep.subr.mxu0 0.0
        %3089 = vmatpush2.msra.mxu0 0.0
        %3090 = vmatprep.subr.mxu0 0.0
        %3091 = vmatpush2.msra.mxu0 0.0
        %3092 = vmatprep.subr.mxu0 0.0
        %3093 = vmatpush2.msra.mxu0 0.0
        %3094 = vmatprep.subr.mxu0 0.0
        %3095 = vmatpush2.msra.mxu0 0.0
        %3096 = vmatprep.subr.mxu0 0.0
        %3097 = vmatpush2.msra.mxu0 0.0
        %3098 = vmatprep.subr.mxu0 0.0
        %3099 = vmatpush2.msra.mxu0 0.0
        %3100 = vmatprep.subr.mxu0 0.0
        %3101 = vmatpush2.msra.mxu0 0.0
        %3102 = vmatprep.subr.mxu0 0.0
        %3103 = vmatpush2.msra.mxu0 0.0
        %3104 = vmatprep.subr.mxu0 0.0
        %3105 = vmatpush2.msra.mxu0 0.0
        %3106 = vmatprep.subr.mxu0 0.0
        %3107 = vmatpush2.msra.mxu0 0.0
        %3108 = vmatprep.subr.mxu0 0.0
        %3109 = vmatpush2.msra.mxu0 0.0
        %3110 = vmatprep.subr.mxu0 0.0
        %3111 = vmatpush2.msra.mxu0 0.0
        %3112 = vmatprep.subr.mxu0 0.0
        %3113 = vmatpush2.msra.mxu0 0.0
        %3114 = vmatprep.subr.mxu0 0.0
        %3115 = vmatpush2.msra.mxu0 0.0
        %3116 = vmatprep.subr.mxu0 0.0
        %3117 = vmatpush2.msra.mxu0 0.0
        %3118 = vmatprep.mubr.f32.mxu0 0.0
        %3119 = vmatmul.mubr.f32.gmra.mxu0 %v3036
        %v3120 = vpop.f32.mrf.mxu0
        %v3121 = vadd.f32 0.0, %v3120
        %v3122 = vpop.f32.mrf.mxu0
        %3123 = vmatprep.mubr.f32.mxu0 0.0
        %3124 = vmatmul.mubr.f32.gmra.mxu0 %v3037
        %v3125 = vpop.f32.mrf.mxu0
        %v3126 = vadd.f32 0.0, %v3125
        %v3127 = vpop.f32.mrf.mxu0
        %3128 = vdwg.mxu0
        %3129 = vmatprep.subr.mxu0 0.0
        %3130 = vmatpush1.msra.mxu0 %v3035
        %3131 = vmatprep.subr.mxu0 0.0
        %3132 = vmatpush1.msra.mxu0 %v3034
        %3133 = vmatprep.subr.mxu0 0.0
        %3134 = vmatpush1.msra.mxu0 %v3033
        %3135 = vmatprep.subr.mxu0 0.0
        %3136 = vmatpush1.msra.mxu0 %v3032
        %3137 = vmatprep.subr.mxu0 0.0
        %3138 = vmatpush1.msra.mxu0 %v3031
        %3139 = vmatprep.subr.mxu0 0.0
        %3140 = vmatpush1.msra.mxu0 %v3030
        %3141 = vmatprep.subr.mxu0 0.0
        %3142 = vmatpush1.msra.mxu0 %v3029
        %3143 = vmatprep.subr.mxu0 0.0
        %3144 = vmatpush1.msra.mxu0 %v3028
        %3145 = vmatprep.subr.mxu0 0.0
        %3146 = vmatpush1.msra.mxu0 %v3027
        %3147 = vmatprep.subr.mxu0 0.0
        %3148 = vmatpush1.msra.mxu0 %v3026
        %3149 = vmatprep.subr.mxu0 0.0
        %3150 = vmatpush1.msra.mxu0 %v3025
        %3151 = vmatprep.subr.mxu0 0.0
        %3152 = vmatpush1.msra.mxu0 %v3024
        %3153 = vmatprep.subr.mxu0 0.0
        %3154 = vmatpush1.msra.mxu0 %v3023
        %3155 = vmatprep.subr.mxu0 0.0
        %3156 = vmatpush1.msra.mxu0 %v3022
        %3157 = vmatprep.subr.mxu0 0.0
        %3158 = vmatpush1.msra.mxu0 %v3021
        %3159 = vmatprep.subr.mxu0 0.0
        %3160 = vmatpush1.msra.mxu0 %v3020
        %3161 = vmatprep.subr.mxu0 0.0
        %3162 = vmatpush2.msra.mxu0 0.0
        %3163 = vmatprep.subr.mxu0 0.0
        %3164 = vmatpush2.msra.mxu0 0.0
        %3165 = vmatprep.subr.mxu0 0.0
        %3166 = vmatpush2.msra.mxu0 0.0
        %3167 = vmatprep.subr.mxu0 0.0
        %3168 = vmatpush2.msra.mxu0 0.0
        %3169 = vmatprep.subr.mxu0 0.0
        %3170 = vmatpush2.msra.mxu0 0.0
        %3171 = vmatprep.subr.mxu0 0.0
        %3172 = vmatpush2.msra.mxu0 0.0
        %3173 = vmatprep.subr.mxu0 0.0
        %3174 = vmatpush2.msra.mxu0 0.0
        %3175 = vmatprep.subr.mxu0 0.0
        %3176 = vmatpush2.msra.mxu0 0.0
        %3177 = vmatprep.subr.mxu0 0.0
        %3178 = vmatpush2.msra.mxu0 0.0
        %3179 = vmatprep.subr.mxu0 0.0
        %3180 = vmatpush2.msra.mxu0 0.0
        %3181 = vmatprep.subr.mxu0 0.0
        %3182 = vmatpush2.msra.mxu0 0.0
        %3183 = vmatprep.subr.mxu0 0.0
        %3184 = vmatpush2.msra.mxu0 0.0
        %3185 = vmatprep.subr.mxu0 0.0
        %3186 = vmatpush2.msra.mxu0 0.0
        %3187 = vmatprep.subr.mxu0 0.0
        %3188 = vmatpush2.msra.mxu0 0.0
        %3189 = vmatprep.subr.mxu0 0.0
        %3190 = vmatpush2.msra.mxu0 0.0
        %3191 = vmatprep.subr.mxu0 0.0
        %3192 = vmatpush2.msra.mxu0 0.0
        %3193 = vmatprep.mubr.f32.mxu0 0.0
        %3194 = vmatmul.mubr.f32.gmra.mxu0 %v3018
        %v3195 = vpop.f32.mrf.mxu0
        %v3196 = vadd.f32 %v3121, %v3195
        %v3197 = vpop.f32.mrf.mxu0
        %3198 = vmatprep.mubr.f32.mxu0 0.0
        %3199 = vmatmul.mubr.f32.gmra.mxu0 %v3019
        %v3200 = vpop.f32.mrf.mxu0
        %v3201 = vadd.f32 %v3126, %v3200
        %v3202 = vpop.f32.mrf.mxu0
        %3203 = vdwg.mxu0
        %v3204 = vld [vmem:[#allocation3 + $0x9] sm:$0xff]
        %v3205 = vld [vmem:[#allocation3 + $0x11] sm:$0xff]
        %v3206 = vld [vmem:[%s2595] sm:$0xff]
        %v3207 = vld [vmem:[%s2595 + $0x8] sm:$0xff]
        %v3208 = vld [vmem:[%s2595 + $0x10] sm:$0xff]
        %v3209 = vld [vmem:[%s2595 + $0x18] sm:$0xff]
        %v3210 = vld [vmem:[%s2595 + $0x20] sm:$0xff]
        %v3211 = vld [vmem:[%s2595 + $0x28] sm:$0xff]
        %v3212 = vld [vmem:[%s2595 + $0x30] sm:$0xff]
        %v3213 = vld [vmem:[%s2595 + $0x38] sm:$0xff]
        %v3214 = vld [vmem:[%s2595 + $0x40] sm:$0xff]
        %v3215 = vld [vmem:[%s2595 + $0x48] sm:$0xff]
        %v3216 = vld [vmem:[%s2595 + $0x50] sm:$0xff]
        %v3217 = vld [vmem:[%s2595 + $0x58] sm:$0xff]
        %v3218 = vld [vmem:[%s2595 + $0x60] sm:$0xff]
        %v3219 = vld [vmem:[%s2595 + $0x68] sm:$0xff]
        %v3220 = vld [vmem:[%s2595 + $0x70] sm:$0xff]
        %v3221 = vld [vmem:[%s2595 + $0x78] sm:$0xff]
        %3222 = vmatprep.subr.mxu0 0.0
        %3223 = vmatpush1.msra.mxu0 %v3221
        %3224 = vmatprep.subr.mxu0 0.0
        %3225 = vmatpush1.msra.mxu0 %v3220
        %3226 = vmatprep.subr.mxu0 0.0
        %3227 = vmatpush1.msra.mxu0 %v3219
        %3228 = vmatprep.subr.mxu0 0.0
        %3229 = vmatpush1.msra.mxu0 %v3218
        %3230 = vmatprep.subr.mxu0 0.0
        %3231 = vmatpush1.msra.mxu0 %v3217
        %3232 = vmatprep.subr.mxu0 0.0
        %3233 = vmatpush1.msra.mxu0 %v3216
        %3234 = vmatprep.subr.mxu0 0.0
        %3235 = vmatpush1.msra.mxu0 %v3215
        %3236 = vmatprep.subr.mxu0 0.0
        %3237 = vmatpush1.msra.mxu0 %v3214
        %3238 = vmatprep.subr.mxu0 0.0
        %3239 = vmatpush1.msra.mxu0 %v3213
        %3240 = vmatprep.subr.mxu0 0.0
        %3241 = vmatpush1.msra.mxu0 %v3212
        %3242 = vmatprep.subr.mxu0 0.0
        %3243 = vmatpush1.msra.mxu0 %v3211
        %3244 = vmatprep.subr.mxu0 0.0
        %3245 = vmatpush1.msra.mxu0 %v3210
        %3246 = vmatprep.subr.mxu0 0.0
        %3247 = vmatpush1.msra.mxu0 %v3209
        %3248 = vmatprep.subr.mxu0 0.0
        %3249 = vmatpush1.msra.mxu0 %v3208
        %3250 = vmatprep.subr.mxu0 0.0
        %3251 = vmatpush1.msra.mxu0 %v3207
        %3252 = vmatprep.subr.mxu0 0.0
        %3253 = vmatpush1.msra.mxu0 %v3206
        %3254 = vmatprep.subr.mxu0 0.0
        %3255 = vmatpush2.msra.mxu0 0.0
        %3256 = vmatprep.subr.mxu0 0.0
        %3257 = vmatpush2.msra.mxu0 0.0
        %3258 = vmatprep.subr.mxu0 0.0
        %3259 = vmatpush2.msra.mxu0 0.0
        %3260 = vmatprep.subr.mxu0 0.0
        %3261 = vmatpush2.msra.mxu0 0.0
        %3262 = vmatprep.subr.mxu0 0.0
        %3263 = vmatpush2.msra.mxu0 0.0
        %3264 = vmatprep.subr.mxu0 0.0
        %3265 = vmatpush2.msra.mxu0 0.0
        %3266 = vmatprep.subr.mxu0 0.0
        %3267 = vmatpush2.msra.mxu0 0.0
        %3268 = vmatprep.subr.mxu0 0.0
        %3269 = vmatpush2.msra.mxu0 0.0
        %3270 = vmatprep.subr.mxu0 0.0
        %3271 = vmatpush2.msra.mxu0 0.0
        %3272 = vmatprep.subr.mxu0 0.0
        %3273 = vmatpush2.msra.mxu0 0.0
        %3274 = vmatprep.subr.mxu0 0.0
        %3275 = vmatpush2.msra.mxu0 0.0
        %3276 = vmatprep.subr.mxu0 0.0
        %3277 = vmatpush2.msra.mxu0 0.0
        %3278 = vmatprep.subr.mxu0 0.0
        %3279 = vmatpush2.msra.mxu0 0.0
        %3280 = vmatprep.subr.mxu0 0.0
        %3281 = vmatpush2.msra.mxu0 0.0
        %3282 = vmatprep.subr.mxu0 0.0
        %3283 = vmatpush2.msra.mxu0 0.0
        %3284 = vmatprep.subr.mxu0 0.0
        %3285 = vmatpush2.msra.mxu0 0.0
        %3286 = vmatprep.mubr.f32.mxu0 0.0
        %3287 = vmatmul.mubr.f32.gmra.mxu0 %v3204
        %v3288 = vpop.f32.mrf.mxu0
        %v3289 = vadd.f32 0.0, %v3288
        %v3290 = vpop.f32.mrf.mxu0
        %3291 = vmatprep.mubr.f32.mxu0 0.0
        %3292 = vmatmul.mubr.f32.gmra.mxu0 %v3205
        %v3293 = vpop.f32.mrf.mxu0
        %v3294 = vadd.f32 0.0, %v3293
        %v3295 = vpop.f32.mrf.mxu0
        %3296 = vdwg.mxu0
        %v3297 = vadd.f32 %v3196, %v3289
        %v3298 = vadd.f32 %v3201, %v3294
        %v3299 = vld [vmem:[#allocation15] sm:$0x1]
        %v3301 = vlaneseq
        %v3302 = vshrl.u32 %v3301, 7
        %v3303 = vsub.s32 0, %v3302
        %v3304 = vrot.slane %v3299, %v3303
        %v3306 = vadd.f32 %v3297, %v3304
        %v3307 = vadd.f32 %v3298, %v3304
        %v3308 = vmax.f32 %v3306, 0.0
        %v3309 = vmax.f32 %v3307, 0.0
        %v3310 = vadd.f32 %v3308, %v2720
        %v3311 = vadd.f32 %v3309, %v2721
        %v3312 = vld [vmem:[#allocation27] sm:$0x1]
        %v3314 = vlaneseq
        %v3315 = vshrl.u32 %v3314, 7
        %v3316 = vsub.s32 0, %v3315
        %v3317 = vrot.slane %v3312, %v3316
        %v3319 = vmul.f32 %v3310, %v3317
        %v3320 = vmul.f32 %v3311, %v3317
        %v3321 = vld [vmem:[%s16] sm:$0x1]
        %v3323 = vlaneseq
        %v3324 = vshrl.u32 %v3323, 7
        %v3325 = vsub.s32 0, %v3324
        %v3326 = vrot.slane %v3321, %v3325
        %v3328 = vadd.f32 %v3319, %v3326
        %v3329 = vadd.f32 %v3320, %v3326
        %v3330 = vmax.f32 %v3328, 0.0
        %v3331 = vmax.f32 %v3329, 0.0
        %3332 = vst [vmem:[#allocation3 + $0x8] sm:$0xff] %v3330
        %3333 = vst [vmem:[#allocation3 + $0x10] sm:$0xff] %v3331
        %v3334 = vld [vmem:[#allocation3 + $0x7] sm:$0xff]
        %v3335 = vld [vmem:[#allocation3 + $0xf] sm:$0xff]
        %v3336 = vld [vmem:[#allocation16] sm:$0xff]
        %v3337 = vld [vmem:[#allocation16 + $0x8] sm:$0xff]
        %v3338 = vld [vmem:[#allocation16 + $0x10] sm:$0xff]
        %v3339 = vld [vmem:[#allocation16 + $0x18] sm:$0xff]
        %v3340 = vld [vmem:[#allocation16 + $0x20] sm:$0xff]
        %v3341 = vld [vmem:[#allocation16 + $0x28] sm:$0xff]
        %v3342 = vld [vmem:[#allocation16 + $0x30] sm:$0xff]
        %v3343 = vld [vmem:[#allocation16 + $0x38] sm:$0xff]
        %v3344 = vld [vmem:[#allocation16 + $0x40] sm:$0xff]
        %v3345 = vld [vmem:[#allocation16 + $0x48] sm:$0xff]
        %v3346 = vld [vmem:[#allocation16 + $0x50] sm:$0xff]
        %v3347 = vld [vmem:[#allocation16 + $0x58] sm:$0xff]
        %v3348 = vld [vmem:[#allocation16 + $0x60] sm:$0xff]
        %v3349 = vld [vmem:[#allocation16 + $0x68] sm:$0xff]
        %v3350 = vld [vmem:[#allocation16 + $0x70] sm:$0xff]
        %v3351 = vld [vmem:[#allocation16 + $0x78] sm:$0xff]
        %v3352 = vld [vmem:[#allocation16 + $0x80] sm:$0xff]
        %v3353 = vld [vmem:[#allocation16 + $0x88] sm:$0xff]
        %v3354 = vld [vmem:[#allocation16 + $0x90] sm:$0xff]
        %v3355 = vld [vmem:[#allocation16 + $0x98] sm:$0xff]
        %v3356 = vld [vmem:[#allocation16 + $0xa0] sm:$0xff]
        %v3357 = vld [vmem:[#allocation16 + $0xa8] sm:$0xff]
        %v3358 = vld [vmem:[#allocation16 + $0xb0] sm:$0xff]
        %v3359 = vld [vmem:[#allocation16 + $0xb8] sm:$0xff]
        %v3360 = vld [vmem:[#allocation16 + $0xc0] sm:$0xff]
        %v3361 = vld [vmem:[#allocation16 + $0xc8] sm:$0xff]
        %v3362 = vld [vmem:[#allocation16 + $0xd0] sm:$0xff]
        %v3363 = vld [vmem:[#allocation16 + $0xd8] sm:$0xff]
        %v3364 = vld [vmem:[#allocation16 + $0xe0] sm:$0xff]
        %v3365 = vld [vmem:[#allocation16 + $0xe8] sm:$0xff]
        %v3366 = vld [vmem:[#allocation16 + $0xf0] sm:$0xff]
        %v3367 = vld [vmem:[#allocation16 + $0xf8] sm:$0xff]
        %v3368 = vld [vmem:[#allocation3 + $0x8] sm:$0xff]
        %v3369 = vld [vmem:[#allocation3 + $0x10] sm:$0xff]
        %s3370 = scalar_lea.vmem [#allocation16], 256
        %v3371 = vld [vmem:[%s3370] sm:$0xff]
        %v3372 = vld [vmem:[%s3370 + $0x8] sm:$0xff]
        %v3373 = vld [vmem:[%s3370 + $0x10] sm:$0xff]
        %v3374 = vld [vmem:[%s3370 + $0x18] sm:$0xff]
        %v3375 = vld [vmem:[%s3370 + $0x20] sm:$0xff]
        %v3376 = vld [vmem:[%s3370 + $0x28] sm:$0xff]
        %v3377 = vld [vmem:[%s3370 + $0x30] sm:$0xff]
        %v3378 = vld [vmem:[%s3370 + $0x38] sm:$0xff]
        %v3379 = vld [vmem:[%s3370 + $0x40] sm:$0xff]
        %v3380 = vld [vmem:[%s3370 + $0x48] sm:$0xff]
        %v3381 = vld [vmem:[%s3370 + $0x50] sm:$0xff]
        %v3382 = vld [vmem:[%s3370 + $0x58] sm:$0xff]
        %v3383 = vld [vmem:[%s3370 + $0x60] sm:$0xff]
        %v3384 = vld [vmem:[%s3370 + $0x68] sm:$0xff]
        %v3385 = vld [vmem:[%s3370 + $0x70] sm:$0xff]
        %v3386 = vld [vmem:[%s3370 + $0x78] sm:$0xff]
        %v3387 = vld [vmem:[%s3370 + $0x80] sm:$0xff]
        %v3388 = vld [vmem:[%s3370 + $0x88] sm:$0xff]
        %v3389 = vld [vmem:[%s3370 + $0x90] sm:$0xff]
        %v3390 = vld [vmem:[%s3370 + $0x98] sm:$0xff]
        %v3391 = vld [vmem:[%s3370 + $0xa0] sm:$0xff]
        %v3392 = vld [vmem:[%s3370 + $0xa8] sm:$0xff]
        %v3393 = vld [vmem:[%s3370 + $0xb0] sm:$0xff]
        %v3394 = vld [vmem:[%s3370 + $0xb8] sm:$0xff]
        %v3395 = vld [vmem:[%s3370 + $0xc0] sm:$0xff]
        %v3396 = vld [vmem:[%s3370 + $0xc8] sm:$0xff]
        %v3397 = vld [vmem:[%s3370 + $0xd0] sm:$0xff]
        %v3398 = vld [vmem:[%s3370 + $0xd8] sm:$0xff]
        %v3399 = vld [vmem:[%s3370 + $0xe0] sm:$0xff]
        %v3400 = vld [vmem:[%s3370 + $0xe8] sm:$0xff]
        %v3401 = vld [vmem:[%s3370 + $0xf0] sm:$0xff]
        %v3402 = vld [vmem:[%s3370 + $0xf8] sm:$0xff]
        %3403 = vmatprep.subr.mxu0 %v3402
        %3404 = vmatpush1.msra.mxu0 %v3401
        %3405 = vmatprep.subr.mxu0 %v3400
        %3406 = vmatpush1.msra.mxu0 %v3399
        %3407 = vmatprep.subr.mxu0 %v3398
        %3408 = vmatpush1.msra.mxu0 %v3397
        %3409 = vmatprep.subr.mxu0 %v3396
        %3410 = vmatpush1.msra.mxu0 %v3395
        %3411 = vmatprep.subr.mxu0 %v3394
        %3412 = vmatpush1.msra.mxu0 %v3393
        %3413 = vmatprep.subr.mxu0 %v3392
        %3414 = vmatpush1.msra.mxu0 %v3391
        %3415 = vmatprep.subr.mxu0 %v3390
        %3416 = vmatpush1.msra.mxu0 %v3389
        %3417 = vmatprep.subr.mxu0 %v3388
        %3418 = vmatpush1.msra.mxu0 %v3387
        %3419 = vmatprep.subr.mxu0 %v3386
        %3420 = vmatpush1.msra.mxu0 %v3385
        %3421 = vmatprep.subr.mxu0 %v3384
        %3422 = vmatpush1.msra.mxu0 %v3383
        %3423 = vmatprep.subr.mxu0 %v3382
        %3424 = vmatpush1.msra.mxu0 %v3381
        %3425 = vmatprep.subr.mxu0 %v3380
        %3426 = vmatpush1.msra.mxu0 %v3379
        %3427 = vmatprep.subr.mxu0 %v3378
        %3428 = vmatpush1.msra.mxu0 %v3377
        %3429 = vmatprep.subr.mxu0 %v3376
        %3430 = vmatpush1.msra.mxu0 %v3375
        %3431 = vmatprep.subr.mxu0 %v3374
        %3432 = vmatpush1.msra.mxu0 %v3373
        %3433 = vmatprep.subr.mxu0 %v3372
        %3434 = vmatpush1.msra.mxu0 %v3371
        %3435 = vmatprep.subr.mxu0 0.0
        %3436 = vmatpush2.msra.mxu0 0.0
        %3437 = vmatprep.subr.mxu0 0.0
        %3438 = vmatpush2.msra.mxu0 0.0
        %3439 = vmatprep.subr.mxu0 0.0
        %3440 = vmatpush2.msra.mxu0 0.0
        %3441 = vmatprep.subr.mxu0 0.0
        %3442 = vmatpush2.msra.mxu0 0.0
        %3443 = vmatprep.subr.mxu0 0.0
        %3444 = vmatpush2.msra.mxu0 0.0
        %3445 = vmatprep.subr.mxu0 0.0
        %3446 = vmatpush2.msra.mxu0 0.0
        %3447 = vmatprep.subr.mxu0 0.0
        %3448 = vmatpush2.msra.mxu0 0.0
        %3449 = vmatprep.subr.mxu0 0.0
        %3450 = vmatpush2.msra.mxu0 0.0
        %3451 = vmatprep.subr.mxu0 0.0
        %3452 = vmatpush2.msra.mxu0 0.0
        %3453 = vmatprep.subr.mxu0 0.0
        %3454 = vmatpush2.msra.mxu0 0.0
        %3455 = vmatprep.subr.mxu0 0.0
        %3456 = vmatpush2.msra.mxu0 0.0
        %3457 = vmatprep.subr.mxu0 0.0
        %3458 = vmatpush2.msra.mxu0 0.0
        %3459 = vmatprep.subr.mxu0 0.0
        %3460 = vmatpush2.msra.mxu0 0.0
        %3461 = vmatprep.subr.mxu0 0.0
        %3462 = vmatpush2.msra.mxu0 0.0
        %3463 = vmatprep.subr.mxu0 0.0
        %3464 = vmatpush2.msra.mxu0 0.0
        %3465 = vmatprep.subr.mxu0 0.0
        %3466 = vmatpush2.msra.mxu0 0.0
        %3467 = vmatprep.mubr.f32.mxu0 0.0
        %3468 = vmatmul.mubr.f32.gmra.mxu0 %v3368
        %v3469 = vpop.f32.mrf.mxu0
        %v3470 = vadd.f32 0.0, %v3469
        %v3471 = vpop.f32.mrf.mxu0
        %v3472 = vadd.f32 0.0, %v3471
        %3473 = vmatprep.mubr.f32.mxu0 0.0
        %3474 = vmatmul.mubr.f32.gmra.mxu0 %v3369
        %v3475 = vpop.f32.mrf.mxu0
        %v3476 = vadd.f32 0.0, %v3475
        %v3477 = vpop.f32.mrf.mxu0
        %v3478 = vadd.f32 0.0, %v3477
        %3479 = vdwg.mxu0
        %3480 = vmatprep.subr.mxu0 %v3367
        %3481 = vmatpush1.msra.mxu0 %v3366
        %3482 = vmatprep.subr.mxu0 %v3365
        %3483 = vmatpush1.msra.mxu0 %v3364
        %3484 = vmatprep.subr.mxu0 %v3363
        %3485 = vmatpush1.msra.mxu0 %v3362
        %3486 = vmatprep.subr.mxu0 %v3361
        %3487 = vmatpush1.msra.mxu0 %v3360
        %3488 = vmatprep.subr.mxu0 %v3359
        %3489 = vmatpush1.msra.mxu0 %v3358
        %3490 = vmatprep.subr.mxu0 %v3357
        %3491 = vmatpush1.msra.mxu0 %v3356
        %3492 = vmatprep.subr.mxu0 %v3355
        %3493 = vmatpush1.msra.mxu0 %v3354
        %3494 = vmatprep.subr.mxu0 %v3353
        %3495 = vmatpush1.msra.mxu0 %v3352
        %3496 = vmatprep.subr.mxu0 %v3351
        %3497 = vmatpush1.msra.mxu0 %v3350
        %3498 = vmatprep.subr.mxu0 %v3349
        %3499 = vmatpush1.msra.mxu0 %v3348
        %3500 = vmatprep.subr.mxu0 %v3347
        %3501 = vmatpush1.msra.mxu0 %v3346
        %3502 = vmatprep.subr.mxu0 %v3345
        %3503 = vmatpush1.msra.mxu0 %v3344
        %3504 = vmatprep.subr.mxu0 %v3343
        %3505 = vmatpush1.msra.mxu0 %v3342
        %3506 = vmatprep.subr.mxu0 %v3341
        %3507 = vmatpush1.msra.mxu0 %v3340
        %3508 = vmatprep.subr.mxu0 %v3339
        %3509 = vmatpush1.msra.mxu0 %v3338
        %3510 = vmatprep.subr.mxu0 %v3337
        %3511 = vmatpush1.msra.mxu0 %v3336
        %3512 = vmatprep.subr.mxu0 0.0
        %3513 = vmatpush2.msra.mxu0 0.0
        %3514 = vmatprep.subr.mxu0 0.0
        %3515 = vmatpush2.msra.mxu0 0.0
        %3516 = vmatprep.subr.mxu0 0.0
        %3517 = vmatpush2.msra.mxu0 0.0
        %3518 = vmatprep.subr.mxu0 0.0
        %3519 = vmatpush2.msra.mxu0 0.0
        %3520 = vmatprep.subr.mxu0 0.0
        %3521 = vmatpush2.msra.mxu0 0.0
        %3522 = vmatprep.subr.mxu0 0.0
        %3523 = vmatpush2.msra.mxu0 0.0
        %3524 = vmatprep.subr.mxu0 0.0
        %3525 = vmatpush2.msra.mxu0 0.0
        %3526 = vmatprep.subr.mxu0 0.0
        %3527 = vmatpush2.msra.mxu0 0.0
        %3528 = vmatprep.subr.mxu0 0.0
        %3529 = vmatpush2.msra.mxu0 0.0
        %3530 = vmatprep.subr.mxu0 0.0
        %3531 = vmatpush2.msra.mxu0 0.0
        %3532 = vmatprep.subr.mxu0 0.0
        %3533 = vmatpush2.msra.mxu0 0.0
        %3534 = vmatprep.subr.mxu0 0.0
        %3535 = vmatpush2.msra.mxu0 0.0
        %3536 = vmatprep.subr.mxu0 0.0
        %3537 = vmatpush2.msra.mxu0 0.0
        %3538 = vmatprep.subr.mxu0 0.0
        %3539 = vmatpush2.msra.mxu0 0.0
        %3540 = vmatprep.subr.mxu0 0.0
        %3541 = vmatpush2.msra.mxu0 0.0
        %3542 = vmatprep.subr.mxu0 0.0
        %3543 = vmatpush2.msra.mxu0 0.0
        %3544 = vmatprep.mubr.f32.mxu0 0.0
        %3545 = vmatmul.mubr.f32.gmra.mxu0 %v3334
        %v3546 = vpop.f32.mrf.mxu0
        %v3547 = vadd.f32 %v3470, %v3546
        %v3548 = vpop.f32.mrf.mxu0
        %v3549 = vadd.f32 %v3472, %v3548
        %3550 = vmatprep.mubr.f32.mxu0 0.0
        %3551 = vmatmul.mubr.f32.gmra.mxu0 %v3335
        %v3552 = vpop.f32.mrf.mxu0
        %v3553 = vadd.f32 %v3476, %v3552
        %v3554 = vpop.f32.mrf.mxu0
        %v3555 = vadd.f32 %v3478, %v3554
        %3556 = vdwg.mxu0
        %v3557 = vld [vmem:[#allocation3 + $0x9] sm:$0xff]
        %v3558 = vld [vmem:[#allocation3 + $0x11] sm:$0xff]
        %s3559 = scalar_lea.vmem [#allocation16], 512
        %v3560 = vld [vmem:[%s3559] sm:$0xff]
        %v3561 = vld [vmem:[%s3559 + $0x8] sm:$0xff]
        %v3562 = vld [vmem:[%s3559 + $0x10] sm:$0xff]
        %v3563 = vld [vmem:[%s3559 + $0x18] sm:$0xff]
        %v3564 = vld [vmem:[%s3559 + $0x20] sm:$0xff]
        %v3565 = vld [vmem:[%s3559 + $0x28] sm:$0xff]
        %v3566 = vld [vmem:[%s3559 + $0x30] sm:$0xff]
        %v3567 = vld [vmem:[%s3559 + $0x38] sm:$0xff]
        %v3568 = vld [vmem:[%s3559 + $0x40] sm:$0xff]
        %v3569 = vld [vmem:[%s3559 + $0x48] sm:$0xff]
        %v3570 = vld [vmem:[%s3559 + $0x50] sm:$0xff]
        %v3571 = vld [vmem:[%s3559 + $0x58] sm:$0xff]
        %v3572 = vld [vmem:[%s3559 + $0x60] sm:$0xff]
        %v3573 = vld [vmem:[%s3559 + $0x68] sm:$0xff]
        %v3574 = vld [vmem:[%s3559 + $0x70] sm:$0xff]
        %v3575 = vld [vmem:[%s3559 + $0x78] sm:$0xff]
        %v3576 = vld [vmem:[%s3559 + $0x80] sm:$0xff]
        %v3577 = vld [vmem:[%s3559 + $0x88] sm:$0xff]
        %v3578 = vld [vmem:[%s3559 + $0x90] sm:$0xff]
        %v3579 = vld [vmem:[%s3559 + $0x98] sm:$0xff]
        %v3580 = vld [vmem:[%s3559 + $0xa0] sm:$0xff]
        %v3581 = vld [vmem:[%s3559 + $0xa8] sm:$0xff]
        %v3582 = vld [vmem:[%s3559 + $0xb0] sm:$0xff]
        %v3583 = vld [vmem:[%s3559 + $0xb8] sm:$0xff]
        %v3584 = vld [vmem:[%s3559 + $0xc0] sm:$0xff]
        %v3585 = vld [vmem:[%s3559 + $0xc8] sm:$0xff]
        %v3586 = vld [vmem:[%s3559 + $0xd0] sm:$0xff]
        %v3587 = vld [vmem:[%s3559 + $0xd8] sm:$0xff]
        %v3588 = vld [vmem:[%s3559 + $0xe0] sm:$0xff]
        %v3589 = vld [vmem:[%s3559 + $0xe8] sm:$0xff]
        %v3590 = vld [vmem:[%s3559 + $0xf0] sm:$0xff]
        %v3591 = vld [vmem:[%s3559 + $0xf8] sm:$0xff]
        %3592 = vmatprep.subr.mxu0 %v3591
        %3593 = vmatpush1.msra.mxu0 %v3590
        %3594 = vmatprep.subr.mxu0 %v3589
        %3595 = vmatpush1.msra.mxu0 %v3588
        %3596 = vmatprep.subr.mxu0 %v3587
        %3597 = vmatpush1.msra.mxu0 %v3586
        %3598 = vmatprep.subr.mxu0 %v3585
        %3599 = vmatpush1.msra.mxu0 %v3584
        %3600 = vmatprep.subr.mxu0 %v3583
        %3601 = vmatpush1.msra.mxu0 %v3582
        %3602 = vmatprep.subr.mxu0 %v3581
        %3603 = vmatpush1.msra.mxu0 %v3580
        %3604 = vmatprep.subr.mxu0 %v3579
        %3605 = vmatpush1.msra.mxu0 %v3578
        %3606 = vmatprep.subr.mxu0 %v3577
        %3607 = vmatpush1.msra.mxu0 %v3576
        %3608 = vmatprep.subr.mxu0 %v3575
        %3609 = vmatpush1.msra.mxu0 %v3574
        %3610 = vmatprep.subr.mxu0 %v3573
        %3611 = vmatpush1.msra.mxu0 %v3572
        %3612 = vmatprep.subr.mxu0 %v3571
        %3613 = vmatpush1.msra.mxu0 %v3570
        %3614 = vmatprep.subr.mxu0 %v3569
        %3615 = vmatpush1.msra.mxu0 %v3568
        %3616 = vmatprep.subr.mxu0 %v3567
        %3617 = vmatpush1.msra.mxu0 %v3566
        %3618 = vmatprep.subr.mxu0 %v3565
        %3619 = vmatpush1.msra.mxu0 %v3564
        %3620 = vmatprep.subr.mxu0 %v3563
        %3621 = vmatpush1.msra.mxu0 %v3562
        %3622 = vmatprep.subr.mxu0 %v3561
        %3623 = vmatpush1.msra.mxu0 %v3560
        %3624 = vmatprep.subr.mxu0 0.0
        %3625 = vmatpush2.msra.mxu0 0.0
        %3626 = vmatprep.subr.mxu0 0.0
        %3627 = vmatpush2.msra.mxu0 0.0
        %3628 = vmatprep.subr.mxu0 0.0
        %3629 = vmatpush2.msra.mxu0 0.0
        %3630 = vmatprep.subr.mxu0 0.0
        %3631 = vmatpush2.msra.mxu0 0.0
        %3632 = vmatprep.subr.mxu0 0.0
        %3633 = vmatpush2.msra.mxu0 0.0
        %3634 = vmatprep.subr.mxu0 0.0
        %3635 = vmatpush2.msra.mxu0 0.0
        %3636 = vmatprep.subr.mxu0 0.0
        %3637 = vmatpush2.msra.mxu0 0.0
        %3638 = vmatprep.subr.mxu0 0.0
        %3639 = vmatpush2.msra.mxu0 0.0
        %3640 = vmatprep.subr.mxu0 0.0
        %3641 = vmatpush2.msra.mxu0 0.0
        %3642 = vmatprep.subr.mxu0 0.0
        %3643 = vmatpush2.msra.mxu0 0.0
        %3644 = vmatprep.subr.mxu0 0.0
        %3645 = vmatpush2.msra.mxu0 0.0
        %3646 = vmatprep.subr.mxu0 0.0
        %3647 = vmatpush2.msra.mxu0 0.0
        %3648 = vmatprep.subr.mxu0 0.0
        %3649 = vmatpush2.msra.mxu0 0.0
        %3650 = vmatprep.subr.mxu0 0.0
        %3651 = vmatpush2.msra.mxu0 0.0
        %3652 = vmatprep.subr.mxu0 0.0
        %3653 = vmatpush2.msra.mxu0 0.0
        %3654 = vmatprep.subr.mxu0 0.0
        %3655 = vmatpush2.msra.mxu0 0.0
        %3656 = vmatprep.mubr.f32.mxu0 0.0
        %3657 = vmatmul.mubr.f32.gmra.mxu0 %v3557
        %v3658 = vpop.f32.mrf.mxu0
        %v3659 = vadd.f32 0.0, %v3658
        %v3660 = vpop.f32.mrf.mxu0
        %v3661 = vadd.f32 0.0, %v3660
        %3662 = vmatprep.mubr.f32.mxu0 0.0
        %3663 = vmatmul.mubr.f32.gmra.mxu0 %v3558
        %v3664 = vpop.f32.mrf.mxu0
        %v3665 = vadd.f32 0.0, %v3664
        %v3666 = vpop.f32.mrf.mxu0
        %v3667 = vadd.f32 0.0, %v3666
        %3668 = vdwg.mxu0
        %v3669 = vadd.f32 %v3547, %v3659
        %v3670 = vadd.f32 %v3549, %v3661
        %v3671 = vadd.f32 %v3553, %v3665
        %v3672 = vadd.f32 %v3555, %v3667
        %v3673 = vld [vmem:[%s8] sm:$0x3]
        %v3675 = vlaneseq
        %v3676 = vshrl.u32 %v3675, 7
        %v3677 = vsub.s32 0, %v3676
        %v3678 = vrot.slane %v3673, %v3677
        %v3679 = vlaneseq
        %v3680 = vshrl.u32 %v3679, 7
        %v3681 = vsub.s32 1, %v3680
        %v3682 = vrot.slane %v3673, %v3681
        %v3685 = vadd.f32 %v3669, %v3678
        %v3686 = vadd.f32 %v3670, %v3682
        %v3687 = vadd.f32 %v3671, %v3678
        %v3688 = vadd.f32 %v3672, %v3682
        %v3689 = vmax.f32 %v3685, 0.0
        %v3690 = vmax.f32 %v3686, 0.0
        %v3691 = vmax.f32 %v3687, 0.0
        %v3692 = vmax.f32 %v3688, 0.0
        %v3693 = vld [vmem:[#allocation33] sm:$0xff]
        %v3694 = vld [vmem:[#allocation33 + $0x8] sm:$0xff]
        %v3695 = vld [vmem:[#allocation33 + $0x10] sm:$0xff]
        %v3696 = vld [vmem:[#allocation33 + $0x18] sm:$0xff]
        %v3697 = vld [vmem:[#allocation33 + $0x20] sm:$0xff]
        %v3698 = vld [vmem:[#allocation33 + $0x28] sm:$0xff]
        %v3699 = vld [vmem:[#allocation33 + $0x30] sm:$0xff]
        %v3700 = vld [vmem:[#allocation33 + $0x38] sm:$0xff]
        %v3701 = vld [vmem:[#allocation33 + $0x40] sm:$0xff]
        %v3702 = vld [vmem:[#allocation33 + $0x48] sm:$0xff]
        %v3703 = vld [vmem:[#allocation33 + $0x50] sm:$0xff]
        %v3704 = vld [vmem:[#allocation33 + $0x58] sm:$0xff]
        %v3705 = vld [vmem:[#allocation33 + $0x60] sm:$0xff]
        %v3706 = vld [vmem:[#allocation33 + $0x68] sm:$0xff]
        %v3707 = vld [vmem:[#allocation33 + $0x70] sm:$0xff]
        %v3708 = vld [vmem:[#allocation33 + $0x78] sm:$0xff]
        %v3709 = vld [vmem:[#allocation33 + $0x80] sm:$0xff]
        %v3710 = vld [vmem:[#allocation33 + $0x88] sm:$0xff]
        %v3711 = vld [vmem:[#allocation33 + $0x90] sm:$0xff]
        %v3712 = vld [vmem:[#allocation33 + $0x98] sm:$0xff]
        %v3713 = vld [vmem:[#allocation33 + $0xa0] sm:$0xff]
        %v3714 = vld [vmem:[#allocation33 + $0xa8] sm:$0xff]
        %v3715 = vld [vmem:[#allocation33 + $0xb0] sm:$0xff]
        %v3716 = vld [vmem:[#allocation33 + $0xb8] sm:$0xff]
        %v3717 = vld [vmem:[#allocation33 + $0xc0] sm:$0xff]
        %v3718 = vld [vmem:[#allocation33 + $0xc8] sm:$0xff]
        %v3719 = vld [vmem:[#allocation33 + $0xd0] sm:$0xff]
        %v3720 = vld [vmem:[#allocation33 + $0xd8] sm:$0xff]
        %v3721 = vld [vmem:[#allocation33 + $0xe0] sm:$0xff]
        %v3722 = vld [vmem:[#allocation33 + $0xe8] sm:$0xff]
        %v3723 = vld [vmem:[#allocation33 + $0xf0] sm:$0xff]
        %v3724 = vld [vmem:[#allocation33 + $0xf8] sm:$0xff]
        %3725 = vmatprep.subr.mxu0 0.0
        %3726 = vmatpush1.msra.mxu0 %v3708
        %3727 = vmatprep.subr.mxu0 0.0
        %3728 = vmatpush1.msra.mxu0 %v3707
        %3729 = vmatprep.subr.mxu0 0.0
        %3730 = vmatpush1.msra.mxu0 %v3706
        %3731 = vmatprep.subr.mxu0 0.0
        %3732 = vmatpush1.msra.mxu0 %v3705
        %3733 = vmatprep.subr.mxu0 0.0
        %3734 = vmatpush1.msra.mxu0 %v3704
        %3735 = vmatprep.subr.mxu0 0.0
        %3736 = vmatpush1.msra.mxu0 %v3703
        %3737 = vmatprep.subr.mxu0 0.0
        %3738 = vmatpush1.msra.mxu0 %v3702
        %3739 = vmatprep.subr.mxu0 0.0
        %3740 = vmatpush1.msra.mxu0 %v3701
        %3741 = vmatprep.subr.mxu0 0.0
        %3742 = vmatpush1.msra.mxu0 %v3700
        %3743 = vmatprep.subr.mxu0 0.0
        %3744 = vmatpush1.msra.mxu0 %v3699
        %3745 = vmatprep.subr.mxu0 0.0
        %3746 = vmatpush1.msra.mxu0 %v3698
        %3747 = vmatprep.subr.mxu0 0.0
        %3748 = vmatpush1.msra.mxu0 %v3697
        %3749 = vmatprep.subr.mxu0 0.0
        %3750 = vmatpush1.msra.mxu0 %v3696
        %3751 = vmatprep.subr.mxu0 0.0
        %3752 = vmatpush1.msra.mxu0 %v3695
        %3753 = vmatprep.subr.mxu0 0.0
        %3754 = vmatpush1.msra.mxu0 %v3694
        %3755 = vmatprep.subr.mxu0 0.0
        %3756 = vmatpush1.msra.mxu0 %v3693
        %3757 = vmatprep.subr.mxu0 0.0
        %3758 = vmatpush2.msra.mxu0 %v3724
        %3759 = vmatprep.subr.mxu0 0.0
        %3760 = vmatpush2.msra.mxu0 %v3723
        %3761 = vmatprep.subr.mxu0 0.0
        %3762 = vmatpush2.msra.mxu0 %v3722
        %3763 = vmatprep.subr.mxu0 0.0
        %3764 = vmatpush2.msra.mxu0 %v3721
        %3765 = vmatprep.subr.mxu0 0.0
        %3766 = vmatpush2.msra.mxu0 %v3720
        %3767 = vmatprep.subr.mxu0 0.0
        %3768 = vmatpush2.msra.mxu0 %v3719
        %3769 = vmatprep.subr.mxu0 0.0
        %3770 = vmatpush2.msra.mxu0 %v3718
        %3771 = vmatprep.subr.mxu0 0.0
        %3772 = vmatpush2.msra.mxu0 %v3717
        %3773 = vmatprep.subr.mxu0 0.0
        %3774 = vmatpush2.msra.mxu0 %v3716
        %3775 = vmatprep.subr.mxu0 0.0
        %3776 = vmatpush2.msra.mxu0 %v3715
        %3777 = vmatprep.subr.mxu0 0.0
        %3778 = vmatpush2.msra.mxu0 %v3714
        %3779 = vmatprep.subr.mxu0 0.0
        %3780 = vmatpush2.msra.mxu0 %v3713
        %3781 = vmatprep.subr.mxu0 0.0
        %3782 = vmatpush2.msra.mxu0 %v3712
        %3783 = vmatprep.subr.mxu0 0.0
        %3784 = vmatpush2.msra.mxu0 %v3711
        %3785 = vmatprep.subr.mxu0 0.0
        %3786 = vmatpush2.msra.mxu0 %v3710
        %3787 = vmatprep.subr.mxu0 0.0
        %3788 = vmatpush2.msra.mxu0 %v3709
        %3789 = vmatprep.mubr.f32.mxu0 %v3690
        %3790 = vmatmul.mubr.f32.gmra.mxu0 %v3689
        %v3791 = vpop.f32.mrf.mxu0
        %v3792 = vadd.f32 0.0, %v3791
        %v3793 = vpop.f32.mrf.mxu0
        %3794 = vmatprep.mubr.f32.mxu0 %v3692
        %3795 = vmatmul.mubr.f32.gmra.mxu0 %v3691
        %v3796 = vpop.f32.mrf.mxu0
        %v3797 = vadd.f32 0.0, %v3796
        %v3798 = vpop.f32.mrf.mxu0
        %3799 = vdwg.mxu0
        %s3800 = scalar_lea.vmem [#allocation33], 256
        %v3801 = vld [vmem:[%s3800] sm:$0xff]
        %v3802 = vld [vmem:[%s3800 + $0x8] sm:$0xff]
        %v3803 = vld [vmem:[%s3800 + $0x10] sm:$0xff]
        %v3804 = vld [vmem:[%s3800 + $0x18] sm:$0xff]
        %v3805 = vld [vmem:[%s3800 + $0x20] sm:$0xff]
        %v3806 = vld [vmem:[%s3800 + $0x28] sm:$0xff]
        %v3807 = vld [vmem:[%s3800 + $0x30] sm:$0xff]
        %v3808 = vld [vmem:[%s3800 + $0x38] sm:$0xff]
        %v3809 = vld [vmem:[%s3800 + $0x40] sm:$0xff]
        %v3810 = vld [vmem:[%s3800 + $0x48] sm:$0xff]
        %v3811 = vld [vmem:[%s3800 + $0x50] sm:$0xff]
        %v3812 = vld [vmem:[%s3800 + $0x58] sm:$0xff]
        %v3813 = vld [vmem:[%s3800 + $0x60] sm:$0xff]
        %v3814 = vld [vmem:[%s3800 + $0x68] sm:$0xff]
        %v3815 = vld [vmem:[%s3800 + $0x70] sm:$0xff]
        %v3816 = vld [vmem:[%s3800 + $0x78] sm:$0xff]
        %v3817 = vld [vmem:[%s3800 + $0x80] sm:$0xff]
        %v3818 = vld [vmem:[%s3800 + $0x88] sm:$0xff]
        %v3819 = vld [vmem:[%s3800 + $0x90] sm:$0xff]
        %v3820 = vld [vmem:[%s3800 + $0x98] sm:$0xff]
        %v3821 = vld [vmem:[%s3800 + $0xa0] sm:$0xff]
        %v3822 = vld [vmem:[%s3800 + $0xa8] sm:$0xff]
        %v3823 = vld [vmem:[%s3800 + $0xb0] sm:$0xff]
        %v3824 = vld [vmem:[%s3800 + $0xb8] sm:$0xff]
        %v3825 = vld [vmem:[%s3800 + $0xc0] sm:$0xff]
        %v3826 = vld [vmem:[%s3800 + $0xc8] sm:$0xff]
        %v3827 = vld [vmem:[%s3800 + $0xd0] sm:$0xff]
        %v3828 = vld [vmem:[%s3800 + $0xd8] sm:$0xff]
        %v3829 = vld [vmem:[%s3800 + $0xe0] sm:$0xff]
        %v3830 = vld [vmem:[%s3800 + $0xe8] sm:$0xff]
        %v3831 = vld [vmem:[%s3800 + $0xf0] sm:$0xff]
        %v3832 = vld [vmem:[%s3800 + $0xf8] sm:$0xff]
        %3833 = vmatprep.subr.mxu0 0.0
        %3834 = vmatpush1.msra.mxu0 %v3816
        %3835 = vmatprep.subr.mxu0 0.0
        %3836 = vmatpush1.msra.mxu0 %v3815
        %3837 = vmatprep.subr.mxu0 0.0
        %3838 = vmatpush1.msra.mxu0 %v3814
        %3839 = vmatprep.subr.mxu0 0.0
        %3840 = vmatpush1.msra.mxu0 %v3813
        %3841 = vmatprep.subr.mxu0 0.0
        %3842 = vmatpush1.msra.mxu0 %v3812
        %3843 = vmatprep.subr.mxu0 0.0
        %3844 = vmatpush1.msra.mxu0 %v3811
        %3845 = vmatprep.subr.mxu0 0.0
        %3846 = vmatpush1.msra.mxu0 %v3810
        %3847 = vmatprep.subr.mxu0 0.0
        %3848 = vmatpush1.msra.mxu0 %v3809
        %3849 = vmatprep.subr.mxu0 0.0
        %3850 = vmatpush1.msra.mxu0 %v3808
        %3851 = vmatprep.subr.mxu0 0.0
        %3852 = vmatpush1.msra.mxu0 %v3807
        %3853 = vmatprep.subr.mxu0 0.0
        %3854 = vmatpush1.msra.mxu0 %v3806
        %3855 = vmatprep.subr.mxu0 0.0
        %3856 = vmatpush1.msra.mxu0 %v3805
        %3857 = vmatprep.subr.mxu0 0.0
        %3858 = vmatpush1.msra.mxu0 %v3804
        %3859 = vmatprep.subr.mxu0 0.0
        %3860 = vmatpush1.msra.mxu0 %v3803
        %3861 = vmatprep.subr.mxu0 0.0
        %3862 = vmatpush1.msra.mxu0 %v3802
        %3863 = vmatprep.subr.mxu0 0.0
        %3864 = vmatpush1.msra.mxu0 %v3801
        %3865 = vmatprep.subr.mxu0 0.0
        %3866 = vmatpush2.msra.mxu0 %v3832
        %3867 = vmatprep.subr.mxu0 0.0
        %3868 = vmatpush2.msra.mxu0 %v3831
        %3869 = vmatprep.subr.mxu0 0.0
        %3870 = vmatpush2.msra.mxu0 %v3830
        %3871 = vmatprep.subr.mxu0 0.0
        %3872 = vmatpush2.msra.mxu0 %v3829
        %3873 = vmatprep.subr.mxu0 0.0
        %3874 = vmatpush2.msra.mxu0 %v3828
        %3875 = vmatprep.subr.mxu0 0.0
        %3876 = vmatpush2.msra.mxu0 %v3827
        %3877 = vmatprep.subr.mxu0 0.0
        %3878 = vmatpush2.msra.mxu0 %v3826
        %3879 = vmatprep.subr.mxu0 0.0
        %3880 = vmatpush2.msra.mxu0 %v3825
        %3881 = vmatprep.subr.mxu0 0.0
        %3882 = vmatpush2.msra.mxu0 %v3824
        %3883 = vmatprep.subr.mxu0 0.0
        %3884 = vmatpush2.msra.mxu0 %v3823
        %3885 = vmatprep.subr.mxu0 0.0
        %3886 = vmatpush2.msra.mxu0 %v3822
        %3887 = vmatprep.subr.mxu0 0.0
        %3888 = vmatpush2.msra.mxu0 %v3821
        %3889 = vmatprep.subr.mxu0 0.0
        %3890 = vmatpush2.msra.mxu0 %v3820
        %3891 = vmatprep.subr.mxu0 0.0
        %3892 = vmatpush2.msra.mxu0 %v3819
        %3893 = vmatprep.subr.mxu0 0.0
        %3894 = vmatpush2.msra.mxu0 %v3818
        %3895 = vmatprep.subr.mxu0 0.0
        %3896 = vmatpush2.msra.mxu0 %v3817
        %3897 = vmatprep.mubr.f32.mxu0 %v3690
        %3898 = vmatmul.mubr.f32.gmra.mxu0 %v3689
        %v3899 = vpop.f32.mrf.mxu0
        %v3900 = vadd.f32 0.0, %v3899
        %v3901 = vpop.f32.mrf.mxu0
        %3902 = vmatprep.mubr.f32.mxu0 %v3692
        %3903 = vmatmul.mubr.f32.gmra.mxu0 %v3691
        %v3904 = vpop.f32.mrf.mxu0
        %v3905 = vadd.f32 0.0, %v3904
        %v3906 = vpop.f32.mrf.mxu0
        %3907 = vdwg.mxu0
        %v3908 = vmax.f32 %v3792, %v3900
        %v3909 = vmax.f32 %v3797, %v3905
        %v3910 = vld [vmem:[%s22] sm:$0xff]
        %vm3911 = vcmask 130048
        %v3913 = vsel %vm3911, %v3910, 0
        %3915 = vmatprep.subr.mxu0 0.0
        %3916 = vmatpush1.msra.mxu0 0.0
        %3917 = vmatprep.subr.mxu0 0.0
        %3918 = vmatpush1.msra.mxu0 0.0
        %3919 = vmatprep.subr.mxu0 0.0
        %3920 = vmatpush1.msra.mxu0 0.0
        %3921 = vmatprep.subr.mxu0 0.0
        %3922 = vmatpush1.msra.mxu0 0.0
        %3923 = vmatprep.subr.mxu0 0.0
        %3924 = vmatpush1.msra.mxu0 0.0
        %3925 = vmatprep.subr.mxu0 0.0
        %3926 = vmatpush1.msra.mxu0 0.0
        %3927 = vmatprep.subr.mxu0 0.0
        %3928 = vmatpush1.msra.mxu0 0.0
        %3929 = vmatprep.subr.mxu0 0.0
        %3930 = vmatpush1.msra.mxu0 0.0
        %3931 = vmatprep.subr.mxu0 0.0
        %3932 = vmatpush1.msra.mxu0 0.0
        %3933 = vmatprep.subr.mxu0 0.0
        %3934 = vmatpush1.msra.mxu0 0.0
        %3935 = vmatprep.subr.mxu0 0.0
        %3936 = vmatpush1.msra.mxu0 0.0
        %3937 = vmatprep.subr.mxu0 0.0
        %3938 = vmatpush1.msra.mxu0 0.0
        %3939 = vmatprep.subr.mxu0 0.0
        %3940 = vmatpush1.msra.mxu0 0.0
        %3941 = vmatprep.subr.mxu0 0.0
        %3942 = vmatpush1.msra.mxu0 0.0
        %3943 = vmatprep.subr.mxu0 0.0
        %3944 = vmatpush1.msra.mxu0 %v3909
        %3945 = vmatprep.subr.mxu0 0.0
        %3946 = vmatpush1.msra.mxu0 %v3908
        %3947 = vmatprep.subr.mxu0 0.0
        %3948 = vmatpush2.msra.mxu0 0.0
        %3949 = vmatprep.subr.mxu0 0.0
        %3950 = vmatpush2.msra.mxu0 0.0
        %3951 = vmatprep.subr.mxu0 0.0
        %3952 = vmatpush2.msra.mxu0 0.0
        %3953 = vmatprep.subr.mxu0 0.0
        %3954 = vmatpush2.msra.mxu0 0.0
        %3955 = vmatprep.subr.mxu0 0.0
        %3956 = vmatpush2.msra.mxu0 0.0
        %3957 = vmatprep.subr.mxu0 0.0
        %3958 = vmatpush2.msra.mxu0 0.0
        %3959 = vmatprep.subr.mxu0 0.0
        %3960 = vmatpush2.msra.mxu0 0.0
        %3961 = vmatprep.subr.mxu0 0.0
        %3962 = vmatpush2.msra.mxu0 0.0
        %3963 = vmatprep.subr.mxu0 0.0
        %3964 = vmatpush2.msra.mxu0 0.0
        %3965 = vmatprep.subr.mxu0 0.0
        %3966 = vmatpush2.msra.mxu0 0.0
        %3967 = vmatprep.subr.mxu0 0.0
        %3968 = vmatpush2.msra.mxu0 0.0
        %3969 = vmatprep.subr.mxu0 0.0
        %3970 = vmatpush2.msra.mxu0 0.0
        %3971 = vmatprep.subr.mxu0 0.0
        %3972 = vmatpush2.msra.mxu0 0.0
        %3973 = vmatprep.subr.mxu0 0.0
        %3974 = vmatpush2.msra.mxu0 0.0
        %3975 = vmatprep.subr.mxu0 0.0
        %3976 = vmatpush2.msra.mxu0 0.0
        %3977 = vmatprep.subr.mxu0 0.0
        %3978 = vmatpush2.msra.mxu0 0.0
        %3979 = vmatprep.mubr.f32.mxu0 0.0
        %3980 = vmatmul.mubr.f32.gmra.mxu0 %v3913
        %v3981 = vpop.f32.mrf.mxu0
        %v3982 = vadd.f32 0.0, %v3981
        %v3983 = vpop.f32.mrf.mxu0
        %3984 = vdwg.mxu0
        %s3985 = scalar_lea.vmem %s22, 8
        %v3986 = vld [vmem:[%s3985] sm:$0xff]
        %v3988 = vsel %vm3911, %v3986, 0
        %3990 = vmatprep.subr.mxu0 0.0
        %3991 = vmatpush1.msra.mxu0 0.0
        %3992 = vmatprep.subr.mxu0 0.0
        %3993 = vmatpush1.msra.mxu0 0.0
        %3994 = vmatprep.subr.mxu0 0.0
        %3995 = vmatpush1.msra.mxu0 0.0
        %3996 = vmatprep.subr.mxu0 0.0
        %3997 = vmatpush1.msra.mxu0 0.0
        %3998 = vmatprep.subr.mxu0 0.0
        %3999 = vmatpush1.msra.mxu0 0.0
        %4000 = vmatprep.subr.mxu0 0.0
        %4001 = vmatpush1.msra.mxu0 0.0
        %4002 = vmatprep.subr.mxu0 0.0
        %4003 = vmatpush1.msra.mxu0 0.0
        %4004 = vmatprep.subr.mxu0 0.0
        %4005 = vmatpush1.msra.mxu0 0.0
        %4006 = vmatprep.subr.mxu0 0.0
        %4007 = vmatpush1.msra.mxu0 0.0
        %4008 = vmatprep.subr.mxu0 0.0
        %4009 = vmatpush1.msra.mxu0 0.0
        %4010 = vmatprep.subr.mxu0 0.0
        %4011 = vmatpush1.msra.mxu0 0.0
        %4012 = vmatprep.subr.mxu0 0.0
        %4013 = vmatpush1.msra.mxu0 0.0
        %4014 = vmatprep.subr.mxu0 0.0
        %4015 = vmatpush1.msra.mxu0 0.0
        %4016 = vmatprep.subr.mxu0 0.0
        %4017 = vmatpush1.msra.mxu0 0.0
        %4018 = vmatprep.subr.mxu0 0.0
        %4019 = vmatpush1.msra.mxu0 %v3909
        %4020 = vmatprep.subr.mxu0 0.0
        %4021 = vmatpush1.msra.mxu0 %v3908
        %4022 = vmatprep.subr.mxu0 0.0
        %4023 = vmatpush2.msra.mxu0 0.0
        %4024 = vmatprep.subr.mxu0 0.0
        %4025 = vmatpush2.msra.mxu0 0.0
        %4026 = vmatprep.subr.mxu0 0.0
        %4027 = vmatpush2.msra.mxu0 0.0
        %4028 = vmatprep.subr.mxu0 0.0
        %4029 = vmatpush2.msra.mxu0 0.0
        %4030 = vmatprep.subr.mxu0 0.0
        %4031 = vmatpush2.msra.mxu0 0.0
        %4032 = vmatprep.subr.mxu0 0.0
        %4033 = vmatpush2.msra.mxu0 0.0
        %4034 = vmatprep.subr.mxu0 0.0
        %4035 = vmatpush2.msra.mxu0 0.0
        %4036 = vmatprep.subr.mxu0 0.0
        %4037 = vmatpush2.msra.mxu0 0.0
        %4038 = vmatprep.subr.mxu0 0.0
        %4039 = vmatpush2.msra.mxu0 0.0
        %4040 = vmatprep.subr.mxu0 0.0
        %4041 = vmatpush2.msra.mxu0 0.0
        %4042 = vmatprep.subr.mxu0 0.0
        %4043 = vmatpush2.msra.mxu0 0.0
        %4044 = vmatprep.subr.mxu0 0.0
        %4045 = vmatpush2.msra.mxu0 0.0
        %4046 = vmatprep.subr.mxu0 0.0
        %4047 = vmatpush2.msra.mxu0 0.0
        %4048 = vmatprep.subr.mxu0 0.0
        %4049 = vmatpush2.msra.mxu0 0.0
        %4050 = vmatprep.subr.mxu0 0.0
        %4051 = vmatpush2.msra.mxu0 0.0
        %4052 = vmatprep.subr.mxu0 0.0
        %4053 = vmatpush2.msra.mxu0 0.0
        %4054 = vmatprep.mubr.f32.mxu0 0.0
        %4055 = vmatmul.mubr.f32.gmra.mxu0 %v3988
        %v4056 = vpop.f32.mrf.mxu0
        %v4057 = vadd.f32 0.0, %v4056
        %v4058 = vpop.f32.mrf.mxu0
        %4059 = vdwg.mxu0
        %v4060 = vmax.f32 %v3982, %v4057
        %4061 = vst [vmem:[#allocation4 + $0x8] sm:$0xff] %v4060
        %v4062 = vld [vmem:[#allocation4 + $0x7] sm:$0xff]
        %v4063 = vld [vmem:[#allocation18] sm:$0xff]
        %v4064 = vld [vmem:[#allocation18 + $0x8] sm:$0xff]
        %v4065 = vld [vmem:[#allocation18 + $0x10] sm:$0xff]
        %v4066 = vld [vmem:[#allocation18 + $0x18] sm:$0xff]
        %v4067 = vld [vmem:[#allocation18 + $0x20] sm:$0xff]
        %v4068 = vld [vmem:[#allocation18 + $0x28] sm:$0xff]
        %v4069 = vld [vmem:[#allocation18 + $0x30] sm:$0xff]
        %v4070 = vld [vmem:[#allocation18 + $0x38] sm:$0xff]
        %v4071 = vld [vmem:[#allocation18 + $0x40] sm:$0xff]
        %v4072 = vld [vmem:[#allocation18 + $0x48] sm:$0xff]
        %v4073 = vld [vmem:[#allocation18 + $0x50] sm:$0xff]
        %v4074 = vld [vmem:[#allocation18 + $0x58] sm:$0xff]
        %v4075 = vld [vmem:[#allocation18 + $0x60] sm:$0xff]
        %v4076 = vld [vmem:[#allocation18 + $0x68] sm:$0xff]
        %v4077 = vld [vmem:[#allocation18 + $0x70] sm:$0xff]
        %v4078 = vld [vmem:[#allocation18 + $0x78] sm:$0xff]
        %v4079 = vld [vmem:[#allocation4 + $0x8] sm:$0xff]
        %s4080 = scalar_lea.vmem [#allocation18], 128
        %v4081 = vld [vmem:[%s4080] sm:$0xff]
        %v4082 = vld [vmem:[%s4080 + $0x8] sm:$0xff]
        %v4083 = vld [vmem:[%s4080 + $0x10] sm:$0xff]
        %v4084 = vld [vmem:[%s4080 + $0x18] sm:$0xff]
        %v4085 = vld [vmem:[%s4080 + $0x20] sm:$0xff]
        %v4086 = vld [vmem:[%s4080 + $0x28] sm:$0xff]
        %v4087 = vld [vmem:[%s4080 + $0x30] sm:$0xff]
        %v4088 = vld [vmem:[%s4080 + $0x38] sm:$0xff]
        %v4089 = vld [vmem:[%s4080 + $0x40] sm:$0xff]
        %v4090 = vld [vmem:[%s4080 + $0x48] sm:$0xff]
        %v4091 = vld [vmem:[%s4080 + $0x50] sm:$0xff]
        %v4092 = vld [vmem:[%s4080 + $0x58] sm:$0xff]
        %v4093 = vld [vmem:[%s4080 + $0x60] sm:$0xff]
        %v4094 = vld [vmem:[%s4080 + $0x68] sm:$0xff]
        %v4095 = vld [vmem:[%s4080 + $0x70] sm:$0xff]
        %v4096 = vld [vmem:[%s4080 + $0x78] sm:$0xff]
        %4097 = vmatprep.subr.mxu0 0.0
        %4098 = vmatpush1.msra.mxu0 %v4096
        %4099 = vmatprep.subr.mxu0 0.0
        %4100 = vmatpush1.msra.mxu0 %v4095
        %4101 = vmatprep.subr.mxu0 0.0
        %4102 = vmatpush1.msra.mxu0 %v4094
        %4103 = vmatprep.subr.mxu0 0.0
        %4104 = vmatpush1.msra.mxu0 %v4093
        %4105 = vmatprep.subr.mxu0 0.0
        %4106 = vmatpush1.msra.mxu0 %v4092
        %4107 = vmatprep.subr.mxu0 0.0
        %4108 = vmatpush1.msra.mxu0 %v4091
        %4109 = vmatprep.subr.mxu0 0.0
        %4110 = vmatpush1.msra.mxu0 %v4090
        %4111 = vmatprep.subr.mxu0 0.0
        %4112 = vmatpush1.msra.mxu0 %v4089
        %4113 = vmatprep.subr.mxu0 0.0
        %4114 = vmatpush1.msra.mxu0 %v4088
        %4115 = vmatprep.subr.mxu0 0.0
        %4116 = vmatpush1.msra.mxu0 %v4087
        %4117 = vmatprep.subr.mxu0 0.0
        %4118 = vmatpush1.msra.mxu0 %v4086
        %4119 = vmatprep.subr.mxu0 0.0
        %4120 = vmatpush1.msra.mxu0 %v4085
        %4121 = vmatprep.subr.mxu0 0.0
        %4122 = vmatpush1.msra.mxu0 %v4084
        %4123 = vmatprep.subr.mxu0 0.0
        %4124 = vmatpush1.msra.mxu0 %v4083
        %4125 = vmatprep.subr.mxu0 0.0
        %4126 = vmatpush1.msra.mxu0 %v4082
        %4127 = vmatprep.subr.mxu0 0.0
        %4128 = vmatpush1.msra.mxu0 %v4081
        %4129 = vmatprep.subr.mxu0 0.0
        %4130 = vmatpush2.msra.mxu0 0.0
        %4131 = vmatprep.subr.mxu0 0.0
        %4132 = vmatpush2.msra.mxu0 0.0
        %4133 = vmatprep.subr.mxu0 0.0
        %4134 = vmatpush2.msra.mxu0 0.0
        %4135 = vmatprep.subr.mxu0 0.0
        %4136 = vmatpush2.msra.mxu0 0.0
        %4137 = vmatprep.subr.mxu0 0.0
        %4138 = vmatpush2.msra.mxu0 0.0
        %4139 = vmatprep.subr.mxu0 0.0
        %4140 = vmatpush2.msra.mxu0 0.0
        %4141 = vmatprep.subr.mxu0 0.0
        %4142 = vmatpush2.msra.mxu0 0.0
        %4143 = vmatprep.subr.mxu0 0.0
        %4144 = vmatpush2.msra.mxu0 0.0
        %4145 = vmatprep.subr.mxu0 0.0
        %4146 = vmatpush2.msra.mxu0 0.0
        %4147 = vmatprep.subr.mxu0 0.0
        %4148 = vmatpush2.msra.mxu0 0.0
        %4149 = vmatprep.subr.mxu0 0.0
        %4150 = vmatpush2.msra.mxu0 0.0
        %4151 = vmatprep.subr.mxu0 0.0
        %4152 = vmatpush2.msra.mxu0 0.0
        %4153 = vmatprep.subr.mxu0 0.0
        %4154 = vmatpush2.msra.mxu0 0.0
        %4155 = vmatprep.subr.mxu0 0.0
        %4156 = vmatpush2.msra.mxu0 0.0
        %4157 = vmatprep.subr.mxu0 0.0
        %4158 = vmatpush2.msra.mxu0 0.0
        %4159 = vmatprep.subr.mxu0 0.0
        %4160 = vmatpush2.msra.mxu0 0.0
        %4161 = vmatprep.mubr.f32.mxu0 0.0
        %4162 = vmatmul.mubr.f32.gmra.mxu0 %v4079
        %v4163 = vpop.f32.mrf.mxu0
        %v4164 = vadd.f32 0.0, %v4163
        %v4165 = vpop.f32.mrf.mxu0
        %4166 = vdwg.mxu0
        %4167 = vmatprep.subr.mxu0 0.0
        %4168 = vmatpush1.msra.mxu0 %v4078
        %4169 = vmatprep.subr.mxu0 0.0
        %4170 = vmatpush1.msra.mxu0 %v4077
        %4171 = vmatprep.subr.mxu0 0.0
        %4172 = vmatpush1.msra.mxu0 %v4076
        %4173 = vmatprep.subr.mxu0 0.0
        %4174 = vmatpush1.msra.mxu0 %v4075
        %4175 = vmatprep.subr.mxu0 0.0
        %4176 = vmatpush1.msra.mxu0 %v4074
        %4177 = vmatprep.subr.mxu0 0.0
        %4178 = vmatpush1.msra.mxu0 %v4073
        %4179 = vmatprep.subr.mxu0 0.0
        %4180 = vmatpush1.msra.mxu0 %v4072
        %4181 = vmatprep.subr.mxu0 0.0
        %4182 = vmatpush1.msra.mxu0 %v4071
        %4183 = vmatprep.subr.mxu0 0.0
        %4184 = vmatpush1.msra.mxu0 %v4070
        %4185 = vmatprep.subr.mxu0 0.0
        %4186 = vmatpush1.msra.mxu0 %v4069
        %4187 = vmatprep.subr.mxu0 0.0
        %4188 = vmatpush1.msra.mxu0 %v4068
        %4189 = vmatprep.subr.mxu0 0.0
        %4190 = vmatpush1.msra.mxu0 %v4067
        %4191 = vmatprep.subr.mxu0 0.0
        %4192 = vmatpush1.msra.mxu0 %v4066
        %4193 = vmatprep.subr.mxu0 0.0
        %4194 = vmatpush1.msra.mxu0 %v4065
        %4195 = vmatprep.subr.mxu0 0.0
        %4196 = vmatpush1.msra.mxu0 %v4064
        %4197 = vmatprep.subr.mxu0 0.0
        %4198 = vmatpush1.msra.mxu0 %v4063
        %4199 = vmatprep.subr.mxu0 0.0
        %4200 = vmatpush2.msra.mxu0 0.0
        %4201 = vmatprep.subr.mxu0 0.0
        %4202 = vmatpush2.msra.mxu0 0.0
        %4203 = vmatprep.subr.mxu0 0.0
        %4204 = vmatpush2.msra.mxu0 0.0
        %4205 = vmatprep.subr.mxu0 0.0
        %4206 = vmatpush2.msra.mxu0 0.0
        %4207 = vmatprep.subr.mxu0 0.0
        %4208 = vmatpush2.msra.mxu0 0.0
        %4209 = vmatprep.subr.mxu0 0.0
        %4210 = vmatpush2.msra.mxu0 0.0
        %4211 = vmatprep.subr.mxu0 0.0
        %4212 = vmatpush2.msra.mxu0 0.0
        %4213 = vmatprep.subr.mxu0 0.0
        %4214 = vmatpush2.msra.mxu0 0.0
        %4215 = vmatprep.subr.mxu0 0.0
        %4216 = vmatpush2.msra.mxu0 0.0
        %4217 = vmatprep.subr.mxu0 0.0
        %4218 = vmatpush2.msra.mxu0 0.0
        %4219 = vmatprep.subr.mxu0 0.0
        %4220 = vmatpush2.msra.mxu0 0.0
        %4221 = vmatprep.subr.mxu0 0.0
        %4222 = vmatpush2.msra.mxu0 0.0
        %4223 = vmatprep.subr.mxu0 0.0
        %4224 = vmatpush2.msra.mxu0 0.0
        %4225 = vmatprep.subr.mxu0 0.0
        %4226 = vmatpush2.msra.mxu0 0.0
        %4227 = vmatprep.subr.mxu0 0.0
        %4228 = vmatpush2.msra.mxu0 0.0
        %4229 = vmatprep.subr.mxu0 0.0
        %4230 = vmatpush2.msra.mxu0 0.0
        %4231 = vmatprep.mubr.f32.mxu0 0.0
        %4232 = vmatmul.mubr.f32.gmra.mxu0 %v4062
        %v4233 = vpop.f32.mrf.mxu0
        %v4234 = vadd.f32 %v4164, %v4233
        %v4235 = vpop.f32.mrf.mxu0
        %4236 = vdwg.mxu0
        %v4237 = vld [vmem:[#allocation4 + $0x9] sm:$0xff]
        %s4238 = scalar_lea.vmem [#allocation18], 256
        %v4239 = vld [vmem:[%s4238] sm:$0xff]
        %v4240 = vld [vmem:[%s4238 + $0x8] sm:$0xff]
        %v4241 = vld [vmem:[%s4238 + $0x10] sm:$0xff]
        %v4242 = vld [vmem:[%s4238 + $0x18] sm:$0xff]
        %v4243 = vld [vmem:[%s4238 + $0x20] sm:$0xff]
        %v4244 = vld [vmem:[%s4238 + $0x28] sm:$0xff]
        %v4245 = vld [vmem:[%s4238 + $0x30] sm:$0xff]
        %v4246 = vld [vmem:[%s4238 + $0x38] sm:$0xff]
        %v4247 = vld [vmem:[%s4238 + $0x40] sm:$0xff]
        %v4248 = vld [vmem:[%s4238 + $0x48] sm:$0xff]
        %v4249 = vld [vmem:[%s4238 + $0x50] sm:$0xff]
        %v4250 = vld [vmem:[%s4238 + $0x58] sm:$0xff]
        %v4251 = vld [vmem:[%s4238 + $0x60] sm:$0xff]
        %v4252 = vld [vmem:[%s4238 + $0x68] sm:$0xff]
        %v4253 = vld [vmem:[%s4238 + $0x70] sm:$0xff]
        %v4254 = vld [vmem:[%s4238 + $0x78] sm:$0xff]
        %4255 = vmatprep.subr.mxu0 0.0
        %4256 = vmatpush1.msra.mxu0 %v4254
        %4257 = vmatprep.subr.mxu0 0.0
        %4258 = vmatpush1.msra.mxu0 %v4253
        %4259 = vmatprep.subr.mxu0 0.0
        %4260 = vmatpush1.msra.mxu0 %v4252
        %4261 = vmatprep.subr.mxu0 0.0
        %4262 = vmatpush1.msra.mxu0 %v4251
        %4263 = vmatprep.subr.mxu0 0.0
        %4264 = vmatpush1.msra.mxu0 %v4250
        %4265 = vmatprep.subr.mxu0 0.0
        %4266 = vmatpush1.msra.mxu0 %v4249
        %4267 = vmatprep.subr.mxu0 0.0
        %4268 = vmatpush1.msra.mxu0 %v4248
        %4269 = vmatprep.subr.mxu0 0.0
        %4270 = vmatpush1.msra.mxu0 %v4247
        %4271 = vmatprep.subr.mxu0 0.0
        %4272 = vmatpush1.msra.mxu0 %v4246
        %4273 = vmatprep.subr.mxu0 0.0
        %4274 = vmatpush1.msra.mxu0 %v4245
        %4275 = vmatprep.subr.mxu0 0.0
        %4276 = vmatpush1.msra.mxu0 %v4244
        %4277 = vmatprep.subr.mxu0 0.0
        %4278 = vmatpush1.msra.mxu0 %v4243
        %4279 = vmatprep.subr.mxu0 0.0
        %4280 = vmatpush1.msra.mxu0 %v4242
        %4281 = vmatprep.subr.mxu0 0.0
        %4282 = vmatpush1.msra.mxu0 %v4241
        %4283 = vmatprep.subr.mxu0 0.0
        %4284 = vmatpush1.msra.mxu0 %v4240
        %4285 = vmatprep.subr.mxu0 0.0
        %4286 = vmatpush1.msra.mxu0 %v4239
        %4287 = vmatprep.subr.mxu0 0.0
        %4288 = vmatpush2.msra.mxu0 0.0
        %4289 = vmatprep.subr.mxu0 0.0
        %4290 = vmatpush2.msra.mxu0 0.0
        %4291 = vmatprep.subr.mxu0 0.0
        %4292 = vmatpush2.msra.mxu0 0.0
        %4293 = vmatprep.subr.mxu0 0.0
        %4294 = vmatpush2.msra.mxu0 0.0
        %4295 = vmatprep.subr.mxu0 0.0
        %4296 = vmatpush2.msra.mxu0 0.0
        %4297 = vmatprep.subr.mxu0 0.0
        %4298 = vmatpush2.msra.mxu0 0.0
        %4299 = vmatprep.subr.mxu0 0.0
        %4300 = vmatpush2.msra.mxu0 0.0
        %4301 = vmatprep.subr.mxu0 0.0
        %4302 = vmatpush2.msra.mxu0 0.0
        %4303 = vmatprep.subr.mxu0 0.0
        %4304 = vmatpush2.msra.mxu0 0.0
        %4305 = vmatprep.subr.mxu0 0.0
        %4306 = vmatpush2.msra.mxu0 0.0
        %4307 = vmatprep.subr.mxu0 0.0
        %4308 = vmatpush2.msra.mxu0 0.0
        %4309 = vmatprep.subr.mxu0 0.0
        %4310 = vmatpush2.msra.mxu0 0.0
        %4311 = vmatprep.subr.mxu0 0.0
        %4312 = vmatpush2.msra.mxu0 0.0
        %4313 = vmatprep.subr.mxu0 0.0
        %4314 = vmatpush2.msra.mxu0 0.0
        %4315 = vmatprep.subr.mxu0 0.0
        %4316 = vmatpush2.msra.mxu0 0.0
        %4317 = vmatprep.subr.mxu0 0.0
        %4318 = vmatpush2.msra.mxu0 0.0
        %4319 = vmatprep.mubr.f32.mxu0 0.0
        %4320 = vmatmul.mubr.f32.gmra.mxu0 %v4237
        %v4321 = vpop.f32.mrf.mxu0
        %v4322 = vadd.f32 0.0, %v4321
        %v4323 = vpop.f32.mrf.mxu0
        %4324 = vdwg.mxu0
        %v4325 = vadd.f32 %v4234, %v4322
        %v4326 = vld [vmem:[#allocation19] sm:$0x1]
        %v4328 = vlaneseq
        %v4329 = vshrl.u32 %v4328, 7
        %v4330 = vsub.s32 0, %v4329
        %v4331 = vrot.slane %v4326, %v4330
        %v4333 = vadd.f32 %v4325, %v4331
        %v4334 = vmax.f32 %v4333, 0.0
        %4335 = vst [vmem:[#allocation4 + $0x8] sm:$0xff] %v4334
        %v4336 = vld [vmem:[#allocation4 + $0x7] sm:$0xff]
        %v4337 = vld [vmem:[#allocation21] sm:$0xff]
        %v4338 = vld [vmem:[#allocation21 + $0x8] sm:$0xff]
        %v4339 = vld [vmem:[#allocation21 + $0x10] sm:$0xff]
        %v4340 = vld [vmem:[#allocation21 + $0x18] sm:$0xff]
        %v4341 = vld [vmem:[#allocation21 + $0x20] sm:$0xff]
        %v4342 = vld [vmem:[#allocation21 + $0x28] sm:$0xff]
        %v4343 = vld [vmem:[#allocation21 + $0x30] sm:$0xff]
        %v4344 = vld [vmem:[#allocation21 + $0x38] sm:$0xff]
        %v4345 = vld [vmem:[#allocation21 + $0x40] sm:$0xff]
        %v4346 = vld [vmem:[#allocation21 + $0x48] sm:$0xff]
        %v4347 = vld [vmem:[#allocation21 + $0x50] sm:$0xff]
        %v4348 = vld [vmem:[#allocation21 + $0x58] sm:$0xff]
        %v4349 = vld [vmem:[#allocation21 + $0x60] sm:$0xff]
        %v4350 = vld [vmem:[#allocation21 + $0x68] sm:$0xff]
        %v4351 = vld [vmem:[#allocation21 + $0x70] sm:$0xff]
        %v4352 = vld [vmem:[#allocation21 + $0x78] sm:$0xff]
        %v4353 = vld [vmem:[#allocation4 + $0x8] sm:$0xff]
        %s4354 = scalar_lea.vmem [#allocation21], 128
        %v4355 = vld [vmem:[%s4354] sm:$0xff]
        %v4356 = vld [vmem:[%s4354 + $0x8] sm:$0xff]
        %v4357 = vld [vmem:[%s4354 + $0x10] sm:$0xff]
        %v4358 = vld [vmem:[%s4354 + $0x18] sm:$0xff]
        %v4359 = vld [vmem:[%s4354 + $0x20] sm:$0xff]
        %v4360 = vld [vmem:[%s4354 + $0x28] sm:$0xff]
        %v4361 = vld [vmem:[%s4354 + $0x30] sm:$0xff]
        %v4362 = vld [vmem:[%s4354 + $0x38] sm:$0xff]
        %v4363 = vld [vmem:[%s4354 + $0x40] sm:$0xff]
        %v4364 = vld [vmem:[%s4354 + $0x48] sm:$0xff]
        %v4365 = vld [vmem:[%s4354 + $0x50] sm:$0xff]
        %v4366 = vld [vmem:[%s4354 + $0x58] sm:$0xff]
        %v4367 = vld [vmem:[%s4354 + $0x60] sm:$0xff]
        %v4368 = vld [vmem:[%s4354 + $0x68] sm:$0xff]
        %v4369 = vld [vmem:[%s4354 + $0x70] sm:$0xff]
        %v4370 = vld [vmem:[%s4354 + $0x78] sm:$0xff]
        %4371 = vmatprep.subr.mxu0 0.0
        %4372 = vmatpush1.msra.mxu0 %v4370
        %4373 = vmatprep.subr.mxu0 0.0
        %4374 = vmatpush1.msra.mxu0 %v4369
        %4375 = vmatprep.subr.mxu0 0.0
        %4376 = vmatpush1.msra.mxu0 %v4368
        %4377 = vmatprep.subr.mxu0 0.0
        %4378 = vmatpush1.msra.mxu0 %v4367
        %4379 = vmatprep.subr.mxu0 0.0
        %4380 = vmatpush1.msra.mxu0 %v4366
        %4381 = vmatprep.subr.mxu0 0.0
        %4382 = vmatpush1.msra.mxu0 %v4365
        %4383 = vmatprep.subr.mxu0 0.0
        %4384 = vmatpush1.msra.mxu0 %v4364
        %4385 = vmatprep.subr.mxu0 0.0
        %4386 = vmatpush1.msra.mxu0 %v4363
        %4387 = vmatprep.subr.mxu0 0.0
        %4388 = vmatpush1.msra.mxu0 %v4362
        %4389 = vmatprep.subr.mxu0 0.0
        %4390 = vmatpush1.msra.mxu0 %v4361
        %4391 = vmatprep.subr.mxu0 0.0
        %4392 = vmatpush1.msra.mxu0 %v4360
        %4393 = vmatprep.subr.mxu0 0.0
        %4394 = vmatpush1.msra.mxu0 %v4359
        %4395 = vmatprep.subr.mxu0 0.0
        %4396 = vmatpush1.msra.mxu0 %v4358
        %4397 = vmatprep.subr.mxu0 0.0
        %4398 = vmatpush1.msra.mxu0 %v4357
        %4399 = vmatprep.subr.mxu0 0.0
        %4400 = vmatpush1.msra.mxu0 %v4356
        %4401 = vmatprep.subr.mxu0 0.0
        %4402 = vmatpush1.msra.mxu0 %v4355
        %4403 = vmatprep.subr.mxu0 0.0
        %4404 = vmatpush2.msra.mxu0 0.0
        %4405 = vmatprep.subr.mxu0 0.0
        %4406 = vmatpush2.msra.mxu0 0.0
        %4407 = vmatprep.subr.mxu0 0.0
        %4408 = vmatpush2.msra.mxu0 0.0
        %4409 = vmatprep.subr.mxu0 0.0
        %4410 = vmatpush2.msra.mxu0 0.0
        %4411 = vmatprep.subr.mxu0 0.0
        %4412 = vmatpush2.msra.mxu0 0.0
        %4413 = vmatprep.subr.mxu0 0.0
        %4414 = vmatpush2.msra.mxu0 0.0
        %4415 = vmatprep.subr.mxu0 0.0
        %4416 = vmatpush2.msra.mxu0 0.0
        %4417 = vmatprep.subr.mxu0 0.0
        %4418 = vmatpush2.msra.mxu0 0.0
        %4419 = vmatprep.subr.mxu0 0.0
        %4420 = vmatpush2.msra.mxu0 0.0
        %4421 = vmatprep.subr.mxu0 0.0
        %4422 = vmatpush2.msra.mxu0 0.0
        %4423 = vmatprep.subr.mxu0 0.0
        %4424 = vmatpush2.msra.mxu0 0.0
        %4425 = vmatprep.subr.mxu0 0.0
        %4426 = vmatpush2.msra.mxu0 0.0
        %4427 = vmatprep.subr.mxu0 0.0
        %4428 = vmatpush2.msra.mxu0 0.0
        %4429 = vmatprep.subr.mxu0 0.0
        %4430 = vmatpush2.msra.mxu0 0.0
        %4431 = vmatprep.subr.mxu0 0.0
        %4432 = vmatpush2.msra.mxu0 0.0
        %4433 = vmatprep.subr.mxu0 0.0
        %4434 = vmatpush2.msra.mxu0 0.0
        %4435 = vmatprep.mubr.f32.mxu0 0.0
        %4436 = vmatmul.mubr.f32.gmra.mxu0 %v4353
        %v4437 = vpop.f32.mrf.mxu0
        %v4438 = vadd.f32 0.0, %v4437
        %v4439 = vpop.f32.mrf.mxu0
        %4440 = vdwg.mxu0
        %4441 = vmatprep.subr.mxu0 0.0
        %4442 = vmatpush1.msra.mxu0 %v4352
        %4443 = vmatprep.subr.mxu0 0.0
        %4444 = vmatpush1.msra.mxu0 %v4351
        %4445 = vmatprep.subr.mxu0 0.0
        %4446 = vmatpush1.msra.mxu0 %v4350
        %4447 = vmatprep.subr.mxu0 0.0
        %4448 = vmatpush1.msra.mxu0 %v4349
        %4449 = vmatprep.subr.mxu0 0.0
        %4450 = vmatpush1.msra.mxu0 %v4348
        %4451 = vmatprep.subr.mxu0 0.0
        %4452 = vmatpush1.msra.mxu0 %v4347
        %4453 = vmatprep.subr.mxu0 0.0
        %4454 = vmatpush1.msra.mxu0 %v4346
        %4455 = vmatprep.subr.mxu0 0.0
        %4456 = vmatpush1.msra.mxu0 %v4345
        %4457 = vmatprep.subr.mxu0 0.0
        %4458 = vmatpush1.msra.mxu0 %v4344
        %4459 = vmatprep.subr.mxu0 0.0
        %4460 = vmatpush1.msra.mxu0 %v4343
        %4461 = vmatprep.subr.mxu0 0.0
        %4462 = vmatpush1.msra.mxu0 %v4342
        %4463 = vmatprep.subr.mxu0 0.0
        %4464 = vmatpush1.msra.mxu0 %v4341
        %4465 = vmatprep.subr.mxu0 0.0
        %4466 = vmatpush1.msra.mxu0 %v4340
        %4467 = vmatprep.subr.mxu0 0.0
        %4468 = vmatpush1.msra.mxu0 %v4339
        %4469 = vmatprep.subr.mxu0 0.0
        %4470 = vmatpush1.msra.mxu0 %v4338
        %4471 = vmatprep.subr.mxu0 0.0
        %4472 = vmatpush1.msra.mxu0 %v4337
        %4473 = vmatprep.subr.mxu0 0.0
        %4474 = vmatpush2.msra.mxu0 0.0
        %4475 = vmatprep.subr.mxu0 0.0
        %4476 = vmatpush2.msra.mxu0 0.0
        %4477 = vmatprep.subr.mxu0 0.0
        %4478 = vmatpush2.msra.mxu0 0.0
        %4479 = vmatprep.subr.mxu0 0.0
        %4480 = vmatpush2.msra.mxu0 0.0
        %4481 = vmatprep.subr.mxu0 0.0
        %4482 = vmatpush2.msra.mxu0 0.0
        %4483 = vmatprep.subr.mxu0 0.0
        %4484 = vmatpush2.msra.mxu0 0.0
        %4485 = vmatprep.subr.mxu0 0.0
        %4486 = vmatpush2.msra.mxu0 0.0
        %4487 = vmatprep.subr.mxu0 0.0
        %4488 = vmatpush2.msra.mxu0 0.0
        %4489 = vmatprep.subr.mxu0 0.0
        %4490 = vmatpush2.msra.mxu0 0.0
        %4491 = vmatprep.subr.mxu0 0.0
        %4492 = vmatpush2.msra.mxu0 0.0
        %4493 = vmatprep.subr.mxu0 0.0
        %4494 = vmatpush2.msra.mxu0 0.0
        %4495 = vmatprep.subr.mxu0 0.0
        %4496 = vmatpush2.msra.mxu0 0.0
        %4497 = vmatprep.subr.mxu0 0.0
        %4498 = vmatpush2.msra.mxu0 0.0
        %4499 = vmatprep.subr.mxu0 0.0
        %4500 = vmatpush2.msra.mxu0 0.0
        %4501 = vmatprep.subr.mxu0 0.0
        %4502 = vmatpush2.msra.mxu0 0.0
        %4503 = vmatprep.subr.mxu0 0.0
        %4504 = vmatpush2.msra.mxu0 0.0
        %4505 = vmatprep.mubr.f32.mxu0 0.0
        %4506 = vmatmul.mubr.f32.gmra.mxu0 %v4336
        %v4507 = vpop.f32.mrf.mxu0
        %v4508 = vadd.f32 %v4438, %v4507
        %v4509 = vpop.f32.mrf.mxu0
        %4510 = vdwg.mxu0
        %v4511 = vld [vmem:[#allocation4 + $0x9] sm:$0xff]
        %s4512 = scalar_lea.vmem [#allocation21], 256
        %v4513 = vld [vmem:[%s4512] sm:$0xff]
        %v4514 = vld [vmem:[%s4512 + $0x8] sm:$0xff]
        %v4515 = vld [vmem:[%s4512 + $0x10] sm:$0xff]
        %v4516 = vld [vmem:[%s4512 + $0x18] sm:$0xff]
        %v4517 = vld [vmem:[%s4512 + $0x20] sm:$0xff]
        %v4518 = vld [vmem:[%s4512 + $0x28] sm:$0xff]
        %v4519 = vld [vmem:[%s4512 + $0x30] sm:$0xff]
        %v4520 = vld [vmem:[%s4512 + $0x38] sm:$0xff]
        %v4521 = vld [vmem:[%s4512 + $0x40] sm:$0xff]
        %v4522 = vld [vmem:[%s4512 + $0x48] sm:$0xff]
        %v4523 = vld [vmem:[%s4512 + $0x50] sm:$0xff]
        %v4524 = vld [vmem:[%s4512 + $0x58] sm:$0xff]
        %v4525 = vld [vmem:[%s4512 + $0x60] sm:$0xff]
        %v4526 = vld [vmem:[%s4512 + $0x68] sm:$0xff]
        %v4527 = vld [vmem:[%s4512 + $0x70] sm:$0xff]
        %v4528 = vld [vmem:[%s4512 + $0x78] sm:$0xff]
        %4529 = vmatprep.subr.mxu0 0.0
        %4530 = vmatpush1.msra.mxu0 %v4528
        %4531 = vmatprep.subr.mxu0 0.0
        %4532 = vmatpush1.msra.mxu0 %v4527
        %4533 = vmatprep.subr.mxu0 0.0
        %4534 = vmatpush1.msra.mxu0 %v4526
        %4535 = vmatprep.subr.mxu0 0.0
        %4536 = vmatpush1.msra.mxu0 %v4525
        %4537 = vmatprep.subr.mxu0 0.0
        %4538 = vmatpush1.msra.mxu0 %v4524
        %4539 = vmatprep.subr.mxu0 0.0
        %4540 = vmatpush1.msra.mxu0 %v4523
        %4541 = vmatprep.subr.mxu0 0.0
        %4542 = vmatpush1.msra.mxu0 %v4522
        %4543 = vmatprep.subr.mxu0 0.0
        %4544 = vmatpush1.msra.mxu0 %v4521
        %4545 = vmatprep.subr.mxu0 0.0
        %4546 = vmatpush1.msra.mxu0 %v4520
        %4547 = vmatprep.subr.mxu0 0.0
        %4548 = vmatpush1.msra.mxu0 %v4519
        %4549 = vmatprep.subr.mxu0 0.0
        %4550 = vmatpush1.msra.mxu0 %v4518
        %4551 = vmatprep.subr.mxu0 0.0
        %4552 = vmatpush1.msra.mxu0 %v4517
        %4553 = vmatprep.subr.mxu0 0.0
        %4554 = vmatpush1.msra.mxu0 %v4516
        %4555 = vmatprep.subr.mxu0 0.0
        %4556 = vmatpush1.msra.mxu0 %v4515
        %4557 = vmatprep.subr.mxu0 0.0
        %4558 = vmatpush1.msra.mxu0 %v4514
        %4559 = vmatprep.subr.mxu0 0.0
        %4560 = vmatpush1.msra.mxu0 %v4513
        %4561 = vmatprep.subr.mxu0 0.0
        %4562 = vmatpush2.msra.mxu0 0.0
        %4563 = vmatprep.subr.mxu0 0.0
        %4564 = vmatpush2.msra.mxu0 0.0
        %4565 = vmatprep.subr.mxu0 0.0
        %4566 = vmatpush2.msra.mxu0 0.0
        %4567 = vmatprep.subr.mxu0 0.0
        %4568 = vmatpush2.msra.mxu0 0.0
        %4569 = vmatprep.subr.mxu0 0.0
        %4570 = vmatpush2.msra.mxu0 0.0
        %4571 = vmatprep.subr.mxu0 0.0
        %4572 = vmatpush2.msra.mxu0 0.0
        %4573 = vmatprep.subr.mxu0 0.0
        %4574 = vmatpush2.msra.mxu0 0.0
        %4575 = vmatprep.subr.mxu0 0.0
        %4576 = vmatpush2.msra.mxu0 0.0
        %4577 = vmatprep.subr.mxu0 0.0
        %4578 = vmatpush2.msra.mxu0 0.0
        %4579 = vmatprep.subr.mxu0 0.0
        %4580 = vmatpush2.msra.mxu0 0.0
        %4581 = vmatprep.subr.mxu0 0.0
        %4582 = vmatpush2.msra.mxu0 0.0
        %4583 = vmatprep.subr.mxu0 0.0
        %4584 = vmatpush2.msra.mxu0 0.0
        %4585 = vmatprep.subr.mxu0 0.0
        %4586 = vmatpush2.msra.mxu0 0.0
        %4587 = vmatprep.subr.mxu0 0.0
        %4588 = vmatpush2.msra.mxu0 0.0
        %4589 = vmatprep.subr.mxu0 0.0
        %4590 = vmatpush2.msra.mxu0 0.0
        %4591 = vmatprep.subr.mxu0 0.0
        %4592 = vmatpush2.msra.mxu0 0.0
        %4593 = vmatprep.mubr.f32.mxu0 0.0
        %4594 = vmatmul.mubr.f32.gmra.mxu0 %v4511
        %v4595 = vpop.f32.mrf.mxu0
        %v4596 = vadd.f32 0.0, %v4595
        %v4597 = vpop.f32.mrf.mxu0
        %4598 = vdwg.mxu0
        %v4599 = vadd.f32 %v4508, %v4596
        %v4600 = vld [vmem:[#allocation22] sm:$0x1]
        %v4602 = vlaneseq
        %v4603 = vshrl.u32 %v4602, 7
        %v4604 = vsub.s32 0, %v4603
        %v4605 = vrot.slane %v4600, %v4604
        %v4607 = vadd.f32 %v4599, %v4605
        %v4608 = vmax.f32 %v4607, 0.0
        %v4609 = vadd.f32 %v4608, %v4060
        %v4610 = vld [vmem:[#allocation28] sm:$0x1]
        %v4612 = vlaneseq
        %v4613 = vshrl.u32 %v4612, 7
        %v4614 = vsub.s32 0, %v4613
        %v4615 = vrot.slane %v4610, %v4614
        %v4617 = vmul.f32 %v4609, %v4615
        %v4618 = vld [vmem:[%s18] sm:$0x1]
        %v4620 = vlaneseq
        %v4621 = vshrl.u32 %v4620, 7
        %v4622 = vsub.s32 0, %v4621
        %v4623 = vrot.slane %v4618, %v4622
        %v4625 = vadd.f32 %v4617, %v4623
        %v4626 = vmax.f32 %v4625, 0.0
        %4627 = vst [vmem:[#allocation4 + $0x8] sm:$0xff] %v4626
        %v4628 = vld [vmem:[#allocation4 + $0x7] sm:$0xff]
        %v4629 = vld [vmem:[#allocation24] sm:$0xff]
        %v4630 = vld [vmem:[#allocation24 + $0x8] sm:$0xff]
        %v4631 = vld [vmem:[#allocation24 + $0x10] sm:$0xff]
        %v4632 = vld [vmem:[#allocation24 + $0x18] sm:$0xff]
        %v4633 = vld [vmem:[#allocation24 + $0x20] sm:$0xff]
        %v4634 = vld [vmem:[#allocation24 + $0x28] sm:$0xff]
        %v4635 = vld [vmem:[#allocation24 + $0x30] sm:$0xff]
        %v4636 = vld [vmem:[#allocation24 + $0x38] sm:$0xff]
        %v4637 = vld [vmem:[#allocation24 + $0x40] sm:$0xff]
        %v4638 = vld [vmem:[#allocation24 + $0x48] sm:$0xff]
        %v4639 = vld [vmem:[#allocation24 + $0x50] sm:$0xff]
        %v4640 = vld [vmem:[#allocation24 + $0x58] sm:$0xff]
        %v4641 = vld [vmem:[#allocation24 + $0x60] sm:$0xff]
        %v4642 = vld [vmem:[#allocation24 + $0x68] sm:$0xff]
        %v4643 = vld [vmem:[#allocation24 + $0x70] sm:$0xff]
        %v4644 = vld [vmem:[#allocation24 + $0x78] sm:$0xff]
        %v4645 = vld [vmem:[#allocation24 + $0x80] sm:$0xff]
        %v4646 = vld [vmem:[#allocation24 + $0x88] sm:$0xff]
        %v4647 = vld [vmem:[#allocation24 + $0x90] sm:$0xff]
        %v4648 = vld [vmem:[#allocation24 + $0x98] sm:$0xff]
        %v4649 = vld [vmem:[#allocation24 + $0xa0] sm:$0xff]
        %v4650 = vld [vmem:[#allocation24 + $0xa8] sm:$0xff]
        %v4651 = vld [vmem:[#allocation24 + $0xb0] sm:$0xff]
        %v4652 = vld [vmem:[#allocation24 + $0xb8] sm:$0xff]
        %v4653 = vld [vmem:[#allocation24 + $0xc0] sm:$0xff]
        %v4654 = vld [vmem:[#allocation24 + $0xc8] sm:$0xff]
        %v4655 = vld [vmem:[#allocation24 + $0xd0] sm:$0xff]
        %v4656 = vld [vmem:[#allocation24 + $0xd8] sm:$0xff]
        %v4657 = vld [vmem:[#allocation24 + $0xe0] sm:$0xff]
        %v4658 = vld [vmem:[#allocation24 + $0xe8] sm:$0xff]
        %v4659 = vld [vmem:[#allocation24 + $0xf0] sm:$0xff]
        %v4660 = vld [vmem:[#allocation24 + $0xf8] sm:$0xff]
        %v4661 = vld [vmem:[#allocation4 + $0x8] sm:$0xff]
        %s4662 = scalar_lea.vmem [#allocation24], 256
        %v4663 = vld [vmem:[%s4662] sm:$0xff]
        %v4664 = vld [vmem:[%s4662 + $0x8] sm:$0xff]
        %v4665 = vld [vmem:[%s4662 + $0x10] sm:$0xff]
        %v4666 = vld [vmem:[%s4662 + $0x18] sm:$0xff]
        %v4667 = vld [vmem:[%s4662 + $0x20] sm:$0xff]
        %v4668 = vld [vmem:[%s4662 + $0x28] sm:$0xff]
        %v4669 = vld [vmem:[%s4662 + $0x30] sm:$0xff]
        %v4670 = vld [vmem:[%s4662 + $0x38] sm:$0xff]
        %v4671 = vld [vmem:[%s4662 + $0x40] sm:$0xff]
        %v4672 = vld [vmem:[%s4662 + $0x48] sm:$0xff]
        %v4673 = vld [vmem:[%s4662 + $0x50] sm:$0xff]
        %v4674 = vld [vmem:[%s4662 + $0x58] sm:$0xff]
        %v4675 = vld [vmem:[%s4662 + $0x60] sm:$0xff]
        %v4676 = vld [vmem:[%s4662 + $0x68] sm:$0xff]
        %v4677 = vld [vmem:[%s4662 + $0x70] sm:$0xff]
        %v4678 = vld [vmem:[%s4662 + $0x78] sm:$0xff]
        %v4679 = vld [vmem:[%s4662 + $0x80] sm:$0xff]
        %v4680 = vld [vmem:[%s4662 + $0x88] sm:$0xff]
        %v4681 = vld [vmem:[%s4662 + $0x90] sm:$0xff]
        %v4682 = vld [vmem:[%s4662 + $0x98] sm:$0xff]
        %v4683 = vld [vmem:[%s4662 + $0xa0] sm:$0xff]
        %v4684 = vld [vmem:[%s4662 + $0xa8] sm:$0xff]
        %v4685 = vld [vmem:[%s4662 + $0xb0] sm:$0xff]
        %v4686 = vld [vmem:[%s4662 + $0xb8] sm:$0xff]
        %v4687 = vld [vmem:[%s4662 + $0xc0] sm:$0xff]
        %v4688 = vld [vmem:[%s4662 + $0xc8] sm:$0xff]
        %v4689 = vld [vmem:[%s4662 + $0xd0] sm:$0xff]
        %v4690 = vld [vmem:[%s4662 + $0xd8] sm:$0xff]
        %v4691 = vld [vmem:[%s4662 + $0xe0] sm:$0xff]
        %v4692 = vld [vmem:[%s4662 + $0xe8] sm:$0xff]
        %v4693 = vld [vmem:[%s4662 + $0xf0] sm:$0xff]
        %v4694 = vld [vmem:[%s4662 + $0xf8] sm:$0xff]
        %4695 = vmatprep.subr.mxu0 %v4694
        %4696 = vmatpush1.msra.mxu0 %v4693
        %4697 = vmatprep.subr.mxu0 %v4692
        %4698 = vmatpush1.msra.mxu0 %v4691
        %4699 = vmatprep.subr.mxu0 %v4690
        %4700 = vmatpush1.msra.mxu0 %v4689
        %4701 = vmatprep.subr.mxu0 %v4688
        %4702 = vmatpush1.msra.mxu0 %v4687
        %4703 = vmatprep.subr.mxu0 %v4686
        %4704 = vmatpush1.msra.mxu0 %v4685
        %4705 = vmatprep.subr.mxu0 %v4684
        %4706 = vmatpush1.msra.mxu0 %v4683
        %4707 = vmatprep.subr.mxu0 %v4682
        %4708 = vmatpush1.msra.mxu0 %v4681
        %4709 = vmatprep.subr.mxu0 %v4680
        %4710 = vmatpush1.msra.mxu0 %v4679
        %4711 = vmatprep.subr.mxu0 %v4678
        %4712 = vmatpush1.msra.mxu0 %v4677
        %4713 = vmatprep.subr.mxu0 %v4676
        %4714 = vmatpush1.msra.mxu0 %v4675
        %4715 = vmatprep.subr.mxu0 %v4674
        %4716 = vmatpush1.msra.mxu0 %v4673
        %4717 = vmatprep.subr.mxu0 %v4672
        %4718 = vmatpush1.msra.mxu0 %v4671
        %4719 = vmatprep.subr.mxu0 %v4670
        %4720 = vmatpush1.msra.mxu0 %v4669
        %4721 = vmatprep.subr.mxu0 %v4668
        %4722 = vmatpush1.msra.mxu0 %v4667
        %4723 = vmatprep.subr.mxu0 %v4666
        %4724 = vmatpush1.msra.mxu0 %v4665
        %4725 = vmatprep.subr.mxu0 %v4664
        %4726 = vmatpush1.msra.mxu0 %v4663
        %4727 = vmatprep.subr.mxu0 0.0
        %4728 = vmatpush2.msra.mxu0 0.0
        %4729 = vmatprep.subr.mxu0 0.0
        %4730 = vmatpush2.msra.mxu0 0.0
        %4731 = vmatprep.subr.mxu0 0.0
        %4732 = vmatpush2.msra.mxu0 0.0
        %4733 = vmatprep.subr.mxu0 0.0
        %4734 = vmatpush2.msra.mxu0 0.0
        %4735 = vmatprep.subr.mxu0 0.0
        %4736 = vmatpush2.msra.mxu0 0.0
        %4737 = vmatprep.subr.mxu0 0.0
        %4738 = vmatpush2.msra.mxu0 0.0
        %4739 = vmatprep.subr.mxu0 0.0
        %4740 = vmatpush2.msra.mxu0 0.0
        %4741 = vmatprep.subr.mxu0 0.0
        %4742 = vmatpush2.msra.mxu0 0.0
        %4743 = vmatprep.subr.mxu0 0.0
        %4744 = vmatpush2.msra.mxu0 0.0
        %4745 = vmatprep.subr.mxu0 0.0
        %4746 = vmatpush2.msra.mxu0 0.0
        %4747 = vmatprep.subr.mxu0 0.0
        %4748 = vmatpush2.msra.mxu0 0.0
        %4749 = vmatprep.subr.mxu0 0.0
        %4750 = vmatpush2.msra.mxu0 0.0
        %4751 = vmatprep.subr.mxu0 0.0
        %4752 = vmatpush2.msra.mxu0 0.0
        %4753 = vmatprep.subr.mxu0 0.0
        %4754 = vmatpush2.msra.mxu0 0.0
        %4755 = vmatprep.subr.mxu0 0.0
        %4756 = vmatpush2.msra.mxu0 0.0
        %4757 = vmatprep.subr.mxu0 0.0
        %4758 = vmatpush2.msra.mxu0 0.0
        %4759 = vmatprep.mubr.f32.mxu0 0.0
        %4760 = vmatmul.mubr.f32.gmra.mxu0 %v4661
        %v4761 = vpop.f32.mrf.mxu0
        %v4762 = vadd.f32 0.0, %v4761
        %v4763 = vpop.f32.mrf.mxu0
        %v4764 = vadd.f32 0.0, %v4763
        %4765 = vdwg.mxu0
        %4766 = vmatprep.subr.mxu0 %v4660
        %4767 = vmatpush1.msra.mxu0 %v4659
        %4768 = vmatprep.subr.mxu0 %v4658
        %4769 = vmatpush1.msra.mxu0 %v4657
        %4770 = vmatprep.subr.mxu0 %v4656
        %4771 = vmatpush1.msra.mxu0 %v4655
        %4772 = vmatprep.subr.mxu0 %v4654
        %4773 = vmatpush1.msra.mxu0 %v4653
        %4774 = vmatprep.subr.mxu0 %v4652
        %4775 = vmatpush1.msra.mxu0 %v4651
        %4776 = vmatprep.subr.mxu0 %v4650
        %4777 = vmatpush1.msra.mxu0 %v4649
        %4778 = vmatprep.subr.mxu0 %v4648
        %4779 = vmatpush1.msra.mxu0 %v4647
        %4780 = vmatprep.subr.mxu0 %v4646
        %4781 = vmatpush1.msra.mxu0 %v4645
        %4782 = vmatprep.subr.mxu0 %v4644
        %4783 = vmatpush1.msra.mxu0 %v4643
        %4784 = vmatprep.subr.mxu0 %v4642
        %4785 = vmatpush1.msra.mxu0 %v4641
        %4786 = vmatprep.subr.mxu0 %v4640
        %4787 = vmatpush1.msra.mxu0 %v4639
        %4788 = vmatprep.subr.mxu0 %v4638
        %4789 = vmatpush1.msra.mxu0 %v4637
        %4790 = vmatprep.subr.mxu0 %v4636
        %4791 = vmatpush1.msra.mxu0 %v4635
        %4792 = vmatprep.subr.mxu0 %v4634
        %4793 = vmatpush1.msra.mxu0 %v4633
        %4794 = vmatprep.subr.mxu0 %v4632
        %4795 = vmatpush1.msra.mxu0 %v4631
        %4796 = vmatprep.subr.mxu0 %v4630
        %4797 = vmatpush1.msra.mxu0 %v4629
        %4798 = vmatprep.subr.mxu0 0.0
        %4799 = vmatpush2.msra.mxu0 0.0
        %4800 = vmatprep.subr.mxu0 0.0
        %4801 = vmatpush2.msra.mxu0 0.0
        %4802 = vmatprep.subr.mxu0 0.0
        %4803 = vmatpush2.msra.mxu0 0.0
        %4804 = vmatprep.subr.mxu0 0.0
        %4805 = vmatpush2.msra.mxu0 0.0
        %4806 = vmatprep.subr.mxu0 0.0
        %4807 = vmatpush2.msra.mxu0 0.0
        %4808 = vmatprep.subr.mxu0 0.0
        %4809 = vmatpush2.msra.mxu0 0.0
        %4810 = vmatprep.subr.mxu0 0.0
        %4811 = vmatpush2.msra.mxu0 0.0
        %4812 = vmatprep.subr.mxu0 0.0
        %4813 = vmatpush2.msra.mxu0 0.0
        %4814 = vmatprep.subr.mxu0 0.0
        %4815 = vmatpush2.msra.mxu0 0.0
        %4816 = vmatprep.subr.mxu0 0.0
        %4817 = vmatpush2.msra.mxu0 0.0
        %4818 = vmatprep.subr.mxu0 0.0
        %4819 = vmatpush2.msra.mxu0 0.0
        %4820 = vmatprep.subr.mxu0 0.0
        %4821 = vmatpush2.msra.mxu0 0.0
        %4822 = vmatprep.subr.mxu0 0.0
        %4823 = vmatpush2.msra.mxu0 0.0
        %4824 = vmatprep.subr.mxu0 0.0
        %4825 = vmatpush2.msra.mxu0 0.0
        %4826 = vmatprep.subr.mxu0 0.0
        %4827 = vmatpush2.msra.mxu0 0.0
        %4828 = vmatprep.subr.mxu0 0.0
        %4829 = vmatpush2.msra.mxu0 0.0
        %4830 = vmatprep.mubr.f32.mxu0 0.0
        %4831 = vmatmul.mubr.f32.gmra.mxu0 %v4628
        %v4832 = vpop.f32.mrf.mxu0
        %v4833 = vadd.f32 %v4762, %v4832
        %v4834 = vpop.f32.mrf.mxu0
        %v4835 = vadd.f32 %v4764, %v4834
        %4836 = vdwg.mxu0
        %v4837 = vld [vmem:[#allocation4 + $0x9] sm:$0xff]
        %s4838 = scalar_lea.vmem [#allocation24], 512
        %v4839 = vld [vmem:[%s4838] sm:$0xff]
        %v4840 = vld [vmem:[%s4838 + $0x8] sm:$0xff]
        %v4841 = vld [vmem:[%s4838 + $0x10] sm:$0xff]
        %v4842 = vld [vmem:[%s4838 + $0x18] sm:$0xff]
        %v4843 = vld [vmem:[%s4838 + $0x20] sm:$0xff]
        %v4844 = vld [vmem:[%s4838 + $0x28] sm:$0xff]
        %v4845 = vld [vmem:[%s4838 + $0x30] sm:$0xff]
        %v4846 = vld [vmem:[%s4838 + $0x38] sm:$0xff]
        %v4847 = vld [vmem:[%s4838 + $0x40] sm:$0xff]
        %v4848 = vld [vmem:[%s4838 + $0x48] sm:$0xff]
        %v4849 = vld [vmem:[%s4838 + $0x50] sm:$0xff]
        %v4850 = vld [vmem:[%s4838 + $0x58] sm:$0xff]
        %v4851 = vld [vmem:[%s4838 + $0x60] sm:$0xff]
        %v4852 = vld [vmem:[%s4838 + $0x68] sm:$0xff]
        %v4853 = vld [vmem:[%s4838 + $0x70] sm:$0xff]
        %v4854 = vld [vmem:[%s4838 + $0x78] sm:$0xff]
        %v4855 = vld [vmem:[%s4838 + $0x80] sm:$0xff]
        %v4856 = vld [vmem:[%s4838 + $0x88] sm:$0xff]
        %v4857 = vld [vmem:[%s4838 + $0x90] sm:$0xff]
        %v4858 = vld [vmem:[%s4838 + $0x98] sm:$0xff]
        %v4859 = vld [vmem:[%s4838 + $0xa0] sm:$0xff]
        %v4860 = vld [vmem:[%s4838 + $0xa8] sm:$0xff]
        %v4861 = vld [vmem:[%s4838 + $0xb0] sm:$0xff]
        %v4862 = vld [vmem:[%s4838 + $0xb8] sm:$0xff]
        %v4863 = vld [vmem:[%s4838 + $0xc0] sm:$0xff]
        %v4864 = vld [vmem:[%s4838 + $0xc8] sm:$0xff]
        %v4865 = vld [vmem:[%s4838 + $0xd0] sm:$0xff]
        %v4866 = vld [vmem:[%s4838 + $0xd8] sm:$0xff]
        %v4867 = vld [vmem:[%s4838 + $0xe0] sm:$0xff]
        %v4868 = vld [vmem:[%s4838 + $0xe8] sm:$0xff]
        %v4869 = vld [vmem:[%s4838 + $0xf0] sm:$0xff]
        %v4870 = vld [vmem:[%s4838 + $0xf8] sm:$0xff]
        %4871 = vmatprep.subr.mxu0 %v4870
        %4872 = vmatpush1.msra.mxu0 %v4869
        %4873 = vmatprep.subr.mxu0 %v4868
        %4874 = vmatpush1.msra.mxu0 %v4867
        %4875 = vmatprep.subr.mxu0 %v4866
        %4876 = vmatpush1.msra.mxu0 %v4865
        %4877 = vmatprep.subr.mxu0 %v4864
        %4878 = vmatpush1.msra.mxu0 %v4863
        %4879 = vmatprep.subr.mxu0 %v4862
        %4880 = vmatpush1.msra.mxu0 %v4861
        %4881 = vmatprep.subr.mxu0 %v4860
        %4882 = vmatpush1.msra.mxu0 %v4859
        %4883 = vmatprep.subr.mxu0 %v4858
        %4884 = vmatpush1.msra.mxu0 %v4857
        %4885 = vmatprep.subr.mxu0 %v4856
        %4886 = vmatpush1.msra.mxu0 %v4855
        %4887 = vmatprep.subr.mxu0 %v4854
        %4888 = vmatpush1.msra.mxu0 %v4853
        %4889 = vmatprep.subr.mxu0 %v4852
        %4890 = vmatpush1.msra.mxu0 %v4851
        %4891 = vmatprep.subr.mxu0 %v4850
        %4892 = vmatpush1.msra.mxu0 %v4849
        %4893 = vmatprep.subr.mxu0 %v4848
        %4894 = vmatpush1.msra.mxu0 %v4847
        %4895 = vmatprep.subr.mxu0 %v4846
        %4896 = vmatpush1.msra.mxu0 %v4845
        %4897 = vmatprep.subr.mxu0 %v4844
        %4898 = vmatpush1.msra.mxu0 %v4843
        %4899 = vmatprep.subr.mxu0 %v4842
        %4900 = vmatpush1.msra.mxu0 %v4841
        %4901 = vmatprep.subr.mxu0 %v4840
        %4902 = vmatpush1.msra.mxu0 %v4839
        %4903 = vmatprep.subr.mxu0 0.0
        %4904 = vmatpush2.msra.mxu0 0.0
        %4905 = vmatprep.subr.mxu0 0.0
        %4906 = vmatpush2.msra.mxu0 0.0
        %4907 = vmatprep.subr.mxu0 0.0
        %4908 = vmatpush2.msra.mxu0 0.0
        %4909 = vmatprep.subr.mxu0 0.0
        %4910 = vmatpush2.msra.mxu0 0.0
        %4911 = vmatprep.subr.mxu0 0.0
        %4912 = vmatpush2.msra.mxu0 0.0
        %4913 = vmatprep.subr.mxu0 0.0
        %4914 = vmatpush2.msra.mxu0 0.0
        %4915 = vmatprep.subr.mxu0 0.0
        %4916 = vmatpush2.msra.mxu0 0.0
        %4917 = vmatprep.subr.mxu0 0.0
        %4918 = vmatpush2.msra.mxu0 0.0
        %4919 = vmatprep.subr.mxu0 0.0
        %4920 = vmatpush2.msra.mxu0 0.0
        %4921 = vmatprep.subr.mxu0 0.0
        %4922 = vmatpush2.msra.mxu0 0.0
        %4923 = vmatprep.subr.mxu0 0.0
        %4924 = vmatpush2.msra.mxu0 0.0
        %4925 = vmatprep.subr.mxu0 0.0
        %4926 = vmatpush2.msra.mxu0 0.0
        %4927 = vmatprep.subr.mxu0 0.0
        %4928 = vmatpush2.msra.mxu0 0.0
        %4929 = vmatprep.subr.mxu0 0.0
        %4930 = vmatpush2.msra.mxu0 0.0
        %4931 = vmatprep.subr.mxu0 0.0
        %4932 = vmatpush2.msra.mxu0 0.0
        %4933 = vmatprep.subr.mxu0 0.0
        %4934 = vmatpush2.msra.mxu0 0.0
        %4935 = vmatprep.mubr.f32.mxu0 0.0
        %4936 = vmatmul.mubr.f32.gmra.mxu0 %v4837
        %v4937 = vpop.f32.mrf.mxu0
        %v4938 = vadd.f32 0.0, %v4937
        %v4939 = vpop.f32.mrf.mxu0
        %v4940 = vadd.f32 0.0, %v4939
        %4941 = vdwg.mxu0
        %v4942 = vadd.f32 %v4833, %v4938
        %v4943 = vadd.f32 %v4835, %v4940
        %v4944 = vld [vmem:[#allocation25] sm:$0x3]
        %v4946 = vlaneseq
        %v4947 = vshrl.u32 %v4946, 7
        %v4948 = vsub.s32 0, %v4947
        %v4949 = vrot.slane %v4944, %v4948
        %v4950 = vlaneseq
        %v4951 = vshrl.u32 %v4950, 7
        %v4952 = vsub.s32 1, %v4951
        %v4953 = vrot.slane %v4944, %v4952
        %v4956 = vadd.f32 %v4942, %v4949
        %v4957 = vadd.f32 %v4943, %v4953
        %v4958 = vmax.f32 %v4956, 0.0
        %v4959 = vmax.f32 %v4957, 0.0
        %v4960 = vld [vmem:[#allocation34] sm:$0xff]
        %v4961 = vld [vmem:[#allocation34 + $0x8] sm:$0xff]
        %v4962 = vld [vmem:[#allocation34 + $0x10] sm:$0xff]
        %v4963 = vld [vmem:[#allocation34 + $0x18] sm:$0xff]
        %v4964 = vld [vmem:[#allocation34 + $0x20] sm:$0xff]
        %v4965 = vld [vmem:[#allocation34 + $0x28] sm:$0xff]
        %v4966 = vld [vmem:[#allocation34 + $0x30] sm:$0xff]
        %v4967 = vld [vmem:[#allocation34 + $0x38] sm:$0xff]
        %v4968 = vld [vmem:[#allocation34 + $0x40] sm:$0xff]
        %v4969 = vld [vmem:[#allocation34 + $0x48] sm:$0xff]
        %v4970 = vld [vmem:[#allocation34 + $0x50] sm:$0xff]
        %v4971 = vld [vmem:[#allocation34 + $0x58] sm:$0xff]
        %v4972 = vld [vmem:[#allocation34 + $0x60] sm:$0xff]
        %v4973 = vld [vmem:[#allocation34 + $0x68] sm:$0xff]
        %v4974 = vld [vmem:[#allocation34 + $0x70] sm:$0xff]
        %v4975 = vld [vmem:[#allocation34 + $0x78] sm:$0xff]
        %v4976 = vld [vmem:[#allocation34 + $0x80] sm:$0xff]
        %v4977 = vld [vmem:[#allocation34 + $0x88] sm:$0xff]
        %v4978 = vld [vmem:[#allocation34 + $0x90] sm:$0xff]
        %v4979 = vld [vmem:[#allocation34 + $0x98] sm:$0xff]
        %v4980 = vld [vmem:[#allocation34 + $0xa0] sm:$0xff]
        %v4981 = vld [vmem:[#allocation34 + $0xa8] sm:$0xff]
        %v4982 = vld [vmem:[#allocation34 + $0xb0] sm:$0xff]
        %v4983 = vld [vmem:[#allocation34 + $0xb8] sm:$0xff]
        %v4984 = vld [vmem:[#allocation34 + $0xc0] sm:$0xff]
        %v4985 = vld [vmem:[#allocation34 + $0xc8] sm:$0xff]
        %v4986 = vld [vmem:[#allocation34 + $0xd0] sm:$0xff]
        %v4987 = vld [vmem:[#allocation34 + $0xd8] sm:$0xff]
        %v4988 = vld [vmem:[#allocation34 + $0xe0] sm:$0xff]
        %v4989 = vld [vmem:[#allocation34 + $0xe8] sm:$0xff]
        %v4990 = vld [vmem:[#allocation34 + $0xf0] sm:$0xff]
        %v4991 = vld [vmem:[#allocation34 + $0xf8] sm:$0xff]
        %4992 = vmatprep.subr.mxu0 0.0
        %4993 = vmatpush1.msra.mxu0 %v4975
        %4994 = vmatprep.subr.mxu0 0.0
        %4995 = vmatpush1.msra.mxu0 %v4974
        %4996 = vmatprep.subr.mxu0 0.0
        %4997 = vmatpush1.msra.mxu0 %v4973
        %4998 = vmatprep.subr.mxu0 0.0
        %4999 = vmatpush1.msra.mxu0 %v4972
        %5000 = vmatprep.subr.mxu0 0.0
        %5001 = vmatpush1.msra.mxu0 %v4971
        %5002 = vmatprep.subr.mxu0 0.0
        %5003 = vmatpush1.msra.mxu0 %v4970
        %5004 = vmatprep.subr.mxu0 0.0
        %5005 = vmatpush1.msra.mxu0 %v4969
        %5006 = vmatprep.subr.mxu0 0.0
        %5007 = vmatpush1.msra.mxu0 %v4968
        %5008 = vmatprep.subr.mxu0 0.0
        %5009 = vmatpush1.msra.mxu0 %v4967
        %5010 = vmatprep.subr.mxu0 0.0
        %5011 = vmatpush1.msra.mxu0 %v4966
        %5012 = vmatprep.subr.mxu0 0.0
        %5013 = vmatpush1.msra.mxu0 %v4965
        %5014 = vmatprep.subr.mxu0 0.0
        %5015 = vmatpush1.msra.mxu0 %v4964
        %5016 = vmatprep.subr.mxu0 0.0
        %5017 = vmatpush1.msra.mxu0 %v4963
        %5018 = vmatprep.subr.mxu0 0.0
        %5019 = vmatpush1.msra.mxu0 %v4962
        %5020 = vmatprep.subr.mxu0 0.0
        %5021 = vmatpush1.msra.mxu0 %v4961
        %5022 = vmatprep.subr.mxu0 0.0
        %5023 = vmatpush1.msra.mxu0 %v4960
        %5024 = vmatprep.subr.mxu0 0.0
        %5025 = vmatpush2.msra.mxu0 %v4991
        %5026 = vmatprep.subr.mxu0 0.0
        %5027 = vmatpush2.msra.mxu0 %v4990
        %5028 = vmatprep.subr.mxu0 0.0
        %5029 = vmatpush2.msra.mxu0 %v4989
        %5030 = vmatprep.subr.mxu0 0.0
        %5031 = vmatpush2.msra.mxu0 %v4988
        %5032 = vmatprep.subr.mxu0 0.0
        %5033 = vmatpush2.msra.mxu0 %v4987
        %5034 = vmatprep.subr.mxu0 0.0
        %5035 = vmatpush2.msra.mxu0 %v4986
        %5036 = vmatprep.subr.mxu0 0.0
        %5037 = vmatpush2.msra.mxu0 %v4985
        %5038 = vmatprep.subr.mxu0 0.0
        %5039 = vmatpush2.msra.mxu0 %v4984
        %5040 = vmatprep.subr.mxu0 0.0
        %5041 = vmatpush2.msra.mxu0 %v4983
        %5042 = vmatprep.subr.mxu0 0.0
        %5043 = vmatpush2.msra.mxu0 %v4982
        %5044 = vmatprep.subr.mxu0 0.0
        %5045 = vmatpush2.msra.mxu0 %v4981
        %5046 = vmatprep.subr.mxu0 0.0
        %5047 = vmatpush2.msra.mxu0 %v4980
        %5048 = vmatprep.subr.mxu0 0.0
        %5049 = vmatpush2.msra.mxu0 %v4979
        %5050 = vmatprep.subr.mxu0 0.0
        %5051 = vmatpush2.msra.mxu0 %v4978
        %5052 = vmatprep.subr.mxu0 0.0
        %5053 = vmatpush2.msra.mxu0 %v4977
        %5054 = vmatprep.subr.mxu0 0.0
        %5055 = vmatpush2.msra.mxu0 %v4976
        %5056 = vmatprep.mubr.f32.mxu0 %v4959
        %5057 = vmatmul.mubr.f32.gmra.mxu0 %v4958
        %v5058 = vpop.f32.mrf.mxu0
        %v5059 = vadd.f32 0.0, %v5058
        %v5060 = vpop.f32.mrf.mxu0
        %5061 = vdwg.mxu0
        %s5062 = scalar_lea.vmem [#allocation34], 256
        %v5063 = vld [vmem:[%s5062] sm:$0xff]
        %v5064 = vld [vmem:[%s5062 + $0x8] sm:$0xff]
        %v5065 = vld [vmem:[%s5062 + $0x10] sm:$0xff]
        %v5066 = vld [vmem:[%s5062 + $0x18] sm:$0xff]
        %v5067 = vld [vmem:[%s5062 + $0x20] sm:$0xff]
        %v5068 = vld [vmem:[%s5062 + $0x28] sm:$0xff]
        %v5069 = vld [vmem:[%s5062 + $0x30] sm:$0xff]
        %v5070 = vld [vmem:[%s5062 + $0x38] sm:$0xff]
        %v5071 = vld [vmem:[%s5062 + $0x40] sm:$0xff]
        %v5072 = vld [vmem:[%s5062 + $0x48] sm:$0xff]
        %v5073 = vld [vmem:[%s5062 + $0x50] sm:$0xff]
        %v5074 = vld [vmem:[%s5062 + $0x58] sm:$0xff]
        %v5075 = vld [vmem:[%s5062 + $0x60] sm:$0xff]
        %v5076 = vld [vmem:[%s5062 + $0x68] sm:$0xff]
        %v5077 = vld [vmem:[%s5062 + $0x70] sm:$0xff]
        %v5078 = vld [vmem:[%s5062 + $0x78] sm:$0xff]
        %v5079 = vld [vmem:[%s5062 + $0x80] sm:$0xff]
        %v5080 = vld [vmem:[%s5062 + $0x88] sm:$0xff]
        %v5081 = vld [vmem:[%s5062 + $0x90] sm:$0xff]
        %v5082 = vld [vmem:[%s5062 + $0x98] sm:$0xff]
        %v5083 = vld [vmem:[%s5062 + $0xa0] sm:$0xff]
        %v5084 = vld [vmem:[%s5062 + $0xa8] sm:$0xff]
        %v5085 = vld [vmem:[%s5062 + $0xb0] sm:$0xff]
        %v5086 = vld [vmem:[%s5062 + $0xb8] sm:$0xff]
        %v5087 = vld [vmem:[%s5062 + $0xc0] sm:$0xff]
        %v5088 = vld [vmem:[%s5062 + $0xc8] sm:$0xff]
        %v5089 = vld [vmem:[%s5062 + $0xd0] sm:$0xff]
        %v5090 = vld [vmem:[%s5062 + $0xd8] sm:$0xff]
        %v5091 = vld [vmem:[%s5062 + $0xe0] sm:$0xff]
        %v5092 = vld [vmem:[%s5062 + $0xe8] sm:$0xff]
        %v5093 = vld [vmem:[%s5062 + $0xf0] sm:$0xff]
        %v5094 = vld [vmem:[%s5062 + $0xf8] sm:$0xff]
        %5095 = vmatprep.subr.mxu0 0.0
        %5096 = vmatpush1.msra.mxu0 %v5078
        %5097 = vmatprep.subr.mxu0 0.0
        %5098 = vmatpush1.msra.mxu0 %v5077
        %5099 = vmatprep.subr.mxu0 0.0
        %5100 = vmatpush1.msra.mxu0 %v5076
        %5101 = vmatprep.subr.mxu0 0.0
        %5102 = vmatpush1.msra.mxu0 %v5075
        %5103 = vmatprep.subr.mxu0 0.0
        %5104 = vmatpush1.msra.mxu0 %v5074
        %5105 = vmatprep.subr.mxu0 0.0
        %5106 = vmatpush1.msra.mxu0 %v5073
        %5107 = vmatprep.subr.mxu0 0.0
        %5108 = vmatpush1.msra.mxu0 %v5072
        %5109 = vmatprep.subr.mxu0 0.0
        %5110 = vmatpush1.msra.mxu0 %v5071
        %5111 = vmatprep.subr.mxu0 0.0
        %5112 = vmatpush1.msra.mxu0 %v5070
        %5113 = vmatprep.subr.mxu0 0.0
        %5114 = vmatpush1.msra.mxu0 %v5069
        %5115 = vmatprep.subr.mxu0 0.0
        %5116 = vmatpush1.msra.mxu0 %v5068
        %5117 = vmatprep.subr.mxu0 0.0
        %5118 = vmatpush1.msra.mxu0 %v5067
        %5119 = vmatprep.subr.mxu0 0.0
        %5120 = vmatpush1.msra.mxu0 %v5066
        %5121 = vmatprep.subr.mxu0 0.0
        %5122 = vmatpush1.msra.mxu0 %v5065
        %5123 = vmatprep.subr.mxu0 0.0
        %5124 = vmatpush1.msra.mxu0 %v5064
        %5125 = vmatprep.subr.mxu0 0.0
        %5126 = vmatpush1.msra.mxu0 %v5063
        %5127 = vmatprep.subr.mxu0 0.0
        %5128 = vmatpush2.msra.mxu0 %v5094
        %5129 = vmatprep.subr.mxu0 0.0
        %5130 = vmatpush2.msra.mxu0 %v5093
        %5131 = vmatprep.subr.mxu0 0.0
        %5132 = vmatpush2.msra.mxu0 %v5092
        %5133 = vmatprep.subr.mxu0 0.0
        %5134 = vmatpush2.msra.mxu0 %v5091
        %5135 = vmatprep.subr.mxu0 0.0
        %5136 = vmatpush2.msra.mxu0 %v5090
        %5137 = vmatprep.subr.mxu0 0.0
        %5138 = vmatpush2.msra.mxu0 %v5089
        %5139 = vmatprep.subr.mxu0 0.0
        %5140 = vmatpush2.msra.mxu0 %v5088
        %5141 = vmatprep.subr.mxu0 0.0
        %5142 = vmatpush2.msra.mxu0 %v5087
        %5143 = vmatprep.subr.mxu0 0.0
        %5144 = vmatpush2.msra.mxu0 %v5086
        %5145 = vmatprep.subr.mxu0 0.0
        %5146 = vmatpush2.msra.mxu0 %v5085
        %5147 = vmatprep.subr.mxu0 0.0
        %5148 = vmatpush2.msra.mxu0 %v5084
        %5149 = vmatprep.subr.mxu0 0.0
        %5150 = vmatpush2.msra.mxu0 %v5083
        %5151 = vmatprep.subr.mxu0 0.0
        %5152 = vmatpush2.msra.mxu0 %v5082
        %5153 = vmatprep.subr.mxu0 0.0
        %5154 = vmatpush2.msra.mxu0 %v5081
        %5155 = vmatprep.subr.mxu0 0.0
        %5156 = vmatpush2.msra.mxu0 %v5080
        %5157 = vmatprep.subr.mxu0 0.0
        %5158 = vmatpush2.msra.mxu0 %v5079
        %5159 = vmatprep.mubr.f32.mxu0 %v4959
        %5160 = vmatmul.mubr.f32.gmra.mxu0 %v4958
        %v5161 = vpop.f32.mrf.mxu0
        %v5162 = vadd.f32 0.0, %v5161
        %v5163 = vpop.f32.mrf.mxu0
        %5164 = vdwg.mxu0
        %v5165 = vmax.f32 %v5059, %v5162
        %v5166 = vld [vmem:[#allocation36] sm:$0xf]
        %vm5167 = vcmask 64512
        %v5169 = vsel %vm5167, %v5166, 0
        %5171 = vmatprep.subr.mxu0 0.0
        %5172 = vmatpush1.msra.mxu0 0.0
        %5173 = vmatprep.subr.mxu0 0.0
        %5174 = vmatpush1.msra.mxu0 0.0
        %5175 = vmatprep.subr.mxu0 0.0
        %5176 = vmatpush1.msra.mxu0 0.0
        %5177 = vmatprep.subr.mxu0 0.0
        %5178 = vmatpush1.msra.mxu0 0.0
        %5179 = vmatprep.subr.mxu0 0.0
        %5180 = vmatpush1.msra.mxu0 0.0
        %5181 = vmatprep.subr.mxu0 0.0
        %5182 = vmatpush1.msra.mxu0 0.0
        %5183 = vmatprep.subr.mxu0 0.0
        %5184 = vmatpush1.msra.mxu0 0.0
        %5185 = vmatprep.subr.mxu0 0.0
        %5186 = vmatpush1.msra.mxu0 0.0
        %5187 = vmatprep.subr.mxu0 0.0
        %5188 = vmatpush1.msra.mxu0 0.0
        %5189 = vmatprep.subr.mxu0 0.0
        %5190 = vmatpush1.msra.mxu0 0.0
        %5191 = vmatprep.subr.mxu0 0.0
        %5192 = vmatpush1.msra.mxu0 0.0
        %5193 = vmatprep.subr.mxu0 0.0
        %5194 = vmatpush1.msra.mxu0 0.0
        %5195 = vmatprep.subr.mxu0 0.0
        %5196 = vmatpush1.msra.mxu0 0.0
        %5197 = vmatprep.subr.mxu0 0.0
        %5198 = vmatpush1.msra.mxu0 0.0
        %5199 = vmatprep.subr.mxu0 0.0
        %5200 = vmatpush1.msra.mxu0 0.0
        %5201 = vmatprep.subr.mxu0 0.0
        %5202 = vmatpush1.msra.mxu0 %v5165
        %5203 = vmatprep.subr.mxu0 0.0
        %5204 = vmatpush2.msra.mxu0 0.0
        %5205 = vmatprep.subr.mxu0 0.0
        %5206 = vmatpush2.msra.mxu0 0.0
        %5207 = vmatprep.subr.mxu0 0.0
        %5208 = vmatpush2.msra.mxu0 0.0
        %5209 = vmatprep.subr.mxu0 0.0
        %5210 = vmatpush2.msra.mxu0 0.0
        %5211 = vmatprep.subr.mxu0 0.0
        %5212 = vmatpush2.msra.mxu0 0.0
        %5213 = vmatprep.subr.mxu0 0.0
        %5214 = vmatpush2.msra.mxu0 0.0
        %5215 = vmatprep.subr.mxu0 0.0
        %5216 = vmatpush2.msra.mxu0 0.0
        %5217 = vmatprep.subr.mxu0 0.0
        %5218 = vmatpush2.msra.mxu0 0.0
        %5219 = vmatprep.subr.mxu0 0.0
        %5220 = vmatpush2.msra.mxu0 0.0
        %5221 = vmatprep.subr.mxu0 0.0
        %5222 = vmatpush2.msra.mxu0 0.0
        %5223 = vmatprep.subr.mxu0 0.0
        %5224 = vmatpush2.msra.mxu0 0.0
        %5225 = vmatprep.subr.mxu0 0.0
        %5226 = vmatpush2.msra.mxu0 0.0
        %5227 = vmatprep.subr.mxu0 0.0
        %5228 = vmatpush2.msra.mxu0 0.0
        %5229 = vmatprep.subr.mxu0 0.0
        %5230 = vmatpush2.msra.mxu0 0.0
        %5231 = vmatprep.subr.mxu0 0.0
        %5232 = vmatpush2.msra.mxu0 0.0
        %5233 = vmatprep.subr.mxu0 0.0
        %5234 = vmatpush2.msra.mxu0 0.0
        %5235 = vmatprep.mubr.f32.mxu0 0.0
        %5236 = vmatmul.mubr.f32.gmra.mxu0 %v5169
        %v5237 = vpop.f32.mrf.mxu0
        %v5238 = vadd.f32 0.0, %v5237
        %v5239 = vpop.f32.mrf.mxu0
        %5240 = vdwg.mxu0
        %s5241 = scalar_lea.vmem [#allocation36], 4
        %v5242 = vld [vmem:[%s5241] sm:$0xf]
        %v5244 = vsel %vm5167, %v5242, 0
        %5246 = vmatprep.subr.mxu0 0.0
        %5247 = vmatpush1.msra.mxu0 0.0
        %5248 = vmatprep.subr.mxu0 0.0
        %5249 = vmatpush1.msra.mxu0 0.0
        %5250 = vmatprep.subr.mxu0 0.0
        %5251 = vmatpush1.msra.mxu0 0.0
        %5252 = vmatprep.subr.mxu0 0.0
        %5253 = vmatpush1.msra.mxu0 0.0
        %5254 = vmatprep.subr.mxu0 0.0
        %5255 = vmatpush1.msra.mxu0 0.0
        %5256 = vmatprep.subr.mxu0 0.0
        %5257 = vmatpush1.msra.mxu0 0.0
        %5258 = vmatprep.subr.mxu0 0.0
        %5259 = vmatpush1.msra.mxu0 0.0
        %5260 = vmatprep.subr.mxu0 0.0
        %5261 = vmatpush1.msra.mxu0 0.0
        %5262 = vmatprep.subr.mxu0 0.0
        %5263 = vmatpush1.msra.mxu0 0.0
        %5264 = vmatprep.subr.mxu0 0.0
        %5265 = vmatpush1.msra.mxu0 0.0
        %5266 = vmatprep.subr.mxu0 0.0
        %5267 = vmatpush1.msra.mxu0 0.0
        %5268 = vmatprep.subr.mxu0 0.0
        %5269 = vmatpush1.msra.mxu0 0.0
        %5270 = vmatprep.subr.mxu0 0.0
        %5271 = vmatpush1.msra.mxu0 0.0
        %5272 = vmatprep.subr.mxu0 0.0
        %5273 = vmatpush1.msra.mxu0 0.0
        %5274 = vmatprep.subr.mxu0 0.0
        %5275 = vmatpush1.msra.mxu0 0.0
        %5276 = vmatprep.subr.mxu0 0.0
        %5277 = vmatpush1.msra.mxu0 %v5165
        %5278 = vmatprep.subr.mxu0 0.0
        %5279 = vmatpush2.msra.mxu0 0.0
        %5280 = vmatprep.subr.mxu0 0.0
        %5281 = vmatpush2.msra.mxu0 0.0
        %5282 = vmatprep.subr.mxu0 0.0
        %5283 = vmatpush2.msra.mxu0 0.0
        %5284 = vmatprep.subr.mxu0 0.0
        %5285 = vmatpush2.msra.mxu0 0.0
        %5286 = vmatprep.subr.mxu0 0.0
        %5287 = vmatpush2.msra.mxu0 0.0
        %5288 = vmatprep.subr.mxu0 0.0
        %5289 = vmatpush2.msra.mxu0 0.0
        %5290 = vmatprep.subr.mxu0 0.0
        %5291 = vmatpush2.msra.mxu0 0.0
        %5292 = vmatprep.subr.mxu0 0.0
        %5293 = vmatpush2.msra.mxu0 0.0
        %5294 = vmatprep.subr.mxu0 0.0
        %5295 = vmatpush2.msra.mxu0 0.0
        %5296 = vmatprep.subr.mxu0 0.0
        %5297 = vmatpush2.msra.mxu0 0.0
        %5298 = vmatprep.subr.mxu0 0.0
        %5299 = vmatpush2.msra.mxu0 0.0
        %5300 = vmatprep.subr.mxu0 0.0
        %5301 = vmatpush2.msra.mxu0 0.0
        %5302 = vmatprep.subr.mxu0 0.0
        %5303 = vmatpush2.msra.mxu0 0.0
        %5304 = vmatprep.subr.mxu0 0.0
        %5305 = vmatpush2.msra.mxu0 0.0
        %5306 = vmatprep.subr.mxu0 0.0
        %5307 = vmatpush2.msra.mxu0 0.0
        %5308 = vmatprep.subr.mxu0 0.0
        %5309 = vmatpush2.msra.mxu0 0.0
        %5310 = vmatprep.mubr.f32.mxu0 0.0
        %5311 = vmatmul.mubr.f32.gmra.mxu0 %v5244
        %v5312 = vpop.f32.mrf.mxu0
        %v5313 = vadd.f32 0.0, %v5312
        %v5314 = vpop.f32.mrf.mxu0
        %5315 = vdwg.mxu0
        %v5316 = vmax.f32 %v5238, %v5313
        %5317 = vst [vmem:[%s1056] sm:$0xf] %v5316
        %p5318 = scmp.lt.s32.totalorder %s49, 1
        %s5319 = scalar_select %p5318, %s49, 1
        %s5320 = smul.addr %s5319, 4
        %s5321 = scalar_lea.vmem %s25, %s5320
        // Predicated region
        $region205: #{rpnheatmap_forward.1} parent=119 // pred_check
          %p5322 = pneg %p597
        $region206: #{rpnheatmap_forward.1} parent=119 // pred_check_branch
          %5324 = sbr.rel (%p5322) target = $region208
        $region207: #{rpnheatmap_forward.1} parent=119 // pred_region
          _
        $region208: #{rpnheatmap_forward.1} parent=119 // pred_fallthru
          _
      $region120: #{rpnheatmap_forward.1} parent=5 // pred_fallthru
        _
      %p5325 = scmp.le.s32.totalorder 2, %s44
      // Predicated region
      $region209: #{rpnheatmap_forward.1} parent=5 // pred_check
        %p5326 = pneg %p5325
      $region210: #{rpnheatmap_forward.1} parent=5 // pred_check_branch
        %5328 = sbr.rel (%p5326) target = $region212
      $region211: #{rpnheatmap_forward.1} parent=5 // pred_region
        %s5329 = ssub.s32 %s44, 2
        // Predicated region
        $region213: #{rpnheatmap_forward.1} parent=211 // pred_check
          %p5330 = pneg %p603
        $region214: #{rpnheatmap_forward.1} parent=211 // pred_check_branch
          %5332 = sbr.rel (%p5330) target = $region216
        $region215: #{rpnheatmap_forward.1} parent=211 // pred_region
          %p5333 = scmp.lt.s32.totalorder %s50, 1
          %s5334 = scalar_select %p5333, %s50, 1
          %s5335 = smul.addr %s5334, 4
          %s5336 = scalar_lea.vmem %s25, %s5335
        $region216: #{rpnheatmap_forward.1} parent=211 // pred_fallthru
          _
      $region212: #{rpnheatmap_forward.1} parent=5 // pred_fallthru
        _
    $region6: #{rpnheatmap_forward.1} parent=1 // loop_footer
      %s48 = sadd.s32 1, %s44
    $region7: #{rpnheatmap_forward.1} parent=1 // loop_footer_branch
      %43 = sbr.rel target = $region3
    $region8: #{rpnheatmap_forward.1} parent=1 // loop_exit
      _
    %5337 = vsyncpa [#allocation6], 1
    %s5338 = scalar_lea.sflag [#allocation6], 1
    %5339 = vsyncpa %s5338, 1
    %5340 = vsyncpa [#allocation8], 1
    %5341 = vsyncpa [#allocation11], 1
    %5342 = vsyncpa [#allocation14], 1
    %5343 = vsyncpa [#allocation17], 1
    %5344 = vsyncpa [#allocation20], 1
    %5345 = vsyncpa [#allocation23], 1
    %5346 = vsyncpa [#allocation26], 1
    %5347 = vsyncpa [#allocation29], 1
    %5348 = vsyncpa [#allocation32], 1
    %5349 = vsyncpa [#allocation35], 1

</llo_original>
